<compile_context>
chip_gen: v7x
topology: tpu7x:2x2x1
jax: 0.10.0
libtpu: 0.0.40
codegen_flags: <defaults>
</compile_context>

<pallas_src>
import functools
import math

import jax
import jax.numpy as jnp
import numpy as np
from jax.experimental import pallas as pl
from jax.experimental.pallas import tpu as pltpu

# ----------------------------- configuration (small shapes) -----------------------------
B = 2            # batch
C_IN = 4         # input channels
IMG = 16         # image size
PATCH = 4        # patch size
GRID = IMG // PATCH
N_PATCH = GRID * GRID          # 16
D_EN = 32                      # encoder embed dim  (en_emb_dim)
DEPTH = 2                      # encoder depth
NH_EN = 4                      # encoder heads
D_DE = 32                      # decoder embed dim  (de_emb_dim)
DE_LAYERS = 2                  # decoder layers
NH_DE = 4                      # decoder heads
OUT_DIM = 64                   # decoder_pred out dim
MLP_RATIO = 4.0
MASK_RATIO = 0.75
LN_EPS = 1e-5

_VIT_W = ('ln1_w', 'ln1_b', 'wqkv', 'bqkv', 'wo', 'bo',
          'ln2_w', 'ln2_b', 'w1', 'b1', 'w2', 'b2')
_CA_W = ('ln1_w', 'ln1_b', 'wq', 'bq', 'wk', 'bk', 'wv', 'bv', 'wo', 'bo',
         'ln2_w', 'ln2_b', 'w1', 'b1', 'w2', 'b2')
_N_VIT_W = len(_VIT_W)   # 12
_N_CA_W = len(_CA_W)     # 16


# ----------------------------- in-kernel math helpers -----------------------------
def _layernorm(x, w, b, eps=LN_EPS):
    mu = jnp.mean(x, axis=-1, keepdims=True)
    var = jnp.mean((x - mu) ** 2, axis=-1, keepdims=True)
    return (x - mu) * jax.lax.rsqrt(var + eps) * w + b


def _gelu(x):
    # tanh-approximate GELU: lands the transcendental on the EUP instead of ~12 VALU ops.
    # |delta| vs exact erf-GELU is ~1e-3 absolute — acceptable for fp32 inference.
    c = math.sqrt(2.0 / math.pi)
    return 0.5 * x * (1.0 + jnp.tanh(c * (x + 0.044715 * x * x * x)))


def _mha_into(scr, q, k, v, num_heads):
    """Multi-head attention on 2-D [Nq, D]/[Nk, D]; each head's output is written
    directly into the [Nq, D] VMEM scratch slice (no concat relayout)."""
    d = q.shape[-1]
    dh = d // num_heads
    scale = 1.0 / math.sqrt(dh)
    for h in range(num_heads):
        qh = q[:, h * dh:(h + 1) * dh]
        kh = k[:, h * dh:(h + 1) * dh]
        vh = v[:, h * dh:(h + 1) * dh]
        s = jax.lax.dot_general(qh, kh, (((1,), (1,)), ((), ())),
                                preferred_element_type=jnp.float32) * scale
        s = s - jnp.max(s, axis=-1, keepdims=True)
        p = jnp.exp(s)
        p = p * pl.reciprocal(jnp.sum(p, axis=-1, keepdims=True), approx=True)
        scr[:, h * dh:(h + 1) * dh] = jnp.dot(p, vh, preferred_element_type=jnp.float32)
    return scr[...]


def _vit_block(x, w, attn_scr, num_heads):
    (ln1w, ln1b, wqkv, bqkv, wo, bo, ln2w, ln2b, w1, b1, w2, b2) = w
    d = x.shape[-1]
    h = _layernorm(x, ln1w[...], ln1b[...])
    qkv = jnp.dot(h, wqkv[...], preferred_element_type=jnp.float32) + bqkv[...]
    q, k, v = qkv[:, :d], qkv[:, d:2 * d], qkv[:, 2 * d:]
    attn = _mha_into(attn_scr, q, k, v, num_heads)
    attn = jnp.dot(attn, wo[...], preferred_element_type=jnp.float32) + bo[...]
    x = x + attn
    h2 = _layernorm(x, ln2w[...], ln2b[...])
    m = jnp.dot(h2, w1[...], preferred_element_type=jnp.float32) + b1[...]
    m = _gelu(m)
    m = jnp.dot(m, w2[...], preferred_element_type=jnp.float32) + b2[...]
    return x + m


def _ca_block(qt, mem, w, attn_scr, num_heads):
    # Cross-attention block: query = mask tokens (pre-norm), key/value = encoder memory.
    (ln1w, ln1b, wq, bq, wk, bk, wv, bv, wo, bo, ln2w, ln2b, w1, b1, w2, b2) = w
    qn = _layernorm(qt, ln1w[...], ln1b[...])
    q = jnp.dot(qn, wq[...], preferred_element_type=jnp.float32) + bq[...]
    k = jnp.dot(mem, wk[...], preferred_element_type=jnp.float32) + bk[...]
    v = jnp.dot(mem, wv[...], preferred_element_type=jnp.float32) + bv[...]
    attn = _mha_into(attn_scr, q, k, v, num_heads)
    attn = jnp.dot(attn, wo[...], preferred_element_type=jnp.float32) + bo[...]
    x = qt + attn
    h2 = _layernorm(x, ln2w[...], ln2b[...])
    m = jnp.dot(h2, w1[...], preferred_element_type=jnp.float32) + b1[...]
    m = _gelu(m)
    m = jnp.dot(m, w2[...], preferred_element_type=jnp.float32) + b2[...]
    return x + m


# ----------------------------- fully fused MAE kernel -----------------------------
def _mae_kernel(*refs, depth, de_layers, nh_en, nh_de):
    # Input layout:
    #   [patches_keep, enc_pos_keep, dec_query_pos, dec_memory_pos,
    #    pe_w, pe_b, 12*depth encoder block weights,
    #    enc_ln_w, enc_ln_b, dec_embed_w, dec_embed_b, mask_token,
    #    16*de_layers decoder block weights, dec_ln_w, dec_ln_b, dec_pred_w, dec_pred_b]
    # then: o_ref, attn_scratch_enc, attn_scratch_dec
    patches_ref, pos_ref, qpos_ref, mpos_ref = refs[:4]
    p = 4
    pe_w, pe_b = refs[p], refs[p + 1]
    p += 2
    enc_blk = refs[p:p + _N_VIT_W * depth]
    p += _N_VIT_W * depth
    enc_ln_w, enc_ln_b, dembed_w, dembed_b, mtok = refs[p:p + 5]
    p += 5
    dec_blk = refs[p:p + _N_CA_W * de_layers]
    p += _N_CA_W * de_layers
    dln_w, dln_b, pr_w, pr_b = refs[p:p + 4]
    p += 4
    o_ref = refs[p]
    scr_en = refs[p + 1]
    scr_de = refs[p + 2]

    # ---- encoder: PatchEmbed (Conv2d k=p, s=p == per-token matmul) + pos + ViT blocks + LN ----
    x = (jnp.dot(patches_ref[0], pe_w[...], preferred_element_type=jnp.float32)
         + pe_b[...] + pos_ref[0])
    for l in range(depth):
        x = _vit_block(x, enc_blk[l * _N_VIT_W:(l + 1) * _N_VIT_W], scr_en, nh_en)
    x = _layernorm(x, enc_ln_w[...], enc_ln_b[...])

    # ---- MaeDecoder fused in the same kernel (no HBM round-trip for x_enc) ----
    mem = jnp.dot(x, dembed_w[...], preferred_element_type=jnp.float32) + dembed_b[...]
    qpos = qpos_ref[0]                     # [n_masked, D]
    mpos = mpos_ref[0]                     # [len_keep, D]
    nm = qpos.shape[0]
    qt = jnp.broadcast_to(mtok[...], (nm, mem.shape[-1]))
    for l in range(de_layers):
        qt = qt + qpos                     # cumulative per-layer, matching the reference
        mem = mem + mpos                   # cumulative per-layer, matching the reference
        qt = _ca_block(qt, mem, dec_blk[l * _N_CA_W:(l + 1) * _N_CA_W], scr_de, nh_de)
    qt = _layernorm(qt, dln_w[...], dln_b[...])
    # decoder_pred applied to [memory ; mask tokens] in shuffled order; the per-token linear
    # commutes with the ids_restore gather, which stays in XLA glue outside the kernel.
    x_all = jnp.concatenate([mem, qt], axis=0)
    o_ref[0] = jnp.dot(x_all, pr_w[...], preferred_element_type=jnp.float32) + pr_b[...]


# ----------------------------- pallas_call wrapper -----------------------------
def _weight_spec(w):
    return pl.BlockSpec(w.shape, lambda b, _nd=w.ndim: (0,) * _nd)


def fused_mae(params, patches_keep, pos_keep, query_pos, memory_pos):
    bsz, lk, pd = patches_keep.shape
    nm = query_pos.shape[1]
    n = lk + nm

    weights = [params['pe_w'], params['pe_b']]
    for blk in params['enc_blocks']:
        weights += [blk[k] for k in _VIT_W]
    weights += [params['enc_ln_w'], params['enc_ln_b'],
                params['dec_embed_w'], params['dec_embed_b'], params['mask_token']]
    for blk in params['dec_blocks']:
        weights += [blk[k] for k in _CA_W]
    weights += [params['dec_ln_w'], params['dec_ln_b'],
                params['dec_pred_w'], params['dec_pred_b']]

    in_specs = ([pl.BlockSpec((1, lk, pd), lambda b: (b, 0, 0)),
                 pl.BlockSpec((1, lk, D_EN), lambda b: (b, 0, 0)),
                 pl.BlockSpec((1, nm, D_DE), lambda b: (b, 0, 0)),
                 pl.BlockSpec((1, lk, D_DE), lambda b: (b, 0, 0))]
                + [_weight_spec(w) for w in weights])

    return pl.pallas_call(
        functools.partial(_mae_kernel,
                          depth=len(params['enc_blocks']),
                          de_layers=len(params['dec_blocks']),
                          nh_en=NH_EN, nh_de=NH_DE),
        out_shape=jax.ShapeDtypeStruct((bsz, n, OUT_DIM), jnp.float32),
        grid=(bsz,),
        in_specs=in_specs,
        out_specs=pl.BlockSpec((1, n, OUT_DIM), lambda b: (b, 0, 0)),
        scratch_shapes=[pltpu.VMEM((lk, D_EN), jnp.float32),   # encoder attention scratch
                        pltpu.VMEM((nm, D_DE), jnp.float32)],  # decoder attention scratch
        compiler_params=pltpu.CompilerParams(dimension_semantics=("parallel",)),
    )(patches_keep, pos_keep, query_pos, memory_pos, *weights)


# ----------------------------- parameter init (deterministic, in-script) -----------------------------
def get_posembed(embed_dim, grid_size, temperature=10000.0):
    scale = 2 * math.pi
    num_pos_feats = embed_dim // 2
    y_embed, x_embed = np.meshgrid(np.arange(grid_size, dtype=np.float32),
                                   np.arange(grid_size, dtype=np.float32), indexing='ij')
    y_embed = y_embed / (grid_size + 1e-6) * scale
    x_embed = x_embed / (grid_size + 1e-6) * scale
    dim_t = np.arange(num_pos_feats, dtype=np.float32)
    dim_t_ = np.floor(dim_t / 2) / num_pos_feats
    dim_t = temperature ** (2 * dim_t_)
    pos_x = x_embed[..., None] / dim_t
    pos_y = y_embed[..., None] / dim_t
    pos_x = np.stack((np.sin(pos_x[..., 0::2]), np.cos(pos_x[..., 1::2])), axis=-1)
    pos_x = pos_x.reshape(*pos_x.shape[:-2], -1)
    pos_y = np.stack((np.sin(pos_y[..., 0::2]), np.cos(pos_y[..., 1::2])), axis=-1)
    pos_y = pos_y.reshape(*pos_y.shape[:-2], -1)
    pos = np.concatenate((pos_y, pos_x), axis=-1).reshape(-1, embed_dim)
    return jnp.asarray(pos, dtype=jnp.float32)[None]          # [1, N, D]


def _xavier(key, fan_in, fan_out):
    a = math.sqrt(6.0 / (fan_in + fan_out))
    return jax.random.uniform(key, (fan_in, fan_out), jnp.float32, -a, a)


def init_enc_block(key, d, h):
    k = jax.random.split(key, 4)
    return {
        'ln1_w': jnp.ones((1, d), jnp.float32), 'ln1_b': jnp.zeros((1, d), jnp.float32),
        'wqkv': _xavier(k[0], d, 3 * d), 'bqkv': jnp.zeros((1, 3 * d), jnp.float32),
        'wo': _xavier(k[1], d, d), 'bo': jnp.zeros((1, d), jnp.float32),
        'ln2_w': jnp.ones((1, d), jnp.float32), 'ln2_b': jnp.zeros((1, d), jnp.float32),
        'w1': _xavier(k[2], d, h), 'b1': jnp.zeros((1, h), jnp.float32),
        'w2': _xavier(k[3], h, d), 'b2': jnp.zeros((1, d), jnp.float32),
    }


def init_dec_block(key, d, h):
    k = jax.random.split(key, 6)
    return {
        'ln1_w': jnp.ones((1, d), jnp.float32), 'ln1_b': jnp.zeros((1, d), jnp.float32),
        'wq': _xavier(k[0], d, d), 'bq': jnp.zeros((1, d), jnp.float32),
        'wk': _xavier(k[1], d, d), 'bk': jnp.zeros((1, d), jnp.float32),
        'wv': _xavier(k[2], d, d), 'bv': jnp.zeros((1, d), jnp.float32),
        'wo': _xavier(k[3], d, d), 'bo': jnp.zeros((1, d), jnp.float32),
        'ln2_w': jnp.ones((1, d), jnp.float32), 'ln2_b': jnp.zeros((1, d), jnp.float32),
        'w1': _xavier(k[4], d, h), 'b1': jnp.zeros((1, h), jnp.float32),
        'w2': _xavier(k[5], h, d), 'b2': jnp.zeros((1, d), jnp.float32),
    }


def init_params(key):
    keys = list(jax.random.split(key, 16))
    ki = iter(keys)
    h_en = int(D_EN * MLP_RATIO)
    h_de = int(D_DE * MLP_RATIO)
    fan_in = C_IN * PATCH * PATCH
    bound = 1.0 / math.sqrt(fan_in)                 # Conv2d default-style init (deterministic)
    return {
        'pe_w': jax.random.uniform(next(ki), (fan_in, D_EN), jnp.float32, -bound, bound),
        'pe_b': jnp.zeros((1, D_EN), jnp.float32),
        'enc_pos': get_posembed(D_EN, GRID),
        'enc_blocks': [init_enc_block(next(ki), D_EN, h_en) for _ in range(DEPTH)],
        'enc_ln_w': jnp.ones((1, D_EN), jnp.float32), 'enc_ln_b': jnp.zeros((1, D_EN), jnp.float32),
        'dec_embed_w': _xavier(next(ki), D_EN, D_DE), 'dec_embed_b': jnp.zeros((1, D_DE), jnp.float32),
        'mask_token': 0.02 * jax.random.normal(next(ki), (1, D_DE), jnp.float32),
        'dec_pos': get_posembed(D_DE, GRID),
        'dec_blocks': [init_dec_block(next(ki), D_DE, h_de) for _ in range(DE_LAYERS)],
        'dec_ln_w': jnp.ones((1, D_DE), jnp.float32), 'dec_ln_b': jnp.zeros((1, D_DE), jnp.float32),
        'dec_pred_w': _xavier(next(ki), D_DE, OUT_DIM), 'dec_pred_b': jnp.zeros((1, OUT_DIM), jnp.float32),
    }


# ----------------------------- full forward (encoder + decoder) -----------------------------
def mae_forward(params, x, mask_key):
    bsz, c, h, w = x.shape
    p = PATCH
    gh, gw = h // p, w // p
    n = gh * gw

    # PatchEmbed unfold: Conv2d(k=p, s=p) == matmul over (c, ky, kx)-ordered patch vectors.
    patches = x.reshape(bsz, c, gh, p, gw, p).transpose(0, 2, 4, 1, 3, 5).reshape(bsz, n, c * p * p)

    # random_masking (glue: rand + argsort + gathers stay in XLA)
    len_keep = int(n * (1 - MASK_RATIO))
    noise = jax.random.uniform(mask_key, (bsz, n))
    ids_shuffle = jnp.argsort(noise, axis=1)
    ids_restore = jnp.argsort(ids_shuffle, axis=1)
    ids_keep = ids_shuffle[:, :len_keep]
    ids_masked = ids_shuffle[:, len_keep:]
    mask = jnp.ones((bsz, n), jnp.float32).at[:, :len_keep].set(0.0)
    mask = jnp.take_along_axis(mask, ids_restore, axis=1)

    # Gather kept raw patches + their encoder pos rows up front; per-token patch-embed and
    # +pos commute with the gather, so this equals the reference embed-then-mask order.
    patches_keep = jnp.take_along_axis(patches, ids_keep[:, :, None], axis=1)
    enc_pos = jnp.broadcast_to(params['enc_pos'], (bsz, n, D_EN))
    pos_keep = jnp.take_along_axis(enc_pos, ids_keep[:, :, None], axis=1)

    dec_pos = jnp.broadcast_to(params['dec_pos'], (bsz, n, D_DE))
    query_pos = jnp.take_along_axis(dec_pos, ids_masked[:, :, None], axis=1)
    memory_pos = jnp.take_along_axis(dec_pos, ids_keep[:, :, None], axis=1)

    # Single fused kernel: patch-embed + DEPTH ViT blocks + LN + decoder_embed +
    # DE_LAYERS cross-attn blocks + decoder LN + decoder_pred  -> [B, N, OUT_DIM] (shuffled order)
    x_pred_shuf = fused_mae(params, patches_keep, pos_keep, query_pos, memory_pos)

    # Un-shuffle (decoder_pred is per-token, so pred-then-gather == reference gather-then-pred).
    x_pred = jnp.take_along_axis(x_pred_shuf, ids_restore[:, :, None], axis=1)

    # TODO(synk): training-mode MSE loss path omitted (inference forward only).
    return {'x_pred': x_pred, 'mask': mask}


# ----------------------------- driver -----------------------------
if __name__ == "__main__":
    root = jax.random.PRNGKey(0)
    k_param, k_data, k_mask = jax.random.split(root, 3)
    params = init_params(k_param)
    x = jax.random.normal(k_data, (B, C_IN, IMG, IMG), jnp.float32)   # NCHW, like PyTorch

    fwd = jax.jit(mae_forward)
    out = fwd(params, x, k_mask)
    jax.block_until_ready(out['x_pred'])
    jax.block_until_ready(out['mask'])

    assert out['x_pred'].shape == (B, N_PATCH, OUT_DIM)
    assert out['mask'].shape == (B, N_PATCH)
    assert bool(jnp.all(jnp.isfinite(out['x_pred'])))
    print("KERNEL_OK")
</pallas_src>

<mosaic_0001>
module attributes {stable_mosaic.version = 11 : i64} {
  func.func @_mae_kernel(%arg0: i32, %arg1: memref<1x4x64xf32, #tpu.memory_space<vmem>>, %arg2: memref<1x4x32xf32, #tpu.memory_space<vmem>>, %arg3: memref<1x12x32xf32, #tpu.memory_space<vmem>>, %arg4: memref<1x4x32xf32, #tpu.memory_space<vmem>>, %arg5: memref<64x32xf32, #tpu.memory_space<vmem>>, %arg6: memref<1x32xf32, #tpu.memory_space<vmem>>, %arg7: memref<1x32xf32, #tpu.memory_space<vmem>>, %arg8: memref<1x32xf32, #tpu.memory_space<vmem>>, %arg9: memref<32x96xf32, #tpu.memory_space<vmem>>, %arg10: memref<1x96xf32, #tpu.memory_space<vmem>>, %arg11: memref<32x32xf32, #tpu.memory_space<vmem>>, %arg12: memref<1x32xf32, #tpu.memory_space<vmem>>, %arg13: memref<1x32xf32, #tpu.memory_space<vmem>>, %arg14: memref<1x32xf32, #tpu.memory_space<vmem>>, %arg15: memref<32x128xf32, #tpu.memory_space<vmem>>, %arg16: memref<1x128xf32, #tpu.memory_space<vmem>>, %arg17: memref<128x32xf32, #tpu.memory_space<vmem>>, %arg18: memref<1x32xf32, #tpu.memory_space<vmem>>, %arg19: memref<1x32xf32, #tpu.memory_space<vmem>>, %arg20: memref<1x32xf32, #tpu.memory_space<vmem>>, %arg21: memref<32x96xf32, #tpu.memory_space<vmem>>, %arg22: memref<1x96xf32, #tpu.memory_space<vmem>>, %arg23: memref<32x32xf32, #tpu.memory_space<vmem>>, %arg24: memref<1x32xf32, #tpu.memory_space<vmem>>, %arg25: memref<1x32xf32, #tpu.memory_space<vmem>>, %arg26: memref<1x32xf32, #tpu.memory_space<vmem>>, %arg27: memref<32x128xf32, #tpu.memory_space<vmem>>, %arg28: memref<1x128xf32, #tpu.memory_space<vmem>>, %arg29: memref<128x32xf32, #tpu.memory_space<vmem>>, %arg30: memref<1x32xf32, #tpu.memory_space<vmem>>, %arg31: memref<1x32xf32, #tpu.memory_space<vmem>>, %arg32: memref<1x32xf32, #tpu.memory_space<vmem>>, %arg33: memref<32x32xf32, #tpu.memory_space<vmem>>, %arg34: memref<1x32xf32, #tpu.memory_space<vmem>>, %arg35: memref<1x32xf32, #tpu.memory_space<vmem>>, %arg36: memref<1x32xf32, #tpu.memory_space<vmem>>, %arg37: memref<1x32xf32, #tpu.memory_space<vmem>>, %arg38: memref<32x32xf32, #tpu.memory_space<vmem>>, %arg39: memref<1x32xf32, #tpu.memory_space<vmem>>, %arg40: memref<32x32xf32, #tpu.memory_space<vmem>>, %arg41: memref<1x32xf32, #tpu.memory_space<vmem>>, %arg42: memref<32x32xf32, #tpu.memory_space<vmem>>, %arg43: memref<1x32xf32, #tpu.memory_space<vmem>>, %arg44: memref<32x32xf32, #tpu.memory_space<vmem>>, %arg45: memref<1x32xf32, #tpu.memory_space<vmem>>, %arg46: memref<1x32xf32, #tpu.memory_space<vmem>>, %arg47: memref<1x32xf32, #tpu.memory_space<vmem>>, %arg48: memref<32x128xf32, #tpu.memory_space<vmem>>, %arg49: memref<1x128xf32, #tpu.memory_space<vmem>>, %arg50: memref<128x32xf32, #tpu.memory_space<vmem>>, %arg51: memref<1x32xf32, #tpu.memory_space<vmem>>, %arg52: memref<1x32xf32, #tpu.memory_space<vmem>>, %arg53: memref<1x32xf32, #tpu.memory_space<vmem>>, %arg54: memref<32x32xf32, #tpu.memory_space<vmem>>, %arg55: memref<1x32xf32, #tpu.memory_space<vmem>>, %arg56: memref<32x32xf32, #tpu.memory_space<vmem>>, %arg57: memref<1x32xf32, #tpu.memory_space<vmem>>, %arg58: memref<32x32xf32, #tpu.memory_space<vmem>>, %arg59: memref<1x32xf32, #tpu.memory_space<vmem>>, %arg60: memref<32x32xf32, #tpu.memory_space<vmem>>, %arg61: memref<1x32xf32, #tpu.memory_space<vmem>>, %arg62: memref<1x32xf32, #tpu.memory_space<vmem>>, %arg63: memref<1x32xf32, #tpu.memory_space<vmem>>, %arg64: memref<32x128xf32, #tpu.memory_space<vmem>>, %arg65: memref<1x128xf32, #tpu.memory_space<vmem>>, %arg66: memref<128x32xf32, #tpu.memory_space<vmem>>, %arg67: memref<1x32xf32, #tpu.memory_space<vmem>>, %arg68: memref<1x32xf32, #tpu.memory_space<vmem>>, %arg69: memref<1x32xf32, #tpu.memory_space<vmem>>, %arg70: memref<32x64xf32, #tpu.memory_space<vmem>>, %arg71: memref<1x64xf32, #tpu.memory_space<vmem>>, %arg72: memref<1x16x64xf32, #tpu.memory_space<vmem>>, %arg73: memref<4x32xf32, #tpu.memory_space<vmem>>, %arg74: memref<12x32xf32, #tpu.memory_space<vmem>>) attributes {dimension_semantics = [#tpu.dimension_semantics<parallel>], iteration_bounds = array<i64: 2>, scalar_prefetch = 0 : i64, scratch_operands = 2 : i64, tpu.core_type = #tpu.core_type<tc>, window_params = [{transform_indices = @transform_0, window_bounds = array<i64: 1, 4, 64>}, {transform_indices = @transform_1, window_bounds = array<i64: 1, 4, 32>}, {transform_indices = @transform_2, window_bounds = array<i64: 1, 12, 32>}, {transform_indices = @transform_3, window_bounds = array<i64: 1, 4, 32>}, {pipeline_mode = #tpu.pipeline_mode<synchronous>, transform_indices = @transform_4, window_bounds = array<i64: 64, 32>}, {pipeline_mode = #tpu.pipeline_mode<synchronous>, transform_indices = @transform_5, window_bounds = array<i64: 1, 32>}, {pipeline_mode = #tpu.pipeline_mode<synchronous>, transform_indices = @transform_6, window_bounds = array<i64: 1, 32>}, {pipeline_mode = #tpu.pipeline_mode<synchronous>, transform_indices = @transform_7, window_bounds = array<i64: 1, 32>}, {pipeline_mode = #tpu.pipeline_mode<synchronous>, transform_indices = @transform_8, window_bounds = array<i64: 32, 96>}, {pipeline_mode = #tpu.pipeline_mode<synchronous>, transform_indices = @transform_9, window_bounds = array<i64: 1, 96>}, {pipeline_mode = #tpu.pipeline_mode<synchronous>, transform_indices = @transform_10, window_bounds = array<i64: 32, 32>}, {pipeline_mode = #tpu.pipeline_mode<synchronous>, transform_indices = @transform_11, window_bounds = array<i64: 1, 32>}, {pipeline_mode = #tpu.pipeline_mode<synchronous>, transform_indices = @transform_12, window_bounds = array<i64: 1, 32>}, {pipeline_mode = #tpu.pipeline_mode<synchronous>, transform_indices = @transform_13, window_bounds = array<i64: 1, 32>}, {pipeline_mode = #tpu.pipeline_mode<synchronous>, transform_indices = @transform_14, window_bounds = array<i64: 32, 128>}, {pipeline_mode = #tpu.pipeline_mode<synchronous>, transform_indices = @transform_15, window_bounds = array<i64: 1, 128>}, {pipeline_mode = #tpu.pipeline_mode<synchronous>, transform_indices = @transform_16, window_bounds = array<i64: 128, 32>}, {pipeline_mode = #tpu.pipeline_mode<synchronous>, transform_indices = @transform_17, window_bounds = array<i64: 1, 32>}, {pipeline_mode = #tpu.pipeline_mode<synchronous>, transform_indices = @transform_18, window_bounds = array<i64: 1, 32>}, {pipeline_mode = #tpu.pipeline_mode<synchronous>, transform_indices = @transform_19, window_bounds = array<i64: 1, 32>}, {pipeline_mode = #tpu.pipeline_mode<synchronous>, transform_indices = @transform_20, window_bounds = array<i64: 32, 96>}, {pipeline_mode = #tpu.pipeline_mode<synchronous>, transform_indices = @transform_21, window_bounds = array<i64: 1, 96>}, {pipeline_mode = #tpu.pipeline_mode<synchronous>, transform_indices = @transform_22, window_bounds = array<i64: 32, 32>}, {pipeline_mode = #tpu.pipeline_mode<synchronous>, transform_indices = @transform_23, window_bounds = array<i64: 1, 32>}, {pipeline_mode = #tpu.pipeline_mode<synchronous>, transform_indices = @transform_24, window_bounds = array<i64: 1, 32>}, {pipeline_mode = #tpu.pipeline_mode<synchronous>, transform_indices = @transform_25, window_bounds = array<i64: 1, 32>}, {pipeline_mode = #tpu.pipeline_mode<synchronous>, transform_indices = @transform_26, window_bounds = array<i64: 32, 128>}, {pipeline_mode = #tpu.pipeline_mode<synchronous>, transform_indices = @transform_27, window_bounds = array<i64: 1, 128>}, {pipeline_mode = #tpu.pipeline_mode<synchronous>, transform_indices = @transform_28, window_bounds = array<i64: 128, 32>}, {pipeline_mode = #tpu.pipeline_mode<synchronous>, transform_indices = @transform_29, window_bounds = array<i64: 1, 32>}, {pipeline_mode = #tpu.pipeline_mode<synchronous>, transform_indices = @transform_30, window_bounds = array<i64: 1, 32>}, {pipeline_mode = #tpu.pipeline_mode<synchronous>, transform_indices = @transform_31, window_bounds = array<i64: 1, 32>}, {pipeline_mode = #tpu.pipeline_mode<synchronous>, transform_indices = @transform_32, window_bounds = array<i64: 32, 32>}, {pipeline_mode = #tpu.pipeline_mode<synchronous>, transform_indices = @transform_33, window_bounds = array<i64: 1, 32>}, {pipeline_mode = #tpu.pipeline_mode<synchronous>, transform_indices = @transform_34, window_bounds = array<i64: 1, 32>}, {pipeline_mode = #tpu.pipeline_mode<synchronous>, transform_indices = @transform_35, window_bounds = array<i64: 1, 32>}, {pipeline_mode = #tpu.pipeline_mode<synchronous>, transform_indices = @transform_36, window_bounds = array<i64: 1, 32>}, {pipeline_mode = #tpu.pipeline_mode<synchronous>, transform_indices = @transform_37, window_bounds = array<i64: 32, 32>}, {pipeline_mode = #tpu.pipeline_mode<synchronous>, transform_indices = @transform_38, window_bounds = array<i64: 1, 32>}, {pipeline_mode = #tpu.pipeline_mode<synchronous>, transform_indices = @transform_39, window_bounds = array<i64: 32, 32>}, {pipeline_mode = #tpu.pipeline_mode<synchronous>, transform_indices = @transform_40, window_bounds = array<i64: 1, 32>}, {pipeline_mode = #tpu.pipeline_mode<synchronous>, transform_indices = @transform_41, window_bounds = array<i64: 32, 32>}, {pipeline_mode = #tpu.pipeline_mode<synchronous>, transform_indices = @transform_42, window_bounds = array<i64: 1, 32>}, {pipeline_mode = #tpu.pipeline_mode<synchronous>, transform_indices = @transform_43, window_bounds = array<i64: 32, 32>}, {pipeline_mode = #tpu.pipeline_mode<synchronous>, transform_indices = @transform_44, window_bounds = array<i64: 1, 32>}, {pipeline_mode = #tpu.pipeline_mode<synchronous>, transform_indices = @transform_45, window_bounds = array<i64: 1, 32>}, {pipeline_mode = #tpu.pipeline_mode<synchronous>, transform_indices = @transform_46, window_bounds = array<i64: 1, 32>}, {pipeline_mode = #tpu.pipeline_mode<synchronous>, transform_indices = @transform_47, window_bounds = array<i64: 32, 128>}, {pipeline_mode = #tpu.pipeline_mode<synchronous>, transform_indices = @transform_48, window_bounds = array<i64: 1, 128>}, {pipeline_mode = #tpu.pipeline_mode<synchronous>, transform_indices = @transform_49, window_bounds = array<i64: 128, 32>}, {pipeline_mode = #tpu.pipeline_mode<synchronous>, transform_indices = @transform_50, window_bounds = array<i64: 1, 32>}, {pipeline_mode = #tpu.pipeline_mode<synchronous>, transform_indices = @transform_51, window_bounds = array<i64: 1, 32>}, {pipeline_mode = #tpu.pipeline_mode<synchronous>, transform_indices = @transform_52, window_bounds = array<i64: 1, 32>}, {pipeline_mode = #tpu.pipeline_mode<synchronous>, transform_indices = @transform_53, window_bounds = array<i64: 32, 32>}, {pipeline_mode = #tpu.pipeline_mode<synchronous>, transform_indices = @transform_54, window_bounds = array<i64: 1, 32>}, {pipeline_mode = #tpu.pipeline_mode<synchronous>, transform_indices = @transform_55, window_bounds = array<i64: 32, 32>}, {pipeline_mode = #tpu.pipeline_mode<synchronous>, transform_indices = @transform_56, window_bounds = array<i64: 1, 32>}, {pipeline_mode = #tpu.pipeline_mode<synchronous>, transform_indices = @transform_57, window_bounds = array<i64: 32, 32>}, {pipeline_mode = #tpu.pipeline_mode<synchronous>, transform_indices = @transform_58, window_bounds = array<i64: 1, 32>}, {pipeline_mode = #tpu.pipeline_mode<synchronous>, transform_indices = @transform_59, window_bounds = array<i64: 32, 32>}, {pipeline_mode = #tpu.pipeline_mode<synchronous>, transform_indices = @transform_60, window_bounds = array<i64: 1, 32>}, {pipeline_mode = #tpu.pipeline_mode<synchronous>, transform_indices = @transform_61, window_bounds = array<i64: 1, 32>}, {pipeline_mode = #tpu.pipeline_mode<synchronous>, transform_indices = @transform_62, window_bounds = array<i64: 1, 32>}, {pipeline_mode = #tpu.pipeline_mode<synchronous>, transform_indices = @transform_63, window_bounds = array<i64: 32, 128>}, {pipeline_mode = #tpu.pipeline_mode<synchronous>, transform_indices = @transform_64, window_bounds = array<i64: 1, 128>}, {pipeline_mode = #tpu.pipeline_mode<synchronous>, transform_indices = @transform_65, window_bounds = array<i64: 128, 32>}, {pipeline_mode = #tpu.pipeline_mode<synchronous>, transform_indices = @transform_66, window_bounds = array<i64: 1, 32>}, {pipeline_mode = #tpu.pipeline_mode<synchronous>, transform_indices = @transform_67, window_bounds = array<i64: 1, 32>}, {pipeline_mode = #tpu.pipeline_mode<synchronous>, transform_indices = @transform_68, window_bounds = array<i64: 1, 32>}, {pipeline_mode = #tpu.pipeline_mode<synchronous>, transform_indices = @transform_69, window_bounds = array<i64: 32, 64>}, {pipeline_mode = #tpu.pipeline_mode<synchronous>, transform_indices = @transform_70, window_bounds = array<i64: 1, 64>}, {transform_indices = @transform_71, window_bounds = array<i64: 1, 16, 64>}]} {
    %c0 = arith.constant 0 : index
    %c0_0 = arith.constant 0 : index
    %c0_1 = arith.constant 0 : index
    %0 = vector.load %arg1[%c0, %c0_0, %c0_1] : memref<1x4x64xf32, #tpu.memory_space<vmem>>, vector<1x4x64xf32>
    %1 = vector.shape_cast %0 : vector<1x4x64xf32> to vector<4x64xf32>
    %c0_2 = arith.constant 0 : index
    %c0_3 = arith.constant 0 : index
    %2 = vector.load %arg5[%c0_2, %c0_3] : memref<64x32xf32, #tpu.memory_space<vmem>>, vector<64x32xf32>
    %cst = arith.constant dense<0.000000e+00> : vector<4x32xf32>
    %3 = tpu.matmul %1, %2, %cst {dimension_numbers = #tpu.dot_dimension_numbers<[1], [0], [0], [1], [0, 0, 1, 1], [], []>} : vector<4x64xf32>, vector<64x32xf32>, vector<4x32xf32> -> vector<4x32xf32>
    %c0_4 = arith.constant 0 : index
    %c0_5 = arith.constant 0 : index
    %4 = vector.load %arg6[%c0_4, %c0_5] : memref<1x32xf32, #tpu.memory_space<vmem>>, vector<1x32xf32>
    %5 = vector.broadcast %4 : vector<1x32xf32> to vector<4x32xf32>
    %6 = arith.addf %3, %5 : vector<4x32xf32>
    %c0_6 = arith.constant 0 : index
    %c0_7 = arith.constant 0 : index
    %c0_8 = arith.constant 0 : index
    %7 = vector.load %arg2[%c0_6, %c0_7, %c0_8] : memref<1x4x32xf32, #tpu.memory_space<vmem>>, vector<1x4x32xf32>
    %8 = vector.shape_cast %7 : vector<1x4x32xf32> to vector<4x32xf32>
    %9 = arith.addf %6, %8 : vector<4x32xf32>
    %c0_9 = arith.constant 0 : index
    %c0_10 = arith.constant 0 : index
    %10 = vector.load %arg7[%c0_9, %c0_10] : memref<1x32xf32, #tpu.memory_space<vmem>>, vector<1x32xf32>
    %c0_11 = arith.constant 0 : index
    %c0_12 = arith.constant 0 : index
    %11 = vector.load %arg8[%c0_11, %c0_12] : memref<1x32xf32, #tpu.memory_space<vmem>>, vector<1x32xf32>
    %cst_13 = arith.constant dense<0.000000e+00> : vector<4xf32>
    %12 = vector.multi_reduction <add>, %9, %cst_13 [1] : vector<4x32xf32> to vector<4xf32>
    %13 = vector.shape_cast %12 : vector<4xf32> to vector<4x1xf32>
    %cst_14 = arith.constant 3.200000e+01 : f32
    %14 = vector.broadcast %cst_14 : f32 to vector<4x1xf32>
    %15 = arith.divf %13, %14 : vector<4x1xf32>
    %16 = vector.broadcast %15 : vector<4x1xf32> to vector<4x32xf32>
    %17 = arith.subf %9, %16 : vector<4x32xf32>
    %18 = arith.mulf %17, %17 : vector<4x32xf32>
    %cst_15 = arith.constant dense<0.000000e+00> : vector<4xf32>
    %19 = vector.multi_reduction <add>, %18, %cst_15 [1] : vector<4x32xf32> to vector<4xf32>
    %20 = vector.shape_cast %19 : vector<4xf32> to vector<4x1xf32>
    %cst_16 = arith.constant 3.200000e+01 : f32
    %21 = vector.broadcast %cst_16 : f32 to vector<4x1xf32>
    %22 = arith.divf %20, %21 : vector<4x1xf32>
    %23 = vector.broadcast %15 : vector<4x1xf32> to vector<4x32xf32>
    %24 = arith.subf %9, %23 : vector<4x32xf32>
    %cst_17 = arith.constant 9.99999974E-6 : f32
    %25 = vector.broadcast %cst_17 : f32 to vector<4x1xf32>
    %26 = arith.addf %22, %25 : vector<4x1xf32>
    %27 = math.rsqrt %26 : vector<4x1xf32>
    %28 = vector.broadcast %27 : vector<4x1xf32> to vector<4x32xf32>
    %29 = arith.mulf %24, %28 : vector<4x32xf32>
    %30 = vector.broadcast %10 : vector<1x32xf32> to vector<4x32xf32>
    %31 = arith.mulf %29, %30 : vector<4x32xf32>
    %32 = vector.broadcast %11 : vector<1x32xf32> to vector<4x32xf32>
    %33 = arith.addf %31, %32 : vector<4x32xf32>
    %c0_18 = arith.constant 0 : index
    %c0_19 = arith.constant 0 : index
    %34 = vector.load %arg9[%c0_18, %c0_19] : memref<32x96xf32, #tpu.memory_space<vmem>>, vector<32x96xf32>
    %cst_20 = arith.constant dense<0.000000e+00> : vector<4x96xf32>
    %35 = tpu.matmul %33, %34, %cst_20 {dimension_numbers = #tpu.dot_dimension_numbers<[1], [0], [0], [1], [0, 0, 1, 1], [], []>} : vector<4x32xf32>, vector<32x96xf32>, vector<4x96xf32> -> vector<4x96xf32>
    %c0_21 = arith.constant 0 : index
    %c0_22 = arith.constant 0 : index
    %36 = vector.load %arg10[%c0_21, %c0_22] : memref<1x96xf32, #tpu.memory_space<vmem>>, vector<1x96xf32>
    %37 = vector.broadcast %36 : vector<1x96xf32> to vector<4x96xf32>
    %38 = arith.addf %35, %37 : vector<4x96xf32>
    %39 = vector.extract_strided_slice %38 {offsets = [0, 0], sizes = [4, 32], strides = [1, 1]} : vector<4x96xf32> to vector<4x32xf32>
    %40 = vector.extract_strided_slice %38 {offsets = [0, 32], sizes = [4, 32], strides = [1, 1]} : vector<4x96xf32> to vector<4x32xf32>
    %41 = vector.extract_strided_slice %38 {offsets = [0, 64], sizes = [4, 32], strides = [1, 1]} : vector<4x96xf32> to vector<4x32xf32>
    %42 = vector.extract_strided_slice %39 {offsets = [0, 0], sizes = [4, 8], strides = [1, 1]} : vector<4x32xf32> to vector<4x8xf32>
    %43 = vector.extract_strided_slice %40 {offsets = [0, 0], sizes = [4, 8], strides = [1, 1]} : vector<4x32xf32> to vector<4x8xf32>
    %44 = vector.extract_strided_slice %41 {offsets = [0, 0], sizes = [4, 8], strides = [1, 1]} : vector<4x32xf32> to vector<4x8xf32>
    %cst_23 = arith.constant dense<0.000000e+00> : vector<4x4xf32>
    %45 = tpu.matmul %42, %43, %cst_23 {dimension_numbers = #tpu.dot_dimension_numbers<[1], [1], [0], [0], [0, 0, 1, 0], [], []>} : vector<4x8xf32>, vector<4x8xf32>, vector<4x4xf32> -> vector<4x4xf32>
    %cst_24 = arith.constant 0.353553385 : f32
    %46 = vector.broadcast %cst_24 : f32 to vector<4x4xf32>
    %47 = arith.mulf %45, %46 : vector<4x4xf32>
    %cst_25 = arith.constant dense<0xFF800000> : vector<4xf32>
    %48 = vector.multi_reduction <maximumf>, %47, %cst_25 [1] : vector<4x4xf32> to vector<4xf32>
    %49 = vector.shape_cast %48 : vector<4xf32> to vector<4x1xf32>
    %50 = vector.broadcast %49 : vector<4x1xf32> to vector<4x4xf32>
    %51 = arith.subf %47, %50 : vector<4x4xf32>
    %52 = math.exp %51 : vector<4x4xf32>
    %cst_26 = arith.constant dense<0.000000e+00> : vector<4xf32>
    %53 = vector.multi_reduction <add>, %52, %cst_26 [1] : vector<4x4xf32> to vector<4xf32>
    %54 = vector.shape_cast %53 : vector<4xf32> to vector<4x1xf32>
    %55 = tpu.reciprocal %54 {approx = true} : vector<4x1xf32> -> vector<4x1xf32>
    %56 = vector.broadcast %55 : vector<4x1xf32> to vector<4x4xf32>
    %57 = arith.mulf %52, %56 : vector<4x4xf32>
    %cst_27 = arith.constant dense<0.000000e+00> : vector<4x8xf32>
    %58 = tpu.matmul %57, %44, %cst_27 {dimension_numbers = #tpu.dot_dimension_numbers<[1], [0], [0], [1], [0, 0, 1, 1], [], []>} : vector<4x4xf32>, vector<4x8xf32>, vector<4x8xf32> -> vector<4x8xf32>
    %c0_28 = arith.constant 0 : index
    %c0_29 = arith.constant 0 : index
    %59 = vector.load %arg73[%c0_28, %c0_29] : memref<4x32xf32, #tpu.memory_space<vmem>>, vector<4x8xf32>
    tpu.vector_store %arg73[%c0_28, %c0_29], %58 {strides = array<i32>} : memref<4x32xf32, #tpu.memory_space<vmem>>, vector<4x8xf32>,
    %60 = vector.extract_strided_slice %39 {offsets = [0, 8], sizes = [4, 8], strides = [1, 1]} : vector<4x32xf32> to vector<4x8xf32>
    %61 = vector.extract_strided_slice %40 {offsets = [0, 8], sizes = [4, 8], strides = [1, 1]} : vector<4x32xf32> to vector<4x8xf32>
    %62 = vector.extract_strided_slice %41 {offsets = [0, 8], sizes = [4, 8], strides = [1, 1]} : vector<4x32xf32> to vector<4x8xf32>
    %cst_30 = arith.constant dense<0.000000e+00> : vector<4x4xf32>
    %63 = tpu.matmul %60, %61, %cst_30 {dimension_numbers = #tpu.dot_dimension_numbers<[1], [1], [0], [0], [0, 0, 1, 0], [], []>} : vector<4x8xf32>, vector<4x8xf32>, vector<4x4xf32> -> vector<4x4xf32>
    %cst_31 = arith.constant 0.353553385 : f32
    %64 = vector.broadcast %cst_31 : f32 to vector<4x4xf32>
    %65 = arith.mulf %63, %64 : vector<4x4xf32>
    %cst_32 = arith.constant dense<0xFF800000> : vector<4xf32>
    %66 = vector.multi_reduction <maximumf>, %65, %cst_32 [1] : vector<4x4xf32> to vector<4xf32>
    %67 = vector.shape_cast %66 : vector<4xf32> to vector<4x1xf32>
    %68 = vector.broadcast %67 : vector<4x1xf32> to vector<4x4xf32>
    %69 = arith.subf %65, %68 : vector<4x4xf32>
    %70 = math.exp %69 : vector<4x4xf32>
    %cst_33 = arith.constant dense<0.000000e+00> : vector<4xf32>
    %71 = vector.multi_reduction <add>, %70, %cst_33 [1] : vector<4x4xf32> to vector<4xf32>
    %72 = vector.shape_cast %71 : vector<4xf32> to vector<4x1xf32>
    %73 = tpu.reciprocal %72 {approx = true} : vector<4x1xf32> -> vector<4x1xf32>
    %74 = vector.broadcast %73 : vector<4x1xf32> to vector<4x4xf32>
    %75 = arith.mulf %70, %74 : vector<4x4xf32>
    %cst_34 = arith.constant dense<0.000000e+00> : vector<4x8xf32>
    %76 = tpu.matmul %75, %62, %cst_34 {dimension_numbers = #tpu.dot_dimension_numbers<[1], [0], [0], [1], [0, 0, 1, 1], [], []>} : vector<4x4xf32>, vector<4x8xf32>, vector<4x8xf32> -> vector<4x8xf32>
    %c0_35 = arith.constant 0 : index
    %c8 = arith.constant 8 : index
    %77 = vector.load %arg73[%c0_35, %c8] : memref<4x32xf32, #tpu.memory_space<vmem>>, vector<4x8xf32>
    tpu.vector_store %arg73[%c0_35, %c8], %76 {strides = array<i32>} : memref<4x32xf32, #tpu.memory_space<vmem>>, vector<4x8xf32>,
    %78 = vector.extract_strided_slice %39 {offsets = [0, 16], sizes = [4, 8], strides = [1, 1]} : vector<4x32xf32> to vector<4x8xf32>
    %79 = vector.extract_strided_slice %40 {offsets = [0, 16], sizes = [4, 8], strides = [1, 1]} : vector<4x32xf32> to vector<4x8xf32>
    %80 = vector.extract_strided_slice %41 {offsets = [0, 16], sizes = [4, 8], strides = [1, 1]} : vector<4x32xf32> to vector<4x8xf32>
    %cst_36 = arith.constant dense<0.000000e+00> : vector<4x4xf32>
    %81 = tpu.matmul %78, %79, %cst_36 {dimension_numbers = #tpu.dot_dimension_numbers<[1], [1], [0], [0], [0, 0, 1, 0], [], []>} : vector<4x8xf32>, vector<4x8xf32>, vector<4x4xf32> -> vector<4x4xf32>
    %cst_37 = arith.constant 0.353553385 : f32
    %82 = vector.broadcast %cst_37 : f32 to vector<4x4xf32>
    %83 = arith.mulf %81, %82 : vector<4x4xf32>
    %cst_38 = arith.constant dense<0xFF800000> : vector<4xf32>
    %84 = vector.multi_reduction <maximumf>, %83, %cst_38 [1] : vector<4x4xf32> to vector<4xf32>
    %85 = vector.shape_cast %84 : vector<4xf32> to vector<4x1xf32>
    %86 = vector.broadcast %85 : vector<4x1xf32> to vector<4x4xf32>
    %87 = arith.subf %83, %86 : vector<4x4xf32>
    %88 = math.exp %87 : vector<4x4xf32>
    %cst_39 = arith.constant dense<0.000000e+00> : vector<4xf32>
    %89 = vector.multi_reduction <add>, %88, %cst_39 [1] : vector<4x4xf32> to vector<4xf32>
    %90 = vector.shape_cast %89 : vector<4xf32> to vector<4x1xf32>
    %91 = tpu.reciprocal %90 {approx = true} : vector<4x1xf32> -> vector<4x1xf32>
    %92 = vector.broadcast %91 : vector<4x1xf32> to vector<4x4xf32>
    %93 = arith.mulf %88, %92 : vector<4x4xf32>
    %cst_40 = arith.constant dense<0.000000e+00> : vector<4x8xf32>
    %94 = tpu.matmul %93, %80, %cst_40 {dimension_numbers = #tpu.dot_dimension_numbers<[1], [0], [0], [1], [0, 0, 1, 1], [], []>} : vector<4x4xf32>, vector<4x8xf32>, vector<4x8xf32> -> vector<4x8xf32>
    %c0_41 = arith.constant 0 : index
    %c16 = arith.constant 16 : index
    %95 = vector.load %arg73[%c0_41, %c16] : memref<4x32xf32, #tpu.memory_space<vmem>>, vector<4x8xf32>
    tpu.vector_store %arg73[%c0_41, %c16], %94 {strides = array<i32>} : memref<4x32xf32, #tpu.memory_space<vmem>>, vector<4x8xf32>,
    %96 = vector.extract_strided_slice %39 {offsets = [0, 24], sizes = [4, 8], strides = [1, 1]} : vector<4x32xf32> to vector<4x8xf32>
    %97 = vector.extract_strided_slice %40 {offsets = [0, 24], sizes = [4, 8], strides = [1, 1]} : vector<4x32xf32> to vector<4x8xf32>
    %98 = vector.extract_strided_slice %41 {offsets = [0, 24], sizes = [4, 8], strides = [1, 1]} : vector<4x32xf32> to vector<4x8xf32>
    %cst_42 = arith.constant dense<0.000000e+00> : vector<4x4xf32>
    %99 = tpu.matmul %96, %97, %cst_42 {dimension_numbers = #tpu.dot_dimension_numbers<[1], [1], [0], [0], [0, 0, 1, 0], [], []>} : vector<4x8xf32>, vector<4x8xf32>, vector<4x4xf32> -> vector<4x4xf32>
    %cst_43 = arith.constant 0.353553385 : f32
    %100 = vector.broadcast %cst_43 : f32 to vector<4x4xf32>
    %101 = arith.mulf %99, %100 : vector<4x4xf32>
    %cst_44 = arith.constant dense<0xFF800000> : vector<4xf32>
    %102 = vector.multi_reduction <maximumf>, %101, %cst_44 [1] : vector<4x4xf32> to vector<4xf32>
    %103 = vector.shape_cast %102 : vector<4xf32> to vector<4x1xf32>
    %104 = vector.broadcast %103 : vector<4x1xf32> to vector<4x4xf32>
    %105 = arith.subf %101, %104 : vector<4x4xf32>
    %106 = math.exp %105 : vector<4x4xf32>
    %cst_45 = arith.constant dense<0.000000e+00> : vector<4xf32>
    %107 = vector.multi_reduction <add>, %106, %cst_45 [1] : vector<4x4xf32> to vector<4xf32>
    %108 = vector.shape_cast %107 : vector<4xf32> to vector<4x1xf32>
    %109 = tpu.reciprocal %108 {approx = true} : vector<4x1xf32> -> vector<4x1xf32>
    %110 = vector.broadcast %109 : vector<4x1xf32> to vector<4x4xf32>
    %111 = arith.mulf %106, %110 : vector<4x4xf32>
    %cst_46 = arith.constant dense<0.000000e+00> : vector<4x8xf32>
    %112 = tpu.matmul %111, %98, %cst_46 {dimension_numbers = #tpu.dot_dimension_numbers<[1], [0], [0], [1], [0, 0, 1, 1], [], []>} : vector<4x4xf32>, vector<4x8xf32>, vector<4x8xf32> -> vector<4x8xf32>
    %c0_47 = arith.constant 0 : index
    %c24 = arith.constant 24 : index
    %113 = vector.load %arg73[%c0_47, %c24] : memref<4x32xf32, #tpu.memory_space<vmem>>, vector<4x8xf32>
    tpu.vector_store %arg73[%c0_47, %c24], %112 {strides = array<i32>} : memref<4x32xf32, #tpu.memory_space<vmem>>, vector<4x8xf32>,
    %c0_48 = arith.constant 0 : index
    %c0_49 = arith.constant 0 : index
    %114 = vector.load %arg73[%c0_48, %c0_49] : memref<4x32xf32, #tpu.memory_space<vmem>>, vector<4x32xf32>
    %c0_50 = arith.constant 0 : index
    %c0_51 = arith.constant 0 : index
    %115 = vector.load %arg11[%c0_50, %c0_51] : memref<32x32xf32, #tpu.memory_space<vmem>>, vector<32x32xf32>
    %cst_52 = arith.constant dense<0.000000e+00> : vector<4x32xf32>
    %116 = tpu.matmul %114, %115, %cst_52 {dimension_numbers = #tpu.dot_dimension_numbers<[1], [0], [0], [1], [0, 0, 1, 1], [], []>} : vector<4x32xf32>, vector<32x32xf32>, vector<4x32xf32> -> vector<4x32xf32>
    %c0_53 = arith.constant 0 : index
    %c0_54 = arith.constant 0 : index
    %117 = vector.load %arg12[%c0_53, %c0_54] : memref<1x32xf32, #tpu.memory_space<vmem>>, vector<1x32xf32>
    %118 = vector.broadcast %117 : vector<1x32xf32> to vector<4x32xf32>
    %119 = arith.addf %116, %118 : vector<4x32xf32>
    %120 = arith.addf %9, %119 : vector<4x32xf32>
    %c0_55 = arith.constant 0 : index
    %c0_56 = arith.constant 0 : index
    %121 = vector.load %arg13[%c0_55, %c0_56] : memref<1x32xf32, #tpu.memory_space<vmem>>, vector<1x32xf32>
    %c0_57 = arith.constant 0 : index
    %c0_58 = arith.constant 0 : index
    %122 = vector.load %arg14[%c0_57, %c0_58] : memref<1x32xf32, #tpu.memory_space<vmem>>, vector<1x32xf32>
    %cst_59 = arith.constant dense<0.000000e+00> : vector<4xf32>
    %123 = vector.multi_reduction <add>, %120, %cst_59 [1] : vector<4x32xf32> to vector<4xf32>
    %124 = vector.shape_cast %123 : vector<4xf32> to vector<4x1xf32>
    %cst_60 = arith.constant 3.200000e+01 : f32
    %125 = vector.broadcast %cst_60 : f32 to vector<4x1xf32>
    %126 = arith.divf %124, %125 : vector<4x1xf32>
    %127 = vector.broadcast %126 : vector<4x1xf32> to vector<4x32xf32>
    %128 = arith.subf %120, %127 : vector<4x32xf32>
    %129 = arith.mulf %128, %128 : vector<4x32xf32>
    %cst_61 = arith.constant dense<0.000000e+00> : vector<4xf32>
    %130 = vector.multi_reduction <add>, %129, %cst_61 [1] : vector<4x32xf32> to vector<4xf32>
    %131 = vector.shape_cast %130 : vector<4xf32> to vector<4x1xf32>
    %cst_62 = arith.constant 3.200000e+01 : f32
    %132 = vector.broadcast %cst_62 : f32 to vector<4x1xf32>
    %133 = arith.divf %131, %132 : vector<4x1xf32>
    %134 = vector.broadcast %126 : vector<4x1xf32> to vector<4x32xf32>
    %135 = arith.subf %120, %134 : vector<4x32xf32>
    %cst_63 = arith.constant 9.99999974E-6 : f32
    %136 = vector.broadcast %cst_63 : f32 to vector<4x1xf32>
    %137 = arith.addf %133, %136 : vector<4x1xf32>
    %138 = math.rsqrt %137 : vector<4x1xf32>
    %139 = vector.broadcast %138 : vector<4x1xf32> to vector<4x32xf32>
    %140 = arith.mulf %135, %139 : vector<4x32xf32>
    %141 = vector.broadcast %121 : vector<1x32xf32> to vector<4x32xf32>
    %142 = arith.mulf %140, %141 : vector<4x32xf32>
    %143 = vector.broadcast %122 : vector<1x32xf32> to vector<4x32xf32>
    %144 = arith.addf %142, %143 : vector<4x32xf32>
    %c0_64 = arith.constant 0 : index
    %c0_65 = arith.constant 0 : index
    %145 = vector.load %arg15[%c0_64, %c0_65] : memref<32x128xf32, #tpu.memory_space<vmem>>, vector<32x128xf32>
    %cst_66 = arith.constant dense<0.000000e+00> : vector<4x128xf32>
    %146 = tpu.matmul %144, %145, %cst_66 {dimension_numbers = #tpu.dot_dimension_numbers<[1], [0], [0], [1], [0, 0, 1, 1], [], []>} : vector<4x32xf32>, vector<32x128xf32>, vector<4x128xf32> -> vector<4x128xf32>
    %c0_67 = arith.constant 0 : index
    %c0_68 = arith.constant 0 : index
    %147 = vector.load %arg16[%c0_67, %c0_68] : memref<1x128xf32, #tpu.memory_space<vmem>>, vector<1x128xf32>
    %148 = vector.broadcast %147 : vector<1x128xf32> to vector<4x128xf32>
    %149 = arith.addf %146, %148 : vector<4x128xf32>
    %cst_69 = arith.constant 5.000000e-01 : f32
    %150 = vector.broadcast %cst_69 : f32 to vector<4x128xf32>
    %151 = arith.mulf %150, %149 : vector<4x128xf32>
    %cst_70 = arith.constant 4.471500e-02 : f32
    %152 = vector.broadcast %cst_70 : f32 to vector<4x128xf32>
    %153 = arith.mulf %152, %149 : vector<4x128xf32>
    %154 = arith.mulf %153, %149 : vector<4x128xf32>
    %155 = arith.mulf %154, %149 : vector<4x128xf32>
    %156 = arith.addf %149, %155 : vector<4x128xf32>
    %cst_71 = arith.constant 0.797884583 : f32
    %157 = vector.broadcast %cst_71 : f32 to vector<4x128xf32>
    %158 = arith.mulf %157, %156 : vector<4x128xf32>
    %159 = math.tanh %158 : vector<4x128xf32>
    %cst_72 = arith.constant 1.000000e+00 : f32
    %160 = vector.broadcast %cst_72 : f32 to vector<4x128xf32>
    %161 = arith.addf %160, %159 : vector<4x128xf32>
    %162 = arith.mulf %151, %161 : vector<4x128xf32>
    %c0_73 = arith.constant 0 : index
    %c0_74 = arith.constant 0 : index
    %163 = vector.load %arg17[%c0_73, %c0_74] : memref<128x32xf32, #tpu.memory_space<vmem>>, vector<128x32xf32>
    %cst_75 = arith.constant dense<0.000000e+00> : vector<4x32xf32>
    %164 = tpu.matmul %162, %163, %cst_75 {dimension_numbers = #tpu.dot_dimension_numbers<[1], [0], [0], [1], [0, 0, 1, 1], [], []>} : vector<4x128xf32>, vector<128x32xf32>, vector<4x32xf32> -> vector<4x32xf32>
    %c0_76 = arith.constant 0 : index
    %c0_77 = arith.constant 0 : index
    %165 = vector.load %arg18[%c0_76, %c0_77] : memref<1x32xf32, #tpu.memory_space<vmem>>, vector<1x32xf32>
    %166 = vector.broadcast %165 : vector<1x32xf32> to vector<4x32xf32>
    %167 = arith.addf %164, %166 : vector<4x32xf32>
    %168 = arith.addf %120, %167 : vector<4x32xf32>
    %c0_78 = arith.constant 0 : index
    %c0_79 = arith.constant 0 : index
    %169 = vector.load %arg19[%c0_78, %c0_79] : memref<1x32xf32, #tpu.memory_space<vmem>>, vector<1x32xf32>
    %c0_80 = arith.constant 0 : index
    %c0_81 = arith.constant 0 : index
    %170 = vector.load %arg20[%c0_80, %c0_81] : memref<1x32xf32, #tpu.memory_space<vmem>>, vector<1x32xf32>
    %cst_82 = arith.constant dense<0.000000e+00> : vector<4xf32>
    %171 = vector.multi_reduction <add>, %168, %cst_82 [1] : vector<4x32xf32> to vector<4xf32>
    %172 = vector.shape_cast %171 : vector<4xf32> to vector<4x1xf32>
    %cst_83 = arith.constant 3.200000e+01 : f32
    %173 = vector.broadcast %cst_83 : f32 to vector<4x1xf32>
    %174 = arith.divf %172, %173 : vector<4x1xf32>
    %175 = vector.broadcast %174 : vector<4x1xf32> to vector<4x32xf32>
    %176 = arith.subf %168, %175 : vector<4x32xf32>
    %177 = arith.mulf %176, %176 : vector<4x32xf32>
    %cst_84 = arith.constant dense<0.000000e+00> : vector<4xf32>
    %178 = vector.multi_reduction <add>, %177, %cst_84 [1] : vector<4x32xf32> to vector<4xf32>
    %179 = vector.shape_cast %178 : vector<4xf32> to vector<4x1xf32>
    %cst_85 = arith.constant 3.200000e+01 : f32
    %180 = vector.broadcast %cst_85 : f32 to vector<4x1xf32>
    %181 = arith.divf %179, %180 : vector<4x1xf32>
    %182 = vector.broadcast %174 : vector<4x1xf32> to vector<4x32xf32>
    %183 = arith.subf %168, %182 : vector<4x32xf32>
    %cst_86 = arith.constant 9.99999974E-6 : f32
    %184 = vector.broadcast %cst_86 : f32 to vector<4x1xf32>
    %185 = arith.addf %181, %184 : vector<4x1xf32>
    %186 = math.rsqrt %185 : vector<4x1xf32>
    %187 = vector.broadcast %186 : vector<4x1xf32> to vector<4x32xf32>
    %188 = arith.mulf %183, %187 : vector<4x32xf32>
    %189 = vector.broadcast %169 : vector<1x32xf32> to vector<4x32xf32>
    %190 = arith.mulf %188, %189 : vector<4x32xf32>
    %191 = vector.broadcast %170 : vector<1x32xf32> to vector<4x32xf32>
    %192 = arith.addf %190, %191 : vector<4x32xf32>
    %c0_87 = arith.constant 0 : index
    %c0_88 = arith.constant 0 : index
    %193 = vector.load %arg21[%c0_87, %c0_88] : memref<32x96xf32, #tpu.memory_space<vmem>>, vector<32x96xf32>
    %cst_89 = arith.constant dense<0.000000e+00> : vector<4x96xf32>
    %194 = tpu.matmul %192, %193, %cst_89 {dimension_numbers = #tpu.dot_dimension_numbers<[1], [0], [0], [1], [0, 0, 1, 1], [], []>} : vector<4x32xf32>, vector<32x96xf32>, vector<4x96xf32> -> vector<4x96xf32>
    %c0_90 = arith.constant 0 : index
    %c0_91 = arith.constant 0 : index
    %195 = vector.load %arg22[%c0_90, %c0_91] : memref<1x96xf32, #tpu.memory_space<vmem>>, vector<1x96xf32>
    %196 = vector.broadcast %195 : vector<1x96xf32> to vector<4x96xf32>
    %197 = arith.addf %194, %196 : vector<4x96xf32>
    %198 = vector.extract_strided_slice %197 {offsets = [0, 0], sizes = [4, 32], strides = [1, 1]} : vector<4x96xf32> to vector<4x32xf32>
    %199 = vector.extract_strided_slice %197 {offsets = [0, 32], sizes = [4, 32], strides = [1, 1]} : vector<4x96xf32> to vector<4x32xf32>
    %200 = vector.extract_strided_slice %197 {offsets = [0, 64], sizes = [4, 32], strides = [1, 1]} : vector<4x96xf32> to vector<4x32xf32>
    %201 = vector.extract_strided_slice %198 {offsets = [0, 0], sizes = [4, 8], strides = [1, 1]} : vector<4x32xf32> to vector<4x8xf32>
    %202 = vector.extract_strided_slice %199 {offsets = [0, 0], sizes = [4, 8], strides = [1, 1]} : vector<4x32xf32> to vector<4x8xf32>
    %203 = vector.extract_strided_slice %200 {offsets = [0, 0], sizes = [4, 8], strides = [1, 1]} : vector<4x32xf32> to vector<4x8xf32>
    %cst_92 = arith.constant dense<0.000000e+00> : vector<4x4xf32>
    %204 = tpu.matmul %201, %202, %cst_92 {dimension_numbers = #tpu.dot_dimension_numbers<[1], [1], [0], [0], [0, 0, 1, 0], [], []>} : vector<4x8xf32>, vector<4x8xf32>, vector<4x4xf32> -> vector<4x4xf32>
    %cst_93 = arith.constant 0.353553385 : f32
    %205 = vector.broadcast %cst_93 : f32 to vector<4x4xf32>
    %206 = arith.mulf %204, %205 : vector<4x4xf32>
    %cst_94 = arith.constant dense<0xFF800000> : vector<4xf32>
    %207 = vector.multi_reduction <maximumf>, %206, %cst_94 [1] : vector<4x4xf32> to vector<4xf32>
    %208 = vector.shape_cast %207 : vector<4xf32> to vector<4x1xf32>
    %209 = vector.broadcast %208 : vector<4x1xf32> to vector<4x4xf32>
    %210 = arith.subf %206, %209 : vector<4x4xf32>
    %211 = math.exp %210 : vector<4x4xf32>
    %cst_95 = arith.constant dense<0.000000e+00> : vector<4xf32>
    %212 = vector.multi_reduction <add>, %211, %cst_95 [1] : vector<4x4xf32> to vector<4xf32>
    %213 = vector.shape_cast %212 : vector<4xf32> to vector<4x1xf32>
    %214 = tpu.reciprocal %213 {approx = true} : vector<4x1xf32> -> vector<4x1xf32>
    %215 = vector.broadcast %214 : vector<4x1xf32> to vector<4x4xf32>
    %216 = arith.mulf %211, %215 : vector<4x4xf32>
    %cst_96 = arith.constant dense<0.000000e+00> : vector<4x8xf32>
    %217 = tpu.matmul %216, %203, %cst_96 {dimension_numbers = #tpu.dot_dimension_numbers<[1], [0], [0], [1], [0, 0, 1, 1], [], []>} : vector<4x4xf32>, vector<4x8xf32>, vector<4x8xf32> -> vector<4x8xf32>
    %c0_97 = arith.constant 0 : index
    %c0_98 = arith.constant 0 : index
    %218 = vector.load %arg73[%c0_97, %c0_98] : memref<4x32xf32, #tpu.memory_space<vmem>>, vector<4x8xf32>
    tpu.vector_store %arg73[%c0_97, %c0_98], %217 {strides = array<i32>} : memref<4x32xf32, #tpu.memory_space<vmem>>, vector<4x8xf32>,
    %219 = vector.extract_strided_slice %198 {offsets = [0, 8], sizes = [4, 8], strides = [1, 1]} : vector<4x32xf32> to vector<4x8xf32>
    %220 = vector.extract_strided_slice %199 {offsets = [0, 8], sizes = [4, 8], strides = [1, 1]} : vector<4x32xf32> to vector<4x8xf32>
    %221 = vector.extract_strided_slice %200 {offsets = [0, 8], sizes = [4, 8], strides = [1, 1]} : vector<4x32xf32> to vector<4x8xf32>
    %cst_99 = arith.constant dense<0.000000e+00> : vector<4x4xf32>
    %222 = tpu.matmul %219, %220, %cst_99 {dimension_numbers = #tpu.dot_dimension_numbers<[1], [1], [0], [0], [0, 0, 1, 0], [], []>} : vector<4x8xf32>, vector<4x8xf32>, vector<4x4xf32> -> vector<4x4xf32>
    %cst_100 = arith.constant 0.353553385 : f32
    %223 = vector.broadcast %cst_100 : f32 to vector<4x4xf32>
    %224 = arith.mulf %222, %223 : vector<4x4xf32>
    %cst_101 = arith.constant dense<0xFF800000> : vector<4xf32>
    %225 = vector.multi_reduction <maximumf>, %224, %cst_101 [1] : vector<4x4xf32> to vector<4xf32>
    %226 = vector.shape_cast %225 : vector<4xf32> to vector<4x1xf32>
    %227 = vector.broadcast %226 : vector<4x1xf32> to vector<4x4xf32>
    %228 = arith.subf %224, %227 : vector<4x4xf32>
    %229 = math.exp %228 : vector<4x4xf32>
    %cst_102 = arith.constant dense<0.000000e+00> : vector<4xf32>
    %230 = vector.multi_reduction <add>, %229, %cst_102 [1] : vector<4x4xf32> to vector<4xf32>
    %231 = vector.shape_cast %230 : vector<4xf32> to vector<4x1xf32>
    %232 = tpu.reciprocal %231 {approx = true} : vector<4x1xf32> -> vector<4x1xf32>
    %233 = vector.broadcast %232 : vector<4x1xf32> to vector<4x4xf32>
    %234 = arith.mulf %229, %233 : vector<4x4xf32>
    %cst_103 = arith.constant dense<0.000000e+00> : vector<4x8xf32>
    %235 = tpu.matmul %234, %221, %cst_103 {dimension_numbers = #tpu.dot_dimension_numbers<[1], [0], [0], [1], [0, 0, 1, 1], [], []>} : vector<4x4xf32>, vector<4x8xf32>, vector<4x8xf32> -> vector<4x8xf32>
    %c0_104 = arith.constant 0 : index
    %c8_105 = arith.constant 8 : index
    %236 = vector.load %arg73[%c0_104, %c8_105] : memref<4x32xf32, #tpu.memory_space<vmem>>, vector<4x8xf32>
    tpu.vector_store %arg73[%c0_104, %c8_105], %235 {strides = array<i32>} : memref<4x32xf32, #tpu.memory_space<vmem>>, vector<4x8xf32>,
    %237 = vector.extract_strided_slice %198 {offsets = [0, 16], sizes = [4, 8], strides = [1, 1]} : vector<4x32xf32> to vector<4x8xf32>
    %238 = vector.extract_strided_slice %199 {offsets = [0, 16], sizes = [4, 8], strides = [1, 1]} : vector<4x32xf32> to vector<4x8xf32>
    %239 = vector.extract_strided_slice %200 {offsets = [0, 16], sizes = [4, 8], strides = [1, 1]} : vector<4x32xf32> to vector<4x8xf32>
    %cst_106 = arith.constant dense<0.000000e+00> : vector<4x4xf32>
    %240 = tpu.matmul %237, %238, %cst_106 {dimension_numbers = #tpu.dot_dimension_numbers<[1], [1], [0], [0], [0, 0, 1, 0], [], []>} : vector<4x8xf32>, vector<4x8xf32>, vector<4x4xf32> -> vector<4x4xf32>
    %cst_107 = arith.constant 0.353553385 : f32
    %241 = vector.broadcast %cst_107 : f32 to vector<4x4xf32>
    %242 = arith.mulf %240, %241 : vector<4x4xf32>
    %cst_108 = arith.constant dense<0xFF800000> : vector<4xf32>
    %243 = vector.multi_reduction <maximumf>, %242, %cst_108 [1] : vector<4x4xf32> to vector<4xf32>
    %244 = vector.shape_cast %243 : vector<4xf32> to vector<4x1xf32>
    %245 = vector.broadcast %244 : vector<4x1xf32> to vector<4x4xf32>
    %246 = arith.subf %242, %245 : vector<4x4xf32>
    %247 = math.exp %246 : vector<4x4xf32>
    %cst_109 = arith.constant dense<0.000000e+00> : vector<4xf32>
    %248 = vector.multi_reduction <add>, %247, %cst_109 [1] : vector<4x4xf32> to vector<4xf32>
    %249 = vector.shape_cast %248 : vector<4xf32> to vector<4x1xf32>
    %250 = tpu.reciprocal %249 {approx = true} : vector<4x1xf32> -> vector<4x1xf32>
    %251 = vector.broadcast %250 : vector<4x1xf32> to vector<4x4xf32>
    %252 = arith.mulf %247, %251 : vector<4x4xf32>
    %cst_110 = arith.constant dense<0.000000e+00> : vector<4x8xf32>
    %253 = tpu.matmul %252, %239, %cst_110 {dimension_numbers = #tpu.dot_dimension_numbers<[1], [0], [0], [1], [0, 0, 1, 1], [], []>} : vector<4x4xf32>, vector<4x8xf32>, vector<4x8xf32> -> vector<4x8xf32>
    %c0_111 = arith.constant 0 : index
    %c16_112 = arith.constant 16 : index
    %254 = vector.load %arg73[%c0_111, %c16_112] : memref<4x32xf32, #tpu.memory_space<vmem>>, vector<4x8xf32>
    tpu.vector_store %arg73[%c0_111, %c16_112], %253 {strides = array<i32>} : memref<4x32xf32, #tpu.memory_space<vmem>>, vector<4x8xf32>,
    %255 = vector.extract_strided_slice %198 {offsets = [0, 24], sizes = [4, 8], strides = [1, 1]} : vector<4x32xf32> to vector<4x8xf32>
    %256 = vector.extract_strided_slice %199 {offsets = [0, 24], sizes = [4, 8], strides = [1, 1]} : vector<4x32xf32> to vector<4x8xf32>
    %257 = vector.extract_strided_slice %200 {offsets = [0, 24], sizes = [4, 8], strides = [1, 1]} : vector<4x32xf32> to vector<4x8xf32>
    %cst_113 = arith.constant dense<0.000000e+00> : vector<4x4xf32>
    %258 = tpu.matmul %255, %256, %cst_113 {dimension_numbers = #tpu.dot_dimension_numbers<[1], [1], [0], [0], [0, 0, 1, 0], [], []>} : vector<4x8xf32>, vector<4x8xf32>, vector<4x4xf32> -> vector<4x4xf32>
    %cst_114 = arith.constant 0.353553385 : f32
    %259 = vector.broadcast %cst_114 : f32 to vector<4x4xf32>
    %260 = arith.mulf %258, %259 : vector<4x4xf32>
    %cst_115 = arith.constant dense<0xFF800000> : vector<4xf32>
    %261 = vector.multi_reduction <maximumf>, %260, %cst_115 [1] : vector<4x4xf32> to vector<4xf32>
    %262 = vector.shape_cast %261 : vector<4xf32> to vector<4x1xf32>
    %263 = vector.broadcast %262 : vector<4x1xf32> to vector<4x4xf32>
    %264 = arith.subf %260, %263 : vector<4x4xf32>
    %265 = math.exp %264 : vector<4x4xf32>
    %cst_116 = arith.constant dense<0.000000e+00> : vector<4xf32>
    %266 = vector.multi_reduction <add>, %265, %cst_116 [1] : vector<4x4xf32> to vector<4xf32>
    %267 = vector.shape_cast %266 : vector<4xf32> to vector<4x1xf32>
    %268 = tpu.reciprocal %267 {approx = true} : vector<4x1xf32> -> vector<4x1xf32>
    %269 = vector.broadcast %268 : vector<4x1xf32> to vector<4x4xf32>
    %270 = arith.mulf %265, %269 : vector<4x4xf32>
    %cst_117 = arith.constant dense<0.000000e+00> : vector<4x8xf32>
    %271 = tpu.matmul %270, %257, %cst_117 {dimension_numbers = #tpu.dot_dimension_numbers<[1], [0], [0], [1], [0, 0, 1, 1], [], []>} : vector<4x4xf32>, vector<4x8xf32>, vector<4x8xf32> -> vector<4x8xf32>
    %c0_118 = arith.constant 0 : index
    %c24_119 = arith.constant 24 : index
    %272 = vector.load %arg73[%c0_118, %c24_119] : memref<4x32xf32, #tpu.memory_space<vmem>>, vector<4x8xf32>
    tpu.vector_store %arg73[%c0_118, %c24_119], %271 {strides = array<i32>} : memref<4x32xf32, #tpu.memory_space<vmem>>, vector<4x8xf32>,
    %c0_120 = arith.constant 0 : index
    %c0_121 = arith.constant 0 : index
    %273 = vector.load %arg73[%c0_120, %c0_121] : memref<4x32xf32, #tpu.memory_space<vmem>>, vector<4x32xf32>
    %c0_122 = arith.constant 0 : index
    %c0_123 = arith.constant 0 : index
    %274 = vector.load %arg23[%c0_122, %c0_123] : memref<32x32xf32, #tpu.memory_space<vmem>>, vector<32x32xf32>
    %cst_124 = arith.constant dense<0.000000e+00> : vector<4x32xf32>
    %275 = tpu.matmul %273, %274, %cst_124 {dimension_numbers = #tpu.dot_dimension_numbers<[1], [0], [0], [1], [0, 0, 1, 1], [], []>} : vector<4x32xf32>, vector<32x32xf32>, vector<4x32xf32> -> vector<4x32xf32>
    %c0_125 = arith.constant 0 : index
    %c0_126 = arith.constant 0 : index
    %276 = vector.load %arg24[%c0_125, %c0_126] : memref<1x32xf32, #tpu.memory_space<vmem>>, vector<1x32xf32>
    %277 = vector.broadcast %276 : vector<1x32xf32> to vector<4x32xf32>
    %278 = arith.addf %275, %277 : vector<4x32xf32>
    %279 = arith.addf %168, %278 : vector<4x32xf32>
    %c0_127 = arith.constant 0 : index
    %c0_128 = arith.constant 0 : index
    %280 = vector.load %arg25[%c0_127, %c0_128] : memref<1x32xf32, #tpu.memory_space<vmem>>, vector<1x32xf32>
    %c0_129 = arith.constant 0 : index
    %c0_130 = arith.constant 0 : index
    %281 = vector.load %arg26[%c0_129, %c0_130] : memref<1x32xf32, #tpu.memory_space<vmem>>, vector<1x32xf32>
    %cst_131 = arith.constant dense<0.000000e+00> : vector<4xf32>
    %282 = vector.multi_reduction <add>, %279, %cst_131 [1] : vector<4x32xf32> to vector<4xf32>
    %283 = vector.shape_cast %282 : vector<4xf32> to vector<4x1xf32>
    %cst_132 = arith.constant 3.200000e+01 : f32
    %284 = vector.broadcast %cst_132 : f32 to vector<4x1xf32>
    %285 = arith.divf %283, %284 : vector<4x1xf32>
    %286 = vector.broadcast %285 : vector<4x1xf32> to vector<4x32xf32>
    %287 = arith.subf %279, %286 : vector<4x32xf32>
    %288 = arith.mulf %287, %287 : vector<4x32xf32>
    %cst_133 = arith.constant dense<0.000000e+00> : vector<4xf32>
    %289 = vector.multi_reduction <add>, %288, %cst_133 [1] : vector<4x32xf32> to vector<4xf32>
    %290 = vector.shape_cast %289 : vector<4xf32> to vector<4x1xf32>
    %cst_134 = arith.constant 3.200000e+01 : f32
    %291 = vector.broadcast %cst_134 : f32 to vector<4x1xf32>
    %292 = arith.divf %290, %291 : vector<4x1xf32>
    %293 = vector.broadcast %285 : vector<4x1xf32> to vector<4x32xf32>
    %294 = arith.subf %279, %293 : vector<4x32xf32>
    %cst_135 = arith.constant 9.99999974E-6 : f32
    %295 = vector.broadcast %cst_135 : f32 to vector<4x1xf32>
    %296 = arith.addf %292, %295 : vector<4x1xf32>
    %297 = math.rsqrt %296 : vector<4x1xf32>
    %298 = vector.broadcast %297 : vector<4x1xf32> to vector<4x32xf32>
    %299 = arith.mulf %294, %298 : vector<4x32xf32>
    %300 = vector.broadcast %280 : vector<1x32xf32> to vector<4x32xf32>
    %301 = arith.mulf %299, %300 : vector<4x32xf32>
    %302 = vector.broadcast %281 : vector<1x32xf32> to vector<4x32xf32>
    %303 = arith.addf %301, %302 : vector<4x32xf32>
    %c0_136 = arith.constant 0 : index
    %c0_137 = arith.constant 0 : index
    %304 = vector.load %arg27[%c0_136, %c0_137] : memref<32x128xf32, #tpu.memory_space<vmem>>, vector<32x128xf32>
    %cst_138 = arith.constant dense<0.000000e+00> : vector<4x128xf32>
    %305 = tpu.matmul %303, %304, %cst_138 {dimension_numbers = #tpu.dot_dimension_numbers<[1], [0], [0], [1], [0, 0, 1, 1], [], []>} : vector<4x32xf32>, vector<32x128xf32>, vector<4x128xf32> -> vector<4x128xf32>
    %c0_139 = arith.constant 0 : index
    %c0_140 = arith.constant 0 : index
    %306 = vector.load %arg28[%c0_139, %c0_140] : memref<1x128xf32, #tpu.memory_space<vmem>>, vector<1x128xf32>
    %307 = vector.broadcast %306 : vector<1x128xf32> to vector<4x128xf32>
    %308 = arith.addf %305, %307 : vector<4x128xf32>
    %cst_141 = arith.constant 5.000000e-01 : f32
    %309 = vector.broadcast %cst_141 : f32 to vector<4x128xf32>
    %310 = arith.mulf %309, %308 : vector<4x128xf32>
    %cst_142 = arith.constant 4.471500e-02 : f32
    %311 = vector.broadcast %cst_142 : f32 to vector<4x128xf32>
    %312 = arith.mulf %311, %308 : vector<4x128xf32>
    %313 = arith.mulf %312, %308 : vector<4x128xf32>
    %314 = arith.mulf %313, %308 : vector<4x128xf32>
    %315 = arith.addf %308, %314 : vector<4x128xf32>
    %cst_143 = arith.constant 0.797884583 : f32
    %316 = vector.broadcast %cst_143 : f32 to vector<4x128xf32>
    %317 = arith.mulf %316, %315 : vector<4x128xf32>
    %318 = math.tanh %317 : vector<4x128xf32>
    %cst_144 = arith.constant 1.000000e+00 : f32
    %319 = vector.broadcast %cst_144 : f32 to vector<4x128xf32>
    %320 = arith.addf %319, %318 : vector<4x128xf32>
    %321 = arith.mulf %310, %320 : vector<4x128xf32>
    %c0_145 = arith.constant 0 : index
    %c0_146 = arith.constant 0 : index
    %322 = vector.load %arg29[%c0_145, %c0_146] : memref<128x32xf32, #tpu.memory_space<vmem>>, vector<128x32xf32>
    %cst_147 = arith.constant dense<0.000000e+00> : vector<4x32xf32>
    %323 = tpu.matmul %321, %322, %cst_147 {dimension_numbers = #tpu.dot_dimension_numbers<[1], [0], [0], [1], [0, 0, 1, 1], [], []>} : vector<4x128xf32>, vector<128x32xf32>, vector<4x32xf32> -> vector<4x32xf32>
    %c0_148 = arith.constant 0 : index
    %c0_149 = arith.constant 0 : index
    %324 = vector.load %arg30[%c0_148, %c0_149] : memref<1x32xf32, #tpu.memory_space<vmem>>, vector<1x32xf32>
    %325 = vector.broadcast %324 : vector<1x32xf32> to vector<4x32xf32>
    %326 = arith.addf %323, %325 : vector<4x32xf32>
    %327 = arith.addf %279, %326 : vector<4x32xf32>
    %c0_150 = arith.constant 0 : index
    %c0_151 = arith.constant 0 : index
    %328 = vector.load %arg31[%c0_150, %c0_151] : memref<1x32xf32, #tpu.memory_space<vmem>>, vector<1x32xf32>
    %c0_152 = arith.constant 0 : index
    %c0_153 = arith.constant 0 : index
    %329 = vector.load %arg32[%c0_152, %c0_153] : memref<1x32xf32, #tpu.memory_space<vmem>>, vector<1x32xf32>
    %cst_154 = arith.constant dense<0.000000e+00> : vector<4xf32>
    %330 = vector.multi_reduction <add>, %327, %cst_154 [1] : vector<4x32xf32> to vector<4xf32>
    %331 = vector.shape_cast %330 : vector<4xf32> to vector<4x1xf32>
    %cst_155 = arith.constant 3.200000e+01 : f32
    %332 = vector.broadcast %cst_155 : f32 to vector<4x1xf32>
    %333 = arith.divf %331, %332 : vector<4x1xf32>
    %334 = vector.broadcast %333 : vector<4x1xf32> to vector<4x32xf32>
    %335 = arith.subf %327, %334 : vector<4x32xf32>
    %336 = arith.mulf %335, %335 : vector<4x32xf32>
    %cst_156 = arith.constant dense<0.000000e+00> : vector<4xf32>
    %337 = vector.multi_reduction <add>, %336, %cst_156 [1] : vector<4x32xf32> to vector<4xf32>
    %338 = vector.shape_cast %337 : vector<4xf32> to vector<4x1xf32>
    %cst_157 = arith.constant 3.200000e+01 : f32
    %339 = vector.broadcast %cst_157 : f32 to vector<4x1xf32>
    %340 = arith.divf %338, %339 : vector<4x1xf32>
    %341 = vector.broadcast %333 : vector<4x1xf32> to vector<4x32xf32>
    %342 = arith.subf %327, %341 : vector<4x32xf32>
    %cst_158 = arith.constant 9.99999974E-6 : f32
    %343 = vector.broadcast %cst_158 : f32 to vector<4x1xf32>
    %344 = arith.addf %340, %343 : vector<4x1xf32>
    %345 = math.rsqrt %344 : vector<4x1xf32>
    %346 = vector.broadcast %345 : vector<4x1xf32> to vector<4x32xf32>
    %347 = arith.mulf %342, %346 : vector<4x32xf32>
    %348 = vector.broadcast %328 : vector<1x32xf32> to vector<4x32xf32>
    %349 = arith.mulf %347, %348 : vector<4x32xf32>
    %350 = vector.broadcast %329 : vector<1x32xf32> to vector<4x32xf32>
    %351 = arith.addf %349, %350 : vector<4x32xf32>
    %c0_159 = arith.constant 0 : index
    %c0_160 = arith.constant 0 : index
    %352 = vector.load %arg33[%c0_159, %c0_160] : memref<32x32xf32, #tpu.memory_space<vmem>>, vector<32x32xf32>
    %cst_161 = arith.constant dense<0.000000e+00> : vector<4x32xf32>
    %353 = tpu.matmul %351, %352, %cst_161 {dimension_numbers = #tpu.dot_dimension_numbers<[1], [0], [0], [1], [0, 0, 1, 1], [], []>} : vector<4x32xf32>, vector<32x32xf32>, vector<4x32xf32> -> vector<4x32xf32>
    %c0_162 = arith.constant 0 : index
    %c0_163 = arith.constant 0 : index
    %354 = vector.load %arg34[%c0_162, %c0_163] : memref<1x32xf32, #tpu.memory_space<vmem>>, vector<1x32xf32>
    %355 = vector.broadcast %354 : vector<1x32xf32> to vector<4x32xf32>
    %356 = arith.addf %353, %355 : vector<4x32xf32>
    %c0_164 = arith.constant 0 : index
    %c0_165 = arith.constant 0 : index
    %c0_166 = arith.constant 0 : index
    %357 = vector.load %arg3[%c0_164, %c0_165, %c0_166] : memref<1x12x32xf32, #tpu.memory_space<vmem>>, vector<1x12x32xf32>
    %358 = vector.shape_cast %357 : vector<1x12x32xf32> to vector<12x32xf32>
    %c0_167 = arith.constant 0 : index
    %c0_168 = arith.constant 0 : index
    %c0_169 = arith.constant 0 : index
    %359 = vector.load %arg4[%c0_167, %c0_168, %c0_169] : memref<1x4x32xf32, #tpu.memory_space<vmem>>, vector<1x4x32xf32>
    %360 = vector.shape_cast %359 : vector<1x4x32xf32> to vector<4x32xf32>
    %c0_170 = arith.constant 0 : index
    %c0_171 = arith.constant 0 : index
    %361 = vector.load %arg35[%c0_170, %c0_171] : memref<1x32xf32, #tpu.memory_space<vmem>>, vector<1x32xf32>
    %362 = vector.shape_cast %361 : vector<1x32xf32> to vector<1x32xf32>
    %363 = vector.broadcast %362 : vector<1x32xf32> to vector<12x32xf32>
    %364 = arith.addf %363, %358 : vector<12x32xf32>
    %365 = arith.addf %356, %360 : vector<4x32xf32>
    %c0_172 = arith.constant 0 : index
    %c0_173 = arith.constant 0 : index
    %366 = vector.load %arg36[%c0_172, %c0_173] : memref<1x32xf32, #tpu.memory_space<vmem>>, vector<1x32xf32>
    %c0_174 = arith.constant 0 : index
    %c0_175 = arith.constant 0 : index
    %367 = vector.load %arg37[%c0_174, %c0_175] : memref<1x32xf32, #tpu.memory_space<vmem>>, vector<1x32xf32>
    %cst_176 = arith.constant dense<0.000000e+00> : vector<12xf32>
    %368 = vector.multi_reduction <add>, %364, %cst_176 [1] : vector<12x32xf32> to vector<12xf32>
    %369 = vector.shape_cast %368 : vector<12xf32> to vector<12x1xf32>
    %cst_177 = arith.constant 3.200000e+01 : f32
    %370 = vector.broadcast %cst_177 : f32 to vector<12x1xf32>
    %371 = arith.divf %369, %370 : vector<12x1xf32>
    %372 = vector.broadcast %371 : vector<12x1xf32> to vector<12x32xf32>
    %373 = arith.subf %364, %372 : vector<12x32xf32>
    %374 = arith.mulf %373, %373 : vector<12x32xf32>
    %cst_178 = arith.constant dense<0.000000e+00> : vector<12xf32>
    %375 = vector.multi_reduction <add>, %374, %cst_178 [1] : vector<12x32xf32> to vector<12xf32>
    %376 = vector.shape_cast %375 : vector<12xf32> to vector<12x1xf32>
    %cst_179 = arith.constant 3.200000e+01 : f32
    %377 = vector.broadcast %cst_179 : f32 to vector<12x1xf32>
    %378 = arith.divf %376, %377 : vector<12x1xf32>
    %379 = vector.broadcast %371 : vector<12x1xf32> to vector<12x32xf32>
    %380 = arith.subf %364, %379 : vector<12x32xf32>
    %cst_180 = arith.constant 9.99999974E-6 : f32
    %381 = vector.broadcast %cst_180 : f32 to vector<12x1xf32>
    %382 = arith.addf %378, %381 : vector<12x1xf32>
    %383 = math.rsqrt %382 : vector<12x1xf32>
    %384 = vector.broadcast %383 : vector<12x1xf32> to vector<12x32xf32>
    %385 = arith.mulf %380, %384 : vector<12x32xf32>
    %386 = vector.broadcast %366 : vector<1x32xf32> to vector<12x32xf32>
    %387 = arith.mulf %385, %386 : vector<12x32xf32>
    %388 = vector.broadcast %367 : vector<1x32xf32> to vector<12x32xf32>
    %389 = arith.addf %387, %388 : vector<12x32xf32>
    %c0_181 = arith.constant 0 : index
    %c0_182 = arith.constant 0 : index
    %390 = vector.load %arg38[%c0_181, %c0_182] : memref<32x32xf32, #tpu.memory_space<vmem>>, vector<32x32xf32>
    %cst_183 = arith.constant dense<0.000000e+00> : vector<12x32xf32>
    %391 = tpu.matmul %389, %390, %cst_183 {dimension_numbers = #tpu.dot_dimension_numbers<[1], [0], [0], [1], [0, 0, 1, 1], [], []>} : vector<12x32xf32>, vector<32x32xf32>, vector<12x32xf32> -> vector<12x32xf32>
    %c0_184 = arith.constant 0 : index
    %c0_185 = arith.constant 0 : index
    %392 = vector.load %arg39[%c0_184, %c0_185] : memref<1x32xf32, #tpu.memory_space<vmem>>, vector<1x32xf32>
    %393 = vector.broadcast %392 : vector<1x32xf32> to vector<12x32xf32>
    %394 = arith.addf %391, %393 : vector<12x32xf32>
    %c0_186 = arith.constant 0 : index
    %c0_187 = arith.constant 0 : index
    %395 = vector.load %arg40[%c0_186, %c0_187] : memref<32x32xf32, #tpu.memory_space<vmem>>, vector<32x32xf32>
    %cst_188 = arith.constant dense<0.000000e+00> : vector<4x32xf32>
    %396 = tpu.matmul %365, %395, %cst_188 {dimension_numbers = #tpu.dot_dimension_numbers<[1], [0], [0], [1], [0, 0, 1, 1], [], []>} : vector<4x32xf32>, vector<32x32xf32>, vector<4x32xf32> -> vector<4x32xf32>
    %c0_189 = arith.constant 0 : index
    %c0_190 = arith.constant 0 : index
    %397 = vector.load %arg41[%c0_189, %c0_190] : memref<1x32xf32, #tpu.memory_space<vmem>>, vector<1x32xf32>
    %398 = vector.broadcast %397 : vector<1x32xf32> to vector<4x32xf32>
    %399 = arith.addf %396, %398 : vector<4x32xf32>
    %c0_191 = arith.constant 0 : index
    %c0_192 = arith.constant 0 : index
    %400 = vector.load %arg42[%c0_191, %c0_192] : memref<32x32xf32, #tpu.memory_space<vmem>>, vector<32x32xf32>
    %cst_193 = arith.constant dense<0.000000e+00> : vector<4x32xf32>
    %401 = tpu.matmul %365, %400, %cst_193 {dimension_numbers = #tpu.dot_dimension_numbers<[1], [0], [0], [1], [0, 0, 1, 1], [], []>} : vector<4x32xf32>, vector<32x32xf32>, vector<4x32xf32> -> vector<4x32xf32>
    %c0_194 = arith.constant 0 : index
    %c0_195 = arith.constant 0 : index
    %402 = vector.load %arg43[%c0_194, %c0_195] : memref<1x32xf32, #tpu.memory_space<vmem>>, vector<1x32xf32>
    %403 = vector.broadcast %402 : vector<1x32xf32> to vector<4x32xf32>
    %404 = arith.addf %401, %403 : vector<4x32xf32>
    %405 = vector.extract_strided_slice %394 {offsets = [0, 0], sizes = [12, 8], strides = [1, 1]} : vector<12x32xf32> to vector<12x8xf32>
    %406 = vector.extract_strided_slice %399 {offsets = [0, 0], sizes = [4, 8], strides = [1, 1]} : vector<4x32xf32> to vector<4x8xf32>
    %407 = vector.extract_strided_slice %404 {offsets = [0, 0], sizes = [4, 8], strides = [1, 1]} : vector<4x32xf32> to vector<4x8xf32>
    %cst_196 = arith.constant dense<0.000000e+00> : vector<12x4xf32>
    %408 = tpu.matmul %405, %406, %cst_196 {dimension_numbers = #tpu.dot_dimension_numbers<[1], [1], [0], [0], [0, 0, 1, 0], [], []>} : vector<12x8xf32>, vector<4x8xf32>, vector<12x4xf32> -> vector<12x4xf32>
    %cst_197 = arith.constant 0.353553385 : f32
    %409 = vector.broadcast %cst_197 : f32 to vector<12x4xf32>
    %410 = arith.mulf %408, %409 : vector<12x4xf32>
    %cst_198 = arith.constant dense<0xFF800000> : vector<12xf32>
    %411 = vector.multi_reduction <maximumf>, %410, %cst_198 [1] : vector<12x4xf32> to vector<12xf32>
    %412 = vector.shape_cast %411 : vector<12xf32> to vector<12x1xf32>
    %413 = vector.broadcast %412 : vector<12x1xf32> to vector<12x4xf32>
    %414 = arith.subf %410, %413 : vector<12x4xf32>
    %415 = math.exp %414 : vector<12x4xf32>
    %cst_199 = arith.constant dense<0.000000e+00> : vector<12xf32>
    %416 = vector.multi_reduction <add>, %415, %cst_199 [1] : vector<12x4xf32> to vector<12xf32>
    %417 = vector.shape_cast %416 : vector<12xf32> to vector<12x1xf32>
    %418 = tpu.reciprocal %417 {approx = true} : vector<12x1xf32> -> vector<12x1xf32>
    %419 = vector.broadcast %418 : vector<12x1xf32> to vector<12x4xf32>
    %420 = arith.mulf %415, %419 : vector<12x4xf32>
    %cst_200 = arith.constant dense<0.000000e+00> : vector<12x8xf32>
    %421 = tpu.matmul %420, %407, %cst_200 {dimension_numbers = #tpu.dot_dimension_numbers<[1], [0], [0], [1], [0, 0, 1, 1], [], []>} : vector<12x4xf32>, vector<4x8xf32>, vector<12x8xf32> -> vector<12x8xf32>
    %c0_201 = arith.constant 0 : index
    %c0_202 = arith.constant 0 : index
    %422 = vector.load %arg74[%c0_201, %c0_202] : memref<12x32xf32, #tpu.memory_space<vmem>>, vector<12x8xf32>
    tpu.vector_store %arg74[%c0_201, %c0_202], %421 {strides = array<i32>} : memref<12x32xf32, #tpu.memory_space<vmem>>, vector<12x8xf32>,
    %423 = vector.extract_strided_slice %394 {offsets = [0, 8], sizes = [12, 8], strides = [1, 1]} : vector<12x32xf32> to vector<12x8xf32>
    %424 = vector.extract_strided_slice %399 {offsets = [0, 8], sizes = [4, 8], strides = [1, 1]} : vector<4x32xf32> to vector<4x8xf32>
    %425 = vector.extract_strided_slice %404 {offsets = [0, 8], sizes = [4, 8], strides = [1, 1]} : vector<4x32xf32> to vector<4x8xf32>
    %cst_203 = arith.constant dense<0.000000e+00> : vector<12x4xf32>
    %426 = tpu.matmul %423, %424, %cst_203 {dimension_numbers = #tpu.dot_dimension_numbers<[1], [1], [0], [0], [0, 0, 1, 0], [], []>} : vector<12x8xf32>, vector<4x8xf32>, vector<12x4xf32> -> vector<12x4xf32>
    %cst_204 = arith.constant 0.353553385 : f32
    %427 = vector.broadcast %cst_204 : f32 to vector<12x4xf32>
    %428 = arith.mulf %426, %427 : vector<12x4xf32>
    %cst_205 = arith.constant dense<0xFF800000> : vector<12xf32>
    %429 = vector.multi_reduction <maximumf>, %428, %cst_205 [1] : vector<12x4xf32> to vector<12xf32>
    %430 = vector.shape_cast %429 : vector<12xf32> to vector<12x1xf32>
    %431 = vector.broadcast %430 : vector<12x1xf32> to vector<12x4xf32>
    %432 = arith.subf %428, %431 : vector<12x4xf32>
    %433 = math.exp %432 : vector<12x4xf32>
    %cst_206 = arith.constant dense<0.000000e+00> : vector<12xf32>
    %434 = vector.multi_reduction <add>, %433, %cst_206 [1] : vector<12x4xf32> to vector<12xf32>
    %435 = vector.shape_cast %434 : vector<12xf32> to vector<12x1xf32>
    %436 = tpu.reciprocal %435 {approx = true} : vector<12x1xf32> -> vector<12x1xf32>
    %437 = vector.broadcast %436 : vector<12x1xf32> to vector<12x4xf32>
    %438 = arith.mulf %433, %437 : vector<12x4xf32>
    %cst_207 = arith.constant dense<0.000000e+00> : vector<12x8xf32>
    %439 = tpu.matmul %438, %425, %cst_207 {dimension_numbers = #tpu.dot_dimension_numbers<[1], [0], [0], [1], [0, 0, 1, 1], [], []>} : vector<12x4xf32>, vector<4x8xf32>, vector<12x8xf32> -> vector<12x8xf32>
    %c0_208 = arith.constant 0 : index
    %c8_209 = arith.constant 8 : index
    %440 = vector.load %arg74[%c0_208, %c8_209] : memref<12x32xf32, #tpu.memory_space<vmem>>, vector<12x8xf32>
    tpu.vector_store %arg74[%c0_208, %c8_209], %439 {strides = array<i32>} : memref<12x32xf32, #tpu.memory_space<vmem>>, vector<12x8xf32>,
    %441 = vector.extract_strided_slice %394 {offsets = [0, 16], sizes = [12, 8], strides = [1, 1]} : vector<12x32xf32> to vector<12x8xf32>
    %442 = vector.extract_strided_slice %399 {offsets = [0, 16], sizes = [4, 8], strides = [1, 1]} : vector<4x32xf32> to vector<4x8xf32>
    %443 = vector.extract_strided_slice %404 {offsets = [0, 16], sizes = [4, 8], strides = [1, 1]} : vector<4x32xf32> to vector<4x8xf32>
    %cst_210 = arith.constant dense<0.000000e+00> : vector<12x4xf32>
    %444 = tpu.matmul %441, %442, %cst_210 {dimension_numbers = #tpu.dot_dimension_numbers<[1], [1], [0], [0], [0, 0, 1, 0], [], []>} : vector<12x8xf32>, vector<4x8xf32>, vector<12x4xf32> -> vector<12x4xf32>
    %cst_211 = arith.constant 0.353553385 : f32
    %445 = vector.broadcast %cst_211 : f32 to vector<12x4xf32>
    %446 = arith.mulf %444, %445 : vector<12x4xf32>
    %cst_212 = arith.constant dense<0xFF800000> : vector<12xf32>
    %447 = vector.multi_reduction <maximumf>, %446, %cst_212 [1] : vector<12x4xf32> to vector<12xf32>
    %448 = vector.shape_cast %447 : vector<12xf32> to vector<12x1xf32>
    %449 = vector.broadcast %448 : vector<12x1xf32> to vector<12x4xf32>
    %450 = arith.subf %446, %449 : vector<12x4xf32>
    %451 = math.exp %450 : vector<12x4xf32>
    %cst_213 = arith.constant dense<0.000000e+00> : vector<12xf32>
    %452 = vector.multi_reduction <add>, %451, %cst_213 [1] : vector<12x4xf32> to vector<12xf32>
    %453 = vector.shape_cast %452 : vector<12xf32> to vector<12x1xf32>
    %454 = tpu.reciprocal %453 {approx = true} : vector<12x1xf32> -> vector<12x1xf32>
    %455 = vector.broadcast %454 : vector<12x1xf32> to vector<12x4xf32>
    %456 = arith.mulf %451, %455 : vector<12x4xf32>
    %cst_214 = arith.constant dense<0.000000e+00> : vector<12x8xf32>
    %457 = tpu.matmul %456, %443, %cst_214 {dimension_numbers = #tpu.dot_dimension_numbers<[1], [0], [0], [1], [0, 0, 1, 1], [], []>} : vector<12x4xf32>, vector<4x8xf32>, vector<12x8xf32> -> vector<12x8xf32>
    %c0_215 = arith.constant 0 : index
    %c16_216 = arith.constant 16 : index
    %458 = vector.load %arg74[%c0_215, %c16_216] : memref<12x32xf32, #tpu.memory_space<vmem>>, vector<12x8xf32>
    tpu.vector_store %arg74[%c0_215, %c16_216], %457 {strides = array<i32>} : memref<12x32xf32, #tpu.memory_space<vmem>>, vector<12x8xf32>,
    %459 = vector.extract_strided_slice %394 {offsets = [0, 24], sizes = [12, 8], strides = [1, 1]} : vector<12x32xf32> to vector<12x8xf32>
    %460 = vector.extract_strided_slice %399 {offsets = [0, 24], sizes = [4, 8], strides = [1, 1]} : vector<4x32xf32> to vector<4x8xf32>
    %461 = vector.extract_strided_slice %404 {offsets = [0, 24], sizes = [4, 8], strides = [1, 1]} : vector<4x32xf32> to vector<4x8xf32>
    %cst_217 = arith.constant dense<0.000000e+00> : vector<12x4xf32>
    %462 = tpu.matmul %459, %460, %cst_217 {dimension_numbers = #tpu.dot_dimension_numbers<[1], [1], [0], [0], [0, 0, 1, 0], [], []>} : vector<12x8xf32>, vector<4x8xf32>, vector<12x4xf32> -> vector<12x4xf32>
    %cst_218 = arith.constant 0.353553385 : f32
    %463 = vector.broadcast %cst_218 : f32 to vector<12x4xf32>
    %464 = arith.mulf %462, %463 : vector<12x4xf32>
    %cst_219 = arith.constant dense<0xFF800000> : vector<12xf32>
    %465 = vector.multi_reduction <maximumf>, %464, %cst_219 [1] : vector<12x4xf32> to vector<12xf32>
    %466 = vector.shape_cast %465 : vector<12xf32> to vector<12x1xf32>
    %467 = vector.broadcast %466 : vector<12x1xf32> to vector<12x4xf32>
    %468 = arith.subf %464, %467 : vector<12x4xf32>
    %469 = math.exp %468 : vector<12x4xf32>
    %cst_220 = arith.constant dense<0.000000e+00> : vector<12xf32>
    %470 = vector.multi_reduction <add>, %469, %cst_220 [1] : vector<12x4xf32> to vector<12xf32>
    %471 = vector.shape_cast %470 : vector<12xf32> to vector<12x1xf32>
    %472 = tpu.reciprocal %471 {approx = true} : vector<12x1xf32> -> vector<12x1xf32>
    %473 = vector.broadcast %472 : vector<12x1xf32> to vector<12x4xf32>
    %474 = arith.mulf %469, %473 : vector<12x4xf32>
    %cst_221 = arith.constant dense<0.000000e+00> : vector<12x8xf32>
    %475 = tpu.matmul %474, %461, %cst_221 {dimension_numbers = #tpu.dot_dimension_numbers<[1], [0], [0], [1], [0, 0, 1, 1], [], []>} : vector<12x4xf32>, vector<4x8xf32>, vector<12x8xf32> -> vector<12x8xf32>
    %c0_222 = arith.constant 0 : index
    %c24_223 = arith.constant 24 : index
    %476 = vector.load %arg74[%c0_222, %c24_223] : memref<12x32xf32, #tpu.memory_space<vmem>>, vector<12x8xf32>
    tpu.vector_store %arg74[%c0_222, %c24_223], %475 {strides = array<i32>} : memref<12x32xf32, #tpu.memory_space<vmem>>, vector<12x8xf32>,
    %c0_224 = arith.constant 0 : index
    %c0_225 = arith.constant 0 : index
    %477 = vector.load %arg74[%c0_224, %c0_225] : memref<12x32xf32, #tpu.memory_space<vmem>>, vector<12x32xf32>
    %c0_226 = arith.constant 0 : index
    %c0_227 = arith.constant 0 : index
    %478 = vector.load %arg44[%c0_226, %c0_227] : memref<32x32xf32, #tpu.memory_space<vmem>>, vector<32x32xf32>
    %cst_228 = arith.constant dense<0.000000e+00> : vector<12x32xf32>
    %479 = tpu.matmul %477, %478, %cst_228 {dimension_numbers = #tpu.dot_dimension_numbers<[1], [0], [0], [1], [0, 0, 1, 1], [], []>} : vector<12x32xf32>, vector<32x32xf32>, vector<12x32xf32> -> vector<12x32xf32>
    %c0_229 = arith.constant 0 : index
    %c0_230 = arith.constant 0 : index
    %480 = vector.load %arg45[%c0_229, %c0_230] : memref<1x32xf32, #tpu.memory_space<vmem>>, vector<1x32xf32>
    %481 = vector.broadcast %480 : vector<1x32xf32> to vector<12x32xf32>
    %482 = arith.addf %479, %481 : vector<12x32xf32>
    %483 = arith.addf %364, %482 : vector<12x32xf32>
    %c0_231 = arith.constant 0 : index
    %c0_232 = arith.constant 0 : index
    %484 = vector.load %arg46[%c0_231, %c0_232] : memref<1x32xf32, #tpu.memory_space<vmem>>, vector<1x32xf32>
    %c0_233 = arith.constant 0 : index
    %c0_234 = arith.constant 0 : index
    %485 = vector.load %arg47[%c0_233, %c0_234] : memref<1x32xf32, #tpu.memory_space<vmem>>, vector<1x32xf32>
    %cst_235 = arith.constant dense<0.000000e+00> : vector<12xf32>
    %486 = vector.multi_reduction <add>, %483, %cst_235 [1] : vector<12x32xf32> to vector<12xf32>
    %487 = vector.shape_cast %486 : vector<12xf32> to vector<12x1xf32>
    %cst_236 = arith.constant 3.200000e+01 : f32
    %488 = vector.broadcast %cst_236 : f32 to vector<12x1xf32>
    %489 = arith.divf %487, %488 : vector<12x1xf32>
    %490 = vector.broadcast %489 : vector<12x1xf32> to vector<12x32xf32>
    %491 = arith.subf %483, %490 : vector<12x32xf32>
    %492 = arith.mulf %491, %491 : vector<12x32xf32>
    %cst_237 = arith.constant dense<0.000000e+00> : vector<12xf32>
    %493 = vector.multi_reduction <add>, %492, %cst_237 [1] : vector<12x32xf32> to vector<12xf32>
    %494 = vector.shape_cast %493 : vector<12xf32> to vector<12x1xf32>
    %cst_238 = arith.constant 3.200000e+01 : f32
    %495 = vector.broadcast %cst_238 : f32 to vector<12x1xf32>
    %496 = arith.divf %494, %495 : vector<12x1xf32>
    %497 = vector.broadcast %489 : vector<12x1xf32> to vector<12x32xf32>
    %498 = arith.subf %483, %497 : vector<12x32xf32>
    %cst_239 = arith.constant 9.99999974E-6 : f32
    %499 = vector.broadcast %cst_239 : f32 to vector<12x1xf32>
    %500 = arith.addf %496, %499 : vector<12x1xf32>
    %501 = math.rsqrt %500 : vector<12x1xf32>
    %502 = vector.broadcast %501 : vector<12x1xf32> to vector<12x32xf32>
    %503 = arith.mulf %498, %502 : vector<12x32xf32>
    %504 = vector.broadcast %484 : vector<1x32xf32> to vector<12x32xf32>
    %505 = arith.mulf %503, %504 : vector<12x32xf32>
    %506 = vector.broadcast %485 : vector<1x32xf32> to vector<12x32xf32>
    %507 = arith.addf %505, %506 : vector<12x32xf32>
    %c0_240 = arith.constant 0 : index
    %c0_241 = arith.constant 0 : index
    %508 = vector.load %arg48[%c0_240, %c0_241] : memref<32x128xf32, #tpu.memory_space<vmem>>, vector<32x128xf32>
    %cst_242 = arith.constant dense<0.000000e+00> : vector<12x128xf32>
    %509 = tpu.matmul %507, %508, %cst_242 {dimension_numbers = #tpu.dot_dimension_numbers<[1], [0], [0], [1], [0, 0, 1, 1], [], []>} : vector<12x32xf32>, vector<32x128xf32>, vector<12x128xf32> -> vector<12x128xf32>
    %c0_243 = arith.constant 0 : index
    %c0_244 = arith.constant 0 : index
    %510 = vector.load %arg49[%c0_243, %c0_244] : memref<1x128xf32, #tpu.memory_space<vmem>>, vector<1x128xf32>
    %511 = vector.broadcast %510 : vector<1x128xf32> to vector<12x128xf32>
    %512 = arith.addf %509, %511 : vector<12x128xf32>
    %cst_245 = arith.constant 5.000000e-01 : f32
    %513 = vector.broadcast %cst_245 : f32 to vector<12x128xf32>
    %514 = arith.mulf %513, %512 : vector<12x128xf32>
    %cst_246 = arith.constant 4.471500e-02 : f32
    %515 = vector.broadcast %cst_246 : f32 to vector<12x128xf32>
    %516 = arith.mulf %515, %512 : vector<12x128xf32>
    %517 = arith.mulf %516, %512 : vector<12x128xf32>
    %518 = arith.mulf %517, %512 : vector<12x128xf32>
    %519 = arith.addf %512, %518 : vector<12x128xf32>
    %cst_247 = arith.constant 0.797884583 : f32
    %520 = vector.broadcast %cst_247 : f32 to vector<12x128xf32>
    %521 = arith.mulf %520, %519 : vector<12x128xf32>
    %522 = math.tanh %521 : vector<12x128xf32>
    %cst_248 = arith.constant 1.000000e+00 : f32
    %523 = vector.broadcast %cst_248 : f32 to vector<12x128xf32>
    %524 = arith.addf %523, %522 : vector<12x128xf32>
    %525 = arith.mulf %514, %524 : vector<12x128xf32>
    %c0_249 = arith.constant 0 : index
    %c0_250 = arith.constant 0 : index
    %526 = vector.load %arg50[%c0_249, %c0_250] : memref<128x32xf32, #tpu.memory_space<vmem>>, vector<128x32xf32>
    %cst_251 = arith.constant dense<0.000000e+00> : vector<12x32xf32>
    %527 = tpu.matmul %525, %526, %cst_251 {dimension_numbers = #tpu.dot_dimension_numbers<[1], [0], [0], [1], [0, 0, 1, 1], [], []>} : vector<12x128xf32>, vector<128x32xf32>, vector<12x32xf32> -> vector<12x32xf32>
    %c0_252 = arith.constant 0 : index
    %c0_253 = arith.constant 0 : index
    %528 = vector.load %arg51[%c0_252, %c0_253] : memref<1x32xf32, #tpu.memory_space<vmem>>, vector<1x32xf32>
    %529 = vector.broadcast %528 : vector<1x32xf32> to vector<12x32xf32>
    %530 = arith.addf %527, %529 : vector<12x32xf32>
    %531 = arith.addf %483, %530 : vector<12x32xf32>
    %532 = arith.addf %531, %358 : vector<12x32xf32>
    %533 = arith.addf %365, %360 : vector<4x32xf32>
    %c0_254 = arith.constant 0 : index
    %c0_255 = arith.constant 0 : index
    %534 = vector.load %arg52[%c0_254, %c0_255] : memref<1x32xf32, #tpu.memory_space<vmem>>, vector<1x32xf32>
    %c0_256 = arith.constant 0 : index
    %c0_257 = arith.constant 0 : index
    %535 = vector.load %arg53[%c0_256, %c0_257] : memref<1x32xf32, #tpu.memory_space<vmem>>, vector<1x32xf32>
    %cst_258 = arith.constant dense<0.000000e+00> : vector<12xf32>
    %536 = vector.multi_reduction <add>, %532, %cst_258 [1] : vector<12x32xf32> to vector<12xf32>
    %537 = vector.shape_cast %536 : vector<12xf32> to vector<12x1xf32>
    %cst_259 = arith.constant 3.200000e+01 : f32
    %538 = vector.broadcast %cst_259 : f32 to vector<12x1xf32>
    %539 = arith.divf %537, %538 : vector<12x1xf32>
    %540 = vector.broadcast %539 : vector<12x1xf32> to vector<12x32xf32>
    %541 = arith.subf %532, %540 : vector<12x32xf32>
    %542 = arith.mulf %541, %541 : vector<12x32xf32>
    %cst_260 = arith.constant dense<0.000000e+00> : vector<12xf32>
    %543 = vector.multi_reduction <add>, %542, %cst_260 [1] : vector<12x32xf32> to vector<12xf32>
    %544 = vector.shape_cast %543 : vector<12xf32> to vector<12x1xf32>
    %cst_261 = arith.constant 3.200000e+01 : f32
    %545 = vector.broadcast %cst_261 : f32 to vector<12x1xf32>
    %546 = arith.divf %544, %545 : vector<12x1xf32>
    %547 = vector.broadcast %539 : vector<12x1xf32> to vector<12x32xf32>
    %548 = arith.subf %532, %547 : vector<12x32xf32>
    %cst_262 = arith.constant 9.99999974E-6 : f32
    %549 = vector.broadcast %cst_262 : f32 to vector<12x1xf32>
    %550 = arith.addf %546, %549 : vector<12x1xf32>
    %551 = math.rsqrt %550 : vector<12x1xf32>
    %552 = vector.broadcast %551 : vector<12x1xf32> to vector<12x32xf32>
    %553 = arith.mulf %548, %552 : vector<12x32xf32>
    %554 = vector.broadcast %534 : vector<1x32xf32> to vector<12x32xf32>
    %555 = arith.mulf %553, %554 : vector<12x32xf32>
    %556 = vector.broadcast %535 : vector<1x32xf32> to vector<12x32xf32>
    %557 = arith.addf %555, %556 : vector<12x32xf32>
    %c0_263 = arith.constant 0 : index
    %c0_264 = arith.constant 0 : index
    %558 = vector.load %arg54[%c0_263, %c0_264] : memref<32x32xf32, #tpu.memory_space<vmem>>, vector<32x32xf32>
    %cst_265 = arith.constant dense<0.000000e+00> : vector<12x32xf32>
    %559 = tpu.matmul %557, %558, %cst_265 {dimension_numbers = #tpu.dot_dimension_numbers<[1], [0], [0], [1], [0, 0, 1, 1], [], []>} : vector<12x32xf32>, vector<32x32xf32>, vector<12x32xf32> -> vector<12x32xf32>
    %c0_266 = arith.constant 0 : index
    %c0_267 = arith.constant 0 : index
    %560 = vector.load %arg55[%c0_266, %c0_267] : memref<1x32xf32, #tpu.memory_space<vmem>>, vector<1x32xf32>
    %561 = vector.broadcast %560 : vector<1x32xf32> to vector<12x32xf32>
    %562 = arith.addf %559, %561 : vector<12x32xf32>
    %c0_268 = arith.constant 0 : index
    %c0_269 = arith.constant 0 : index
    %563 = vector.load %arg56[%c0_268, %c0_269] : memref<32x32xf32, #tpu.memory_space<vmem>>, vector<32x32xf32>
    %cst_270 = arith.constant dense<0.000000e+00> : vector<4x32xf32>
    %564 = tpu.matmul %533, %563, %cst_270 {dimension_numbers = #tpu.dot_dimension_numbers<[1], [0], [0], [1], [0, 0, 1, 1], [], []>} : vector<4x32xf32>, vector<32x32xf32>, vector<4x32xf32> -> vector<4x32xf32>
    %c0_271 = arith.constant 0 : index
    %c0_272 = arith.constant 0 : index
    %565 = vector.load %arg57[%c0_271, %c0_272] : memref<1x32xf32, #tpu.memory_space<vmem>>, vector<1x32xf32>
    %566 = vector.broadcast %565 : vector<1x32xf32> to vector<4x32xf32>
    %567 = arith.addf %564, %566 : vector<4x32xf32>
    %c0_273 = arith.constant 0 : index
    %c0_274 = arith.constant 0 : index
    %568 = vector.load %arg58[%c0_273, %c0_274] : memref<32x32xf32, #tpu.memory_space<vmem>>, vector<32x32xf32>
    %cst_275 = arith.constant dense<0.000000e+00> : vector<4x32xf32>
    %569 = tpu.matmul %533, %568, %cst_275 {dimension_numbers = #tpu.dot_dimension_numbers<[1], [0], [0], [1], [0, 0, 1, 1], [], []>} : vector<4x32xf32>, vector<32x32xf32>, vector<4x32xf32> -> vector<4x32xf32>
    %c0_276 = arith.constant 0 : index
    %c0_277 = arith.constant 0 : index
    %570 = vector.load %arg59[%c0_276, %c0_277] : memref<1x32xf32, #tpu.memory_space<vmem>>, vector<1x32xf32>
    %571 = vector.broadcast %570 : vector<1x32xf32> to vector<4x32xf32>
    %572 = arith.addf %569, %571 : vector<4x32xf32>
    %573 = vector.extract_strided_slice %562 {offsets = [0, 0], sizes = [12, 8], strides = [1, 1]} : vector<12x32xf32> to vector<12x8xf32>
    %574 = vector.extract_strided_slice %567 {offsets = [0, 0], sizes = [4, 8], strides = [1, 1]} : vector<4x32xf32> to vector<4x8xf32>
    %575 = vector.extract_strided_slice %572 {offsets = [0, 0], sizes = [4, 8], strides = [1, 1]} : vector<4x32xf32> to vector<4x8xf32>
    %cst_278 = arith.constant dense<0.000000e+00> : vector<12x4xf32>
    %576 = tpu.matmul %573, %574, %cst_278 {dimension_numbers = #tpu.dot_dimension_numbers<[1], [1], [0], [0], [0, 0, 1, 0], [], []>} : vector<12x8xf32>, vector<4x8xf32>, vector<12x4xf32> -> vector<12x4xf32>
    %cst_279 = arith.constant 0.353553385 : f32
    %577 = vector.broadcast %cst_279 : f32 to vector<12x4xf32>
    %578 = arith.mulf %576, %577 : vector<12x4xf32>
    %cst_280 = arith.constant dense<0xFF800000> : vector<12xf32>
    %579 = vector.multi_reduction <maximumf>, %578, %cst_280 [1] : vector<12x4xf32> to vector<12xf32>
    %580 = vector.shape_cast %579 : vector<12xf32> to vector<12x1xf32>
    %581 = vector.broadcast %580 : vector<12x1xf32> to vector<12x4xf32>
    %582 = arith.subf %578, %581 : vector<12x4xf32>
    %583 = math.exp %582 : vector<12x4xf32>
    %cst_281 = arith.constant dense<0.000000e+00> : vector<12xf32>
    %584 = vector.multi_reduction <add>, %583, %cst_281 [1] : vector<12x4xf32> to vector<12xf32>
    %585 = vector.shape_cast %584 : vector<12xf32> to vector<12x1xf32>
    %586 = tpu.reciprocal %585 {approx = true} : vector<12x1xf32> -> vector<12x1xf32>
    %587 = vector.broadcast %586 : vector<12x1xf32> to vector<12x4xf32>
    %588 = arith.mulf %583, %587 : vector<12x4xf32>
    %cst_282 = arith.constant dense<0.000000e+00> : vector<12x8xf32>
    %589 = tpu.matmul %588, %575, %cst_282 {dimension_numbers = #tpu.dot_dimension_numbers<[1], [0], [0], [1], [0, 0, 1, 1], [], []>} : vector<12x4xf32>, vector<4x8xf32>, vector<12x8xf32> -> vector<12x8xf32>
    %c0_283 = arith.constant 0 : index
    %c0_284 = arith.constant 0 : index
    %590 = vector.load %arg74[%c0_283, %c0_284] : memref<12x32xf32, #tpu.memory_space<vmem>>, vector<12x8xf32>
    tpu.vector_store %arg74[%c0_283, %c0_284], %589 {strides = array<i32>} : memref<12x32xf32, #tpu.memory_space<vmem>>, vector<12x8xf32>,
    %591 = vector.extract_strided_slice %562 {offsets = [0, 8], sizes = [12, 8], strides = [1, 1]} : vector<12x32xf32> to vector<12x8xf32>
    %592 = vector.extract_strided_slice %567 {offsets = [0, 8], sizes = [4, 8], strides = [1, 1]} : vector<4x32xf32> to vector<4x8xf32>
    %593 = vector.extract_strided_slice %572 {offsets = [0, 8], sizes = [4, 8], strides = [1, 1]} : vector<4x32xf32> to vector<4x8xf32>
    %cst_285 = arith.constant dense<0.000000e+00> : vector<12x4xf32>
    %594 = tpu.matmul %591, %592, %cst_285 {dimension_numbers = #tpu.dot_dimension_numbers<[1], [1], [0], [0], [0, 0, 1, 0], [], []>} : vector<12x8xf32>, vector<4x8xf32>, vector<12x4xf32> -> vector<12x4xf32>
    %cst_286 = arith.constant 0.353553385 : f32
    %595 = vector.broadcast %cst_286 : f32 to vector<12x4xf32>
    %596 = arith.mulf %594, %595 : vector<12x4xf32>
    %cst_287 = arith.constant dense<0xFF800000> : vector<12xf32>
    %597 = vector.multi_reduction <maximumf>, %596, %cst_287 [1] : vector<12x4xf32> to vector<12xf32>
    %598 = vector.shape_cast %597 : vector<12xf32> to vector<12x1xf32>
    %599 = vector.broadcast %598 : vector<12x1xf32> to vector<12x4xf32>
    %600 = arith.subf %596, %599 : vector<12x4xf32>
    %601 = math.exp %600 : vector<12x4xf32>
    %cst_288 = arith.constant dense<0.000000e+00> : vector<12xf32>
    %602 = vector.multi_reduction <add>, %601, %cst_288 [1] : vector<12x4xf32> to vector<12xf32>
    %603 = vector.shape_cast %602 : vector<12xf32> to vector<12x1xf32>
    %604 = tpu.reciprocal %603 {approx = true} : vector<12x1xf32> -> vector<12x1xf32>
    %605 = vector.broadcast %604 : vector<12x1xf32> to vector<12x4xf32>
    %606 = arith.mulf %601, %605 : vector<12x4xf32>
    %cst_289 = arith.constant dense<0.000000e+00> : vector<12x8xf32>
    %607 = tpu.matmul %606, %593, %cst_289 {dimension_numbers = #tpu.dot_dimension_numbers<[1], [0], [0], [1], [0, 0, 1, 1], [], []>} : vector<12x4xf32>, vector<4x8xf32>, vector<12x8xf32> -> vector<12x8xf32>
    %c0_290 = arith.constant 0 : index
    %c8_291 = arith.constant 8 : index
    %608 = vector.load %arg74[%c0_290, %c8_291] : memref<12x32xf32, #tpu.memory_space<vmem>>, vector<12x8xf32>
    tpu.vector_store %arg74[%c0_290, %c8_291], %607 {strides = array<i32>} : memref<12x32xf32, #tpu.memory_space<vmem>>, vector<12x8xf32>,
    %609 = vector.extract_strided_slice %562 {offsets = [0, 16], sizes = [12, 8], strides = [1, 1]} : vector<12x32xf32> to vector<12x8xf32>
    %610 = vector.extract_strided_slice %567 {offsets = [0, 16], sizes = [4, 8], strides = [1, 1]} : vector<4x32xf32> to vector<4x8xf32>
    %611 = vector.extract_strided_slice %572 {offsets = [0, 16], sizes = [4, 8], strides = [1, 1]} : vector<4x32xf32> to vector<4x8xf32>
    %cst_292 = arith.constant dense<0.000000e+00> : vector<12x4xf32>
    %612 = tpu.matmul %609, %610, %cst_292 {dimension_numbers = #tpu.dot_dimension_numbers<[1], [1], [0], [0], [0, 0, 1, 0], [], []>} : vector<12x8xf32>, vector<4x8xf32>, vector<12x4xf32> -> vector<12x4xf32>
    %cst_293 = arith.constant 0.353553385 : f32
    %613 = vector.broadcast %cst_293 : f32 to vector<12x4xf32>
    %614 = arith.mulf %612, %613 : vector<12x4xf32>
    %cst_294 = arith.constant dense<0xFF800000> : vector<12xf32>
    %615 = vector.multi_reduction <maximumf>, %614, %cst_294 [1] : vector<12x4xf32> to vector<12xf32>
    %616 = vector.shape_cast %615 : vector<12xf32> to vector<12x1xf32>
    %617 = vector.broadcast %616 : vector<12x1xf32> to vector<12x4xf32>
    %618 = arith.subf %614, %617 : vector<12x4xf32>
    %619 = math.exp %618 : vector<12x4xf32>
    %cst_295 = arith.constant dense<0.000000e+00> : vector<12xf32>
    %620 = vector.multi_reduction <add>, %619, %cst_295 [1] : vector<12x4xf32> to vector<12xf32>
    %621 = vector.shape_cast %620 : vector<12xf32> to vector<12x1xf32>
    %622 = tpu.reciprocal %621 {approx = true} : vector<12x1xf32> -> vector<12x1xf32>
    %623 = vector.broadcast %622 : vector<12x1xf32> to vector<12x4xf32>
    %624 = arith.mulf %619, %623 : vector<12x4xf32>
    %cst_296 = arith.constant dense<0.000000e+00> : vector<12x8xf32>
    %625 = tpu.matmul %624, %611, %cst_296 {dimension_numbers = #tpu.dot_dimension_numbers<[1], [0], [0], [1], [0, 0, 1, 1], [], []>} : vector<12x4xf32>, vector<4x8xf32>, vector<12x8xf32> -> vector<12x8xf32>
    %c0_297 = arith.constant 0 : index
    %c16_298 = arith.constant 16 : index
    %626 = vector.load %arg74[%c0_297, %c16_298] : memref<12x32xf32, #tpu.memory_space<vmem>>, vector<12x8xf32>
    tpu.vector_store %arg74[%c0_297, %c16_298], %625 {strides = array<i32>} : memref<12x32xf32, #tpu.memory_space<vmem>>, vector<12x8xf32>,
    %627 = vector.extract_strided_slice %562 {offsets = [0, 24], sizes = [12, 8], strides = [1, 1]} : vector<12x32xf32> to vector<12x8xf32>
    %628 = vector.extract_strided_slice %567 {offsets = [0, 24], sizes = [4, 8], strides = [1, 1]} : vector<4x32xf32> to vector<4x8xf32>
    %629 = vector.extract_strided_slice %572 {offsets = [0, 24], sizes = [4, 8], strides = [1, 1]} : vector<4x32xf32> to vector<4x8xf32>
    %cst_299 = arith.constant dense<0.000000e+00> : vector<12x4xf32>
    %630 = tpu.matmul %627, %628, %cst_299 {dimension_numbers = #tpu.dot_dimension_numbers<[1], [1], [0], [0], [0, 0, 1, 0], [], []>} : vector<12x8xf32>, vector<4x8xf32>, vector<12x4xf32> -> vector<12x4xf32>
    %cst_300 = arith.constant 0.353553385 : f32
    %631 = vector.broadcast %cst_300 : f32 to vector<12x4xf32>
    %632 = arith.mulf %630, %631 : vector<12x4xf32>
    %cst_301 = arith.constant dense<0xFF800000> : vector<12xf32>
    %633 = vector.multi_reduction <maximumf>, %632, %cst_301 [1] : vector<12x4xf32> to vector<12xf32>
    %634 = vector.shape_cast %633 : vector<12xf32> to vector<12x1xf32>
    %635 = vector.broadcast %634 : vector<12x1xf32> to vector<12x4xf32>
    %636 = arith.subf %632, %635 : vector<12x4xf32>
    %637 = math.exp %636 : vector<12x4xf32>
    %cst_302 = arith.constant dense<0.000000e+00> : vector<12xf32>
    %638 = vector.multi_reduction <add>, %637, %cst_302 [1] : vector<12x4xf32> to vector<12xf32>
    %639 = vector.shape_cast %638 : vector<12xf32> to vector<12x1xf32>
    %640 = tpu.reciprocal %639 {approx = true} : vector<12x1xf32> -> vector<12x1xf32>
    %641 = vector.broadcast %640 : vector<12x1xf32> to vector<12x4xf32>
    %642 = arith.mulf %637, %641 : vector<12x4xf32>
    %cst_303 = arith.constant dense<0.000000e+00> : vector<12x8xf32>
    %643 = tpu.matmul %642, %629, %cst_303 {dimension_numbers = #tpu.dot_dimension_numbers<[1], [0], [0], [1], [0, 0, 1, 1], [], []>} : vector<12x4xf32>, vector<4x8xf32>, vector<12x8xf32> -> vector<12x8xf32>
    %c0_304 = arith.constant 0 : index
    %c24_305 = arith.constant 24 : index
    %644 = vector.load %arg74[%c0_304, %c24_305] : memref<12x32xf32, #tpu.memory_space<vmem>>, vector<12x8xf32>
    tpu.vector_store %arg74[%c0_304, %c24_305], %643 {strides = array<i32>} : memref<12x32xf32, #tpu.memory_space<vmem>>, vector<12x8xf32>,
    %c0_306 = arith.constant 0 : index
    %c0_307 = arith.constant 0 : index
    %645 = vector.load %arg74[%c0_306, %c0_307] : memref<12x32xf32, #tpu.memory_space<vmem>>, vector<12x32xf32>
    %c0_308 = arith.constant 0 : index
    %c0_309 = arith.constant 0 : index
    %646 = vector.load %arg60[%c0_308, %c0_309] : memref<32x32xf32, #tpu.memory_space<vmem>>, vector<32x32xf32>
    %cst_310 = arith.constant dense<0.000000e+00> : vector<12x32xf32>
    %647 = tpu.matmul %645, %646, %cst_310 {dimension_numbers = #tpu.dot_dimension_numbers<[1], [0], [0], [1], [0, 0, 1, 1], [], []>} : vector<12x32xf32>, vector<32x32xf32>, vector<12x32xf32> -> vector<12x32xf32>
    %c0_311 = arith.constant 0 : index
    %c0_312 = arith.constant 0 : index
    %648 = vector.load %arg61[%c0_311, %c0_312] : memref<1x32xf32, #tpu.memory_space<vmem>>, vector<1x32xf32>
    %649 = vector.broadcast %648 : vector<1x32xf32> to vector<12x32xf32>
    %650 = arith.addf %647, %649 : vector<12x32xf32>
    %651 = arith.addf %532, %650 : vector<12x32xf32>
    %c0_313 = arith.constant 0 : index
    %c0_314 = arith.constant 0 : index
    %652 = vector.load %arg62[%c0_313, %c0_314] : memref<1x32xf32, #tpu.memory_space<vmem>>, vector<1x32xf32>
    %c0_315 = arith.constant 0 : index
    %c0_316 = arith.constant 0 : index
    %653 = vector.load %arg63[%c0_315, %c0_316] : memref<1x32xf32, #tpu.memory_space<vmem>>, vector<1x32xf32>
    %cst_317 = arith.constant dense<0.000000e+00> : vector<12xf32>
    %654 = vector.multi_reduction <add>, %651, %cst_317 [1] : vector<12x32xf32> to vector<12xf32>
    %655 = vector.shape_cast %654 : vector<12xf32> to vector<12x1xf32>
    %cst_318 = arith.constant 3.200000e+01 : f32
    %656 = vector.broadcast %cst_318 : f32 to vector<12x1xf32>
    %657 = arith.divf %655, %656 : vector<12x1xf32>
    %658 = vector.broadcast %657 : vector<12x1xf32> to vector<12x32xf32>
    %659 = arith.subf %651, %658 : vector<12x32xf32>
    %660 = arith.mulf %659, %659 : vector<12x32xf32>
    %cst_319 = arith.constant dense<0.000000e+00> : vector<12xf32>
    %661 = vector.multi_reduction <add>, %660, %cst_319 [1] : vector<12x32xf32> to vector<12xf32>
    %662 = vector.shape_cast %661 : vector<12xf32> to vector<12x1xf32>
    %cst_320 = arith.constant 3.200000e+01 : f32
    %663 = vector.broadcast %cst_320 : f32 to vector<12x1xf32>
    %664 = arith.divf %662, %663 : vector<12x1xf32>
    %665 = vector.broadcast %657 : vector<12x1xf32> to vector<12x32xf32>
    %666 = arith.subf %651, %665 : vector<12x32xf32>
    %cst_321 = arith.constant 9.99999974E-6 : f32
    %667 = vector.broadcast %cst_321 : f32 to vector<12x1xf32>
    %668 = arith.addf %664, %667 : vector<12x1xf32>
    %669 = math.rsqrt %668 : vector<12x1xf32>
    %670 = vector.broadcast %669 : vector<12x1xf32> to vector<12x32xf32>
    %671 = arith.mulf %666, %670 : vector<12x32xf32>
    %672 = vector.broadcast %652 : vector<1x32xf32> to vector<12x32xf32>
    %673 = arith.mulf %671, %672 : vector<12x32xf32>
    %674 = vector.broadcast %653 : vector<1x32xf32> to vector<12x32xf32>
    %675 = arith.addf %673, %674 : vector<12x32xf32>
    %c0_322 = arith.constant 0 : index
    %c0_323 = arith.constant 0 : index
    %676 = vector.load %arg64[%c0_322, %c0_323] : memref<32x128xf32, #tpu.memory_space<vmem>>, vector<32x128xf32>
    %cst_324 = arith.constant dense<0.000000e+00> : vector<12x128xf32>
    %677 = tpu.matmul %675, %676, %cst_324 {dimension_numbers = #tpu.dot_dimension_numbers<[1], [0], [0], [1], [0, 0, 1, 1], [], []>} : vector<12x32xf32>, vector<32x128xf32>, vector<12x128xf32> -> vector<12x128xf32>
    %c0_325 = arith.constant 0 : index
    %c0_326 = arith.constant 0 : index
    %678 = vector.load %arg65[%c0_325, %c0_326] : memref<1x128xf32, #tpu.memory_space<vmem>>, vector<1x128xf32>
    %679 = vector.broadcast %678 : vector<1x128xf32> to vector<12x128xf32>
    %680 = arith.addf %677, %679 : vector<12x128xf32>
    %cst_327 = arith.constant 5.000000e-01 : f32
    %681 = vector.broadcast %cst_327 : f32 to vector<12x128xf32>
    %682 = arith.mulf %681, %680 : vector<12x128xf32>
    %cst_328 = arith.constant 4.471500e-02 : f32
    %683 = vector.broadcast %cst_328 : f32 to vector<12x128xf32>
    %684 = arith.mulf %683, %680 : vector<12x128xf32>
    %685 = arith.mulf %684, %680 : vector<12x128xf32>
    %686 = arith.mulf %685, %680 : vector<12x128xf32>
    %687 = arith.addf %680, %686 : vector<12x128xf32>
    %cst_329 = arith.constant 0.797884583 : f32
    %688 = vector.broadcast %cst_329 : f32 to vector<12x128xf32>
    %689 = arith.mulf %688, %687 : vector<12x128xf32>
    %690 = math.tanh %689 : vector<12x128xf32>
    %cst_330 = arith.constant 1.000000e+00 : f32
    %691 = vector.broadcast %cst_330 : f32 to vector<12x128xf32>
    %692 = arith.addf %691, %690 : vector<12x128xf32>
    %693 = arith.mulf %682, %692 : vector<12x128xf32>
    %c0_331 = arith.constant 0 : index
    %c0_332 = arith.constant 0 : index
    %694 = vector.load %arg66[%c0_331, %c0_332] : memref<128x32xf32, #tpu.memory_space<vmem>>, vector<128x32xf32>
    %cst_333 = arith.constant dense<0.000000e+00> : vector<12x32xf32>
    %695 = tpu.matmul %693, %694, %cst_333 {dimension_numbers = #tpu.dot_dimension_numbers<[1], [0], [0], [1], [0, 0, 1, 1], [], []>} : vector<12x128xf32>, vector<128x32xf32>, vector<12x32xf32> -> vector<12x32xf32>
    %c0_334 = arith.constant 0 : index
    %c0_335 = arith.constant 0 : index
    %696 = vector.load %arg67[%c0_334, %c0_335] : memref<1x32xf32, #tpu.memory_space<vmem>>, vector<1x32xf32>
    %697 = vector.broadcast %696 : vector<1x32xf32> to vector<12x32xf32>
    %698 = arith.addf %695, %697 : vector<12x32xf32>
    %699 = arith.addf %651, %698 : vector<12x32xf32>
    %c0_336 = arith.constant 0 : index
    %c0_337 = arith.constant 0 : index
    %700 = vector.load %arg68[%c0_336, %c0_337] : memref<1x32xf32, #tpu.memory_space<vmem>>, vector<1x32xf32>
    %c0_338 = arith.constant 0 : index
    %c0_339 = arith.constant 0 : index
    %701 = vector.load %arg69[%c0_338, %c0_339] : memref<1x32xf32, #tpu.memory_space<vmem>>, vector<1x32xf32>
    %cst_340 = arith.constant dense<0.000000e+00> : vector<12xf32>
    %702 = vector.multi_reduction <add>, %699, %cst_340 [1] : vector<12x32xf32> to vector<12xf32>
    %703 = vector.shape_cast %702 : vector<12xf32> to vector<12x1xf32>
    %cst_341 = arith.constant 3.200000e+01 : f32
    %704 = vector.broadcast %cst_341 : f32 to vector<12x1xf32>
    %705 = arith.divf %703, %704 : vector<12x1xf32>
    %706 = vector.broadcast %705 : vector<12x1xf32> to vector<12x32xf32>
    %707 = arith.subf %699, %706 : vector<12x32xf32>
    %708 = arith.mulf %707, %707 : vector<12x32xf32>
    %cst_342 = arith.constant dense<0.000000e+00> : vector<12xf32>
    %709 = vector.multi_reduction <add>, %708, %cst_342 [1] : vector<12x32xf32> to vector<12xf32>
    %710 = vector.shape_cast %709 : vector<12xf32> to vector<12x1xf32>
    %cst_343 = arith.constant 3.200000e+01 : f32
    %711 = vector.broadcast %cst_343 : f32 to vector<12x1xf32>
    %712 = arith.divf %710, %711 : vector<12x1xf32>
    %713 = vector.broadcast %705 : vector<12x1xf32> to vector<12x32xf32>
    %714 = arith.subf %699, %713 : vector<12x32xf32>
    %cst_344 = arith.constant 9.99999974E-6 : f32
    %715 = vector.broadcast %cst_344 : f32 to vector<12x1xf32>
    %716 = arith.addf %712, %715 : vector<12x1xf32>
    %717 = math.rsqrt %716 : vector<12x1xf32>
    %718 = vector.broadcast %717 : vector<12x1xf32> to vector<12x32xf32>
    %719 = arith.mulf %714, %718 : vector<12x32xf32>
    %720 = vector.broadcast %700 : vector<1x32xf32> to vector<12x32xf32>
    %721 = arith.mulf %719, %720 : vector<12x32xf32>
    %722 = vector.broadcast %701 : vector<1x32xf32> to vector<12x32xf32>
    %723 = arith.addf %721, %722 : vector<12x32xf32>
    %724 = tpu.concatenate %533, %723 in 0 : vector<4x32xf32>, vector<12x32xf32> -> vector<16x32xf32>
    %c0_345 = arith.constant 0 : index
    %c0_346 = arith.constant 0 : index
    %725 = vector.load %arg70[%c0_345, %c0_346] : memref<32x64xf32, #tpu.memory_space<vmem>>, vector<32x64xf32>
    %cst_347 = arith.constant dense<0.000000e+00> : vector<16x64xf32>
    %726 = tpu.matmul %724, %725, %cst_347 {dimension_numbers = #tpu.dot_dimension_numbers<[1], [0], [0], [1], [0, 0, 1, 1], [], []>} : vector<16x32xf32>, vector<32x64xf32>, vector<16x64xf32> -> vector<16x64xf32>
    %c0_348 = arith.constant 0 : index
    %c0_349 = arith.constant 0 : index
    %727 = vector.load %arg71[%c0_348, %c0_349] : memref<1x64xf32, #tpu.memory_space<vmem>>, vector<1x64xf32>
    %728 = vector.broadcast %727 : vector<1x64xf32> to vector<16x64xf32>
    %729 = arith.addf %726, %728 : vector<16x64xf32>
    %c0_350 = arith.constant 0 : index
    %c0_351 = arith.constant 0 : index
    %c0_352 = arith.constant 0 : index
    %730 = vector.load %arg72[%c0_350, %c0_351, %c0_352] : memref<1x16x64xf32, #tpu.memory_space<vmem>>, vector<1x16x64xf32>
    %731 = vector.shape_cast %730 : vector<1x16x64xf32> to vector<16x64xf32>
    %732 = vector.shape_cast %729 : vector<16x64xf32> to vector<1x16x64xf32>
    tpu.vector_store %arg72[%c0_350, %c0_351, %c0_352], %732 {strides = array<i32>} : memref<1x16x64xf32, #tpu.memory_space<vmem>>, vector<1x16x64xf32>,
    return
  }
  func.func @transform_0(%arg0: i32) -> (i32, i32, i32) {
    %c0_i32 = arith.constant 0 : i32
    %c0_i32_0 = arith.constant 0 : i32
    %c0_i32_1 = arith.constant 0 : i32
    return %arg0, %c0_i32, %c0_i32_0 : i32, i32, i32
  }
  func.func @transform_1(%arg0: i32) -> (i32, i32, i32) {
    %c0_i32 = arith.constant 0 : i32
    %c0_i32_0 = arith.constant 0 : i32
    %c0_i32_1 = arith.constant 0 : i32
    return %arg0, %c0_i32, %c0_i32_0 : i32, i32, i32
  }
  func.func @transform_2(%arg0: i32) -> (i32, i32, i32) {
    %c0_i32 = arith.constant 0 : i32
    %c0_i32_0 = arith.constant 0 : i32
    %c0_i32_1 = arith.constant 0 : i32
    return %arg0, %c0_i32, %c0_i32_0 : i32, i32, i32
  }
  func.func @transform_3(%arg0: i32) -> (i32, i32, i32) {
    %c0_i32 = arith.constant 0 : i32
    %c0_i32_0 = arith.constant 0 : i32
    %c0_i32_1 = arith.constant 0 : i32
    return %arg0, %c0_i32, %c0_i32_0 : i32, i32, i32
  }
  func.func @transform_4(%arg0: i32) -> (i32, i32) {
    %c0_i32 = arith.constant 0 : i32
    %c0_i32_0 = arith.constant 0 : i32
    %c0_i32_1 = arith.constant 0 : i32
    return %c0_i32, %c0_i32_0 : i32, i32
  }
  func.func @transform_5(%arg0: i32) -> (i32, i32) {
    %c0_i32 = arith.constant 0 : i32
    %c0_i32_0 = arith.constant 0 : i32
    %c0_i32_1 = arith.constant 0 : i32
    return %c0_i32, %c0_i32_0 : i32, i32
  }
  func.func @transform_6(%arg0: i32) -> (i32, i32) {
    %c0_i32 = arith.constant 0 : i32
    %c0_i32_0 = arith.constant 0 : i32
    %c0_i32_1 = arith.constant 0 : i32
    return %c0_i32, %c0_i32_0 : i32, i32
  }
  func.func @transform_7(%arg0: i32) -> (i32, i32) {
    %c0_i32 = arith.constant 0 : i32
    %c0_i32_0 = arith.constant 0 : i32
    %c0_i32_1 = arith.constant 0 : i32
    return %c0_i32, %c0_i32_0 : i32, i32
  }
  func.func @transform_8(%arg0: i32) -> (i32, i32) {
    %c0_i32 = arith.constant 0 : i32
    %c0_i32_0 = arith.constant 0 : i32
    %c0_i32_1 = arith.constant 0 : i32
    return %c0_i32, %c0_i32_0 : i32, i32
  }
  func.func @transform_9(%arg0: i32) -> (i32, i32) {
    %c0_i32 = arith.constant 0 : i32
    %c0_i32_0 = arith.constant 0 : i32
    %c0_i32_1 = arith.constant 0 : i32
    return %c0_i32, %c0_i32_0 : i32, i32
  }
  func.func @transform_10(%arg0: i32) -> (i32, i32) {
    %c0_i32 = arith.constant 0 : i32
    %c0_i32_0 = arith.constant 0 : i32
    %c0_i32_1 = arith.constant 0 : i32
    return %c0_i32, %c0_i32_0 : i32, i32
  }
  func.func @transform_11(%arg0: i32) -> (i32, i32) {
    %c0_i32 = arith.constant 0 : i32
    %c0_i32_0 = arith.constant 0 : i32
    %c0_i32_1 = arith.constant 0 : i32
    return %c0_i32, %c0_i32_0 : i32, i32
  }
  func.func @transform_12(%arg0: i32) -> (i32, i32) {
    %c0_i32 = arith.constant 0 : i32
    %c0_i32_0 = arith.constant 0 : i32
    %c0_i32_1 = arith.constant 0 : i32
    return %c0_i32, %c0_i32_0 : i32, i32
  }
  func.func @transform_13(%arg0: i32) -> (i32, i32) {
    %c0_i32 = arith.constant 0 : i32
    %c0_i32_0 = arith.constant 0 : i32
    %c0_i32_1 = arith.constant 0 : i32
    return %c0_i32, %c0_i32_0 : i32, i32
  }
  func.func @transform_14(%arg0: i32) -> (i32, i32) {
    %c0_i32 = arith.constant 0 : i32
    %c0_i32_0 = arith.constant 0 : i32
    %c0_i32_1 = arith.constant 0 : i32
    return %c0_i32, %c0_i32_0 : i32, i32
  }
  func.func @transform_15(%arg0: i32) -> (i32, i32) {
    %c0_i32 = arith.constant 0 : i32
    %c0_i32_0 = arith.constant 0 : i32
    %c0_i32_1 = arith.constant 0 : i32
    return %c0_i32, %c0_i32_0 : i32, i32
  }
  func.func @transform_16(%arg0: i32) -> (i32, i32) {
    %c0_i32 = arith.constant 0 : i32
    %c0_i32_0 = arith.constant 0 : i32
    %c0_i32_1 = arith.constant 0 : i32
    return %c0_i32, %c0_i32_0 : i32, i32
  }
  func.func @transform_17(%arg0: i32) -> (i32, i32) {
    %c0_i32 = arith.constant 0 : i32
    %c0_i32_0 = arith.constant 0 : i32
    %c0_i32_1 = arith.constant 0 : i32
    return %c0_i32, %c0_i32_0 : i32, i32
  }
  func.func @transform_18(%arg0: i32) -> (i32, i32) {
    %c0_i32 = arith.constant 0 : i32
    %c0_i32_0 = arith.constant 0 : i32
    %c0_i32_1 = arith.constant 0 : i32
    return %c0_i32, %c0_i32_0 : i32, i32
  }
  func.func @transform_19(%arg0: i32) -> (i32, i32) {
    %c0_i32 = arith.constant 0 : i32
    %c0_i32_0 = arith.constant 0 : i32
    %c0_i32_1 = arith.constant 0 : i32
    return %c0_i32, %c0_i32_0 : i32, i32
  }
  func.func @transform_20(%arg0: i32) -> (i32, i32) {
    %c0_i32 = arith.constant 0 : i32
    %c0_i32_0 = arith.constant 0 : i32
    %c0_i32_1 = arith.constant 0 : i32
    return %c0_i32, %c0_i32_0 : i32, i32
  }
  func.func @transform_21(%arg0: i32) -> (i32, i32) {
    %c0_i32 = arith.constant 0 : i32
    %c0_i32_0 = arith.constant 0 : i32
    %c0_i32_1 = arith.constant 0 : i32
    return %c0_i32, %c0_i32_0 : i32, i32
  }
  func.func @transform_22(%arg0: i32) -> (i32, i32) {
    %c0_i32 = arith.constant 0 : i32
    %c0_i32_0 = arith.constant 0 : i32
    %c0_i32_1 = arith.constant 0 : i32
    return %c0_i32, %c0_i32_0 : i32, i32
  }
  func.func @transform_23(%arg0: i32) -> (i32, i32) {
    %c0_i32 = arith.constant 0 : i32
    %c0_i32_0 = arith.constant 0 : i32
    %c0_i32_1 = arith.constant 0 : i32
    return %c0_i32, %c0_i32_0 : i32, i32
  }
  func.func @transform_24(%arg0: i32) -> (i32, i32) {
    %c0_i32 = arith.constant 0 : i32
    %c0_i32_0 = arith.constant 0 : i32
    %c0_i32_1 = arith.constant 0 : i32
    return %c0_i32, %c0_i32_0 : i32, i32
  }
  func.func @transform_25(%arg0: i32) -> (i32, i32) {
    %c0_i32 = arith.constant 0 : i32
    %c0_i32_0 = arith.constant 0 : i32
    %c0_i32_1 = arith.constant 0 : i32
    return %c0_i32, %c0_i32_0 : i32, i32
  }
  func.func @transform_26(%arg0: i32) -> (i32, i32) {
    %c0_i32 = arith.constant 0 : i32
    %c0_i32_0 = arith.constant 0 : i32
    %c0_i32_1 = arith.constant 0 : i32
    return %c0_i32, %c0_i32_0 : i32, i32
  }
  func.func @transform_27(%arg0: i32) -> (i32, i32) {
    %c0_i32 = arith.constant 0 : i32
    %c0_i32_0 = arith.constant 0 : i32
    %c0_i32_1 = arith.constant 0 : i32
    return %c0_i32, %c0_i32_0 : i32, i32
  }
  func.func @transform_28(%arg0: i32) -> (i32, i32) {
    %c0_i32 = arith.constant 0 : i32
    %c0_i32_0 = arith.constant 0 : i32
    %c0_i32_1 = arith.constant 0 : i32
    return %c0_i32, %c0_i32_0 : i32, i32
  }
  func.func @transform_29(%arg0: i32) -> (i32, i32) {
    %c0_i32 = arith.constant 0 : i32
    %c0_i32_0 = arith.constant 0 : i32
    %c0_i32_1 = arith.constant 0 : i32
    return %c0_i32, %c0_i32_0 : i32, i32
  }
  func.func @transform_30(%arg0: i32) -> (i32, i32) {
    %c0_i32 = arith.constant 0 : i32
    %c0_i32_0 = arith.constant 0 : i32
    %c0_i32_1 = arith.constant 0 : i32
    return %c0_i32, %c0_i32_0 : i32, i32
  }
  func.func @transform_31(%arg0: i32) -> (i32, i32) {
    %c0_i32 = arith.constant 0 : i32
    %c0_i32_0 = arith.constant 0 : i32
    %c0_i32_1 = arith.constant 0 : i32
    return %c0_i32, %c0_i32_0 : i32, i32
  }
  func.func @transform_32(%arg0: i32) -> (i32, i32) {
    %c0_i32 = arith.constant 0 : i32
    %c0_i32_0 = arith.constant 0 : i32
    %c0_i32_1 = arith.constant 0 : i32
    return %c0_i32, %c0_i32_0 : i32, i32
  }
  func.func @transform_33(%arg0: i32) -> (i32, i32) {
    %c0_i32 = arith.constant 0 : i32
    %c0_i32_0 = arith.constant 0 : i32
    %c0_i32_1 = arith.constant 0 : i32
    return %c0_i32, %c0_i32_0 : i32, i32
  }
  func.func @transform_34(%arg0: i32) -> (i32, i32) {
    %c0_i32 = arith.constant 0 : i32
    %c0_i32_0 = arith.constant 0 : i32
    %c0_i32_1 = arith.constant 0 : i32
    return %c0_i32, %c0_i32_0 : i32, i32
  }
  func.func @transform_35(%arg0: i32) -> (i32, i32) {
    %c0_i32 = arith.constant 0 : i32
    %c0_i32_0 = arith.constant 0 : i32
    %c0_i32_1 = arith.constant 0 : i32
    return %c0_i32, %c0_i32_0 : i32, i32
  }
  func.func @transform_36(%arg0: i32) -> (i32, i32) {
    %c0_i32 = arith.constant 0 : i32
    %c0_i32_0 = arith.constant 0 : i32
    %c0_i32_1 = arith.constant 0 : i32
    return %c0_i32, %c0_i32_0 : i32, i32
  }
  func.func @transform_37(%arg0: i32) -> (i32, i32) {
    %c0_i32 = arith.constant 0 : i32
    %c0_i32_0 = arith.constant 0 : i32
    %c0_i32_1 = arith.constant 0 : i32
    return %c0_i32, %c0_i32_0 : i32, i32
  }
  func.func @transform_38(%arg0: i32) -> (i32, i32) {
    %c0_i32 = arith.constant 0 : i32
    %c0_i32_0 = arith.constant 0 : i32
    %c0_i32_1 = arith.constant 0 : i32
    return %c0_i32, %c0_i32_0 : i32, i32
  }
  func.func @transform_39(%arg0: i32) -> (i32, i32) {
    %c0_i32 = arith.constant 0 : i32
    %c0_i32_0 = arith.constant 0 : i32
    %c0_i32_1 = arith.constant 0 : i32
    return %c0_i32, %c0_i32_0 : i32, i32
  }
  func.func @transform_40(%arg0: i32) -> (i32, i32) {
    %c0_i32 = arith.constant 0 : i32
    %c0_i32_0 = arith.constant 0 : i32
    %c0_i32_1 = arith.constant 0 : i32
    return %c0_i32, %c0_i32_0 : i32, i32
  }
  func.func @transform_41(%arg0: i32) -> (i32, i32) {
    %c0_i32 = arith.constant 0 : i32
    %c0_i32_0 = arith.constant 0 : i32
    %c0_i32_1 = arith.constant 0 : i32
    return %c0_i32, %c0_i32_0 : i32, i32
  }
  func.func @transform_42(%arg0: i32) -> (i32, i32) {
    %c0_i32 = arith.constant 0 : i32
    %c0_i32_0 = arith.constant 0 : i32
    %c0_i32_1 = arith.constant 0 : i32
    return %c0_i32, %c0_i32_0 : i32, i32
  }
  func.func @transform_43(%arg0: i32) -> (i32, i32) {
    %c0_i32 = arith.constant 0 : i32
    %c0_i32_0 = arith.constant 0 : i32
    %c0_i32_1 = arith.constant 0 : i32
    return %c0_i32, %c0_i32_0 : i32, i32
  }
  func.func @transform_44(%arg0: i32) -> (i32, i32) {
    %c0_i32 = arith.constant 0 : i32
    %c0_i32_0 = arith.constant 0 : i32
    %c0_i32_1 = arith.constant 0 : i32
    return %c0_i32, %c0_i32_0 : i32, i32
  }
  func.func @transform_45(%arg0: i32) -> (i32, i32) {
    %c0_i32 = arith.constant 0 : i32
    %c0_i32_0 = arith.constant 0 : i32
    %c0_i32_1 = arith.constant 0 : i32
    return %c0_i32, %c0_i32_0 : i32, i32
  }
  func.func @transform_46(%arg0: i32) -> (i32, i32) {
    %c0_i32 = arith.constant 0 : i32
    %c0_i32_0 = arith.constant 0 : i32
    %c0_i32_1 = arith.constant 0 : i32
    return %c0_i32, %c0_i32_0 : i32, i32
  }
  func.func @transform_47(%arg0: i32) -> (i32, i32) {
    %c0_i32 = arith.constant 0 : i32
    %c0_i32_0 = arith.constant 0 : i32
    %c0_i32_1 = arith.constant 0 : i32
    return %c0_i32, %c0_i32_0 : i32, i32
  }
  func.func @transform_48(%arg0: i32) -> (i32, i32) {
    %c0_i32 = arith.constant 0 : i32
    %c0_i32_0 = arith.constant 0 : i32
    %c0_i32_1 = arith.constant 0 : i32
    return %c0_i32, %c0_i32_0 : i32, i32
  }
  func.func @transform_49(%arg0: i32) -> (i32, i32) {
    %c0_i32 = arith.constant 0 : i32
    %c0_i32_0 = arith.constant 0 : i32
    %c0_i32_1 = arith.constant 0 : i32
    return %c0_i32, %c0_i32_0 : i32, i32
  }
  func.func @transform_50(%arg0: i32) -> (i32, i32) {
    %c0_i32 = arith.constant 0 : i32
    %c0_i32_0 = arith.constant 0 : i32
    %c0_i32_1 = arith.constant 0 : i32
    return %c0_i32, %c0_i32_0 : i32, i32
  }
  func.func @transform_51(%arg0: i32) -> (i32, i32) {
    %c0_i32 = arith.constant 0 : i32
    %c0_i32_0 = arith.constant 0 : i32
    %c0_i32_1 = arith.constant 0 : i32
    return %c0_i32, %c0_i32_0 : i32, i32
  }
  func.func @transform_52(%arg0: i32) -> (i32, i32) {
    %c0_i32 = arith.constant 0 : i32
    %c0_i32_0 = arith.constant 0 : i32
    %c0_i32_1 = arith.constant 0 : i32
    return %c0_i32, %c0_i32_0 : i32, i32
  }
  func.func @transform_53(%arg0: i32) -> (i32, i32) {
    %c0_i32 = arith.constant 0 : i32
    %c0_i32_0 = arith.constant 0 : i32
    %c0_i32_1 = arith.constant 0 : i32
    return %c0_i32, %c0_i32_0 : i32, i32
  }
  func.func @transform_54(%arg0: i32) -> (i32, i32) {
    %c0_i32 = arith.constant 0 : i32
    %c0_i32_0 = arith.constant 0 : i32
    %c0_i32_1 = arith.constant 0 : i32
    return %c0_i32, %c0_i32_0 : i32, i32
  }
  func.func @transform_55(%arg0: i32) -> (i32, i32) {
    %c0_i32 = arith.constant 0 : i32
    %c0_i32_0 = arith.constant 0 : i32
    %c0_i32_1 = arith.constant 0 : i32
    return %c0_i32, %c0_i32_0 : i32, i32
  }
  func.func @transform_56(%arg0: i32) -> (i32, i32) {
    %c0_i32 = arith.constant 0 : i32
    %c0_i32_0 = arith.constant 0 : i32
    %c0_i32_1 = arith.constant 0 : i32
    return %c0_i32, %c0_i32_0 : i32, i32
  }
  func.func @transform_57(%arg0: i32) -> (i32, i32) {
    %c0_i32 = arith.constant 0 : i32
    %c0_i32_0 = arith.constant 0 : i32
    %c0_i32_1 = arith.constant 0 : i32
    return %c0_i32, %c0_i32_0 : i32, i32
  }
  func.func @transform_58(%arg0: i32) -> (i32, i32) {
    %c0_i32 = arith.constant 0 : i32
    %c0_i32_0 = arith.constant 0 : i32
    %c0_i32_1 = arith.constant 0 : i32
    return %c0_i32, %c0_i32_0 : i32, i32
  }
  func.func @transform_59(%arg0: i32) -> (i32, i32) {
    %c0_i32 = arith.constant 0 : i32
    %c0_i32_0 = arith.constant 0 : i32
    %c0_i32_1 = arith.constant 0 : i32
    return %c0_i32, %c0_i32_0 : i32, i32
  }
  func.func @transform_60(%arg0: i32) -> (i32, i32) {
    %c0_i32 = arith.constant 0 : i32
    %c0_i32_0 = arith.constant 0 : i32
    %c0_i32_1 = arith.constant 0 : i32
    return %c0_i32, %c0_i32_0 : i32, i32
  }
  func.func @transform_61(%arg0: i32) -> (i32, i32) {
    %c0_i32 = arith.constant 0 : i32
    %c0_i32_0 = arith.constant 0 : i32
    %c0_i32_1 = arith.constant 0 : i32
    return %c0_i32, %c0_i32_0 : i32, i32
  }
  func.func @transform_62(%arg0: i32) -> (i32, i32) {
    %c0_i32 = arith.constant 0 : i32
    %c0_i32_0 = arith.constant 0 : i32
    %c0_i32_1 = arith.constant 0 : i32
    return %c0_i32, %c0_i32_0 : i32, i32
  }
  func.func @transform_63(%arg0: i32) -> (i32, i32) {
    %c0_i32 = arith.constant 0 : i32
    %c0_i32_0 = arith.constant 0 : i32
    %c0_i32_1 = arith.constant 0 : i32
    return %c0_i32, %c0_i32_0 : i32, i32
  }
  func.func @transform_64(%arg0: i32) -> (i32, i32) {
    %c0_i32 = arith.constant 0 : i32
    %c0_i32_0 = arith.constant 0 : i32
    %c0_i32_1 = arith.constant 0 : i32
    return %c0_i32, %c0_i32_0 : i32, i32
  }
  func.func @transform_65(%arg0: i32) -> (i32, i32) {
    %c0_i32 = arith.constant 0 : i32
    %c0_i32_0 = arith.constant 0 : i32
    %c0_i32_1 = arith.constant 0 : i32
    return %c0_i32, %c0_i32_0 : i32, i32
  }
  func.func @transform_66(%arg0: i32) -> (i32, i32) {
    %c0_i32 = arith.constant 0 : i32
    %c0_i32_0 = arith.constant 0 : i32
    %c0_i32_1 = arith.constant 0 : i32
    return %c0_i32, %c0_i32_0 : i32, i32
  }
  func.func @transform_67(%arg0: i32) -> (i32, i32) {
    %c0_i32 = arith.constant 0 : i32
    %c0_i32_0 = arith.constant 0 : i32
    %c0_i32_1 = arith.constant 0 : i32
    return %c0_i32, %c0_i32_0 : i32, i32
  }
  func.func @transform_68(%arg0: i32) -> (i32, i32) {
    %c0_i32 = arith.constant 0 : i32
    %c0_i32_0 = arith.constant 0 : i32
    %c0_i32_1 = arith.constant 0 : i32
    return %c0_i32, %c0_i32_0 : i32, i32
  }
  func.func @transform_69(%arg0: i32) -> (i32, i32) {
    %c0_i32 = arith.constant 0 : i32
    %c0_i32_0 = arith.constant 0 : i32
    %c0_i32_1 = arith.constant 0 : i32
    return %c0_i32, %c0_i32_0 : i32, i32
  }
  func.func @transform_70(%arg0: i32) -> (i32, i32) {
    %c0_i32 = arith.constant 0 : i32
    %c0_i32_0 = arith.constant 0 : i32
    %c0_i32_1 = arith.constant 0 : i32
    return %c0_i32, %c0_i32_0 : i32, i32
  }
  func.func @transform_71(%arg0: i32) -> (i32, i32, i32) {
    %c0_i32 = arith.constant 0 : i32
    %c0_i32_0 = arith.constant 0 : i32
    %c0_i32_1 = arith.constant 0 : i32
    return %arg0, %c0_i32, %c0_i32_0 : i32, i32, i32
  }
}

</mosaic_0001>

<llo_original>
// kernel: mae_forward.1
$region0: #{mae_forward.1}
  #allocation0 [shape = 'u32[]', space=smem, size = 0x4, offset = 0x4, fixed_abs, tag = 'smem constant byte address 0x4 - core index']
  #allocation1 [shape = 'u32[144,128]{1,0:T(1,128)}', space=vmem, size = 0x12000, scoped, tag = 'internal scratch']
  #allocation2 [shape = 'f32[4,32]{1,0:T(4,128)}', space=vmem, size = 0x800, scoped, tag = 'scratch operand']
  #allocation3 [shape = 'f32[12,32]{1,0:T(8,128)}', space=vmem, size = 0x2000, scoped, tag = 'scratch operand']
  %s0 = inlined_call_operand.smem [shape: u32[72], index: -1, kind: input, shape index: {}]
  %s1 = sld [smem:[%s0]]
  %s2 = scalar_lea.smem %s0, 1
  %s3 = sld [smem:[%s2]]
  %s4 = scalar_lea.smem %s0, 2
  %s5 = sld [smem:[%s4]]
  %s6 = scalar_lea.smem %s0, 3
  %s7 = sld [smem:[%s6]]
  %s8 = scalar_lea.smem %s0, 4
  %s9 = sld [smem:[%s8]]
  %s10 = scalar_lea.smem %s0, 5
  %s11 = sld [smem:[%s10]]
  %s12 = scalar_lea.smem %s0, 6
  %s13 = sld [smem:[%s12]]
  %s14 = scalar_lea.smem %s0, 7
  %s15 = sld [smem:[%s14]]
  %s16 = scalar_lea.smem %s0, 8
  %s17 = sld [smem:[%s16]]
  %s18 = scalar_lea.smem %s0, 9
  %s19 = sld [smem:[%s18]]
  %s20 = scalar_lea.smem %s0, 10
  %s21 = sld [smem:[%s20]]
  %s22 = scalar_lea.smem %s0, 11
  %s23 = sld [smem:[%s22]]
  %s24 = scalar_lea.smem %s0, 12
  %s25 = sld [smem:[%s24]]
  %s26 = scalar_lea.smem %s0, 13
  %s27 = sld [smem:[%s26]]
  %s28 = scalar_lea.smem %s0, 14
  %s29 = sld [smem:[%s28]]
  %s30 = scalar_lea.smem %s0, 15
  %s31 = sld [smem:[%s30]]
  %s32 = scalar_lea.smem %s0, 16
  %s33 = sld [smem:[%s32]]
  %s34 = scalar_lea.smem %s0, 17
  %s35 = sld [smem:[%s34]]
  %s36 = scalar_lea.smem %s0, 18
  %s37 = sld [smem:[%s36]]
  %s38 = scalar_lea.smem %s0, 19
  %s39 = sld [smem:[%s38]]
  %s40 = scalar_lea.smem %s0, 20
  %s41 = sld [smem:[%s40]]
  %s42 = scalar_lea.smem %s0, 21
  %s43 = sld [smem:[%s42]]
  %s44 = scalar_lea.smem %s0, 22
  %s45 = sld [smem:[%s44]]
  %s46 = scalar_lea.smem %s0, 23
  %s47 = sld [smem:[%s46]]
  %s48 = scalar_lea.smem %s0, 24
  %s49 = sld [smem:[%s48]]
  %s50 = scalar_lea.smem %s0, 25
  %s51 = sld [smem:[%s50]]
  %s52 = scalar_lea.smem %s0, 26
  %s53 = sld [smem:[%s52]]
  %s54 = scalar_lea.smem %s0, 27
  %s55 = sld [smem:[%s54]]
  %s56 = scalar_lea.smem %s0, 28
  %s57 = sld [smem:[%s56]]
  %s58 = scalar_lea.smem %s0, 29
  %s59 = sld [smem:[%s58]]
  %s60 = scalar_lea.smem %s0, 30
  %s61 = sld [smem:[%s60]]
  %s62 = scalar_lea.smem %s0, 31
  %s63 = sld [smem:[%s62]]
  %s64 = scalar_lea.smem %s0, 32
  %s65 = sld [smem:[%s64]]
  %s66 = scalar_lea.smem %s0, 33
  %s67 = sld [smem:[%s66]]
  %s68 = scalar_lea.smem %s0, 34
  %s69 = sld [smem:[%s68]]
  %s70 = scalar_lea.smem %s0, 35
  %s71 = sld [smem:[%s70]]
  %s72 = scalar_lea.smem %s0, 36
  %s73 = sld [smem:[%s72]]
  %s74 = scalar_lea.smem %s0, 37
  %s75 = sld [smem:[%s74]]
  %s76 = scalar_lea.smem %s0, 38
  %s77 = sld [smem:[%s76]]
  %s78 = scalar_lea.smem %s0, 39
  %s79 = sld [smem:[%s78]]
  %s80 = scalar_lea.smem %s0, 40
  %s81 = sld [smem:[%s80]]
  %s82 = scalar_lea.smem %s0, 41
  %s83 = sld [smem:[%s82]]
  %s84 = scalar_lea.smem %s0, 42
  %s85 = sld [smem:[%s84]]
  %s86 = scalar_lea.smem %s0, 43
  %s87 = sld [smem:[%s86]]
  %s88 = scalar_lea.smem %s0, 44
  %s89 = sld [smem:[%s88]]
  %s90 = scalar_lea.smem %s0, 45
  %s91 = sld [smem:[%s90]]
  %s92 = scalar_lea.smem %s0, 46
  %s93 = sld [smem:[%s92]]
  %s94 = scalar_lea.smem %s0, 47
  %s95 = sld [smem:[%s94]]
  %s96 = scalar_lea.smem %s0, 48
  %s97 = sld [smem:[%s96]]
  %s98 = scalar_lea.smem %s0, 49
  %s99 = sld [smem:[%s98]]
  %s100 = scalar_lea.smem %s0, 50
  %s101 = sld [smem:[%s100]]
  %s102 = scalar_lea.smem %s0, 51
  %s103 = sld [smem:[%s102]]
  %s104 = scalar_lea.smem %s0, 52
  %s105 = sld [smem:[%s104]]
  %s106 = scalar_lea.smem %s0, 53
  %s107 = sld [smem:[%s106]]
  %s108 = scalar_lea.smem %s0, 54
  %s109 = sld [smem:[%s108]]
  %s110 = scalar_lea.smem %s0, 55
  %s111 = sld [smem:[%s110]]
  %s112 = scalar_lea.smem %s0, 56
  %s113 = sld [smem:[%s112]]
  %s114 = scalar_lea.smem %s0, 57
  %s115 = sld [smem:[%s114]]
  %s116 = scalar_lea.smem %s0, 58
  %s117 = sld [smem:[%s116]]
  %s118 = scalar_lea.smem %s0, 59
  %s119 = sld [smem:[%s118]]
  %s120 = scalar_lea.smem %s0, 60
  %s121 = sld [smem:[%s120]]
  %s122 = scalar_lea.smem %s0, 61
  %s123 = sld [smem:[%s122]]
  %s124 = scalar_lea.smem %s0, 62
  %s125 = sld [smem:[%s124]]
  %s126 = scalar_lea.smem %s0, 63
  %s127 = sld [smem:[%s126]]
  %s128 = scalar_lea.smem %s0, 64
  %s129 = sld [smem:[%s128]]
  %s130 = scalar_lea.smem %s0, 65
  %s131 = sld [smem:[%s130]]
  %s132 = scalar_lea.smem %s0, 66
  %s133 = sld [smem:[%s132]]
  %s134 = scalar_lea.smem %s0, 67
  %s135 = sld [smem:[%s134]]
  %s136 = scalar_lea.smem %s0, 68
  %s137 = sld [smem:[%s136]]
  %s138 = scalar_lea.smem %s0, 69
  %s139 = sld [smem:[%s138]]
  %s140 = scalar_lea.smem %s0, 70
  %s141 = sld [smem:[%s140]]
  %s142 = scalar_lea.smem %s0, 71
  %s143 = sld [smem:[%s142]]
  %s144 = sld [smem:[#allocation0]]
  $region425: #{mae_forward.1} parent=0
    _
  %s146 = ssub.s32 1, %s144
  %s147 = scalar_select 0, %s146, %s144
  $region1: #{mae_forward.1} parent=0
    #allocation4 [shape = 'u8[512]{0}', space=vmem, size = 0x400, scoped, tag = 'input window, operand 30, single buffered']
    #allocation5 [shape = 's32[2]{0}', space=sflag, size = 0x8, scoped, tag = 'scoped memory for mae_forward.1']
    #allocation6 [shape = 'u8[512]{0}', space=vmem, size = 0x400, scoped, tag = 'input window, operand 31, single buffered']
    #allocation7 [shape = 's32[1]{0}', space=sflag, size = 0x4, scoped, tag = 'scoped memory for mae_forward.1']
    #allocation8 [shape = 'u8[512]{0}', space=vmem, size = 0x400, scoped, tag = 'input window, operand 33, single buffered']
    #allocation9 [shape = 'u8[512]{0}', space=vmem, size = 0x400, scoped, tag = 'input window, operand 34, single buffered']
    #allocation10 [shape = 's32[1]{0}', space=sflag, size = 0x4, scoped, tag = 'scoped memory for mae_forward.1']
    #allocation11 [shape = 'u8[512]{0}', space=vmem, size = 0x400, scoped, tag = 'input window, operand 35, single buffered']
    #allocation12 [shape = 'u8[512]{0}', space=vmem, size = 0x400, scoped, tag = 'input window, operand 36, single buffered']
    #allocation13 [shape = 's32[1]{0}', space=sflag, size = 0x4, scoped, tag = 'scoped memory for mae_forward.1']
    #allocation14 [shape = 'u8[512]{0}', space=vmem, size = 0x400, scoped, tag = 'input window, operand 38, single buffered']
    #allocation15 [shape = 'u8[512]{0}', space=vmem, size = 0x400, scoped, tag = 'input window, operand 40, single buffered']
    #allocation16 [shape = 's32[1]{0}', space=sflag, size = 0x4, scoped, tag = 'scoped memory for mae_forward.1']
    #allocation17 [shape = 'u8[512]{0}', space=vmem, size = 0x400, scoped, tag = 'input window, operand 42, single buffered']
    #allocation18 [shape = 'u8[512]{0}', space=vmem, size = 0x400, scoped, tag = 'input window, operand 44, single buffered']
    #allocation19 [shape = 's32[1]{0}', space=sflag, size = 0x4, scoped, tag = 'scoped memory for mae_forward.1']
    #allocation20 [shape = 'u8[512]{0}', space=vmem, size = 0x400, scoped, tag = 'input window, operand 45, single buffered']
    #allocation21 [shape = 'u8[512]{0}', space=vmem, size = 0x400, scoped, tag = 'input window, operand 46, single buffered']
    #allocation22 [shape = 's32[1]{0}', space=sflag, size = 0x4, scoped, tag = 'scoped memory for mae_forward.1']
    #allocation23 [shape = 'u8[512]{0}', space=vmem, size = 0x400, scoped, tag = 'input window, operand 48, single buffered']
    #allocation24 [shape = 'u8[512]{0}', space=vmem, size = 0x400, scoped, tag = 'input window, operand 50, single buffered']
    #allocation25 [shape = 's32[1]{0}', space=sflag, size = 0x4, scoped, tag = 'scoped memory for mae_forward.1']
    #allocation26 [shape = 'u8[512]{0}', space=vmem, size = 0x400, scoped, tag = 'input window, operand 51, single buffered']
    #allocation27 [shape = 'u8[512]{0}', space=vmem, size = 0x400, scoped, tag = 'input window, operand 52, single buffered']
    #allocation28 [shape = 's32[1]{0}', space=sflag, size = 0x4, scoped, tag = 'scoped memory for mae_forward.1']
    #allocation29 [shape = 'u8[512]{0}', space=vmem, size = 0x400, scoped, tag = 'input window, operand 54, single buffered']
    #allocation30 [shape = 'u8[512]{0}', space=vmem, size = 0x400, scoped, tag = 'input window, operand 56, single buffered']
    #allocation31 [shape = 's32[1]{0}', space=sflag, size = 0x4, scoped, tag = 'scoped memory for mae_forward.1']
    #allocation32 [shape = 'u8[512]{0}', space=vmem, size = 0x400, scoped, tag = 'input window, operand 58, single buffered']
    #allocation33 [shape = 'u8[512]{0}', space=vmem, size = 0x400, scoped, tag = 'input window, operand 60, single buffered']
    #allocation34 [shape = 's32[1]{0}', space=sflag, size = 0x4, scoped, tag = 'scoped memory for mae_forward.1']
    #allocation35 [shape = 'u8[512]{0}', space=vmem, size = 0x400, scoped, tag = 'input window, operand 61, single buffered']
    #allocation36 [shape = 'u8[512]{0}', space=vmem, size = 0x400, scoped, tag = 'input window, operand 62, single buffered']
    #allocation37 [shape = 's32[1]{0}', space=sflag, size = 0x4, scoped, tag = 'scoped memory for mae_forward.1']
    #allocation38 [shape = 'u8[512]{0}', space=vmem, size = 0x400, scoped, tag = 'input window, operand 64, single buffered']
    #allocation39 [shape = 'u8[512]{0}', space=vmem, size = 0x400, scoped, tag = 'input window, operand 66, single buffered']
    #allocation40 [shape = 's32[1]{0}', space=sflag, size = 0x4, scoped, tag = 'scoped memory for mae_forward.1']
    #allocation41 [shape = 'u8[512]{0}', space=vmem, size = 0x400, scoped, tag = 'input window, operand 67, single buffered']
    #allocation42 [shape = 'u8[512]{0}', space=vmem, size = 0x400, scoped, tag = 'input window, operand 68, single buffered']
    #allocation43 [shape = 's32[1]{0}', space=sflag, size = 0x4, scoped, tag = 'scoped memory for mae_forward.1']
    #allocation44 [shape = 'u8[512]{0}', space=vmem, size = 0x400, scoped, tag = 'input window, operand 70, single buffered']
    %148 = vsyncpa [#allocation5], 0
    %149 = vsyncpa [#allocation7], 0
    %150 = vsyncpa [#allocation10], 0
    %151 = vsyncpa [#allocation13], 0
    %152 = vsyncpa [#allocation16], 0
    %153 = vsyncpa [#allocation19], 0
    %154 = vsyncpa [#allocation22], 0
    %155 = vsyncpa [#allocation25], 0
    %156 = vsyncpa [#allocation28], 0
    %157 = vsyncpa [#allocation31], 0
    %158 = vsyncpa [#allocation34], 0
    %159 = vsyncpa [#allocation37], 0
    %160 = vsyncpa [#allocation40], 0
    %161 = vsyncpa [#allocation43], 0
    loop: start=0, step=1, limit=4
    $region2: #{mae_forward.1} parent=1 // loop_pre_header
      _
    $region3: #{mae_forward.1} parent=1 // loop_header
      %s163 = sphi 0, %s167
      %p164 = scmp.ge.s32.totalorder %s163, 4
      %s173 = sphi 0, %s175
      %s176 = sphi 0, %s173
      %s177 = sphi 0, %s176
      %s193 = sphi 0, %s177
      %s199 = sphi 0, %s201
      %s202 = sphi 0, %s199
      %s203 = sphi 0, %s202
      %s219 = sphi 0, %s203
      %s225 = sphi 0, %s227
      %s228 = sphi 0, %s225
      %s229 = sphi 0, %s228
      %s245 = sphi 0, %s229
      %s251 = sphi 0, %s253
      %s254 = sphi 0, %s251
      %s255 = sphi 0, %s254
      %s271 = sphi 0, %s255
      %s275 = sphi 0, %s275
      %s277 = sphi 0, %s275
      %s278 = sphi 0, %s277
      %s292 = sphi 0, %s278
      %s296 = sphi 0, %s296
      %s298 = sphi 0, %s296
      %s299 = sphi 0, %s298
      %s313 = sphi 0, %s299
      %s317 = sphi 0, %s317
      %s319 = sphi 0, %s317
      %s320 = sphi 0, %s319
      %s334 = sphi 0, %s320
      %s338 = sphi 0, %s338
      %s340 = sphi 0, %s338
      %s341 = sphi 0, %s340
      %s355 = sphi 0, %s341
      %s359 = sphi 0, %s359
      %s361 = sphi 0, %s359
      %s362 = sphi 0, %s361
      %s376 = sphi 0, %s362
      %s380 = sphi 0, %s380
      %s382 = sphi 0, %s380
      %s383 = sphi 0, %s382
      %s397 = sphi 0, %s383
      %s401 = sphi 0, %s401
      %s403 = sphi 0, %s401
      %s404 = sphi 0, %s403
      %s418 = sphi 0, %s404
      %s422 = sphi 0, %s422
      %s424 = sphi 0, %s422
      %s425 = sphi 0, %s424
      %s439 = sphi 0, %s425
      %s443 = sphi 0, %s443
      %s445 = sphi 0, %s443
      %s446 = sphi 0, %s445
      %s460 = sphi 0, %s446
      %s464 = sphi 0, %s464
      %s466 = sphi 0, %s464
      %s467 = sphi 0, %s466
      %s481 = sphi 0, %s467
      %s485 = sphi 0, %s485
      %s487 = sphi 0, %s485
      %s488 = sphi 0, %s487
      %s502 = sphi 0, %s488
      %s506 = sphi 0, %s506
      %s508 = sphi 0, %s506
      %s509 = sphi 0, %s508
      %s523 = sphi 0, %s509
      %s527 = sphi 0, %s527
      %s529 = sphi 0, %s527
      %s530 = sphi 0, %s529
      %s544 = sphi 0, %s530
      %s548 = sphi 0, %s548
      %s550 = sphi 0, %s548
      %s551 = sphi 0, %s550
      %s565 = sphi 0, %s551
      %s569 = sphi 0, %s569
      %s571 = sphi 0, %s569
      %s572 = sphi 0, %s571
      %s586 = sphi 0, %s572
      %s590 = sphi 0, %s590
      %s592 = sphi 0, %s590
      %s593 = sphi 0, %s592
      %s607 = sphi 0, %s593
      %s611 = sphi 0, %s611
      %s613 = sphi 0, %s611
      %s614 = sphi 0, %s613
      %s628 = sphi 0, %s614
      %s632 = sphi 0, %s632
      %s634 = sphi 0, %s632
      %s635 = sphi 0, %s634
      %s649 = sphi 0, %s635
      %s653 = sphi 0, %s653
      %s655 = sphi 0, %s653
      %s656 = sphi 0, %s655
      %s670 = sphi 0, %s656
      %s674 = sphi 0, %s674
      %s676 = sphi 0, %s674
      %s677 = sphi 0, %s676
      %s691 = sphi 0, %s677
      %s695 = sphi 0, %s695
      %s697 = sphi 0, %s695
      %s698 = sphi 0, %s697
      %s712 = sphi 0, %s698
      %s716 = sphi 0, %s716
      %s718 = sphi 0, %s716
      %s719 = sphi 0, %s718
      %s733 = sphi 0, %s719
      %s737 = sphi 0, %s737
      %s739 = sphi 0, %s737
      %s740 = sphi 0, %s739
      %s754 = sphi 0, %s740
      %s758 = sphi 0, %s758
      %s760 = sphi 0, %s758
      %s761 = sphi 0, %s760
      %s775 = sphi 0, %s761
      %s779 = sphi 0, %s779
      %s781 = sphi 0, %s779
      %s782 = sphi 0, %s781
      %s796 = sphi 0, %s782
      %s800 = sphi 0, %s800
      %s802 = sphi 0, %s800
      %s803 = sphi 0, %s802
      %s817 = sphi 0, %s803
      %s821 = sphi 0, %s821
      %s823 = sphi 0, %s821
      %s824 = sphi 0, %s823
      %s838 = sphi 0, %s824
      %s842 = sphi 0, %s842
      %s844 = sphi 0, %s842
      %s845 = sphi 0, %s844
      %s859 = sphi 0, %s845
      %s863 = sphi 0, %s863
      %s865 = sphi 0, %s863
      %s866 = sphi 0, %s865
      %s880 = sphi 0, %s866
      %s884 = sphi 0, %s884
      %s886 = sphi 0, %s884
      %s887 = sphi 0, %s886
      %s901 = sphi 0, %s887
      %s905 = sphi 0, %s905
      %s907 = sphi 0, %s905
      %s908 = sphi 0, %s907
      %s922 = sphi 0, %s908
      %s926 = sphi 0, %s926
      %s928 = sphi 0, %s926
      %s929 = sphi 0, %s928
      %s943 = sphi 0, %s929
      %s947 = sphi 0, %s947
      %s949 = sphi 0, %s947
      %s950 = sphi 0, %s949
      %s964 = sphi 0, %s950
      %s968 = sphi 0, %s968
      %s970 = sphi 0, %s968
      %s971 = sphi 0, %s970
      %s985 = sphi 0, %s971
      %s989 = sphi 0, %s989
      %s991 = sphi 0, %s989
      %s992 = sphi 0, %s991
      %s1006 = sphi 0, %s992
      %s1010 = sphi 0, %s1010
      %s1012 = sphi 0, %s1010
      %s1013 = sphi 0, %s1012
      %s1027 = sphi 0, %s1013
      %s1031 = sphi 0, %s1031
      %s1033 = sphi 0, %s1031
      %s1034 = sphi 0, %s1033
      %s1048 = sphi 0, %s1034
      %s1052 = sphi 0, %s1052
      %s1054 = sphi 0, %s1052
      %s1055 = sphi 0, %s1054
      %s1069 = sphi 0, %s1055
      %s1073 = sphi 0, %s1073
      %s1075 = sphi 0, %s1073
      %s1076 = sphi 0, %s1075
      %s1090 = sphi 0, %s1076
      %s1094 = sphi 0, %s1094
      %s1096 = sphi 0, %s1094
      %s1097 = sphi 0, %s1096
      %s1111 = sphi 0, %s1097
      %s1115 = sphi 0, %s1115
      %s1117 = sphi 0, %s1115
      %s1118 = sphi 0, %s1117
      %s1132 = sphi 0, %s1118
      %s1136 = sphi 0, %s1136
      %s1138 = sphi 0, %s1136
      %s1139 = sphi 0, %s1138
      %s1153 = sphi 0, %s1139
      %s1157 = sphi 0, %s1157
      %s1159 = sphi 0, %s1157
      %s1160 = sphi 0, %s1159
      %s1174 = sphi 0, %s1160
      %s1178 = sphi 0, %s1178
      %s1180 = sphi 0, %s1178
      %s1181 = sphi 0, %s1180
      %s1195 = sphi 0, %s1181
      %s1199 = sphi 0, %s1199
      %s1201 = sphi 0, %s1199
      %s1202 = sphi 0, %s1201
      %s1216 = sphi 0, %s1202
      %s1220 = sphi 0, %s1220
      %s1222 = sphi 0, %s1220
      %s1223 = sphi 0, %s1222
      %s1237 = sphi 0, %s1223
      %s1241 = sphi 0, %s1241
      %s1243 = sphi 0, %s1241
      %s1244 = sphi 0, %s1243
      %s1258 = sphi 0, %s1244
      %s1262 = sphi 0, %s1262
      %s1264 = sphi 0, %s1262
      %s1265 = sphi 0, %s1264
      %s1279 = sphi 0, %s1265
      %s1283 = sphi 0, %s1283
      %s1285 = sphi 0, %s1283
      %s1286 = sphi 0, %s1285
      %s1300 = sphi 0, %s1286
      %s1304 = sphi 0, %s1304
      %s1306 = sphi 0, %s1304
      %s1307 = sphi 0, %s1306
      %s1321 = sphi 0, %s1307
      %s1325 = sphi 0, %s1325
      %s1327 = sphi 0, %s1325
      %s1328 = sphi 0, %s1327
      %s1342 = sphi 0, %s1328
      %s1346 = sphi 0, %s1346
      %s1348 = sphi 0, %s1346
      %s1349 = sphi 0, %s1348
      %s1363 = sphi 0, %s1349
      %s1367 = sphi 0, %s1367
      %s1369 = sphi 0, %s1367
      %s1370 = sphi 0, %s1369
      %s1384 = sphi 0, %s1370
      %s1388 = sphi 0, %s1388
      %s1390 = sphi 0, %s1388
      %s1391 = sphi 0, %s1390
      %s1405 = sphi 0, %s1391
      %s1409 = sphi 0, %s1409
      %s1411 = sphi 0, %s1409
      %s1412 = sphi 0, %s1411
      %s1426 = sphi 0, %s1412
      %s1430 = sphi 0, %s1430
      %s1432 = sphi 0, %s1430
      %s1433 = sphi 0, %s1432
      %s1447 = sphi 0, %s1433
      %s1451 = sphi 0, %s1451
      %s1453 = sphi 0, %s1451
      %s1454 = sphi 0, %s1453
      %s1468 = sphi 0, %s1454
      %s1472 = sphi 0, %s1472
      %s1474 = sphi 0, %s1472
      %s1475 = sphi 0, %s1474
      %s1489 = sphi 0, %s1475
      %s1493 = sphi 0, %s1493
      %s1495 = sphi 0, %s1493
      %s1496 = sphi 0, %s1495
      %s1510 = sphi 0, %s1496
      %s1514 = sphi 0, %s1514
      %s1516 = sphi 0, %s1514
      %s1517 = sphi 0, %s1516
      %s1531 = sphi 0, %s1517
      %s1535 = sphi 0, %s1535
      %s1537 = sphi 0, %s1535
      %s1538 = sphi 0, %s1537
      %s1552 = sphi 0, %s1538
      %s1556 = sphi 0, %s1556
      %s1558 = sphi 0, %s1556
      %s1559 = sphi 0, %s1558
      %s1573 = sphi 0, %s1559
      %s1577 = sphi 0, %s1577
      %s1579 = sphi 0, %s1577
      %s1580 = sphi 0, %s1579
      %s1594 = sphi 0, %s1580
      %s1598 = sphi 0, %s1598
      %s1600 = sphi 0, %s1598
      %s1601 = sphi 0, %s1600
      %s1615 = sphi 0, %s1601
      %s1619 = sphi 0, %s1619
      %s1621 = sphi 0, %s1619
      %s1622 = sphi 0, %s1621
      %s1636 = sphi 0, %s1622
      %s1640 = sphi 0, %s1640
      %s1642 = sphi 0, %s1640
      %s1643 = sphi 0, %s1642
      %s1657 = sphi 0, %s1643
      %s1661 = sphi 0, %s1661
      %s1663 = sphi 0, %s1661
      %s1664 = sphi 0, %s1663
      %s1678 = sphi 0, %s1664
      %s1684 = sphi 0, %s1686
      %s1687 = sphi 0, %s1684
      %s1688 = sphi 0, %s1687
      %s1704 = sphi 0, %s1688
    $region4: #{mae_forward.1} parent=1 // loop_header_branch
      %166 = sbr.rel (%p164) target = $region8
    $region5: #{mae_forward.1} parent=1 // loop_body
      %s168 = ssub.s32 %s163, 1
      %s169 = ssub.s32 %s163, 2
      %s170 = sadd.s32 %s163, 1
      %s171 = ssub.s32 %s163, %s170
      %p172 = scmp.eq.s32.totalorder %s171, 0
      %s174 = sadd.s32 %s173, 1
      %s175 = scalar_select %p172, %s173, %s174
      %p178 = pneg %p172
      %p179 = scmp.eq.s32.totalorder %s163, 1
      %p180 = por %p178, %p179
      %p181 = scmp.ne.s32.totalorder %s173, %s176
      %p182 = scmp.eq.s32.totalorder %s163, 0
      %p183 = por %p181, %p182
      %p184 = scmp.ne.s32.totalorder %s173, %s176
      %p185 = scmp.eq.s32.totalorder %s168, 1
      %p186 = por %p184, %p185
      %p187 = scmp.ne.s32.totalorder %s176, %s177
      %p188 = scmp.eq.s32.totalorder %s168, 0
      %p189 = por %p187, %p188
      %p190 = scmp.ne.s32.totalorder %s176, %s177
      %p191 = scmp.eq.s32.totalorder %s169, 1
      %p192 = por %p190, %p191
      %p194 = scmp.ne.s32.totalorder %s177, %s193
      %p195 = scmp.eq.s32.totalorder %s169, 0
      %p196 = por %p194, %p195
      %s197 = ssub.s32 %s163, %s170
      %p198 = scmp.eq.s32.totalorder %s197, 0
      %s200 = sadd.s32 %s199, 1
      %s201 = scalar_select %p198, %s199, %s200
      %p204 = pneg %p198
      %p205 = scmp.eq.s32.totalorder %s163, 1
      %p206 = por %p204, %p205
      %p207 = scmp.ne.s32.totalorder %s199, %s202
      %p208 = scmp.eq.s32.totalorder %s163, 0
      %p209 = por %p207, %p208
      %p210 = scmp.ne.s32.totalorder %s199, %s202
      %p211 = scmp.eq.s32.totalorder %s168, 1
      %p212 = por %p210, %p211
      %p213 = scmp.ne.s32.totalorder %s202, %s203
      %p214 = scmp.eq.s32.totalorder %s168, 0
      %p215 = por %p213, %p214
      %p216 = scmp.ne.s32.totalorder %s202, %s203
      %p217 = scmp.eq.s32.totalorder %s169, 1
      %p218 = por %p216, %p217
      %p220 = scmp.ne.s32.totalorder %s203, %s219
      %p221 = scmp.eq.s32.totalorder %s169, 0
      %p222 = por %p220, %p221
      %s223 = ssub.s32 %s163, %s170
      %p224 = scmp.eq.s32.totalorder %s223, 0
      %s226 = sadd.s32 %s225, 1
      %s227 = scalar_select %p224, %s225, %s226
      %p230 = pneg %p224
      %p231 = scmp.eq.s32.totalorder %s163, 1
      %p232 = por %p230, %p231
      %p233 = scmp.ne.s32.totalorder %s225, %s228
      %p234 = scmp.eq.s32.totalorder %s163, 0
      %p235 = por %p233, %p234
      %p236 = scmp.ne.s32.totalorder %s225, %s228
      %p237 = scmp.eq.s32.totalorder %s168, 1
      %p238 = por %p236, %p237
      %p239 = scmp.ne.s32.totalorder %s228, %s229
      %p240 = scmp.eq.s32.totalorder %s168, 0
      %p241 = por %p239, %p240
      %p242 = scmp.ne.s32.totalorder %s228, %s229
      %p243 = scmp.eq.s32.totalorder %s169, 1
      %p244 = por %p242, %p243
      %p246 = scmp.ne.s32.totalorder %s229, %s245
      %p247 = scmp.eq.s32.totalorder %s169, 0
      %p248 = por %p246, %p247
      %s249 = ssub.s32 %s163, %s170
      %p250 = scmp.eq.s32.totalorder %s249, 0
      %s252 = sadd.s32 %s251, 1
      %s253 = scalar_select %p250, %s251, %s252
      %p256 = pneg %p250
      %p257 = scmp.eq.s32.totalorder %s163, 1
      %p258 = por %p256, %p257
      %p259 = scmp.ne.s32.totalorder %s251, %s254
      %p260 = scmp.eq.s32.totalorder %s163, 0
      %p261 = por %p259, %p260
      %p262 = scmp.ne.s32.totalorder %s251, %s254
      %p263 = scmp.eq.s32.totalorder %s168, 1
      %p264 = por %p262, %p263
      %p265 = scmp.ne.s32.totalorder %s254, %s255
      %p266 = scmp.eq.s32.totalorder %s168, 0
      %p267 = por %p265, %p266
      %p268 = scmp.ne.s32.totalorder %s254, %s255
      %p269 = scmp.eq.s32.totalorder %s169, 1
      %p270 = por %p268, %p269
      %p272 = scmp.ne.s32.totalorder %s255, %s271
      %p273 = scmp.eq.s32.totalorder %s169, 0
      %p274 = por %p272, %p273
      %s276 = sadd.s32 %s275, 1
      %p279 = scmp.eq.s32.totalorder %s163, 1
      %p280 = scmp.ne.s32.totalorder %s275, %s277
      %p281 = scmp.eq.s32.totalorder %s163, 0
      %p282 = por %p280, %p281
      %p283 = scmp.ne.s32.totalorder %s275, %s277
      %p284 = scmp.eq.s32.totalorder %s168, 1
      %p285 = por %p283, %p284
      %p286 = scmp.ne.s32.totalorder %s277, %s278
      %p287 = scmp.eq.s32.totalorder %s168, 0
      %p288 = por %p286, %p287
      %p289 = scmp.ne.s32.totalorder %s277, %s278
      %p290 = scmp.eq.s32.totalorder %s169, 1
      %p291 = por %p289, %p290
      %p293 = scmp.ne.s32.totalorder %s278, %s292
      %p294 = scmp.eq.s32.totalorder %s169, 0
      %p295 = por %p293, %p294
      %s297 = sadd.s32 %s296, 1
      %p300 = scmp.eq.s32.totalorder %s163, 1
      %p301 = scmp.ne.s32.totalorder %s296, %s298
      %p302 = scmp.eq.s32.totalorder %s163, 0
      %p303 = por %p301, %p302
      %p304 = scmp.ne.s32.totalorder %s296, %s298
      %p305 = scmp.eq.s32.totalorder %s168, 1
      %p306 = por %p304, %p305
      %p307 = scmp.ne.s32.totalorder %s298, %s299
      %p308 = scmp.eq.s32.totalorder %s168, 0
      %p309 = por %p307, %p308
      %p310 = scmp.ne.s32.totalorder %s298, %s299
      %p311 = scmp.eq.s32.totalorder %s169, 1
      %p312 = por %p310, %p311
      %p314 = scmp.ne.s32.totalorder %s299, %s313
      %p315 = scmp.eq.s32.totalorder %s169, 0
      %p316 = por %p314, %p315
      %s318 = sadd.s32 %s317, 1
      %p321 = scmp.eq.s32.totalorder %s163, 1
      %p322 = scmp.ne.s32.totalorder %s317, %s319
      %p323 = scmp.eq.s32.totalorder %s163, 0
      %p324 = por %p322, %p323
      %p325 = scmp.ne.s32.totalorder %s317, %s319
      %p326 = scmp.eq.s32.totalorder %s168, 1
      %p327 = por %p325, %p326
      %p328 = scmp.ne.s32.totalorder %s319, %s320
      %p329 = scmp.eq.s32.totalorder %s168, 0
      %p330 = por %p328, %p329
      %p331 = scmp.ne.s32.totalorder %s319, %s320
      %p332 = scmp.eq.s32.totalorder %s169, 1
      %p333 = por %p331, %p332
      %p335 = scmp.ne.s32.totalorder %s320, %s334
      %p336 = scmp.eq.s32.totalorder %s169, 0
      %p337 = por %p335, %p336
      %s339 = sadd.s32 %s338, 1
      %p342 = scmp.eq.s32.totalorder %s163, 1
      %p343 = scmp.ne.s32.totalorder %s338, %s340
      %p344 = scmp.eq.s32.totalorder %s163, 0
      %p345 = por %p343, %p344
      %p346 = scmp.ne.s32.totalorder %s338, %s340
      %p347 = scmp.eq.s32.totalorder %s168, 1
      %p348 = por %p346, %p347
      %p349 = scmp.ne.s32.totalorder %s340, %s341
      %p350 = scmp.eq.s32.totalorder %s168, 0
      %p351 = por %p349, %p350
      %p352 = scmp.ne.s32.totalorder %s340, %s341
      %p353 = scmp.eq.s32.totalorder %s169, 1
      %p354 = por %p352, %p353
      %p356 = scmp.ne.s32.totalorder %s341, %s355
      %p357 = scmp.eq.s32.totalorder %s169, 0
      %p358 = por %p356, %p357
      %s360 = sadd.s32 %s359, 1
      %p363 = scmp.eq.s32.totalorder %s163, 1
      %p364 = scmp.ne.s32.totalorder %s359, %s361
      %p365 = scmp.eq.s32.totalorder %s163, 0
      %p366 = por %p364, %p365
      %p367 = scmp.ne.s32.totalorder %s359, %s361
      %p368 = scmp.eq.s32.totalorder %s168, 1
      %p369 = por %p367, %p368
      %p370 = scmp.ne.s32.totalorder %s361, %s362
      %p371 = scmp.eq.s32.totalorder %s168, 0
      %p372 = por %p370, %p371
      %p373 = scmp.ne.s32.totalorder %s361, %s362
      %p374 = scmp.eq.s32.totalorder %s169, 1
      %p375 = por %p373, %p374
      %p377 = scmp.ne.s32.totalorder %s362, %s376
      %p378 = scmp.eq.s32.totalorder %s169, 0
      %p379 = por %p377, %p378
      %s381 = sadd.s32 %s380, 1
      %p384 = scmp.eq.s32.totalorder %s163, 1
      %p385 = scmp.ne.s32.totalorder %s380, %s382
      %p386 = scmp.eq.s32.totalorder %s163, 0
      %p387 = por %p385, %p386
      %p388 = scmp.ne.s32.totalorder %s380, %s382
      %p389 = scmp.eq.s32.totalorder %s168, 1
      %p390 = por %p388, %p389
      %p391 = scmp.ne.s32.totalorder %s382, %s383
      %p392 = scmp.eq.s32.totalorder %s168, 0
      %p393 = por %p391, %p392
      %p394 = scmp.ne.s32.totalorder %s382, %s383
      %p395 = scmp.eq.s32.totalorder %s169, 1
      %p396 = por %p394, %p395
      %p398 = scmp.ne.s32.totalorder %s383, %s397
      %p399 = scmp.eq.s32.totalorder %s169, 0
      %p400 = por %p398, %p399
      %s402 = sadd.s32 %s401, 1
      %p405 = scmp.eq.s32.totalorder %s163, 1
      %p406 = scmp.ne.s32.totalorder %s401, %s403
      %p407 = scmp.eq.s32.totalorder %s163, 0
      %p408 = por %p406, %p407
      %p409 = scmp.ne.s32.totalorder %s401, %s403
      %p410 = scmp.eq.s32.totalorder %s168, 1
      %p411 = por %p409, %p410
      %p412 = scmp.ne.s32.totalorder %s403, %s404
      %p413 = scmp.eq.s32.totalorder %s168, 0
      %p414 = por %p412, %p413
      %p415 = scmp.ne.s32.totalorder %s403, %s404
      %p416 = scmp.eq.s32.totalorder %s169, 1
      %p417 = por %p415, %p416
      %p419 = scmp.ne.s32.totalorder %s404, %s418
      %p420 = scmp.eq.s32.totalorder %s169, 0
      %p421 = por %p419, %p420
      %s423 = sadd.s32 %s422, 1
      %p426 = scmp.eq.s32.totalorder %s163, 1
      %p427 = scmp.ne.s32.totalorder %s422, %s424
      %p428 = scmp.eq.s32.totalorder %s163, 0
      %p429 = por %p427, %p428
      %p430 = scmp.ne.s32.totalorder %s422, %s424
      %p431 = scmp.eq.s32.totalorder %s168, 1
      %p432 = por %p430, %p431
      %p433 = scmp.ne.s32.totalorder %s424, %s425
      %p434 = scmp.eq.s32.totalorder %s168, 0
      %p435 = por %p433, %p434
      %p436 = scmp.ne.s32.totalorder %s424, %s425
      %p437 = scmp.eq.s32.totalorder %s169, 1
      %p438 = por %p436, %p437
      %p440 = scmp.ne.s32.totalorder %s425, %s439
      %p441 = scmp.eq.s32.totalorder %s169, 0
      %p442 = por %p440, %p441
      %s444 = sadd.s32 %s443, 1
      %p447 = scmp.eq.s32.totalorder %s163, 1
      %p448 = scmp.ne.s32.totalorder %s443, %s445
      %p449 = scmp.eq.s32.totalorder %s163, 0
      %p450 = por %p448, %p449
      %p451 = scmp.ne.s32.totalorder %s443, %s445
      %p452 = scmp.eq.s32.totalorder %s168, 1
      %p453 = por %p451, %p452
      %p454 = scmp.ne.s32.totalorder %s445, %s446
      %p455 = scmp.eq.s32.totalorder %s168, 0
      %p456 = por %p454, %p455
      %p457 = scmp.ne.s32.totalorder %s445, %s446
      %p458 = scmp.eq.s32.totalorder %s169, 1
      %p459 = por %p457, %p458
      %p461 = scmp.ne.s32.totalorder %s446, %s460
      %p462 = scmp.eq.s32.totalorder %s169, 0
      %p463 = por %p461, %p462
      %s465 = sadd.s32 %s464, 1
      %p468 = scmp.eq.s32.totalorder %s163, 1
      %p469 = scmp.ne.s32.totalorder %s464, %s466
      %p470 = scmp.eq.s32.totalorder %s163, 0
      %p471 = por %p469, %p470
      %p472 = scmp.ne.s32.totalorder %s464, %s466
      %p473 = scmp.eq.s32.totalorder %s168, 1
      %p474 = por %p472, %p473
      %p475 = scmp.ne.s32.totalorder %s466, %s467
      %p476 = scmp.eq.s32.totalorder %s168, 0
      %p477 = por %p475, %p476
      %p478 = scmp.ne.s32.totalorder %s466, %s467
      %p479 = scmp.eq.s32.totalorder %s169, 1
      %p480 = por %p478, %p479
      %p482 = scmp.ne.s32.totalorder %s467, %s481
      %p483 = scmp.eq.s32.totalorder %s169, 0
      %p484 = por %p482, %p483
      %s486 = sadd.s32 %s485, 1
      %p489 = scmp.eq.s32.totalorder %s163, 1
      %p490 = scmp.ne.s32.totalorder %s485, %s487
      %p491 = scmp.eq.s32.totalorder %s163, 0
      %p492 = por %p490, %p491
      %p493 = scmp.ne.s32.totalorder %s485, %s487
      %p494 = scmp.eq.s32.totalorder %s168, 1
      %p495 = por %p493, %p494
      %p496 = scmp.ne.s32.totalorder %s487, %s488
      %p497 = scmp.eq.s32.totalorder %s168, 0
      %p498 = por %p496, %p497
      %p499 = scmp.ne.s32.totalorder %s487, %s488
      %p500 = scmp.eq.s32.totalorder %s169, 1
      %p501 = por %p499, %p500
      %p503 = scmp.ne.s32.totalorder %s488, %s502
      %p504 = scmp.eq.s32.totalorder %s169, 0
      %p505 = por %p503, %p504
      %s507 = sadd.s32 %s506, 1
      %p510 = scmp.eq.s32.totalorder %s163, 1
      %p511 = scmp.ne.s32.totalorder %s506, %s508
      %p512 = scmp.eq.s32.totalorder %s163, 0
      %p513 = por %p511, %p512
      %p514 = scmp.ne.s32.totalorder %s506, %s508
      %p515 = scmp.eq.s32.totalorder %s168, 1
      %p516 = por %p514, %p515
      %p517 = scmp.ne.s32.totalorder %s508, %s509
      %p518 = scmp.eq.s32.totalorder %s168, 0
      %p519 = por %p517, %p518
      %p520 = scmp.ne.s32.totalorder %s508, %s509
      %p521 = scmp.eq.s32.totalorder %s169, 1
      %p522 = por %p520, %p521
      %p524 = scmp.ne.s32.totalorder %s509, %s523
      %p525 = scmp.eq.s32.totalorder %s169, 0
      %p526 = por %p524, %p525
      %s528 = sadd.s32 %s527, 1
      %p531 = scmp.eq.s32.totalorder %s163, 1
      %p532 = scmp.ne.s32.totalorder %s527, %s529
      %p533 = scmp.eq.s32.totalorder %s163, 0
      %p534 = por %p532, %p533
      %p535 = scmp.ne.s32.totalorder %s527, %s529
      %p536 = scmp.eq.s32.totalorder %s168, 1
      %p537 = por %p535, %p536
      %p538 = scmp.ne.s32.totalorder %s529, %s530
      %p539 = scmp.eq.s32.totalorder %s168, 0
      %p540 = por %p538, %p539
      %p541 = scmp.ne.s32.totalorder %s529, %s530
      %p542 = scmp.eq.s32.totalorder %s169, 1
      %p543 = por %p541, %p542
      %p545 = scmp.ne.s32.totalorder %s530, %s544
      %p546 = scmp.eq.s32.totalorder %s169, 0
      %p547 = por %p545, %p546
      %s549 = sadd.s32 %s548, 1
      %p552 = scmp.eq.s32.totalorder %s163, 1
      %p553 = scmp.ne.s32.totalorder %s548, %s550
      %p554 = scmp.eq.s32.totalorder %s163, 0
      %p555 = por %p553, %p554
      %p556 = scmp.ne.s32.totalorder %s548, %s550
      %p557 = scmp.eq.s32.totalorder %s168, 1
      %p558 = por %p556, %p557
      %p559 = scmp.ne.s32.totalorder %s550, %s551
      %p560 = scmp.eq.s32.totalorder %s168, 0
      %p561 = por %p559, %p560
      %p562 = scmp.ne.s32.totalorder %s550, %s551
      %p563 = scmp.eq.s32.totalorder %s169, 1
      %p564 = por %p562, %p563
      %p566 = scmp.ne.s32.totalorder %s551, %s565
      %p567 = scmp.eq.s32.totalorder %s169, 0
      %p568 = por %p566, %p567
      %s570 = sadd.s32 %s569, 1
      %p573 = scmp.eq.s32.totalorder %s163, 1
      %p574 = scmp.ne.s32.totalorder %s569, %s571
      %p575 = scmp.eq.s32.totalorder %s163, 0
      %p576 = por %p574, %p575
      %p577 = scmp.ne.s32.totalorder %s569, %s571
      %p578 = scmp.eq.s32.totalorder %s168, 1
      %p579 = por %p577, %p578
      %p580 = scmp.ne.s32.totalorder %s571, %s572
      %p581 = scmp.eq.s32.totalorder %s168, 0
      %p582 = por %p580, %p581
      %p583 = scmp.ne.s32.totalorder %s571, %s572
      %p584 = scmp.eq.s32.totalorder %s169, 1
      %p585 = por %p583, %p584
      %p587 = scmp.ne.s32.totalorder %s572, %s586
      %p588 = scmp.eq.s32.totalorder %s169, 0
      %p589 = por %p587, %p588
      %s591 = sadd.s32 %s590, 1
      %p594 = scmp.eq.s32.totalorder %s163, 1
      %p595 = scmp.ne.s32.totalorder %s590, %s592
      %p596 = scmp.eq.s32.totalorder %s163, 0
      %p597 = por %p595, %p596
      %p598 = scmp.ne.s32.totalorder %s590, %s592
      %p599 = scmp.eq.s32.totalorder %s168, 1
      %p600 = por %p598, %p599
      %p601 = scmp.ne.s32.totalorder %s592, %s593
      %p602 = scmp.eq.s32.totalorder %s168, 0
      %p603 = por %p601, %p602
      %p604 = scmp.ne.s32.totalorder %s592, %s593
      %p605 = scmp.eq.s32.totalorder %s169, 1
      %p606 = por %p604, %p605
      %p608 = scmp.ne.s32.totalorder %s593, %s607
      %p609 = scmp.eq.s32.totalorder %s169, 0
      %p610 = por %p608, %p609
      %s612 = sadd.s32 %s611, 1
      %p615 = scmp.eq.s32.totalorder %s163, 1
      %p616 = scmp.ne.s32.totalorder %s611, %s613
      %p617 = scmp.eq.s32.totalorder %s163, 0
      %p618 = por %p616, %p617
      %p619 = scmp.ne.s32.totalorder %s611, %s613
      %p620 = scmp.eq.s32.totalorder %s168, 1
      %p621 = por %p619, %p620
      %p622 = scmp.ne.s32.totalorder %s613, %s614
      %p623 = scmp.eq.s32.totalorder %s168, 0
      %p624 = por %p622, %p623
      %p625 = scmp.ne.s32.totalorder %s613, %s614
      %p626 = scmp.eq.s32.totalorder %s169, 1
      %p627 = por %p625, %p626
      %p629 = scmp.ne.s32.totalorder %s614, %s628
      %p630 = scmp.eq.s32.totalorder %s169, 0
      %p631 = por %p629, %p630
      %s633 = sadd.s32 %s632, 1
      %p636 = scmp.eq.s32.totalorder %s163, 1
      %p637 = scmp.ne.s32.totalorder %s632, %s634
      %p638 = scmp.eq.s32.totalorder %s163, 0
      %p639 = por %p637, %p638
      %p640 = scmp.ne.s32.totalorder %s632, %s634
      %p641 = scmp.eq.s32.totalorder %s168, 1
      %p642 = por %p640, %p641
      %p643 = scmp.ne.s32.totalorder %s634, %s635
      %p644 = scmp.eq.s32.totalorder %s168, 0
      %p645 = por %p643, %p644
      %p646 = scmp.ne.s32.totalorder %s634, %s635
      %p647 = scmp.eq.s32.totalorder %s169, 1
      %p648 = por %p646, %p647
      %p650 = scmp.ne.s32.totalorder %s635, %s649
      %p651 = scmp.eq.s32.totalorder %s169, 0
      %p652 = por %p650, %p651
      %s654 = sadd.s32 %s653, 1
      %p657 = scmp.eq.s32.totalorder %s163, 1
      %p658 = scmp.ne.s32.totalorder %s653, %s655
      %p659 = scmp.eq.s32.totalorder %s163, 0
      %p660 = por %p658, %p659
      %p661 = scmp.ne.s32.totalorder %s653, %s655
      %p662 = scmp.eq.s32.totalorder %s168, 1
      %p663 = por %p661, %p662
      %p664 = scmp.ne.s32.totalorder %s655, %s656
      %p665 = scmp.eq.s32.totalorder %s168, 0
      %p666 = por %p664, %p665
      %p667 = scmp.ne.s32.totalorder %s655, %s656
      %p668 = scmp.eq.s32.totalorder %s169, 1
      %p669 = por %p667, %p668
      %p671 = scmp.ne.s32.totalorder %s656, %s670
      %p672 = scmp.eq.s32.totalorder %s169, 0
      %p673 = por %p671, %p672
      %s675 = sadd.s32 %s674, 1
      %p678 = scmp.eq.s32.totalorder %s163, 1
      %p679 = scmp.ne.s32.totalorder %s674, %s676
      %p680 = scmp.eq.s32.totalorder %s163, 0
      %p681 = por %p679, %p680
      %p682 = scmp.ne.s32.totalorder %s674, %s676
      %p683 = scmp.eq.s32.totalorder %s168, 1
      %p684 = por %p682, %p683
      %p685 = scmp.ne.s32.totalorder %s676, %s677
      %p686 = scmp.eq.s32.totalorder %s168, 0
      %p687 = por %p685, %p686
      %p688 = scmp.ne.s32.totalorder %s676, %s677
      %p689 = scmp.eq.s32.totalorder %s169, 1
      %p690 = por %p688, %p689
      %p692 = scmp.ne.s32.totalorder %s677, %s691
      %p693 = scmp.eq.s32.totalorder %s169, 0
      %p694 = por %p692, %p693
      %s696 = sadd.s32 %s695, 1
      %p699 = scmp.eq.s32.totalorder %s163, 1
      %p700 = scmp.ne.s32.totalorder %s695, %s697
      %p701 = scmp.eq.s32.totalorder %s163, 0
      %p702 = por %p700, %p701
      %p703 = scmp.ne.s32.totalorder %s695, %s697
      %p704 = scmp.eq.s32.totalorder %s168, 1
      %p705 = por %p703, %p704
      %p706 = scmp.ne.s32.totalorder %s697, %s698
      %p707 = scmp.eq.s32.totalorder %s168, 0
      %p708 = por %p706, %p707
      %p709 = scmp.ne.s32.totalorder %s697, %s698
      %p710 = scmp.eq.s32.totalorder %s169, 1
      %p711 = por %p709, %p710
      %p713 = scmp.ne.s32.totalorder %s698, %s712
      %p714 = scmp.eq.s32.totalorder %s169, 0
      %p715 = por %p713, %p714
      %s717 = sadd.s32 %s716, 1
      %p720 = scmp.eq.s32.totalorder %s163, 1
      %p721 = scmp.ne.s32.totalorder %s716, %s718
      %p722 = scmp.eq.s32.totalorder %s163, 0
      %p723 = por %p721, %p722
      %p724 = scmp.ne.s32.totalorder %s716, %s718
      %p725 = scmp.eq.s32.totalorder %s168, 1
      %p726 = por %p724, %p725
      %p727 = scmp.ne.s32.totalorder %s718, %s719
      %p728 = scmp.eq.s32.totalorder %s168, 0
      %p729 = por %p727, %p728
      %p730 = scmp.ne.s32.totalorder %s718, %s719
      %p731 = scmp.eq.s32.totalorder %s169, 1
      %p732 = por %p730, %p731
      %p734 = scmp.ne.s32.totalorder %s719, %s733
      %p735 = scmp.eq.s32.totalorder %s169, 0
      %p736 = por %p734, %p735
      %s738 = sadd.s32 %s737, 1
      %p741 = scmp.eq.s32.totalorder %s163, 1
      %p742 = scmp.ne.s32.totalorder %s737, %s739
      %p743 = scmp.eq.s32.totalorder %s163, 0
      %p744 = por %p742, %p743
      %p745 = scmp.ne.s32.totalorder %s737, %s739
      %p746 = scmp.eq.s32.totalorder %s168, 1
      %p747 = por %p745, %p746
      %p748 = scmp.ne.s32.totalorder %s739, %s740
      %p749 = scmp.eq.s32.totalorder %s168, 0
      %p750 = por %p748, %p749
      %p751 = scmp.ne.s32.totalorder %s739, %s740
      %p752 = scmp.eq.s32.totalorder %s169, 1
      %p753 = por %p751, %p752
      %p755 = scmp.ne.s32.totalorder %s740, %s754
      %p756 = scmp.eq.s32.totalorder %s169, 0
      %p757 = por %p755, %p756
      %s759 = sadd.s32 %s758, 1
      %p762 = scmp.eq.s32.totalorder %s163, 1
      %p763 = scmp.ne.s32.totalorder %s758, %s760
      %p764 = scmp.eq.s32.totalorder %s163, 0
      %p765 = por %p763, %p764
      %p766 = scmp.ne.s32.totalorder %s758, %s760
      %p767 = scmp.eq.s32.totalorder %s168, 1
      %p768 = por %p766, %p767
      %p769 = scmp.ne.s32.totalorder %s760, %s761
      %p770 = scmp.eq.s32.totalorder %s168, 0
      %p771 = por %p769, %p770
      %p772 = scmp.ne.s32.totalorder %s760, %s761
      %p773 = scmp.eq.s32.totalorder %s169, 1
      %p774 = por %p772, %p773
      %p776 = scmp.ne.s32.totalorder %s761, %s775
      %p777 = scmp.eq.s32.totalorder %s169, 0
      %p778 = por %p776, %p777
      %s780 = sadd.s32 %s779, 1
      %p783 = scmp.eq.s32.totalorder %s163, 1
      %p784 = scmp.ne.s32.totalorder %s779, %s781
      %p785 = scmp.eq.s32.totalorder %s163, 0
      %p786 = por %p784, %p785
      %p787 = scmp.ne.s32.totalorder %s779, %s781
      %p788 = scmp.eq.s32.totalorder %s168, 1
      %p789 = por %p787, %p788
      %p790 = scmp.ne.s32.totalorder %s781, %s782
      %p791 = scmp.eq.s32.totalorder %s168, 0
      %p792 = por %p790, %p791
      %p793 = scmp.ne.s32.totalorder %s781, %s782
      %p794 = scmp.eq.s32.totalorder %s169, 1
      %p795 = por %p793, %p794
      %p797 = scmp.ne.s32.totalorder %s782, %s796
      %p798 = scmp.eq.s32.totalorder %s169, 0
      %p799 = por %p797, %p798
      %s801 = sadd.s32 %s800, 1
      %p804 = scmp.eq.s32.totalorder %s163, 1
      %p805 = scmp.ne.s32.totalorder %s800, %s802
      %p806 = scmp.eq.s32.totalorder %s163, 0
      %p807 = por %p805, %p806
      %p808 = scmp.ne.s32.totalorder %s800, %s802
      %p809 = scmp.eq.s32.totalorder %s168, 1
      %p810 = por %p808, %p809
      %p811 = scmp.ne.s32.totalorder %s802, %s803
      %p812 = scmp.eq.s32.totalorder %s168, 0
      %p813 = por %p811, %p812
      %p814 = scmp.ne.s32.totalorder %s802, %s803
      %p815 = scmp.eq.s32.totalorder %s169, 1
      %p816 = por %p814, %p815
      %p818 = scmp.ne.s32.totalorder %s803, %s817
      %p819 = scmp.eq.s32.totalorder %s169, 0
      %p820 = por %p818, %p819
      %s822 = sadd.s32 %s821, 1
      %p825 = scmp.eq.s32.totalorder %s163, 1
      %p826 = scmp.ne.s32.totalorder %s821, %s823
      %p827 = scmp.eq.s32.totalorder %s163, 0
      %p828 = por %p826, %p827
      %p829 = scmp.ne.s32.totalorder %s821, %s823
      %p830 = scmp.eq.s32.totalorder %s168, 1
      %p831 = por %p829, %p830
      %p832 = scmp.ne.s32.totalorder %s823, %s824
      %p833 = scmp.eq.s32.totalorder %s168, 0
      %p834 = por %p832, %p833
      %p835 = scmp.ne.s32.totalorder %s823, %s824
      %p836 = scmp.eq.s32.totalorder %s169, 1
      %p837 = por %p835, %p836
      %p839 = scmp.ne.s32.totalorder %s824, %s838
      %p840 = scmp.eq.s32.totalorder %s169, 0
      %p841 = por %p839, %p840
      %s843 = sadd.s32 %s842, 1
      %p846 = scmp.eq.s32.totalorder %s163, 1
      %p847 = scmp.ne.s32.totalorder %s842, %s844
      %p848 = scmp.eq.s32.totalorder %s163, 0
      %p849 = por %p847, %p848
      %p850 = scmp.ne.s32.totalorder %s842, %s844
      %p851 = scmp.eq.s32.totalorder %s168, 1
      %p852 = por %p850, %p851
      %p853 = scmp.ne.s32.totalorder %s844, %s845
      %p854 = scmp.eq.s32.totalorder %s168, 0
      %p855 = por %p853, %p854
      %p856 = scmp.ne.s32.totalorder %s844, %s845
      %p857 = scmp.eq.s32.totalorder %s169, 1
      %p858 = por %p856, %p857
      %p860 = scmp.ne.s32.totalorder %s845, %s859
      %p861 = scmp.eq.s32.totalorder %s169, 0
      %p862 = por %p860, %p861
      %s864 = sadd.s32 %s863, 1
      %p867 = scmp.eq.s32.totalorder %s163, 1
      %p868 = scmp.ne.s32.totalorder %s863, %s865
      %p869 = scmp.eq.s32.totalorder %s163, 0
      %p870 = por %p868, %p869
      %p871 = scmp.ne.s32.totalorder %s863, %s865
      %p872 = scmp.eq.s32.totalorder %s168, 1
      %p873 = por %p871, %p872
      %p874 = scmp.ne.s32.totalorder %s865, %s866
      %p875 = scmp.eq.s32.totalorder %s168, 0
      %p876 = por %p874, %p875
      %p877 = scmp.ne.s32.totalorder %s865, %s866
      %p878 = scmp.eq.s32.totalorder %s169, 1
      %p879 = por %p877, %p878
      %p881 = scmp.ne.s32.totalorder %s866, %s880
      %p882 = scmp.eq.s32.totalorder %s169, 0
      %p883 = por %p881, %p882
      %s885 = sadd.s32 %s884, 1
      %p888 = scmp.eq.s32.totalorder %s163, 1
      %p889 = scmp.ne.s32.totalorder %s884, %s886
      %p890 = scmp.eq.s32.totalorder %s163, 0
      %p891 = por %p889, %p890
      %p892 = scmp.ne.s32.totalorder %s884, %s886
      %p893 = scmp.eq.s32.totalorder %s168, 1
      %p894 = por %p892, %p893
      %p895 = scmp.ne.s32.totalorder %s886, %s887
      %p896 = scmp.eq.s32.totalorder %s168, 0
      %p897 = por %p895, %p896
      %p898 = scmp.ne.s32.totalorder %s886, %s887
      %p899 = scmp.eq.s32.totalorder %s169, 1
      %p900 = por %p898, %p899
      %p902 = scmp.ne.s32.totalorder %s887, %s901
      %p903 = scmp.eq.s32.totalorder %s169, 0
      %p904 = por %p902, %p903
      %s906 = sadd.s32 %s905, 1
      %p909 = scmp.eq.s32.totalorder %s163, 1
      %p910 = scmp.ne.s32.totalorder %s905, %s907
      %p911 = scmp.eq.s32.totalorder %s163, 0
      %p912 = por %p910, %p911
      %p913 = scmp.ne.s32.totalorder %s905, %s907
      %p914 = scmp.eq.s32.totalorder %s168, 1
      %p915 = por %p913, %p914
      %p916 = scmp.ne.s32.totalorder %s907, %s908
      %p917 = scmp.eq.s32.totalorder %s168, 0
      %p918 = por %p916, %p917
      %p919 = scmp.ne.s32.totalorder %s907, %s908
      %p920 = scmp.eq.s32.totalorder %s169, 1
      %p921 = por %p919, %p920
      %p923 = scmp.ne.s32.totalorder %s908, %s922
      %p924 = scmp.eq.s32.totalorder %s169, 0
      %p925 = por %p923, %p924
      %s927 = sadd.s32 %s926, 1
      %p930 = scmp.eq.s32.totalorder %s163, 1
      %p931 = scmp.ne.s32.totalorder %s926, %s928
      %p932 = scmp.eq.s32.totalorder %s163, 0
      %p933 = por %p931, %p932
      %p934 = scmp.ne.s32.totalorder %s926, %s928
      %p935 = scmp.eq.s32.totalorder %s168, 1
      %p936 = por %p934, %p935
      %p937 = scmp.ne.s32.totalorder %s928, %s929
      %p938 = scmp.eq.s32.totalorder %s168, 0
      %p939 = por %p937, %p938
      %p940 = scmp.ne.s32.totalorder %s928, %s929
      %p941 = scmp.eq.s32.totalorder %s169, 1
      %p942 = por %p940, %p941
      %p944 = scmp.ne.s32.totalorder %s929, %s943
      %p945 = scmp.eq.s32.totalorder %s169, 0
      %p946 = por %p944, %p945
      %s948 = sadd.s32 %s947, 1
      %p951 = scmp.eq.s32.totalorder %s163, 1
      %p952 = scmp.ne.s32.totalorder %s947, %s949
      %p953 = scmp.eq.s32.totalorder %s163, 0
      %p954 = por %p952, %p953
      %p955 = scmp.ne.s32.totalorder %s947, %s949
      %p956 = scmp.eq.s32.totalorder %s168, 1
      %p957 = por %p955, %p956
      %p958 = scmp.ne.s32.totalorder %s949, %s950
      %p959 = scmp.eq.s32.totalorder %s168, 0
      %p960 = por %p958, %p959
      %p961 = scmp.ne.s32.totalorder %s949, %s950
      %p962 = scmp.eq.s32.totalorder %s169, 1
      %p963 = por %p961, %p962
      %p965 = scmp.ne.s32.totalorder %s950, %s964
      %p966 = scmp.eq.s32.totalorder %s169, 0
      %p967 = por %p965, %p966
      %s969 = sadd.s32 %s968, 1
      %p972 = scmp.eq.s32.totalorder %s163, 1
      %p973 = scmp.ne.s32.totalorder %s968, %s970
      %p974 = scmp.eq.s32.totalorder %s163, 0
      %p975 = por %p973, %p974
      %p976 = scmp.ne.s32.totalorder %s968, %s970
      %p977 = scmp.eq.s32.totalorder %s168, 1
      %p978 = por %p976, %p977
      %p979 = scmp.ne.s32.totalorder %s970, %s971
      %p980 = scmp.eq.s32.totalorder %s168, 0
      %p981 = por %p979, %p980
      %p982 = scmp.ne.s32.totalorder %s970, %s971
      %p983 = scmp.eq.s32.totalorder %s169, 1
      %p984 = por %p982, %p983
      %p986 = scmp.ne.s32.totalorder %s971, %s985
      %p987 = scmp.eq.s32.totalorder %s169, 0
      %p988 = por %p986, %p987
      %s990 = sadd.s32 %s989, 1
      %p993 = scmp.eq.s32.totalorder %s163, 1
      %p994 = scmp.ne.s32.totalorder %s989, %s991
      %p995 = scmp.eq.s32.totalorder %s163, 0
      %p996 = por %p994, %p995
      %p997 = scmp.ne.s32.totalorder %s989, %s991
      %p998 = scmp.eq.s32.totalorder %s168, 1
      %p999 = por %p997, %p998
      %p1000 = scmp.ne.s32.totalorder %s991, %s992
      %p1001 = scmp.eq.s32.totalorder %s168, 0
      %p1002 = por %p1000, %p1001
      %p1003 = scmp.ne.s32.totalorder %s991, %s992
      %p1004 = scmp.eq.s32.totalorder %s169, 1
      %p1005 = por %p1003, %p1004
      %p1007 = scmp.ne.s32.totalorder %s992, %s1006
      %p1008 = scmp.eq.s32.totalorder %s169, 0
      %p1009 = por %p1007, %p1008
      %s1011 = sadd.s32 %s1010, 1
      %p1014 = scmp.eq.s32.totalorder %s163, 1
      %p1015 = scmp.ne.s32.totalorder %s1010, %s1012
      %p1016 = scmp.eq.s32.totalorder %s163, 0
      %p1017 = por %p1015, %p1016
      %p1018 = scmp.ne.s32.totalorder %s1010, %s1012
      %p1019 = scmp.eq.s32.totalorder %s168, 1
      %p1020 = por %p1018, %p1019
      %p1021 = scmp.ne.s32.totalorder %s1012, %s1013
      %p1022 = scmp.eq.s32.totalorder %s168, 0
      %p1023 = por %p1021, %p1022
      %p1024 = scmp.ne.s32.totalorder %s1012, %s1013
      %p1025 = scmp.eq.s32.totalorder %s169, 1
      %p1026 = por %p1024, %p1025
      %p1028 = scmp.ne.s32.totalorder %s1013, %s1027
      %p1029 = scmp.eq.s32.totalorder %s169, 0
      %p1030 = por %p1028, %p1029
      %s1032 = sadd.s32 %s1031, 1
      %p1035 = scmp.eq.s32.totalorder %s163, 1
      %p1036 = scmp.ne.s32.totalorder %s1031, %s1033
      %p1037 = scmp.eq.s32.totalorder %s163, 0
      %p1038 = por %p1036, %p1037
      %p1039 = scmp.ne.s32.totalorder %s1031, %s1033
      %p1040 = scmp.eq.s32.totalorder %s168, 1
      %p1041 = por %p1039, %p1040
      %p1042 = scmp.ne.s32.totalorder %s1033, %s1034
      %p1043 = scmp.eq.s32.totalorder %s168, 0
      %p1044 = por %p1042, %p1043
      %p1045 = scmp.ne.s32.totalorder %s1033, %s1034
      %p1046 = scmp.eq.s32.totalorder %s169, 1
      %p1047 = por %p1045, %p1046
      %p1049 = scmp.ne.s32.totalorder %s1034, %s1048
      %p1050 = scmp.eq.s32.totalorder %s169, 0
      %p1051 = por %p1049, %p1050
      %s1053 = sadd.s32 %s1052, 1
      %p1056 = scmp.eq.s32.totalorder %s163, 1
      %p1057 = scmp.ne.s32.totalorder %s1052, %s1054
      %p1058 = scmp.eq.s32.totalorder %s163, 0
      %p1059 = por %p1057, %p1058
      %p1060 = scmp.ne.s32.totalorder %s1052, %s1054
      %p1061 = scmp.eq.s32.totalorder %s168, 1
      %p1062 = por %p1060, %p1061
      %p1063 = scmp.ne.s32.totalorder %s1054, %s1055
      %p1064 = scmp.eq.s32.totalorder %s168, 0
      %p1065 = por %p1063, %p1064
      %p1066 = scmp.ne.s32.totalorder %s1054, %s1055
      %p1067 = scmp.eq.s32.totalorder %s169, 1
      %p1068 = por %p1066, %p1067
      %p1070 = scmp.ne.s32.totalorder %s1055, %s1069
      %p1071 = scmp.eq.s32.totalorder %s169, 0
      %p1072 = por %p1070, %p1071
      %s1074 = sadd.s32 %s1073, 1
      %p1077 = scmp.eq.s32.totalorder %s163, 1
      %p1078 = scmp.ne.s32.totalorder %s1073, %s1075
      %p1079 = scmp.eq.s32.totalorder %s163, 0
      %p1080 = por %p1078, %p1079
      %p1081 = scmp.ne.s32.totalorder %s1073, %s1075
      %p1082 = scmp.eq.s32.totalorder %s168, 1
      %p1083 = por %p1081, %p1082
      %p1084 = scmp.ne.s32.totalorder %s1075, %s1076
      %p1085 = scmp.eq.s32.totalorder %s168, 0
      %p1086 = por %p1084, %p1085
      %p1087 = scmp.ne.s32.totalorder %s1075, %s1076
      %p1088 = scmp.eq.s32.totalorder %s169, 1
      %p1089 = por %p1087, %p1088
      %p1091 = scmp.ne.s32.totalorder %s1076, %s1090
      %p1092 = scmp.eq.s32.totalorder %s169, 0
      %p1093 = por %p1091, %p1092
      %s1095 = sadd.s32 %s1094, 1
      %p1098 = scmp.eq.s32.totalorder %s163, 1
      %p1099 = scmp.ne.s32.totalorder %s1094, %s1096
      %p1100 = scmp.eq.s32.totalorder %s163, 0
      %p1101 = por %p1099, %p1100
      %p1102 = scmp.ne.s32.totalorder %s1094, %s1096
      %p1103 = scmp.eq.s32.totalorder %s168, 1
      %p1104 = por %p1102, %p1103
      %p1105 = scmp.ne.s32.totalorder %s1096, %s1097
      %p1106 = scmp.eq.s32.totalorder %s168, 0
      %p1107 = por %p1105, %p1106
      %p1108 = scmp.ne.s32.totalorder %s1096, %s1097
      %p1109 = scmp.eq.s32.totalorder %s169, 1
      %p1110 = por %p1108, %p1109
      %p1112 = scmp.ne.s32.totalorder %s1097, %s1111
      %p1113 = scmp.eq.s32.totalorder %s169, 0
      %p1114 = por %p1112, %p1113
      %s1116 = sadd.s32 %s1115, 1
      %p1119 = scmp.eq.s32.totalorder %s163, 1
      %p1120 = scmp.ne.s32.totalorder %s1115, %s1117
      %p1121 = scmp.eq.s32.totalorder %s163, 0
      %p1122 = por %p1120, %p1121
      %p1123 = scmp.ne.s32.totalorder %s1115, %s1117
      %p1124 = scmp.eq.s32.totalorder %s168, 1
      %p1125 = por %p1123, %p1124
      %p1126 = scmp.ne.s32.totalorder %s1117, %s1118
      %p1127 = scmp.eq.s32.totalorder %s168, 0
      %p1128 = por %p1126, %p1127
      %p1129 = scmp.ne.s32.totalorder %s1117, %s1118
      %p1130 = scmp.eq.s32.totalorder %s169, 1
      %p1131 = por %p1129, %p1130
      %p1133 = scmp.ne.s32.totalorder %s1118, %s1132
      %p1134 = scmp.eq.s32.totalorder %s169, 0
      %p1135 = por %p1133, %p1134
      %s1137 = sadd.s32 %s1136, 1
      %p1140 = scmp.eq.s32.totalorder %s163, 1
      %p1141 = scmp.ne.s32.totalorder %s1136, %s1138
      %p1142 = scmp.eq.s32.totalorder %s163, 0
      %p1143 = por %p1141, %p1142
      %p1144 = scmp.ne.s32.totalorder %s1136, %s1138
      %p1145 = scmp.eq.s32.totalorder %s168, 1
      %p1146 = por %p1144, %p1145
      %p1147 = scmp.ne.s32.totalorder %s1138, %s1139
      %p1148 = scmp.eq.s32.totalorder %s168, 0
      %p1149 = por %p1147, %p1148
      %p1150 = scmp.ne.s32.totalorder %s1138, %s1139
      %p1151 = scmp.eq.s32.totalorder %s169, 1
      %p1152 = por %p1150, %p1151
      %p1154 = scmp.ne.s32.totalorder %s1139, %s1153
      %p1155 = scmp.eq.s32.totalorder %s169, 0
      %p1156 = por %p1154, %p1155
      %s1158 = sadd.s32 %s1157, 1
      %p1161 = scmp.eq.s32.totalorder %s163, 1
      %p1162 = scmp.ne.s32.totalorder %s1157, %s1159
      %p1163 = scmp.eq.s32.totalorder %s163, 0
      %p1164 = por %p1162, %p1163
      %p1165 = scmp.ne.s32.totalorder %s1157, %s1159
      %p1166 = scmp.eq.s32.totalorder %s168, 1
      %p1167 = por %p1165, %p1166
      %p1168 = scmp.ne.s32.totalorder %s1159, %s1160
      %p1169 = scmp.eq.s32.totalorder %s168, 0
      %p1170 = por %p1168, %p1169
      %p1171 = scmp.ne.s32.totalorder %s1159, %s1160
      %p1172 = scmp.eq.s32.totalorder %s169, 1
      %p1173 = por %p1171, %p1172
      %p1175 = scmp.ne.s32.totalorder %s1160, %s1174
      %p1176 = scmp.eq.s32.totalorder %s169, 0
      %p1177 = por %p1175, %p1176
      %s1179 = sadd.s32 %s1178, 1
      %p1182 = scmp.eq.s32.totalorder %s163, 1
      %p1183 = scmp.ne.s32.totalorder %s1178, %s1180
      %p1184 = scmp.eq.s32.totalorder %s163, 0
      %p1185 = por %p1183, %p1184
      %p1186 = scmp.ne.s32.totalorder %s1178, %s1180
      %p1187 = scmp.eq.s32.totalorder %s168, 1
      %p1188 = por %p1186, %p1187
      %p1189 = scmp.ne.s32.totalorder %s1180, %s1181
      %p1190 = scmp.eq.s32.totalorder %s168, 0
      %p1191 = por %p1189, %p1190
      %p1192 = scmp.ne.s32.totalorder %s1180, %s1181
      %p1193 = scmp.eq.s32.totalorder %s169, 1
      %p1194 = por %p1192, %p1193
      %p1196 = scmp.ne.s32.totalorder %s1181, %s1195
      %p1197 = scmp.eq.s32.totalorder %s169, 0
      %p1198 = por %p1196, %p1197
      %s1200 = sadd.s32 %s1199, 1
      %p1203 = scmp.eq.s32.totalorder %s163, 1
      %p1204 = scmp.ne.s32.totalorder %s1199, %s1201
      %p1205 = scmp.eq.s32.totalorder %s163, 0
      %p1206 = por %p1204, %p1205
      %p1207 = scmp.ne.s32.totalorder %s1199, %s1201
      %p1208 = scmp.eq.s32.totalorder %s168, 1
      %p1209 = por %p1207, %p1208
      %p1210 = scmp.ne.s32.totalorder %s1201, %s1202
      %p1211 = scmp.eq.s32.totalorder %s168, 0
      %p1212 = por %p1210, %p1211
      %p1213 = scmp.ne.s32.totalorder %s1201, %s1202
      %p1214 = scmp.eq.s32.totalorder %s169, 1
      %p1215 = por %p1213, %p1214
      %p1217 = scmp.ne.s32.totalorder %s1202, %s1216
      %p1218 = scmp.eq.s32.totalorder %s169, 0
      %p1219 = por %p1217, %p1218
      %s1221 = sadd.s32 %s1220, 1
      %p1224 = scmp.eq.s32.totalorder %s163, 1
      %p1225 = scmp.ne.s32.totalorder %s1220, %s1222
      %p1226 = scmp.eq.s32.totalorder %s163, 0
      %p1227 = por %p1225, %p1226
      %p1228 = scmp.ne.s32.totalorder %s1220, %s1222
      %p1229 = scmp.eq.s32.totalorder %s168, 1
      %p1230 = por %p1228, %p1229
      %p1231 = scmp.ne.s32.totalorder %s1222, %s1223
      %p1232 = scmp.eq.s32.totalorder %s168, 0
      %p1233 = por %p1231, %p1232
      %p1234 = scmp.ne.s32.totalorder %s1222, %s1223
      %p1235 = scmp.eq.s32.totalorder %s169, 1
      %p1236 = por %p1234, %p1235
      %p1238 = scmp.ne.s32.totalorder %s1223, %s1237
      %p1239 = scmp.eq.s32.totalorder %s169, 0
      %p1240 = por %p1238, %p1239
      %s1242 = sadd.s32 %s1241, 1
      %p1245 = scmp.eq.s32.totalorder %s163, 1
      %p1246 = scmp.ne.s32.totalorder %s1241, %s1243
      %p1247 = scmp.eq.s32.totalorder %s163, 0
      %p1248 = por %p1246, %p1247
      %p1249 = scmp.ne.s32.totalorder %s1241, %s1243
      %p1250 = scmp.eq.s32.totalorder %s168, 1
      %p1251 = por %p1249, %p1250
      %p1252 = scmp.ne.s32.totalorder %s1243, %s1244
      %p1253 = scmp.eq.s32.totalorder %s168, 0
      %p1254 = por %p1252, %p1253
      %p1255 = scmp.ne.s32.totalorder %s1243, %s1244
      %p1256 = scmp.eq.s32.totalorder %s169, 1
      %p1257 = por %p1255, %p1256
      %p1259 = scmp.ne.s32.totalorder %s1244, %s1258
      %p1260 = scmp.eq.s32.totalorder %s169, 0
      %p1261 = por %p1259, %p1260
      %s1263 = sadd.s32 %s1262, 1
      %p1266 = scmp.eq.s32.totalorder %s163, 1
      %p1267 = scmp.ne.s32.totalorder %s1262, %s1264
      %p1268 = scmp.eq.s32.totalorder %s163, 0
      %p1269 = por %p1267, %p1268
      %p1270 = scmp.ne.s32.totalorder %s1262, %s1264
      %p1271 = scmp.eq.s32.totalorder %s168, 1
      %p1272 = por %p1270, %p1271
      %p1273 = scmp.ne.s32.totalorder %s1264, %s1265
      %p1274 = scmp.eq.s32.totalorder %s168, 0
      %p1275 = por %p1273, %p1274
      %p1276 = scmp.ne.s32.totalorder %s1264, %s1265
      %p1277 = scmp.eq.s32.totalorder %s169, 1
      %p1278 = por %p1276, %p1277
      %p1280 = scmp.ne.s32.totalorder %s1265, %s1279
      %p1281 = scmp.eq.s32.totalorder %s169, 0
      %p1282 = por %p1280, %p1281
      %s1284 = sadd.s32 %s1283, 1
      %p1287 = scmp.eq.s32.totalorder %s163, 1
      %p1288 = scmp.ne.s32.totalorder %s1283, %s1285
      %p1289 = scmp.eq.s32.totalorder %s163, 0
      %p1290 = por %p1288, %p1289
      %p1291 = scmp.ne.s32.totalorder %s1283, %s1285
      %p1292 = scmp.eq.s32.totalorder %s168, 1
      %p1293 = por %p1291, %p1292
      %p1294 = scmp.ne.s32.totalorder %s1285, %s1286
      %p1295 = scmp.eq.s32.totalorder %s168, 0
      %p1296 = por %p1294, %p1295
      %p1297 = scmp.ne.s32.totalorder %s1285, %s1286
      %p1298 = scmp.eq.s32.totalorder %s169, 1
      %p1299 = por %p1297, %p1298
      %p1301 = scmp.ne.s32.totalorder %s1286, %s1300
      %p1302 = scmp.eq.s32.totalorder %s169, 0
      %p1303 = por %p1301, %p1302
      %s1305 = sadd.s32 %s1304, 1
      %p1308 = scmp.eq.s32.totalorder %s163, 1
      %p1309 = scmp.ne.s32.totalorder %s1304, %s1306
      %p1310 = scmp.eq.s32.totalorder %s163, 0
      %p1311 = por %p1309, %p1310
      %p1312 = scmp.ne.s32.totalorder %s1304, %s1306
      %p1313 = scmp.eq.s32.totalorder %s168, 1
      %p1314 = por %p1312, %p1313
      %p1315 = scmp.ne.s32.totalorder %s1306, %s1307
      %p1316 = scmp.eq.s32.totalorder %s168, 0
      %p1317 = por %p1315, %p1316
      %p1318 = scmp.ne.s32.totalorder %s1306, %s1307
      %p1319 = scmp.eq.s32.totalorder %s169, 1
      %p1320 = por %p1318, %p1319
      %p1322 = scmp.ne.s32.totalorder %s1307, %s1321
      %p1323 = scmp.eq.s32.totalorder %s169, 0
      %p1324 = por %p1322, %p1323
      %s1326 = sadd.s32 %s1325, 1
      %p1329 = scmp.eq.s32.totalorder %s163, 1
      %p1330 = scmp.ne.s32.totalorder %s1325, %s1327
      %p1331 = scmp.eq.s32.totalorder %s163, 0
      %p1332 = por %p1330, %p1331
      %p1333 = scmp.ne.s32.totalorder %s1325, %s1327
      %p1334 = scmp.eq.s32.totalorder %s168, 1
      %p1335 = por %p1333, %p1334
      %p1336 = scmp.ne.s32.totalorder %s1327, %s1328
      %p1337 = scmp.eq.s32.totalorder %s168, 0
      %p1338 = por %p1336, %p1337
      %p1339 = scmp.ne.s32.totalorder %s1327, %s1328
      %p1340 = scmp.eq.s32.totalorder %s169, 1
      %p1341 = por %p1339, %p1340
      %p1343 = scmp.ne.s32.totalorder %s1328, %s1342
      %p1344 = scmp.eq.s32.totalorder %s169, 0
      %p1345 = por %p1343, %p1344
      %s1347 = sadd.s32 %s1346, 1
      %p1350 = scmp.eq.s32.totalorder %s163, 1
      %p1351 = scmp.ne.s32.totalorder %s1346, %s1348
      %p1352 = scmp.eq.s32.totalorder %s163, 0
      %p1353 = por %p1351, %p1352
      %p1354 = scmp.ne.s32.totalorder %s1346, %s1348
      %p1355 = scmp.eq.s32.totalorder %s168, 1
      %p1356 = por %p1354, %p1355
      %p1357 = scmp.ne.s32.totalorder %s1348, %s1349
      %p1358 = scmp.eq.s32.totalorder %s168, 0
      %p1359 = por %p1357, %p1358
      %p1360 = scmp.ne.s32.totalorder %s1348, %s1349
      %p1361 = scmp.eq.s32.totalorder %s169, 1
      %p1362 = por %p1360, %p1361
      %p1364 = scmp.ne.s32.totalorder %s1349, %s1363
      %p1365 = scmp.eq.s32.totalorder %s169, 0
      %p1366 = por %p1364, %p1365
      %s1368 = sadd.s32 %s1367, 1
      %p1371 = scmp.eq.s32.totalorder %s163, 1
      %p1372 = scmp.ne.s32.totalorder %s1367, %s1369
      %p1373 = scmp.eq.s32.totalorder %s163, 0
      %p1374 = por %p1372, %p1373
      %p1375 = scmp.ne.s32.totalorder %s1367, %s1369
      %p1376 = scmp.eq.s32.totalorder %s168, 1
      %p1377 = por %p1375, %p1376
      %p1378 = scmp.ne.s32.totalorder %s1369, %s1370
      %p1379 = scmp.eq.s32.totalorder %s168, 0
      %p1380 = por %p1378, %p1379
      %p1381 = scmp.ne.s32.totalorder %s1369, %s1370
      %p1382 = scmp.eq.s32.totalorder %s169, 1
      %p1383 = por %p1381, %p1382
      %p1385 = scmp.ne.s32.totalorder %s1370, %s1384
      %p1386 = scmp.eq.s32.totalorder %s169, 0
      %p1387 = por %p1385, %p1386
      %s1389 = sadd.s32 %s1388, 1
      %p1392 = scmp.eq.s32.totalorder %s163, 1
      %p1393 = scmp.ne.s32.totalorder %s1388, %s1390
      %p1394 = scmp.eq.s32.totalorder %s163, 0
      %p1395 = por %p1393, %p1394
      %p1396 = scmp.ne.s32.totalorder %s1388, %s1390
      %p1397 = scmp.eq.s32.totalorder %s168, 1
      %p1398 = por %p1396, %p1397
      %p1399 = scmp.ne.s32.totalorder %s1390, %s1391
      %p1400 = scmp.eq.s32.totalorder %s168, 0
      %p1401 = por %p1399, %p1400
      %p1402 = scmp.ne.s32.totalorder %s1390, %s1391
      %p1403 = scmp.eq.s32.totalorder %s169, 1
      %p1404 = por %p1402, %p1403
      %p1406 = scmp.ne.s32.totalorder %s1391, %s1405
      %p1407 = scmp.eq.s32.totalorder %s169, 0
      %p1408 = por %p1406, %p1407
      %s1410 = sadd.s32 %s1409, 1
      %p1413 = scmp.eq.s32.totalorder %s163, 1
      %p1414 = scmp.ne.s32.totalorder %s1409, %s1411
      %p1415 = scmp.eq.s32.totalorder %s163, 0
      %p1416 = por %p1414, %p1415
      %p1417 = scmp.ne.s32.totalorder %s1409, %s1411
      %p1418 = scmp.eq.s32.totalorder %s168, 1
      %p1419 = por %p1417, %p1418
      %p1420 = scmp.ne.s32.totalorder %s1411, %s1412
      %p1421 = scmp.eq.s32.totalorder %s168, 0
      %p1422 = por %p1420, %p1421
      %p1423 = scmp.ne.s32.totalorder %s1411, %s1412
      %p1424 = scmp.eq.s32.totalorder %s169, 1
      %p1425 = por %p1423, %p1424
      %p1427 = scmp.ne.s32.totalorder %s1412, %s1426
      %p1428 = scmp.eq.s32.totalorder %s169, 0
      %p1429 = por %p1427, %p1428
      %s1431 = sadd.s32 %s1430, 1
      %p1434 = scmp.eq.s32.totalorder %s163, 1
      %p1435 = scmp.ne.s32.totalorder %s1430, %s1432
      %p1436 = scmp.eq.s32.totalorder %s163, 0
      %p1437 = por %p1435, %p1436
      %p1438 = scmp.ne.s32.totalorder %s1430, %s1432
      %p1439 = scmp.eq.s32.totalorder %s168, 1
      %p1440 = por %p1438, %p1439
      %p1441 = scmp.ne.s32.totalorder %s1432, %s1433
      %p1442 = scmp.eq.s32.totalorder %s168, 0
      %p1443 = por %p1441, %p1442
      %p1444 = scmp.ne.s32.totalorder %s1432, %s1433
      %p1445 = scmp.eq.s32.totalorder %s169, 1
      %p1446 = por %p1444, %p1445
      %p1448 = scmp.ne.s32.totalorder %s1433, %s1447
      %p1449 = scmp.eq.s32.totalorder %s169, 0
      %p1450 = por %p1448, %p1449
      %s1452 = sadd.s32 %s1451, 1
      %p1455 = scmp.eq.s32.totalorder %s163, 1
      %p1456 = scmp.ne.s32.totalorder %s1451, %s1453
      %p1457 = scmp.eq.s32.totalorder %s163, 0
      %p1458 = por %p1456, %p1457
      %p1459 = scmp.ne.s32.totalorder %s1451, %s1453
      %p1460 = scmp.eq.s32.totalorder %s168, 1
      %p1461 = por %p1459, %p1460
      %p1462 = scmp.ne.s32.totalorder %s1453, %s1454
      %p1463 = scmp.eq.s32.totalorder %s168, 0
      %p1464 = por %p1462, %p1463
      %p1465 = scmp.ne.s32.totalorder %s1453, %s1454
      %p1466 = scmp.eq.s32.totalorder %s169, 1
      %p1467 = por %p1465, %p1466
      %p1469 = scmp.ne.s32.totalorder %s1454, %s1468
      %p1470 = scmp.eq.s32.totalorder %s169, 0
      %p1471 = por %p1469, %p1470
      %s1473 = sadd.s32 %s1472, 1
      %p1476 = scmp.eq.s32.totalorder %s163, 1
      %p1477 = scmp.ne.s32.totalorder %s1472, %s1474
      %p1478 = scmp.eq.s32.totalorder %s163, 0
      %p1479 = por %p1477, %p1478
      %p1480 = scmp.ne.s32.totalorder %s1472, %s1474
      %p1481 = scmp.eq.s32.totalorder %s168, 1
      %p1482 = por %p1480, %p1481
      %p1483 = scmp.ne.s32.totalorder %s1474, %s1475
      %p1484 = scmp.eq.s32.totalorder %s168, 0
      %p1485 = por %p1483, %p1484
      %p1486 = scmp.ne.s32.totalorder %s1474, %s1475
      %p1487 = scmp.eq.s32.totalorder %s169, 1
      %p1488 = por %p1486, %p1487
      %p1490 = scmp.ne.s32.totalorder %s1475, %s1489
      %p1491 = scmp.eq.s32.totalorder %s169, 0
      %p1492 = por %p1490, %p1491
      %s1494 = sadd.s32 %s1493, 1
      %p1497 = scmp.eq.s32.totalorder %s163, 1
      %p1498 = scmp.ne.s32.totalorder %s1493, %s1495
      %p1499 = scmp.eq.s32.totalorder %s163, 0
      %p1500 = por %p1498, %p1499
      %p1501 = scmp.ne.s32.totalorder %s1493, %s1495
      %p1502 = scmp.eq.s32.totalorder %s168, 1
      %p1503 = por %p1501, %p1502
      %p1504 = scmp.ne.s32.totalorder %s1495, %s1496
      %p1505 = scmp.eq.s32.totalorder %s168, 0
      %p1506 = por %p1504, %p1505
      %p1507 = scmp.ne.s32.totalorder %s1495, %s1496
      %p1508 = scmp.eq.s32.totalorder %s169, 1
      %p1509 = por %p1507, %p1508
      %p1511 = scmp.ne.s32.totalorder %s1496, %s1510
      %p1512 = scmp.eq.s32.totalorder %s169, 0
      %p1513 = por %p1511, %p1512
      %s1515 = sadd.s32 %s1514, 1
      %p1518 = scmp.eq.s32.totalorder %s163, 1
      %p1519 = scmp.ne.s32.totalorder %s1514, %s1516
      %p1520 = scmp.eq.s32.totalorder %s163, 0
      %p1521 = por %p1519, %p1520
      %p1522 = scmp.ne.s32.totalorder %s1514, %s1516
      %p1523 = scmp.eq.s32.totalorder %s168, 1
      %p1524 = por %p1522, %p1523
      %p1525 = scmp.ne.s32.totalorder %s1516, %s1517
      %p1526 = scmp.eq.s32.totalorder %s168, 0
      %p1527 = por %p1525, %p1526
      %p1528 = scmp.ne.s32.totalorder %s1516, %s1517
      %p1529 = scmp.eq.s32.totalorder %s169, 1
      %p1530 = por %p1528, %p1529
      %p1532 = scmp.ne.s32.totalorder %s1517, %s1531
      %p1533 = scmp.eq.s32.totalorder %s169, 0
      %p1534 = por %p1532, %p1533
      %s1536 = sadd.s32 %s1535, 1
      %p1539 = scmp.eq.s32.totalorder %s163, 1
      %p1540 = scmp.ne.s32.totalorder %s1535, %s1537
      %p1541 = scmp.eq.s32.totalorder %s163, 0
      %p1542 = por %p1540, %p1541
      %p1543 = scmp.ne.s32.totalorder %s1535, %s1537
      %p1544 = scmp.eq.s32.totalorder %s168, 1
      %p1545 = por %p1543, %p1544
      %p1546 = scmp.ne.s32.totalorder %s1537, %s1538
      %p1547 = scmp.eq.s32.totalorder %s168, 0
      %p1548 = por %p1546, %p1547
      %p1549 = scmp.ne.s32.totalorder %s1537, %s1538
      %p1550 = scmp.eq.s32.totalorder %s169, 1
      %p1551 = por %p1549, %p1550
      %p1553 = scmp.ne.s32.totalorder %s1538, %s1552
      %p1554 = scmp.eq.s32.totalorder %s169, 0
      %p1555 = por %p1553, %p1554
      %s1557 = sadd.s32 %s1556, 1
      %p1560 = scmp.eq.s32.totalorder %s163, 1
      %p1561 = scmp.ne.s32.totalorder %s1556, %s1558
      %p1562 = scmp.eq.s32.totalorder %s163, 0
      %p1563 = por %p1561, %p1562
      %p1564 = scmp.ne.s32.totalorder %s1556, %s1558
      %p1565 = scmp.eq.s32.totalorder %s168, 1
      %p1566 = por %p1564, %p1565
      %p1567 = scmp.ne.s32.totalorder %s1558, %s1559
      %p1568 = scmp.eq.s32.totalorder %s168, 0
      %p1569 = por %p1567, %p1568
      %p1570 = scmp.ne.s32.totalorder %s1558, %s1559
      %p1571 = scmp.eq.s32.totalorder %s169, 1
      %p1572 = por %p1570, %p1571
      %p1574 = scmp.ne.s32.totalorder %s1559, %s1573
      %p1575 = scmp.eq.s32.totalorder %s169, 0
      %p1576 = por %p1574, %p1575
      %s1578 = sadd.s32 %s1577, 1
      %p1581 = scmp.eq.s32.totalorder %s163, 1
      %p1582 = scmp.ne.s32.totalorder %s1577, %s1579
      %p1583 = scmp.eq.s32.totalorder %s163, 0
      %p1584 = por %p1582, %p1583
      %p1585 = scmp.ne.s32.totalorder %s1577, %s1579
      %p1586 = scmp.eq.s32.totalorder %s168, 1
      %p1587 = por %p1585, %p1586
      %p1588 = scmp.ne.s32.totalorder %s1579, %s1580
      %p1589 = scmp.eq.s32.totalorder %s168, 0
      %p1590 = por %p1588, %p1589
      %p1591 = scmp.ne.s32.totalorder %s1579, %s1580
      %p1592 = scmp.eq.s32.totalorder %s169, 1
      %p1593 = por %p1591, %p1592
      %p1595 = scmp.ne.s32.totalorder %s1580, %s1594
      %p1596 = scmp.eq.s32.totalorder %s169, 0
      %p1597 = por %p1595, %p1596
      %s1599 = sadd.s32 %s1598, 1
      %p1602 = scmp.eq.s32.totalorder %s163, 1
      %p1603 = scmp.ne.s32.totalorder %s1598, %s1600
      %p1604 = scmp.eq.s32.totalorder %s163, 0
      %p1605 = por %p1603, %p1604
      %p1606 = scmp.ne.s32.totalorder %s1598, %s1600
      %p1607 = scmp.eq.s32.totalorder %s168, 1
      %p1608 = por %p1606, %p1607
      %p1609 = scmp.ne.s32.totalorder %s1600, %s1601
      %p1610 = scmp.eq.s32.totalorder %s168, 0
      %p1611 = por %p1609, %p1610
      %p1612 = scmp.ne.s32.totalorder %s1600, %s1601
      %p1613 = scmp.eq.s32.totalorder %s169, 1
      %p1614 = por %p1612, %p1613
      %p1616 = scmp.ne.s32.totalorder %s1601, %s1615
      %p1617 = scmp.eq.s32.totalorder %s169, 0
      %p1618 = por %p1616, %p1617
      %s1620 = sadd.s32 %s1619, 1
      %p1623 = scmp.eq.s32.totalorder %s163, 1
      %p1624 = scmp.ne.s32.totalorder %s1619, %s1621
      %p1625 = scmp.eq.s32.totalorder %s163, 0
      %p1626 = por %p1624, %p1625
      %p1627 = scmp.ne.s32.totalorder %s1619, %s1621
      %p1628 = scmp.eq.s32.totalorder %s168, 1
      %p1629 = por %p1627, %p1628
      %p1630 = scmp.ne.s32.totalorder %s1621, %s1622
      %p1631 = scmp.eq.s32.totalorder %s168, 0
      %p1632 = por %p1630, %p1631
      %p1633 = scmp.ne.s32.totalorder %s1621, %s1622
      %p1634 = scmp.eq.s32.totalorder %s169, 1
      %p1635 = por %p1633, %p1634
      %p1637 = scmp.ne.s32.totalorder %s1622, %s1636
      %p1638 = scmp.eq.s32.totalorder %s169, 0
      %p1639 = por %p1637, %p1638
      %s1641 = sadd.s32 %s1640, 1
      %p1644 = scmp.eq.s32.totalorder %s163, 1
      %p1645 = scmp.ne.s32.totalorder %s1640, %s1642
      %p1646 = scmp.eq.s32.totalorder %s163, 0
      %p1647 = por %p1645, %p1646
      %p1648 = scmp.ne.s32.totalorder %s1640, %s1642
      %p1649 = scmp.eq.s32.totalorder %s168, 1
      %p1650 = por %p1648, %p1649
      %p1651 = scmp.ne.s32.totalorder %s1642, %s1643
      %p1652 = scmp.eq.s32.totalorder %s168, 0
      %p1653 = por %p1651, %p1652
      %p1654 = scmp.ne.s32.totalorder %s1642, %s1643
      %p1655 = scmp.eq.s32.totalorder %s169, 1
      %p1656 = por %p1654, %p1655
      %p1658 = scmp.ne.s32.totalorder %s1643, %s1657
      %p1659 = scmp.eq.s32.totalorder %s169, 0
      %p1660 = por %p1658, %p1659
      %s1662 = sadd.s32 %s1661, 1
      %p1665 = scmp.eq.s32.totalorder %s163, 1
      %p1666 = scmp.ne.s32.totalorder %s1661, %s1663
      %p1667 = scmp.eq.s32.totalorder %s163, 0
      %p1668 = por %p1666, %p1667
      %p1669 = scmp.ne.s32.totalorder %s1661, %s1663
      %p1670 = scmp.eq.s32.totalorder %s168, 1
      %p1671 = por %p1669, %p1670
      %p1672 = scmp.ne.s32.totalorder %s1663, %s1664
      %p1673 = scmp.eq.s32.totalorder %s168, 0
      %p1674 = por %p1672, %p1673
      %p1675 = scmp.ne.s32.totalorder %s1663, %s1664
      %p1676 = scmp.eq.s32.totalorder %s169, 1
      %p1677 = por %p1675, %p1676
      %p1679 = scmp.ne.s32.totalorder %s1664, %s1678
      %p1680 = scmp.eq.s32.totalorder %s169, 0
      %p1681 = por %p1679, %p1680
      %s1682 = ssub.s32 %s163, %s170
      %p1683 = scmp.eq.s32.totalorder %s1682, 0
      %s1685 = sadd.s32 %s1684, 1
      %s1686 = scalar_select %p1683, %s1684, %s1685
      %p1689 = pneg %p1683
      %p1690 = scmp.eq.s32.totalorder %s163, 1
      %p1691 = por %p1689, %p1690
      %p1692 = scmp.ne.s32.totalorder %s1684, %s1687
      %p1693 = scmp.eq.s32.totalorder %s163, 0
      %p1694 = por %p1692, %p1693
      %p1695 = scmp.ne.s32.totalorder %s1684, %s1687
      %p1696 = scmp.eq.s32.totalorder %s168, 1
      %p1697 = por %p1695, %p1696
      %p1698 = scmp.ne.s32.totalorder %s1687, %s1688
      %p1699 = scmp.eq.s32.totalorder %s168, 0
      %p1700 = por %p1698, %p1699
      %p1701 = scmp.ne.s32.totalorder %s1687, %s1688
      %p1702 = scmp.eq.s32.totalorder %s169, 1
      %p1703 = por %p1701, %p1702
      %p1705 = scmp.ne.s32.totalorder %s1688, %s1704
      %p1706 = scmp.eq.s32.totalorder %s169, 0
      %p1707 = por %p1705, %p1706
      %p1708 = scmp.le.s32.totalorder 1, %s163
      %p1709 = scmp.lt.s32.totalorder %s163, 3
      %p1710 = pnand %p1708, %p1709
      %p1711 = pneg %p1710
      // Predicated region
      $region9: #{mae_forward.1} parent=5 // pred_check
        _
      $region10: #{mae_forward.1} parent=5 // pred_check_branch
        %1713 = sbr.rel (%p1710) target = $region12
      $region11: #{mae_forward.1} parent=5 // pred_region
        %s1714 = ssub.s32 %s163, 1
        // Predicated region
        $region13: #{mae_forward.1} parent=11 // pred_check
          %p1715 = pneg %p288
        $region14: #{mae_forward.1} parent=11 // pred_check_branch
          %1717 = sbr.rel (%p1715) target = $region16
        $region15: #{mae_forward.1} parent=11 // pred_region
          _
        $region16: #{mae_forward.1} parent=11 // pred_fallthru
          _
        // Predicated region
        $region17: #{mae_forward.1} parent=11 // pred_check
          %p1718 = pneg %p309
        $region18: #{mae_forward.1} parent=11 // pred_check_branch
          %1720 = sbr.rel (%p1718) target = $region20
        $region19: #{mae_forward.1} parent=11 // pred_region
          _
        $region20: #{mae_forward.1} parent=11 // pred_fallthru
          _
        // Predicated region
        $region21: #{mae_forward.1} parent=11 // pred_check
          %p1721 = pneg %p330
        $region22: #{mae_forward.1} parent=11 // pred_check_branch
          %1723 = sbr.rel (%p1721) target = $region24
        $region23: #{mae_forward.1} parent=11 // pred_region
          _
        $region24: #{mae_forward.1} parent=11 // pred_fallthru
          _
        // Predicated region
        $region25: #{mae_forward.1} parent=11 // pred_check
          %p1724 = pneg %p351
        $region26: #{mae_forward.1} parent=11 // pred_check_branch
          %1726 = sbr.rel (%p1724) target = $region28
        $region27: #{mae_forward.1} parent=11 // pred_region
          _
        $region28: #{mae_forward.1} parent=11 // pred_fallthru
          _
        // Predicated region
        $region29: #{mae_forward.1} parent=11 // pred_check
          %p1727 = pneg %p372
        $region30: #{mae_forward.1} parent=11 // pred_check_branch
          %1729 = sbr.rel (%p1727) target = $region32
        $region31: #{mae_forward.1} parent=11 // pred_region
          _
        $region32: #{mae_forward.1} parent=11 // pred_fallthru
          _
        // Predicated region
        $region33: #{mae_forward.1} parent=11 // pred_check
          %p1730 = pneg %p393
        $region34: #{mae_forward.1} parent=11 // pred_check_branch
          %1732 = sbr.rel (%p1730) target = $region36
        $region35: #{mae_forward.1} parent=11 // pred_region
          _
        $region36: #{mae_forward.1} parent=11 // pred_fallthru
          _
        // Predicated region
        $region37: #{mae_forward.1} parent=11 // pred_check
          %p1733 = pneg %p414
        $region38: #{mae_forward.1} parent=11 // pred_check_branch
          %1735 = sbr.rel (%p1733) target = $region40
        $region39: #{mae_forward.1} parent=11 // pred_region
          _
        $region40: #{mae_forward.1} parent=11 // pred_fallthru
          _
        // Predicated region
        $region41: #{mae_forward.1} parent=11 // pred_check
          %p1736 = pneg %p435
        $region42: #{mae_forward.1} parent=11 // pred_check_branch
          %1738 = sbr.rel (%p1736) target = $region44
        $region43: #{mae_forward.1} parent=11 // pred_region
          _
        $region44: #{mae_forward.1} parent=11 // pred_fallthru
          _
        // Predicated region
        $region45: #{mae_forward.1} parent=11 // pred_check
          %p1739 = pneg %p456
        $region46: #{mae_forward.1} parent=11 // pred_check_branch
          %1741 = sbr.rel (%p1739) target = $region48
        $region47: #{mae_forward.1} parent=11 // pred_region
          _
        $region48: #{mae_forward.1} parent=11 // pred_fallthru
          _
        // Predicated region
        $region49: #{mae_forward.1} parent=11 // pred_check
          %p1742 = pneg %p477
        $region50: #{mae_forward.1} parent=11 // pred_check_branch
          %1744 = sbr.rel (%p1742) target = $region52
        $region51: #{mae_forward.1} parent=11 // pred_region
          _
        $region52: #{mae_forward.1} parent=11 // pred_fallthru
          _
        // Predicated region
        $region53: #{mae_forward.1} parent=11 // pred_check
          %p1745 = pneg %p498
        $region54: #{mae_forward.1} parent=11 // pred_check_branch
          %1747 = sbr.rel (%p1745) target = $region56
        $region55: #{mae_forward.1} parent=11 // pred_region
          _
        $region56: #{mae_forward.1} parent=11 // pred_fallthru
          _
        // Predicated region
        $region57: #{mae_forward.1} parent=11 // pred_check
          %p1748 = pneg %p519
        $region58: #{mae_forward.1} parent=11 // pred_check_branch
          %1750 = sbr.rel (%p1748) target = $region60
        $region59: #{mae_forward.1} parent=11 // pred_region
          _
        $region60: #{mae_forward.1} parent=11 // pred_fallthru
          _
        // Predicated region
        $region61: #{mae_forward.1} parent=11 // pred_check
          %p1751 = pneg %p540
        $region62: #{mae_forward.1} parent=11 // pred_check_branch
          %1753 = sbr.rel (%p1751) target = $region64
        $region63: #{mae_forward.1} parent=11 // pred_region
          _
        $region64: #{mae_forward.1} parent=11 // pred_fallthru
          _
        // Predicated region
        $region65: #{mae_forward.1} parent=11 // pred_check
          %p1754 = pneg %p561
        $region66: #{mae_forward.1} parent=11 // pred_check_branch
          %1756 = sbr.rel (%p1754) target = $region68
        $region67: #{mae_forward.1} parent=11 // pred_region
          _
        $region68: #{mae_forward.1} parent=11 // pred_fallthru
          _
        // Predicated region
        $region69: #{mae_forward.1} parent=11 // pred_check
          %p1757 = pneg %p582
        $region70: #{mae_forward.1} parent=11 // pred_check_branch
          %1759 = sbr.rel (%p1757) target = $region72
        $region71: #{mae_forward.1} parent=11 // pred_region
          _
        $region72: #{mae_forward.1} parent=11 // pred_fallthru
          _
        // Predicated region
        $region73: #{mae_forward.1} parent=11 // pred_check
          %p1760 = pneg %p603
        $region74: #{mae_forward.1} parent=11 // pred_check_branch
          %1762 = sbr.rel (%p1760) target = $region76
        $region75: #{mae_forward.1} parent=11 // pred_region
          _
        $region76: #{mae_forward.1} parent=11 // pred_fallthru
          _
        // Predicated region
        $region77: #{mae_forward.1} parent=11 // pred_check
          %p1763 = pneg %p624
        $region78: #{mae_forward.1} parent=11 // pred_check_branch
          %1765 = sbr.rel (%p1763) target = $region80
        $region79: #{mae_forward.1} parent=11 // pred_region
          _
        $region80: #{mae_forward.1} parent=11 // pred_fallthru
          _
        // Predicated region
        $region81: #{mae_forward.1} parent=11 // pred_check
          %p1766 = pneg %p645
        $region82: #{mae_forward.1} parent=11 // pred_check_branch
          %1768 = sbr.rel (%p1766) target = $region84
        $region83: #{mae_forward.1} parent=11 // pred_region
          _
        $region84: #{mae_forward.1} parent=11 // pred_fallthru
          _
        // Predicated region
        $region85: #{mae_forward.1} parent=11 // pred_check
          %p1769 = pneg %p666
        $region86: #{mae_forward.1} parent=11 // pred_check_branch
          %1771 = sbr.rel (%p1769) target = $region88
        $region87: #{mae_forward.1} parent=11 // pred_region
          _
        $region88: #{mae_forward.1} parent=11 // pred_fallthru
          _
        // Predicated region
        $region89: #{mae_forward.1} parent=11 // pred_check
          %p1772 = pneg %p687
        $region90: #{mae_forward.1} parent=11 // pred_check_branch
          %1774 = sbr.rel (%p1772) target = $region92
        $region91: #{mae_forward.1} parent=11 // pred_region
          _
        $region92: #{mae_forward.1} parent=11 // pred_fallthru
          _
        // Predicated region
        $region93: #{mae_forward.1} parent=11 // pred_check
          %p1775 = pneg %p708
        $region94: #{mae_forward.1} parent=11 // pred_check_branch
          %1777 = sbr.rel (%p1775) target = $region96
        $region95: #{mae_forward.1} parent=11 // pred_region
          _
        $region96: #{mae_forward.1} parent=11 // pred_fallthru
          _
        // Predicated region
        $region97: #{mae_forward.1} parent=11 // pred_check
          %p1778 = pneg %p729
        $region98: #{mae_forward.1} parent=11 // pred_check_branch
          %1780 = sbr.rel (%p1778) target = $region100
        $region99: #{mae_forward.1} parent=11 // pred_region
          _
        $region100: #{mae_forward.1} parent=11 // pred_fallthru
          _
        // Predicated region
        $region101: #{mae_forward.1} parent=11 // pred_check
          %p1781 = pneg %p750
        $region102: #{mae_forward.1} parent=11 // pred_check_branch
          %1783 = sbr.rel (%p1781) target = $region104
        $region103: #{mae_forward.1} parent=11 // pred_region
          _
        $region104: #{mae_forward.1} parent=11 // pred_fallthru
          _
        // Predicated region
        $region105: #{mae_forward.1} parent=11 // pred_check
          %p1784 = pneg %p771
        $region106: #{mae_forward.1} parent=11 // pred_check_branch
          %1786 = sbr.rel (%p1784) target = $region108
        $region107: #{mae_forward.1} parent=11 // pred_region
          _
        $region108: #{mae_forward.1} parent=11 // pred_fallthru
          _
        // Predicated region
        $region109: #{mae_forward.1} parent=11 // pred_check
          %p1787 = pneg %p792
        $region110: #{mae_forward.1} parent=11 // pred_check_branch
          %1789 = sbr.rel (%p1787) target = $region112
        $region111: #{mae_forward.1} parent=11 // pred_region
          _
        $region112: #{mae_forward.1} parent=11 // pred_fallthru
          _
        // Predicated region
        $region113: #{mae_forward.1} parent=11 // pred_check
          %p1790 = pneg %p813
        $region114: #{mae_forward.1} parent=11 // pred_check_branch
          %1792 = sbr.rel (%p1790) target = $region116
        $region115: #{mae_forward.1} parent=11 // pred_region
          _
        $region116: #{mae_forward.1} parent=11 // pred_fallthru
          _
        // Predicated region
        $region117: #{mae_forward.1} parent=11 // pred_check
          %p1793 = pneg %p834
        $region118: #{mae_forward.1} parent=11 // pred_check_branch
          %1795 = sbr.rel (%p1793) target = $region120
        $region119: #{mae_forward.1} parent=11 // pred_region
          %s1797 = ssub.s32 16, 16
          %1798 = vsyncadd [#allocation5], %s1797
          %s1800 = sshll.u32 [#allocation4], 4
          %s1801 = int_to_ptr.vmem [resolvable:$true] %s1800
          %1803 = dma.hbm_to_vmem [thread:$0]  %s61, 16, %s1801, [#allocation5]
        $region120: #{mae_forward.1} parent=11 // pred_fallthru
          _
        // Predicated region
        $region121: #{mae_forward.1} parent=11 // pred_check
          %p1804 = pneg %p855
        $region122: #{mae_forward.1} parent=11 // pred_check_branch
          %1806 = sbr.rel (%p1804) target = $region124
        $region123: #{mae_forward.1} parent=11 // pred_region
          %s1808 = ssub.s32 16, 16
          %1809 = vsyncadd [#allocation7], %s1808
          %s1811 = sshll.u32 [#allocation6], 4
          %s1812 = int_to_ptr.vmem [resolvable:$true] %s1811
          %1814 = dma.hbm_to_vmem [thread:$0]  %s63, 16, %s1812, [#allocation7]
        $region124: #{mae_forward.1} parent=11 // pred_fallthru
          _
        // Predicated region
        $region125: #{mae_forward.1} parent=11 // pred_check
          %p1815 = pneg %p876
        $region126: #{mae_forward.1} parent=11 // pred_check_branch
          %1817 = sbr.rel (%p1815) target = $region128
        $region127: #{mae_forward.1} parent=11 // pred_region
          _
        $region128: #{mae_forward.1} parent=11 // pred_fallthru
          _
        // Predicated region
        $region129: #{mae_forward.1} parent=11 // pred_check
          %p1818 = pneg %p897
        $region130: #{mae_forward.1} parent=11 // pred_check_branch
          %1820 = sbr.rel (%p1818) target = $region132
        $region131: #{mae_forward.1} parent=11 // pred_region
          %s1822 = ssub.s32 16, 16
          %1823 = vsyncadd [#allocation7], %s1822
          %s1825 = sshll.u32 [#allocation8], 4
          %s1826 = int_to_ptr.vmem [resolvable:$true] %s1825
          %1828 = dma.hbm_to_vmem [thread:$0]  %s67, 16, %s1826, [#allocation7]
        $region132: #{mae_forward.1} parent=11 // pred_fallthru
          _
        // Predicated region
        $region133: #{mae_forward.1} parent=11 // pred_check
          %p1829 = pneg %p918
        $region134: #{mae_forward.1} parent=11 // pred_check_branch
          %1831 = sbr.rel (%p1829) target = $region136
        $region135: #{mae_forward.1} parent=11 // pred_region
          %s1833 = ssub.s32 16, 16
          %1834 = vsyncadd [#allocation10], %s1833
          %s1836 = sshll.u32 [#allocation9], 4
          %s1837 = int_to_ptr.vmem [resolvable:$true] %s1836
          %1839 = dma.hbm_to_vmem [thread:$0]  %s69, 16, %s1837, [#allocation10]
        $region136: #{mae_forward.1} parent=11 // pred_fallthru
          _
        // Predicated region
        $region137: #{mae_forward.1} parent=11 // pred_check
          %p1840 = pneg %p939
        $region138: #{mae_forward.1} parent=11 // pred_check_branch
          %1842 = sbr.rel (%p1840) target = $region140
        $region139: #{mae_forward.1} parent=11 // pred_region
          %s1844 = ssub.s32 16, 16
          %1845 = vsyncadd [#allocation10], %s1844
          %s1847 = sshll.u32 [#allocation11], 4
          %s1848 = int_to_ptr.vmem [resolvable:$true] %s1847
          %1850 = dma.hbm_to_vmem [thread:$0]  %s71, 16, %s1848, [#allocation10]
        $region140: #{mae_forward.1} parent=11 // pred_fallthru
          _
        // Predicated region
        $region141: #{mae_forward.1} parent=11 // pred_check
          %p1851 = pneg %p960
        $region142: #{mae_forward.1} parent=11 // pred_check_branch
          %1853 = sbr.rel (%p1851) target = $region144
        $region143: #{mae_forward.1} parent=11 // pred_region
          %s1855 = ssub.s32 16, 16
          %1856 = vsyncadd [#allocation13], %s1855
          %s1858 = sshll.u32 [#allocation12], 4
          %s1859 = int_to_ptr.vmem [resolvable:$true] %s1858
          %1861 = dma.hbm_to_vmem [thread:$0]  %s73, 16, %s1859, [#allocation13]
        $region144: #{mae_forward.1} parent=11 // pred_fallthru
          _
        // Predicated region
        $region145: #{mae_forward.1} parent=11 // pred_check
          %p1862 = pneg %p981
        $region146: #{mae_forward.1} parent=11 // pred_check_branch
          %1864 = sbr.rel (%p1862) target = $region148
        $region147: #{mae_forward.1} parent=11 // pred_region
          _
        $region148: #{mae_forward.1} parent=11 // pred_fallthru
          _
        // Predicated region
        $region149: #{mae_forward.1} parent=11 // pred_check
          %p1865 = pneg %p1002
        $region150: #{mae_forward.1} parent=11 // pred_check_branch
          %1867 = sbr.rel (%p1865) target = $region152
        $region151: #{mae_forward.1} parent=11 // pred_region
          %s1869 = ssub.s32 16, 16
          %1870 = vsyncadd [#allocation13], %s1869
          %s1872 = sshll.u32 [#allocation14], 4
          %s1873 = int_to_ptr.vmem [resolvable:$true] %s1872
          %1875 = dma.hbm_to_vmem [thread:$0]  %s77, 16, %s1873, [#allocation13]
        $region152: #{mae_forward.1} parent=11 // pred_fallthru
          _
        // Predicated region
        $region153: #{mae_forward.1} parent=11 // pred_check
          %p1876 = pneg %p1023
        $region154: #{mae_forward.1} parent=11 // pred_check_branch
          %1878 = sbr.rel (%p1876) target = $region156
        $region155: #{mae_forward.1} parent=11 // pred_region
          _
        $region156: #{mae_forward.1} parent=11 // pred_fallthru
          _
        // Predicated region
        $region157: #{mae_forward.1} parent=11 // pred_check
          %p1879 = pneg %p1044
        $region158: #{mae_forward.1} parent=11 // pred_check_branch
          %1881 = sbr.rel (%p1879) target = $region160
        $region159: #{mae_forward.1} parent=11 // pred_region
          %s1883 = ssub.s32 16, 16
          %1884 = vsyncadd [#allocation16], %s1883
          %s1886 = sshll.u32 [#allocation15], 4
          %s1887 = int_to_ptr.vmem [resolvable:$true] %s1886
          %1889 = dma.hbm_to_vmem [thread:$0]  %s81, 16, %s1887, [#allocation16]
        $region160: #{mae_forward.1} parent=11 // pred_fallthru
          _
        // Predicated region
        $region161: #{mae_forward.1} parent=11 // pred_check
          %p1890 = pneg %p1065
        $region162: #{mae_forward.1} parent=11 // pred_check_branch
          %1892 = sbr.rel (%p1890) target = $region164
        $region163: #{mae_forward.1} parent=11 // pred_region
          _
        $region164: #{mae_forward.1} parent=11 // pred_fallthru
          _
        // Predicated region
        $region165: #{mae_forward.1} parent=11 // pred_check
          %p1893 = pneg %p1086
        $region166: #{mae_forward.1} parent=11 // pred_check_branch
          %1895 = sbr.rel (%p1893) target = $region168
        $region167: #{mae_forward.1} parent=11 // pred_region
          %s1897 = ssub.s32 16, 16
          %1898 = vsyncadd [#allocation16], %s1897
          %s1900 = sshll.u32 [#allocation17], 4
          %s1901 = int_to_ptr.vmem [resolvable:$true] %s1900
          %1903 = dma.hbm_to_vmem [thread:$0]  %s85, 16, %s1901, [#allocation16]
        $region168: #{mae_forward.1} parent=11 // pred_fallthru
          _
        // Predicated region
        $region169: #{mae_forward.1} parent=11 // pred_check
          %p1904 = pneg %p1107
        $region170: #{mae_forward.1} parent=11 // pred_check_branch
          %1906 = sbr.rel (%p1904) target = $region172
        $region171: #{mae_forward.1} parent=11 // pred_region
          _
        $region172: #{mae_forward.1} parent=11 // pred_fallthru
          _
        // Predicated region
        $region173: #{mae_forward.1} parent=11 // pred_check
          %p1907 = pneg %p1128
        $region174: #{mae_forward.1} parent=11 // pred_check_branch
          %1909 = sbr.rel (%p1907) target = $region176
        $region175: #{mae_forward.1} parent=11 // pred_region
          %s1911 = ssub.s32 16, 16
          %1912 = vsyncadd [#allocation19], %s1911
          %s1914 = sshll.u32 [#allocation18], 4
          %s1915 = int_to_ptr.vmem [resolvable:$true] %s1914
          %1917 = dma.hbm_to_vmem [thread:$0]  %s89, 16, %s1915, [#allocation19]
        $region176: #{mae_forward.1} parent=11 // pred_fallthru
          _
        // Predicated region
        $region177: #{mae_forward.1} parent=11 // pred_check
          %p1918 = pneg %p1149
        $region178: #{mae_forward.1} parent=11 // pred_check_branch
          %1920 = sbr.rel (%p1918) target = $region180
        $region179: #{mae_forward.1} parent=11 // pred_region
          %s1922 = ssub.s32 16, 16
          %1923 = vsyncadd [#allocation19], %s1922
          %s1925 = sshll.u32 [#allocation20], 4
          %s1926 = int_to_ptr.vmem [resolvable:$true] %s1925
          %1928 = dma.hbm_to_vmem [thread:$0]  %s91, 16, %s1926, [#allocation19]
        $region180: #{mae_forward.1} parent=11 // pred_fallthru
          _
        // Predicated region
        $region181: #{mae_forward.1} parent=11 // pred_check
          %p1929 = pneg %p1170
        $region182: #{mae_forward.1} parent=11 // pred_check_branch
          %1931 = sbr.rel (%p1929) target = $region184
        $region183: #{mae_forward.1} parent=11 // pred_region
          %s1933 = ssub.s32 16, 16
          %1934 = vsyncadd [#allocation22], %s1933
          %s1936 = sshll.u32 [#allocation21], 4
          %s1937 = int_to_ptr.vmem [resolvable:$true] %s1936
          %1939 = dma.hbm_to_vmem [thread:$0]  %s93, 16, %s1937, [#allocation22]
        $region184: #{mae_forward.1} parent=11 // pred_fallthru
          _
        // Predicated region
        $region185: #{mae_forward.1} parent=11 // pred_check
          %p1940 = pneg %p1191
        $region186: #{mae_forward.1} parent=11 // pred_check_branch
          %1942 = sbr.rel (%p1940) target = $region188
        $region187: #{mae_forward.1} parent=11 // pred_region
          _
        $region188: #{mae_forward.1} parent=11 // pred_fallthru
          _
        // Predicated region
        $region189: #{mae_forward.1} parent=11 // pred_check
          %p1943 = pneg %p1212
        $region190: #{mae_forward.1} parent=11 // pred_check_branch
          %1945 = sbr.rel (%p1943) target = $region192
        $region191: #{mae_forward.1} parent=11 // pred_region
          %s1947 = ssub.s32 16, 16
          %1948 = vsyncadd [#allocation22], %s1947
          %s1950 = sshll.u32 [#allocation23], 4
          %s1951 = int_to_ptr.vmem [resolvable:$true] %s1950
          %1953 = dma.hbm_to_vmem [thread:$0]  %s97, 16, %s1951, [#allocation22]
        $region192: #{mae_forward.1} parent=11 // pred_fallthru
          _
        // Predicated region
        $region193: #{mae_forward.1} parent=11 // pred_check
          %p1954 = pneg %p1233
        $region194: #{mae_forward.1} parent=11 // pred_check_branch
          %1956 = sbr.rel (%p1954) target = $region196
        $region195: #{mae_forward.1} parent=11 // pred_region
          _
        $region196: #{mae_forward.1} parent=11 // pred_fallthru
          _
        // Predicated region
        $region197: #{mae_forward.1} parent=11 // pred_check
          %p1957 = pneg %p1254
        $region198: #{mae_forward.1} parent=11 // pred_check_branch
          %1959 = sbr.rel (%p1957) target = $region200
        $region199: #{mae_forward.1} parent=11 // pred_region
          %s1961 = ssub.s32 16, 16
          %1962 = vsyncadd [#allocation25], %s1961
          %s1964 = sshll.u32 [#allocation24], 4
          %s1965 = int_to_ptr.vmem [resolvable:$true] %s1964
          %1967 = dma.hbm_to_vmem [thread:$0]  %s101, 16, %s1965, [#allocation25]
        $region200: #{mae_forward.1} parent=11 // pred_fallthru
          _
        // Predicated region
        $region201: #{mae_forward.1} parent=11 // pred_check
          %p1968 = pneg %p1275
        $region202: #{mae_forward.1} parent=11 // pred_check_branch
          %1970 = sbr.rel (%p1968) target = $region204
        $region203: #{mae_forward.1} parent=11 // pred_region
          %s1972 = ssub.s32 16, 16
          %1973 = vsyncadd [#allocation25], %s1972
          %s1975 = sshll.u32 [#allocation26], 4
          %s1976 = int_to_ptr.vmem [resolvable:$true] %s1975
          %1978 = dma.hbm_to_vmem [thread:$0]  %s103, 16, %s1976, [#allocation25]
        $region204: #{mae_forward.1} parent=11 // pred_fallthru
          _
        // Predicated region
        $region205: #{mae_forward.1} parent=11 // pred_check
          %p1979 = pneg %p1296
        $region206: #{mae_forward.1} parent=11 // pred_check_branch
          %1981 = sbr.rel (%p1979) target = $region208
        $region207: #{mae_forward.1} parent=11 // pred_region
          %s1983 = ssub.s32 16, 16
          %1984 = vsyncadd [#allocation28], %s1983
          %s1986 = sshll.u32 [#allocation27], 4
          %s1987 = int_to_ptr.vmem [resolvable:$true] %s1986
          %1989 = dma.hbm_to_vmem [thread:$0]  %s105, 16, %s1987, [#allocation28]
        $region208: #{mae_forward.1} parent=11 // pred_fallthru
          _
        // Predicated region
        $region209: #{mae_forward.1} parent=11 // pred_check
          %p1990 = pneg %p1317
        $region210: #{mae_forward.1} parent=11 // pred_check_branch
          %1992 = sbr.rel (%p1990) target = $region212
        $region211: #{mae_forward.1} parent=11 // pred_region
          _
        $region212: #{mae_forward.1} parent=11 // pred_fallthru
          _
        // Predicated region
        $region213: #{mae_forward.1} parent=11 // pred_check
          %p1993 = pneg %p1338
        $region214: #{mae_forward.1} parent=11 // pred_check_branch
          %1995 = sbr.rel (%p1993) target = $region216
        $region215: #{mae_forward.1} parent=11 // pred_region
          %s1997 = ssub.s32 16, 16
          %1998 = vsyncadd [#allocation28], %s1997
          %s2000 = sshll.u32 [#allocation29], 4
          %s2001 = int_to_ptr.vmem [resolvable:$true] %s2000
          %2003 = dma.hbm_to_vmem [thread:$0]  %s109, 16, %s2001, [#allocation28]
        $region216: #{mae_forward.1} parent=11 // pred_fallthru
          _
        // Predicated region
        $region217: #{mae_forward.1} parent=11 // pred_check
          %p2004 = pneg %p1359
        $region218: #{mae_forward.1} parent=11 // pred_check_branch
          %2006 = sbr.rel (%p2004) target = $region220
        $region219: #{mae_forward.1} parent=11 // pred_region
          _
        $region220: #{mae_forward.1} parent=11 // pred_fallthru
          _
        // Predicated region
        $region221: #{mae_forward.1} parent=11 // pred_check
          %p2007 = pneg %p1380
        $region222: #{mae_forward.1} parent=11 // pred_check_branch
          %2009 = sbr.rel (%p2007) target = $region224
        $region223: #{mae_forward.1} parent=11 // pred_region
          %s2011 = ssub.s32 16, 16
          %2012 = vsyncadd [#allocation31], %s2011
          %s2014 = sshll.u32 [#allocation30], 4
          %s2015 = int_to_ptr.vmem [resolvable:$true] %s2014
          %2017 = dma.hbm_to_vmem [thread:$0]  %s113, 16, %s2015, [#allocation31]
        $region224: #{mae_forward.1} parent=11 // pred_fallthru
          _
        // Predicated region
        $region225: #{mae_forward.1} parent=11 // pred_check
          %p2018 = pneg %p1401
        $region226: #{mae_forward.1} parent=11 // pred_check_branch
          %2020 = sbr.rel (%p2018) target = $region228
        $region227: #{mae_forward.1} parent=11 // pred_region
          _
        $region228: #{mae_forward.1} parent=11 // pred_fallthru
          _
        // Predicated region
        $region229: #{mae_forward.1} parent=11 // pred_check
          %p2021 = pneg %p1422
        $region230: #{mae_forward.1} parent=11 // pred_check_branch
          %2023 = sbr.rel (%p2021) target = $region232
        $region231: #{mae_forward.1} parent=11 // pred_region
          %s2025 = ssub.s32 16, 16
          %2026 = vsyncadd [#allocation31], %s2025
          %s2028 = sshll.u32 [#allocation32], 4
          %s2029 = int_to_ptr.vmem [resolvable:$true] %s2028
          %2031 = dma.hbm_to_vmem [thread:$0]  %s117, 16, %s2029, [#allocation31]
        $region232: #{mae_forward.1} parent=11 // pred_fallthru
          _
        // Predicated region
        $region233: #{mae_forward.1} parent=11 // pred_check
          %p2032 = pneg %p1443
        $region234: #{mae_forward.1} parent=11 // pred_check_branch
          %2034 = sbr.rel (%p2032) target = $region236
        $region235: #{mae_forward.1} parent=11 // pred_region
          _
        $region236: #{mae_forward.1} parent=11 // pred_fallthru
          _
        // Predicated region
        $region237: #{mae_forward.1} parent=11 // pred_check
          %p2035 = pneg %p1464
        $region238: #{mae_forward.1} parent=11 // pred_check_branch
          %2037 = sbr.rel (%p2035) target = $region240
        $region239: #{mae_forward.1} parent=11 // pred_region
          %s2039 = ssub.s32 16, 16
          %2040 = vsyncadd [#allocation34], %s2039
          %s2042 = sshll.u32 [#allocation33], 4
          %s2043 = int_to_ptr.vmem [resolvable:$true] %s2042
          %2045 = dma.hbm_to_vmem [thread:$0]  %s121, 16, %s2043, [#allocation34]
        $region240: #{mae_forward.1} parent=11 // pred_fallthru
          _
        // Predicated region
        $region241: #{mae_forward.1} parent=11 // pred_check
          %p2046 = pneg %p1485
        $region242: #{mae_forward.1} parent=11 // pred_check_branch
          %2048 = sbr.rel (%p2046) target = $region244
        $region243: #{mae_forward.1} parent=11 // pred_region
          %s2050 = ssub.s32 16, 16
          %2051 = vsyncadd [#allocation34], %s2050
          %s2053 = sshll.u32 [#allocation35], 4
          %s2054 = int_to_ptr.vmem [resolvable:$true] %s2053
          %2056 = dma.hbm_to_vmem [thread:$0]  %s123, 16, %s2054, [#allocation34]
        $region244: #{mae_forward.1} parent=11 // pred_fallthru
          _
        // Predicated region
        $region245: #{mae_forward.1} parent=11 // pred_check
          %p2057 = pneg %p1506
        $region246: #{mae_forward.1} parent=11 // pred_check_branch
          %2059 = sbr.rel (%p2057) target = $region248
        $region247: #{mae_forward.1} parent=11 // pred_region
          %s2061 = ssub.s32 16, 16
          %2062 = vsyncadd [#allocation37], %s2061
          %s2064 = sshll.u32 [#allocation36], 4
          %s2065 = int_to_ptr.vmem [resolvable:$true] %s2064
          %2067 = dma.hbm_to_vmem [thread:$0]  %s125, 16, %s2065, [#allocation37]
        $region248: #{mae_forward.1} parent=11 // pred_fallthru
          _
        // Predicated region
        $region249: #{mae_forward.1} parent=11 // pred_check
          %p2068 = pneg %p1527
        $region250: #{mae_forward.1} parent=11 // pred_check_branch
          %2070 = sbr.rel (%p2068) target = $region252
        $region251: #{mae_forward.1} parent=11 // pred_region
          _
        $region252: #{mae_forward.1} parent=11 // pred_fallthru
          _
        // Predicated region
        $region253: #{mae_forward.1} parent=11 // pred_check
          %p2071 = pneg %p1548
        $region254: #{mae_forward.1} parent=11 // pred_check_branch
          %2073 = sbr.rel (%p2071) target = $region256
        $region255: #{mae_forward.1} parent=11 // pred_region
          %s2075 = ssub.s32 16, 16
          %2076 = vsyncadd [#allocation37], %s2075
          %s2078 = sshll.u32 [#allocation38], 4
          %s2079 = int_to_ptr.vmem [resolvable:$true] %s2078
          %2081 = dma.hbm_to_vmem [thread:$0]  %s129, 16, %s2079, [#allocation37]
        $region256: #{mae_forward.1} parent=11 // pred_fallthru
          _
        // Predicated region
        $region257: #{mae_forward.1} parent=11 // pred_check
          %p2082 = pneg %p1569
        $region258: #{mae_forward.1} parent=11 // pred_check_branch
          %2084 = sbr.rel (%p2082) target = $region260
        $region259: #{mae_forward.1} parent=11 // pred_region
          _
        $region260: #{mae_forward.1} parent=11 // pred_fallthru
          _
        // Predicated region
        $region261: #{mae_forward.1} parent=11 // pred_check
          %p2085 = pneg %p1590
        $region262: #{mae_forward.1} parent=11 // pred_check_branch
          %2087 = sbr.rel (%p2085) target = $region264
        $region263: #{mae_forward.1} parent=11 // pred_region
          %s2089 = ssub.s32 16, 16
          %2090 = vsyncadd [#allocation40], %s2089
          %s2092 = sshll.u32 [#allocation39], 4
          %s2093 = int_to_ptr.vmem [resolvable:$true] %s2092
          %2095 = dma.hbm_to_vmem [thread:$0]  %s133, 16, %s2093, [#allocation40]
        $region264: #{mae_forward.1} parent=11 // pred_fallthru
          _
        // Predicated region
        $region265: #{mae_forward.1} parent=11 // pred_check
          %p2096 = pneg %p1611
        $region266: #{mae_forward.1} parent=11 // pred_check_branch
          %2098 = sbr.rel (%p2096) target = $region268
        $region267: #{mae_forward.1} parent=11 // pred_region
          %s2100 = ssub.s32 16, 16
          %2101 = vsyncadd [#allocation40], %s2100
          %s2103 = sshll.u32 [#allocation41], 4
          %s2104 = int_to_ptr.vmem [resolvable:$true] %s2103
          %2106 = dma.hbm_to_vmem [thread:$0]  %s135, 16, %s2104, [#allocation40]
        $region268: #{mae_forward.1} parent=11 // pred_fallthru
          _
        // Predicated region
        $region269: #{mae_forward.1} parent=11 // pred_check
          %p2107 = pneg %p1632
        $region270: #{mae_forward.1} parent=11 // pred_check_branch
          %2109 = sbr.rel (%p2107) target = $region272
        $region271: #{mae_forward.1} parent=11 // pred_region
          %s2111 = ssub.s32 16, 16
          %2112 = vsyncadd [#allocation43], %s2111
          %s2114 = sshll.u32 [#allocation42], 4
          %s2115 = int_to_ptr.vmem [resolvable:$true] %s2114
          %2117 = dma.hbm_to_vmem [thread:$0]  %s137, 16, %s2115, [#allocation43]
        $region272: #{mae_forward.1} parent=11 // pred_fallthru
          _
        // Predicated region
        $region273: #{mae_forward.1} parent=11 // pred_check
          %p2118 = pneg %p1653
        $region274: #{mae_forward.1} parent=11 // pred_check_branch
          %2120 = sbr.rel (%p2118) target = $region276
        $region275: #{mae_forward.1} parent=11 // pred_region
          _
        $region276: #{mae_forward.1} parent=11 // pred_fallthru
          _
        // Predicated region
        $region277: #{mae_forward.1} parent=11 // pred_check
          %p2121 = pneg %p1674
        $region278: #{mae_forward.1} parent=11 // pred_check_branch
          %2123 = sbr.rel (%p2121) target = $region280
        $region279: #{mae_forward.1} parent=11 // pred_region
          %s2125 = ssub.s32 16, 16
          %2126 = vsyncadd [#allocation43], %s2125
          %s2128 = sshll.u32 [#allocation44], 4
          %s2129 = int_to_ptr.vmem [resolvable:$true] %s2128
          %2131 = dma.hbm_to_vmem [thread:$0]  %s141, 16, %s2129, [#allocation43]
        $region280: #{mae_forward.1} parent=11 // pred_fallthru
          _
      $region12: #{mae_forward.1} parent=5 // pred_fallthru
        _
      %p2132 = scmp.lt.s32.totalorder %s163, 2
      // Predicated region
      $region281: #{mae_forward.1} parent=5 // pred_check
        %p2133 = pneg %p2132
      $region282: #{mae_forward.1} parent=5 // pred_check_branch
        %2135 = sbr.rel (%p2133) target = $region284
      $region283: #{mae_forward.1} parent=5 // pred_region
        // Predicated region
        $region285: #{mae_forward.1} parent=283 // pred_check
          %p2136 = pneg %p183
        $region286: #{mae_forward.1} parent=283 // pred_check_branch
          %2138 = sbr.rel (%p2136) target = $region288
        $region287: #{mae_forward.1} parent=283 // pred_region
          %p2139 = scmp.lt.s32.totalorder %s163, 1
          %s2140 = scalar_select %p2139, %s163, 1
          %s2141 = smul.addr %s2140, 4
          %s2142 = scalar_lea.vmem %s1, %s2141
        $region288: #{mae_forward.1} parent=283 // pred_fallthru
          _
        // Predicated region
        $region289: #{mae_forward.1} parent=283 // pred_check
          %p2143 = pneg %p209
        $region290: #{mae_forward.1} parent=283 // pred_check_branch
          %2145 = sbr.rel (%p2143) target = $region292
        $region291: #{mae_forward.1} parent=283 // pred_region
          %p2146 = scmp.lt.s32.totalorder %s163, 1
          %s2147 = scalar_select %p2146, %s163, 1
          %s2148 = smul.addr %s2147, 4
          %s2149 = scalar_lea.vmem %s3, %s2148
        $region292: #{mae_forward.1} parent=283 // pred_fallthru
          _
        // Predicated region
        $region293: #{mae_forward.1} parent=283 // pred_check
          %p2150 = pneg %p235
        $region294: #{mae_forward.1} parent=283 // pred_check_branch
          %2152 = sbr.rel (%p2150) target = $region296
        $region295: #{mae_forward.1} parent=283 // pred_region
          %p2153 = scmp.lt.s32.totalorder %s163, 1
          %s2154 = scalar_select %p2153, %s163, 1
          %s2155 = smul.addr %s2154, 2
          %s2156 = smul.addr %s2155, 8
          %s2157 = scalar_lea.vmem %s5, %s2156
        $region296: #{mae_forward.1} parent=283 // pred_fallthru
          _
        // Predicated region
        $region297: #{mae_forward.1} parent=283 // pred_check
          %p2158 = pneg %p261
        $region298: #{mae_forward.1} parent=283 // pred_check_branch
          %2160 = sbr.rel (%p2158) target = $region300
        $region299: #{mae_forward.1} parent=283 // pred_region
          %p2161 = scmp.lt.s32.totalorder %s163, 1
          %s2162 = scalar_select %p2161, %s163, 1
          %s2163 = smul.addr %s2162, 4
          %s2164 = scalar_lea.vmem %s7, %s2163
        $region300: #{mae_forward.1} parent=283 // pred_fallthru
          _
      $region284: #{mae_forward.1} parent=5 // pred_fallthru
        _
      %p2165 = scmp.le.s32.totalorder 1, %s163
      %p2166 = scmp.lt.s32.totalorder %s163, 3
      %p2167 = pnand %p2165, %p2166
      %p2168 = pneg %p2167
      // Predicated region
      $region301: #{mae_forward.1} parent=5 // pred_check
        _
      $region302: #{mae_forward.1} parent=5 // pred_check_branch
        %2170 = sbr.rel (%p2167) target = $region304
      $region303: #{mae_forward.1} parent=5 // pred_region
        %s2171 = ssub.s32 %s163, 1
        // Predicated region
        $region305: #{mae_forward.1} parent=303 // pred_check
          %p2172 = pneg %p834
        $region306: #{mae_forward.1} parent=303 // pred_check_branch
          %2174 = sbr.rel (%p2172) target = $region308
        $region307: #{mae_forward.1} parent=303 // pred_region
          %2175 = dma.done [#allocation5], 16
        $region308: #{mae_forward.1} parent=303 // pred_fallthru
          _
        // Predicated region
        $region309: #{mae_forward.1} parent=303 // pred_check
          %p2176 = pneg %p855
        $region310: #{mae_forward.1} parent=303 // pred_check_branch
          %2178 = sbr.rel (%p2176) target = $region312
        $region311: #{mae_forward.1} parent=303 // pred_region
          %2179 = dma.done [#allocation7], 16
        $region312: #{mae_forward.1} parent=303 // pred_fallthru
          _
        // Predicated region
        $region313: #{mae_forward.1} parent=303 // pred_check
          %p2180 = pneg %p897
        $region314: #{mae_forward.1} parent=303 // pred_check_branch
          %2182 = sbr.rel (%p2180) target = $region316
        $region315: #{mae_forward.1} parent=303 // pred_region
          %2183 = dma.done [#allocation7], 16
        $region316: #{mae_forward.1} parent=303 // pred_fallthru
          _
        // Predicated region
        $region317: #{mae_forward.1} parent=303 // pred_check
          %p2184 = pneg %p918
        $region318: #{mae_forward.1} parent=303 // pred_check_branch
          %2186 = sbr.rel (%p2184) target = $region320
        $region319: #{mae_forward.1} parent=303 // pred_region
          %2187 = dma.done [#allocation10], 16
        $region320: #{mae_forward.1} parent=303 // pred_fallthru
          _
        // Predicated region
        $region321: #{mae_forward.1} parent=303 // pred_check
          %p2188 = pneg %p939
        $region322: #{mae_forward.1} parent=303 // pred_check_branch
          %2190 = sbr.rel (%p2188) target = $region324
        $region323: #{mae_forward.1} parent=303 // pred_region
          %2191 = dma.done [#allocation10], 16
        $region324: #{mae_forward.1} parent=303 // pred_fallthru
          _
        // Predicated region
        $region325: #{mae_forward.1} parent=303 // pred_check
          %p2192 = pneg %p960
        $region326: #{mae_forward.1} parent=303 // pred_check_branch
          %2194 = sbr.rel (%p2192) target = $region328
        $region327: #{mae_forward.1} parent=303 // pred_region
          %2195 = dma.done [#allocation13], 16
        $region328: #{mae_forward.1} parent=303 // pred_fallthru
          _
        // Predicated region
        $region329: #{mae_forward.1} parent=303 // pred_check
          %p2196 = pneg %p1002
        $region330: #{mae_forward.1} parent=303 // pred_check_branch
          %2198 = sbr.rel (%p2196) target = $region332
        $region331: #{mae_forward.1} parent=303 // pred_region
          %2199 = dma.done [#allocation13], 16
        $region332: #{mae_forward.1} parent=303 // pred_fallthru
          _
        // Predicated region
        $region333: #{mae_forward.1} parent=303 // pred_check
          %p2200 = pneg %p1044
        $region334: #{mae_forward.1} parent=303 // pred_check_branch
          %2202 = sbr.rel (%p2200) target = $region336
        $region335: #{mae_forward.1} parent=303 // pred_region
          %2203 = dma.done [#allocation16], 16
        $region336: #{mae_forward.1} parent=303 // pred_fallthru
          _
        // Predicated region
        $region337: #{mae_forward.1} parent=303 // pred_check
          %p2204 = pneg %p1086
        $region338: #{mae_forward.1} parent=303 // pred_check_branch
          %2206 = sbr.rel (%p2204) target = $region340
        $region339: #{mae_forward.1} parent=303 // pred_region
          %2207 = dma.done [#allocation16], 16
        $region340: #{mae_forward.1} parent=303 // pred_fallthru
          _
        // Predicated region
        $region341: #{mae_forward.1} parent=303 // pred_check
          %p2208 = pneg %p1128
        $region342: #{mae_forward.1} parent=303 // pred_check_branch
          %2210 = sbr.rel (%p2208) target = $region344
        $region343: #{mae_forward.1} parent=303 // pred_region
          %2211 = dma.done [#allocation19], 16
        $region344: #{mae_forward.1} parent=303 // pred_fallthru
          _
        // Predicated region
        $region345: #{mae_forward.1} parent=303 // pred_check
          %p2212 = pneg %p1149
        $region346: #{mae_forward.1} parent=303 // pred_check_branch
          %2214 = sbr.rel (%p2212) target = $region348
        $region347: #{mae_forward.1} parent=303 // pred_region
          %2215 = dma.done [#allocation19], 16
        $region348: #{mae_forward.1} parent=303 // pred_fallthru
          _
        // Predicated region
        $region349: #{mae_forward.1} parent=303 // pred_check
          %p2216 = pneg %p1170
        $region350: #{mae_forward.1} parent=303 // pred_check_branch
          %2218 = sbr.rel (%p2216) target = $region352
        $region351: #{mae_forward.1} parent=303 // pred_region
          %2219 = dma.done [#allocation22], 16
        $region352: #{mae_forward.1} parent=303 // pred_fallthru
          _
        // Predicated region
        $region353: #{mae_forward.1} parent=303 // pred_check
          %p2220 = pneg %p1212
        $region354: #{mae_forward.1} parent=303 // pred_check_branch
          %2222 = sbr.rel (%p2220) target = $region356
        $region355: #{mae_forward.1} parent=303 // pred_region
          %2223 = dma.done [#allocation22], 16
        $region356: #{mae_forward.1} parent=303 // pred_fallthru
          _
        // Predicated region
        $region357: #{mae_forward.1} parent=303 // pred_check
          %p2224 = pneg %p1254
        $region358: #{mae_forward.1} parent=303 // pred_check_branch
          %2226 = sbr.rel (%p2224) target = $region360
        $region359: #{mae_forward.1} parent=303 // pred_region
          %2227 = dma.done [#allocation25], 16
        $region360: #{mae_forward.1} parent=303 // pred_fallthru
          _
        // Predicated region
        $region361: #{mae_forward.1} parent=303 // pred_check
          %p2228 = pneg %p1275
        $region362: #{mae_forward.1} parent=303 // pred_check_branch
          %2230 = sbr.rel (%p2228) target = $region364
        $region363: #{mae_forward.1} parent=303 // pred_region
          %2231 = dma.done [#allocation25], 16
        $region364: #{mae_forward.1} parent=303 // pred_fallthru
          _
        // Predicated region
        $region365: #{mae_forward.1} parent=303 // pred_check
          %p2232 = pneg %p1296
        $region366: #{mae_forward.1} parent=303 // pred_check_branch
          %2234 = sbr.rel (%p2232) target = $region368
        $region367: #{mae_forward.1} parent=303 // pred_region
          %2235 = dma.done [#allocation28], 16
        $region368: #{mae_forward.1} parent=303 // pred_fallthru
          _
        // Predicated region
        $region369: #{mae_forward.1} parent=303 // pred_check
          %p2236 = pneg %p1338
        $region370: #{mae_forward.1} parent=303 // pred_check_branch
          %2238 = sbr.rel (%p2236) target = $region372
        $region371: #{mae_forward.1} parent=303 // pred_region
          %2239 = dma.done [#allocation28], 16
        $region372: #{mae_forward.1} parent=303 // pred_fallthru
          _
        // Predicated region
        $region373: #{mae_forward.1} parent=303 // pred_check
          %p2240 = pneg %p1380
        $region374: #{mae_forward.1} parent=303 // pred_check_branch
          %2242 = sbr.rel (%p2240) target = $region376
        $region375: #{mae_forward.1} parent=303 // pred_region
          %2243 = dma.done [#allocation31], 16
        $region376: #{mae_forward.1} parent=303 // pred_fallthru
          _
        // Predicated region
        $region377: #{mae_forward.1} parent=303 // pred_check
          %p2244 = pneg %p1422
        $region378: #{mae_forward.1} parent=303 // pred_check_branch
          %2246 = sbr.rel (%p2244) target = $region380
        $region379: #{mae_forward.1} parent=303 // pred_region
          %2247 = dma.done [#allocation31], 16
        $region380: #{mae_forward.1} parent=303 // pred_fallthru
          _
        // Predicated region
        $region381: #{mae_forward.1} parent=303 // pred_check
          %p2248 = pneg %p1464
        $region382: #{mae_forward.1} parent=303 // pred_check_branch
          %2250 = sbr.rel (%p2248) target = $region384
        $region383: #{mae_forward.1} parent=303 // pred_region
          %2251 = dma.done [#allocation34], 16
        $region384: #{mae_forward.1} parent=303 // pred_fallthru
          _
        // Predicated region
        $region385: #{mae_forward.1} parent=303 // pred_check
          %p2252 = pneg %p1485
        $region386: #{mae_forward.1} parent=303 // pred_check_branch
          %2254 = sbr.rel (%p2252) target = $region388
        $region387: #{mae_forward.1} parent=303 // pred_region
          %2255 = dma.done [#allocation34], 16
        $region388: #{mae_forward.1} parent=303 // pred_fallthru
          _
        // Predicated region
        $region389: #{mae_forward.1} parent=303 // pred_check
          %p2256 = pneg %p1506
        $region390: #{mae_forward.1} parent=303 // pred_check_branch
          %2258 = sbr.rel (%p2256) target = $region392
        $region391: #{mae_forward.1} parent=303 // pred_region
          %2259 = dma.done [#allocation37], 16
        $region392: #{mae_forward.1} parent=303 // pred_fallthru
          _
        // Predicated region
        $region393: #{mae_forward.1} parent=303 // pred_check
          %p2260 = pneg %p1548
        $region394: #{mae_forward.1} parent=303 // pred_check_branch
          %2262 = sbr.rel (%p2260) target = $region396
        $region395: #{mae_forward.1} parent=303 // pred_region
          %2263 = dma.done [#allocation37], 16
        $region396: #{mae_forward.1} parent=303 // pred_fallthru
          _
        // Predicated region
        $region397: #{mae_forward.1} parent=303 // pred_check
          %p2264 = pneg %p1590
        $region398: #{mae_forward.1} parent=303 // pred_check_branch
          %2266 = sbr.rel (%p2264) target = $region400
        $region399: #{mae_forward.1} parent=303 // pred_region
          %2267 = dma.done [#allocation40], 16
        $region400: #{mae_forward.1} parent=303 // pred_fallthru
          _
        // Predicated region
        $region401: #{mae_forward.1} parent=303 // pred_check
          %p2268 = pneg %p1611
        $region402: #{mae_forward.1} parent=303 // pred_check_branch
          %2270 = sbr.rel (%p2268) target = $region404
        $region403: #{mae_forward.1} parent=303 // pred_region
          %2271 = dma.done [#allocation40], 16
        $region404: #{mae_forward.1} parent=303 // pred_fallthru
          _
        // Predicated region
        $region405: #{mae_forward.1} parent=303 // pred_check
          %p2272 = pneg %p1632
        $region406: #{mae_forward.1} parent=303 // pred_check_branch
          %2274 = sbr.rel (%p2272) target = $region408
        $region407: #{mae_forward.1} parent=303 // pred_region
          %2275 = dma.done [#allocation43], 16
        $region408: #{mae_forward.1} parent=303 // pred_fallthru
          _
        // Predicated region
        $region409: #{mae_forward.1} parent=303 // pred_check
          %p2276 = pneg %p1674
        $region410: #{mae_forward.1} parent=303 // pred_check_branch
          %2278 = sbr.rel (%p2276) target = $region412
        $region411: #{mae_forward.1} parent=303 // pred_region
          %2279 = dma.done [#allocation43], 16
        $region412: #{mae_forward.1} parent=303 // pred_fallthru
          _
        %p2280 = scmp.lt.s32.totalorder %s168, 1
        %s2281 = scalar_select %p2280, %s168, 1
        %s2282 = smul.addr %s2281, 4
        %s2283 = scalar_lea.vmem %s1, %s2282
        %p2284 = pneg %p189
        %p2285 = pneg %p186
        %p2286 = scmp.lt.s32.totalorder %s168, 1
        %s2287 = scalar_select %p2286, %s168, 1
        %s2288 = smul.addr %s2287, 4
        %s2289 = scalar_lea.vmem %s3, %s2288
        %p2290 = pneg %p215
        %p2291 = pneg %p212
        %p2292 = scmp.lt.s32.totalorder %s168, 1
        %s2293 = scalar_select %p2292, %s168, 1
        %s2294 = smul.addr %s2293, 2
        %s2295 = smul.addr %s2294, 8
        %s2296 = scalar_lea.vmem %s5, %s2295
        %p2297 = pneg %p241
        %p2298 = pneg %p238
        %p2299 = scmp.lt.s32.totalorder %s168, 1
        %s2300 = scalar_select %p2299, %s168, 1
        %s2301 = smul.addr %s2300, 4
        %s2302 = scalar_lea.vmem %s7, %s2301
        %p2303 = pneg %p267
        %p2304 = pneg %p264
        %p2305 = pneg %p288
        %p2306 = pneg %p285
        %p2307 = pneg %p309
        %p2308 = pneg %p306
        %p2309 = pneg %p330
        %p2310 = pneg %p327
        %p2311 = pneg %p351
        %p2312 = pneg %p348
        %p2313 = pneg %p372
        %p2314 = pneg %p369
        %p2315 = pneg %p393
        %p2316 = pneg %p390
        %p2317 = pneg %p414
        %p2318 = pneg %p411
        %p2319 = pneg %p435
        %p2320 = pneg %p432
        %p2321 = pneg %p456
        %p2322 = pneg %p453
        %p2323 = pneg %p477
        %p2324 = pneg %p474
        %p2325 = pneg %p498
        %p2326 = pneg %p495
        %p2327 = pneg %p519
        %p2328 = pneg %p516
        %p2329 = pneg %p540
        %p2330 = pneg %p537
        %p2331 = pneg %p561
        %p2332 = pneg %p558
        %p2333 = pneg %p582
        %p2334 = pneg %p579
        %p2335 = pneg %p603
        %p2336 = pneg %p600
        %p2337 = pneg %p624
        %p2338 = pneg %p621
        %p2339 = pneg %p645
        %p2340 = pneg %p642
        %p2341 = pneg %p666
        %p2342 = pneg %p663
        %p2343 = pneg %p687
        %p2344 = pneg %p684
        %p2345 = pneg %p708
        %p2346 = pneg %p705
        %p2347 = pneg %p729
        %p2348 = pneg %p726
        %p2349 = pneg %p750
        %p2350 = pneg %p747
        %p2351 = pneg %p771
        %p2352 = pneg %p768
        %p2353 = pneg %p792
        %p2354 = pneg %p789
        %p2355 = pneg %p813
        %p2356 = pneg %p810
        %p2357 = pneg %p834
        %p2358 = pneg %p831
        %p2359 = pneg %p855
        %p2360 = pneg %p852
        %p2361 = pneg %p876
        %p2362 = pneg %p873
        %p2363 = pneg %p897
        %p2364 = pneg %p894
        %p2365 = pneg %p918
        %p2366 = pneg %p915
        %p2367 = pneg %p939
        %p2368 = pneg %p936
        %p2369 = pneg %p960
        %p2370 = pneg %p957
        %p2371 = pneg %p981
        %p2372 = pneg %p978
        %p2373 = pneg %p1002
        %p2374 = pneg %p999
        %p2375 = pneg %p1023
        %p2376 = pneg %p1020
        %p2377 = pneg %p1044
        %p2378 = pneg %p1041
        %p2379 = pneg %p1065
        %p2380 = pneg %p1062
        %p2381 = pneg %p1086
        %p2382 = pneg %p1083
        %p2383 = pneg %p1107
        %p2384 = pneg %p1104
        %p2385 = pneg %p1128
        %p2386 = pneg %p1125
        %p2387 = pneg %p1149
        %p2388 = pneg %p1146
        %p2389 = pneg %p1170
        %p2390 = pneg %p1167
        %p2391 = pneg %p1191
        %p2392 = pneg %p1188
        %p2393 = pneg %p1212
        %p2394 = pneg %p1209
        %p2395 = pneg %p1233
        %p2396 = pneg %p1230
        %p2397 = pneg %p1254
        %p2398 = pneg %p1251
        %p2399 = pneg %p1275
        %p2400 = pneg %p1272
        %p2401 = pneg %p1296
        %p2402 = pneg %p1293
        %p2403 = pneg %p1317
        %p2404 = pneg %p1314
        %p2405 = pneg %p1338
        %p2406 = pneg %p1335
        %p2407 = pneg %p1359
        %p2408 = pneg %p1356
        %p2409 = pneg %p1380
        %p2410 = pneg %p1377
        %p2411 = pneg %p1401
        %p2412 = pneg %p1398
        %p2413 = pneg %p1422
        %p2414 = pneg %p1419
        %p2415 = pneg %p1443
        %p2416 = pneg %p1440
        %p2417 = pneg %p1464
        %p2418 = pneg %p1461
        %p2419 = pneg %p1485
        %p2420 = pneg %p1482
        %p2421 = pneg %p1506
        %p2422 = pneg %p1503
        %p2423 = pneg %p1527
        %p2424 = pneg %p1524
        %p2425 = pneg %p1548
        %p2426 = pneg %p1545
        %p2427 = pneg %p1569
        %p2428 = pneg %p1566
        %p2429 = pneg %p1590
        %p2430 = pneg %p1587
        %p2431 = pneg %p1611
        %p2432 = pneg %p1608
        %p2433 = pneg %p1632
        %p2434 = pneg %p1629
        %p2435 = pneg %p1653
        %p2436 = pneg %p1650
        %p2437 = pneg %p1674
        %p2438 = pneg %p1671
        %p2439 = pneg %p1700
        %p2440 = pneg %p1697
        %p2441 = scmp.lt.s32.totalorder %s168, 1
        %s2442 = scalar_select %p2441, %s168, 1
        %s2443 = smul.addr %s2442, 2
        %s2444 = smul.addr %s2443, 8
        %s2445 = scalar_lea.vmem %s143, %s2444
        %p2446 = scmp.lt.s32.totalorder %s168, 1
        %s2447 = scalar_select %p2446, %s168, 1
        %s2448 = smul.addr %s2447, 4
        %s2449 = scalar_lea.vmem %s1, %s2448
        %p2450 = scmp.lt.s32.totalorder %s168, 1
        %s2451 = scalar_select %p2450, %s168, 1
        %s2452 = smul.addr %s2451, 4
        %s2453 = scalar_lea.vmem %s3, %s2452
        %p2454 = scmp.lt.s32.totalorder %s168, 1
        %s2455 = scalar_select %p2454, %s168, 1
        %s2456 = smul.addr %s2455, 2
        %s2457 = smul.addr %s2456, 8
        %s2458 = scalar_lea.vmem %s5, %s2457
        %p2459 = scmp.lt.s32.totalorder %s168, 1
        %s2460 = scalar_select %p2459, %s168, 1
        %s2461 = smul.addr %s2460, 4
        %s2462 = scalar_lea.vmem %s7, %s2461
        %p2463 = scmp.lt.s32.totalorder %s168, 1
        %s2464 = scalar_select %p2463, %s168, 1
        %s2465 = smul.addr %s2464, 2
        %s2466 = smul.addr %s2465, 8
        %s2467 = scalar_lea.vmem %s143, %s2466
        %v2468 = vld [vmem:[%s2449] sm:$0xf]
        %v2469 = vld [vmem:[%s9] sm:$0xff]
        %v2470 = vld [vmem:[%s9 + $0x8] sm:$0xff]
        %v2471 = vld [vmem:[%s9 + $0x10] sm:$0xff]
        %v2472 = vld [vmem:[%s9 + $0x18] sm:$0xff]
        %v2473 = vld [vmem:[%s9 + $0x20] sm:$0xff]
        %v2474 = vld [vmem:[%s9 + $0x28] sm:$0xff]
        %v2475 = vld [vmem:[%s9 + $0x30] sm:$0xff]
        %v2476 = vld [vmem:[%s9 + $0x38] sm:$0xff]
        %v2477 = vld [vmem:[%s11] sm:$0x1]
        %v2479 = vlaneseq
        %v2480 = vshrl.u32 %v2479, 7
        %v2481 = vsub.s32 0, %v2480
        %v2482 = vrot.slane %v2477, %v2481
        %vm2484 = vcmask 523264
        %v2486 = vsel %vm2484, %v2468, 0
        %2488 = vmatprep.subr.mxu0 0.0
        %2489 = vmatpush1.msra.mxu0 %v2469
        %2490 = vmatprep.subr.mxu0 0.0
        %2491 = vmatpush1.msra.mxu0 %v2470
        %2492 = vmatprep.subr.mxu0 0.0
        %2493 = vmatpush1.msra.mxu0 %v2471
        %2494 = vmatprep.subr.mxu0 0.0
        %2495 = vmatpush1.msra.mxu0 %v2472
        %2496 = vmatprep.subr.mxu0 0.0
        %2497 = vmatpush1.msra.mxu0 %v2473
        %2498 = vmatprep.subr.mxu0 0.0
        %2499 = vmatpush1.msra.mxu0 %v2474
        %2500 = vmatprep.subr.mxu0 0.0
        %2501 = vmatpush1.msra.mxu0 %v2475
        %2502 = vmatprep.subr.mxu0 0.0
        %2503 = vmatpush1.msra.mxu0 %v2476
        %2504 = vmatprep.subr.mxu0 0.0
        %2505 = vmatpush1.msra.mxu0 0.0
        %2506 = vmatprep.subr.mxu0 0.0
        %2507 = vmatpush1.msra.mxu0 0.0
        %2508 = vmatprep.subr.mxu0 0.0
        %2509 = vmatpush1.msra.mxu0 0.0
        %2510 = vmatprep.subr.mxu0 0.0
        %2511 = vmatpush1.msra.mxu0 0.0
        %2512 = vmatprep.subr.mxu0 0.0
        %2513 = vmatpush1.msra.mxu0 0.0
        %2514 = vmatprep.subr.mxu0 0.0
        %2515 = vmatpush1.msra.mxu0 0.0
        %2516 = vmatprep.subr.mxu0 0.0
        %2517 = vmatpush1.msra.mxu0 0.0
        %2518 = vmatprep.subr.mxu0 0.0
        %2519 = vmatpush1.msra.mxu0 0.0
        %2520 = vmatprep.subr.mxu0 0.0
        %2521 = vmatpush1.msra.mxu0 0.0
        %2522 = vmatprep.subr.mxu0 0.0
        %2523 = vmatpush1.msra.mxu0 0.0
        %2524 = vmatprep.subr.mxu0 0.0
        %2525 = vmatpush1.msra.mxu0 0.0
        %2526 = vmatprep.subr.mxu0 0.0
        %2527 = vmatpush1.msra.mxu0 0.0
        %2528 = vmatprep.subr.mxu0 0.0
        %2529 = vmatpush1.msra.mxu0 0.0
        %2530 = vmatprep.subr.mxu0 0.0
        %2531 = vmatpush1.msra.mxu0 0.0
        %2532 = vmatprep.subr.mxu0 0.0
        %2533 = vmatpush1.msra.mxu0 0.0
        %2534 = vmatprep.subr.mxu0 0.0
        %2535 = vmatpush1.msra.mxu0 0.0
        %2536 = vmatprep.subr.mxu0 0.0
        %2537 = vmatpush1.msra.mxu0 0.0
        %2538 = vmatprep.subr.mxu0 0.0
        %2539 = vmatpush1.msra.mxu0 0.0
        %2540 = vmatprep.subr.mxu0 0.0
        %2541 = vmatpush1.msra.mxu0 0.0
        %2542 = vmatprep.subr.mxu0 0.0
        %2543 = vmatpush1.msra.mxu0 0.0
        %2544 = vmatprep.subr.mxu0 0.0
        %2545 = vmatpush1.msra.mxu0 0.0
        %2546 = vmatprep.subr.mxu0 0.0
        %2547 = vmatpush1.msra.mxu0 0.0
        %2548 = vmatprep.subr.mxu0 0.0
        %2549 = vmatpush1.msra.mxu0 0.0
        %2550 = vmatprep.subr.mxu0 0.0
        %2551 = vmatpush1.msra.mxu0 0.0
        %2552 = vmatprep.mubr.f32.mxu0 0.0
        %2553 = vmatmul.mubr.f32.gmra.mrb[0].mxu0 %v2486
        %v2554 = vpop.f32.mrb[0].mxu0
        %v2555 = vadd.f32 %v2482, %v2554
        %v2556 = vpop.f32.mrb[0].mxu0
        %2557 = vdwg.mxu0
        %v2558 = vld [vmem:[%s2453] sm:$0xf]
        %v2559 = vadd.f32 %v2555, %v2558
        %v2560 = vld [vmem:[%s13] sm:$0x1]
        %v2561 = vld [vmem:[%s15] sm:$0x1]
        %vm2562 = vcmask 257024
        %v2563 = vsel %vm2562, %v2559, 0.0
        %2564 = vadd.xlane.f32.xlu0 %v2563
        %v2565 = vpop.xlane.xlu0 %2564
        %v2566 = vrcp.pop 32.0
        %v2567 = vmul.f32 %v2565, %v2566
        %v2568 = vsub.f32 %v2559, %v2567
        %v2569 = vmul.f32 %v2568, %v2568
        %v2570 = vsel %vm2562, %v2569, 0.0
        %2571 = vadd.xlane.f32.xlu0 %v2570
        %v2572 = vpop.xlane.xlu0 %2571
        %v2573 = vmul.f32 %v2572, %v2566
        %v2574 = vadd.f32 %v2573, 1e-05
        %v2575 = vrsqrt.pop %v2574
        %v2576 = vmul.f32 %v2568, %v2575
        %v2578 = vlaneseq
        %v2579 = vshrl.u32 %v2578, 7
        %v2580 = vsub.s32 0, %v2579
        %v2581 = vrot.slane %v2560, %v2580
        %v2583 = vmul.f32 %v2576, %v2581
        %v2585 = vlaneseq
        %v2586 = vshrl.u32 %v2585, 7
        %v2587 = vsub.s32 0, %v2586
        %v2588 = vrot.slane %v2561, %v2587
        %v2590 = vadd.f32 %v2583, %v2588
        %v2591 = vld [vmem:[%s17] sm:$0xff]
        %v2592 = vld [vmem:[%s17 + $0x8] sm:$0xff]
        %v2593 = vld [vmem:[%s17 + $0x10] sm:$0xff]
        %v2594 = vld [vmem:[%s17 + $0x18] sm:$0xff]
        %v2595 = vld [vmem:[%s19] sm:$0x1]
        %v2597 = vlaneseq
        %v2598 = vshrl.u32 %v2597, 7
        %v2599 = vsub.s32 0, %v2598
        %v2600 = vrot.slane %v2595, %v2599
        %vm2602 = vcmask 261120
        %v2604 = vsel %vm2602, %v2590, 0
        %2606 = vmatprep.subr.mxu0 0.0
        %2607 = vmatpush1.msra.mxu0 %v2591
        %2608 = vmatprep.subr.mxu0 0.0
        %2609 = vmatpush1.msra.mxu0 %v2592
        %2610 = vmatprep.subr.mxu0 0.0
        %2611 = vmatpush1.msra.mxu0 %v2593
        %2612 = vmatprep.subr.mxu0 0.0
        %2613 = vmatpush1.msra.mxu0 %v2594
        %2614 = vmatprep.subr.mxu0 0.0
        %2615 = vmatpush1.msra.mxu0 0.0
        %2616 = vmatprep.subr.mxu0 0.0
        %2617 = vmatpush1.msra.mxu0 0.0
        %2618 = vmatprep.subr.mxu0 0.0
        %2619 = vmatpush1.msra.mxu0 0.0
        %2620 = vmatprep.subr.mxu0 0.0
        %2621 = vmatpush1.msra.mxu0 0.0
        %2622 = vmatprep.subr.mxu0 0.0
        %2623 = vmatpush1.msra.mxu0 0.0
        %2624 = vmatprep.subr.mxu0 0.0
        %2625 = vmatpush1.msra.mxu0 0.0
        %2626 = vmatprep.subr.mxu0 0.0
        %2627 = vmatpush1.msra.mxu0 0.0
        %2628 = vmatprep.subr.mxu0 0.0
        %2629 = vmatpush1.msra.mxu0 0.0
        %2630 = vmatprep.subr.mxu0 0.0
        %2631 = vmatpush1.msra.mxu0 0.0
        %2632 = vmatprep.subr.mxu0 0.0
        %2633 = vmatpush1.msra.mxu0 0.0
        %2634 = vmatprep.subr.mxu0 0.0
        %2635 = vmatpush1.msra.mxu0 0.0
        %2636 = vmatprep.subr.mxu0 0.0
        %2637 = vmatpush1.msra.mxu0 0.0
        %2638 = vmatprep.subr.mxu0 0.0
        %2639 = vmatpush1.msra.mxu0 0.0
        %2640 = vmatprep.subr.mxu0 0.0
        %2641 = vmatpush1.msra.mxu0 0.0
        %2642 = vmatprep.subr.mxu0 0.0
        %2643 = vmatpush1.msra.mxu0 0.0
        %2644 = vmatprep.subr.mxu0 0.0
        %2645 = vmatpush1.msra.mxu0 0.0
        %2646 = vmatprep.subr.mxu0 0.0
        %2647 = vmatpush1.msra.mxu0 0.0
        %2648 = vmatprep.subr.mxu0 0.0
        %2649 = vmatpush1.msra.mxu0 0.0
        %2650 = vmatprep.subr.mxu0 0.0
        %2651 = vmatpush1.msra.mxu0 0.0
        %2652 = vmatprep.subr.mxu0 0.0
        %2653 = vmatpush1.msra.mxu0 0.0
        %2654 = vmatprep.subr.mxu0 0.0
        %2655 = vmatpush1.msra.mxu0 0.0
        %2656 = vmatprep.subr.mxu0 0.0
        %2657 = vmatpush1.msra.mxu0 0.0
        %2658 = vmatprep.subr.mxu0 0.0
        %2659 = vmatpush1.msra.mxu0 0.0
        %2660 = vmatprep.subr.mxu0 0.0
        %2661 = vmatpush1.msra.mxu0 0.0
        %2662 = vmatprep.subr.mxu0 0.0
        %2663 = vmatpush1.msra.mxu0 0.0
        %2664 = vmatprep.subr.mxu0 0.0
        %2665 = vmatpush1.msra.mxu0 0.0
        %2666 = vmatprep.subr.mxu0 0.0
        %2667 = vmatpush1.msra.mxu0 0.0
        %2668 = vmatprep.subr.mxu0 0.0
        %2669 = vmatpush1.msra.mxu0 0.0
        %2670 = vmatprep.mubr.f32.mxu0 0.0
        %2671 = vmatmul.mubr.f32.gmra.mrb[0].mxu0 %v2604
        %v2672 = vpop.f32.mrb[0].mxu0
        %v2673 = vadd.f32 %v2600, %v2672
        %v2674 = vpop.f32.mrb[0].mxu0
        %2675 = vdwg.mxu0
        %2677 = vrot.lane.b32.xlu0 %v2673, 96
        %v2678 = vpop.permute.xlu0 %2677
        %vm2679 = vcmask 64512
        %v2680 = vsel %vm2679, %v2673, 0
        %v2682 = vsel %vm2679, %v2678, 0
        %2684 = vmatprep.subr.mxu0 0.0
        %2685 = vmatpush1.xpose.msra.mxu0 %v2682
        %2686 = vmatprep.subr.mxu0 0.0
        %2687 = vmatpush1.xpose.msra.mxu0 0.0
        %2688 = vmatprep.subr.mxu0 0.0
        %2689 = vmatpush1.xpose.msra.mxu0 0.0
        %2690 = vmatprep.subr.mxu0 0.0
        %2691 = vmatpush1.xpose.msra.mxu0 0.0
        %2692 = vmatprep.subr.mxu0 0.0
        %2693 = vmatpush1.xpose.msra.mxu0 0.0
        %2694 = vmatprep.subr.mxu0 0.0
        %2695 = vmatpush1.xpose.msra.mxu0 0.0
        %2696 = vmatprep.subr.mxu0 0.0
        %2697 = vmatpush1.xpose.msra.mxu0 0.0
        %2698 = vmatprep.subr.mxu0 0.0
        %2699 = vmatpush1.xpose.msra.mxu0 0.0
        %2700 = vmatprep.subr.mxu0 0.0
        %2701 = vmatpush1.xpose.msra.mxu0 0.0
        %2702 = vmatprep.subr.mxu0 0.0
        %2703 = vmatpush1.xpose.msra.mxu0 0.0
        %2704 = vmatprep.subr.mxu0 0.0
        %2705 = vmatpush1.xpose.msra.mxu0 0.0
        %2706 = vmatprep.subr.mxu0 0.0
        %2707 = vmatpush1.xpose.msra.mxu0 0.0
        %2708 = vmatprep.subr.mxu0 0.0
        %2709 = vmatpush1.xpose.msra.mxu0 0.0
        %2710 = vmatprep.subr.mxu0 0.0
        %2711 = vmatpush1.xpose.msra.mxu0 0.0
        %2712 = vmatprep.subr.mxu0 0.0
        %2713 = vmatpush1.xpose.msra.mxu0 0.0
        %2714 = vmatprep.subr.mxu0 0.0
        %2715 = vmatpush1.xpose.msra.mxu0 0.0
        %2716 = vmatprep.subr.mxu0 0.0
        %2717 = vmatpush1.xpose.msra.mxu0 0.0
        %2718 = vmatprep.subr.mxu0 0.0
        %2719 = vmatpush1.xpose.msra.mxu0 0.0
        %2720 = vmatprep.subr.mxu0 0.0
        %2721 = vmatpush1.xpose.msra.mxu0 0.0
        %2722 = vmatprep.subr.mxu0 0.0
        %2723 = vmatpush1.xpose.msra.mxu0 0.0
        %2724 = vmatprep.subr.mxu0 0.0
        %2725 = vmatpush1.xpose.msra.mxu0 0.0
        %2726 = vmatprep.subr.mxu0 0.0
        %2727 = vmatpush1.xpose.msra.mxu0 0.0
        %2728 = vmatprep.subr.mxu0 0.0
        %2729 = vmatpush1.xpose.msra.mxu0 0.0
        %2730 = vmatprep.subr.mxu0 0.0
        %2731 = vmatpush1.xpose.msra.mxu0 0.0
        %2732 = vmatprep.subr.mxu0 0.0
        %2733 = vmatpush1.xpose.msra.mxu0 0.0
        %2734 = vmatprep.subr.mxu0 0.0
        %2735 = vmatpush1.xpose.msra.mxu0 0.0
        %2736 = vmatprep.subr.mxu0 0.0
        %2737 = vmatpush1.xpose.msra.mxu0 0.0
        %2738 = vmatprep.subr.mxu0 0.0
        %2739 = vmatpush1.xpose.msra.mxu0 0.0
        %2740 = vmatprep.subr.mxu0 0.0
        %2741 = vmatpush1.xpose.msra.mxu0 0.0
        %2742 = vmatprep.subr.mxu0 0.0
        %2743 = vmatpush1.xpose.msra.mxu0 0.0
        %2744 = vmatprep.subr.mxu0 0.0
        %2745 = vmatpush1.xpose.msra.mxu0 0.0
        %2746 = vmatprep.subr.mxu0 0.0
        %2747 = vmatpush1.xpose.msra.mxu0 0.0
        %2748 = vmatprep.mubr.f32.mxu0 0.0
        %2749 = vmatmul.mubr.f32.gmra.mrb[0].mxu0 %v2680
        %v2750 = vpop.f32.mrb[0].mxu0
        %v2751 = vadd.f32 0.0, %v2750
        %v2752 = vpop.f32.mrb[0].mxu0
        %2753 = vdwg.mxu0
        %v2754 = vmul.f32 %v2751, 0.35355338
        %vm2755 = vcmask 27648
        %v2756 = vsel %vm2755, %v2754, -inf
        %2757 = vmax.xlane.f32.xlu0 %v2756
        %v2758 = vpop.xlane.xlu0 %2757
        %v2759 = vsub.f32 %v2754, %v2758
        %v2760 = vmul.f32 %v2759, 1.442695
        %v2761 = vpow.pop %v2760
        %v2762 = vsel %vm2755, %v2761, 0.0
        %2763 = vadd.xlane.f32.xlu0 %v2762
        %v2764 = vpop.xlane.xlu0 %2763
        %v2765 = vrcp.pop %v2764
        %v2766 = vmul.f32 %v2761, %v2765
        %2767 = vrot.lane.b32.xlu0 %v2673, 64
        %v2768 = vpop.permute.xlu0 %2767
        %vm2769 = vcmask 31744
        %v2771 = vsel %vm2769, %v2766, 0
        %vm2773 = vcmask 1043456
        %v2774 = vsel %vm2773, %v2768, 0
        %2776 = vmatprep.subr.mxu0 0.0
        %2777 = vmatpush1.msra.mxu0 %v2774
        %2778 = vmatprep.subr.mxu0 0.0
        %2779 = vmatpush1.msra.mxu0 0.0
        %2780 = vmatprep.subr.mxu0 0.0
        %2781 = vmatpush1.msra.mxu0 0.0
        %2782 = vmatprep.subr.mxu0 0.0
        %2783 = vmatpush1.msra.mxu0 0.0
        %2784 = vmatprep.subr.mxu0 0.0
        %2785 = vmatpush1.msra.mxu0 0.0
        %2786 = vmatprep.subr.mxu0 0.0
        %2787 = vmatpush1.msra.mxu0 0.0
        %2788 = vmatprep.subr.mxu0 0.0
        %2789 = vmatpush1.msra.mxu0 0.0
        %2790 = vmatprep.subr.mxu0 0.0
        %2791 = vmatpush1.msra.mxu0 0.0
        %2792 = vmatprep.subr.mxu0 0.0
        %2793 = vmatpush1.msra.mxu0 0.0
        %2794 = vmatprep.subr.mxu0 0.0
        %2795 = vmatpush1.msra.mxu0 0.0
        %2796 = vmatprep.subr.mxu0 0.0
        %2797 = vmatpush1.msra.mxu0 0.0
        %2798 = vmatprep.subr.mxu0 0.0
        %2799 = vmatpush1.msra.mxu0 0.0
        %2800 = vmatprep.subr.mxu0 0.0
        %2801 = vmatpush1.msra.mxu0 0.0
        %2802 = vmatprep.subr.mxu0 0.0
        %2803 = vmatpush1.msra.mxu0 0.0
        %2804 = vmatprep.subr.mxu0 0.0
        %2805 = vmatpush1.msra.mxu0 0.0
        %2806 = vmatprep.subr.mxu0 0.0
        %2807 = vmatpush1.msra.mxu0 0.0
        %2808 = vmatprep.subr.mxu0 0.0
        %2809 = vmatpush1.msra.mxu0 0.0
        %2810 = vmatprep.subr.mxu0 0.0
        %2811 = vmatpush1.msra.mxu0 0.0
        %2812 = vmatprep.subr.mxu0 0.0
        %2813 = vmatpush1.msra.mxu0 0.0
        %2814 = vmatprep.subr.mxu0 0.0
        %2815 = vmatpush1.msra.mxu0 0.0
        %2816 = vmatprep.subr.mxu0 0.0
        %2817 = vmatpush1.msra.mxu0 0.0
        %2818 = vmatprep.subr.mxu0 0.0
        %2819 = vmatpush1.msra.mxu0 0.0
        %2820 = vmatprep.subr.mxu0 0.0
        %2821 = vmatpush1.msra.mxu0 0.0
        %2822 = vmatprep.subr.mxu0 0.0
        %2823 = vmatpush1.msra.mxu0 0.0
        %2824 = vmatprep.subr.mxu0 0.0
        %2825 = vmatpush1.msra.mxu0 0.0
        %2826 = vmatprep.subr.mxu0 0.0
        %2827 = vmatpush1.msra.mxu0 0.0
        %2828 = vmatprep.subr.mxu0 0.0
        %2829 = vmatpush1.msra.mxu0 0.0
        %2830 = vmatprep.subr.mxu0 0.0
        %2831 = vmatpush1.msra.mxu0 0.0
        %2832 = vmatprep.subr.mxu0 0.0
        %2833 = vmatpush1.msra.mxu0 0.0
        %2834 = vmatprep.subr.mxu0 0.0
        %2835 = vmatpush1.msra.mxu0 0.0
        %2836 = vmatprep.subr.mxu0 0.0
        %2837 = vmatpush1.msra.mxu0 0.0
        %2838 = vmatprep.subr.mxu0 0.0
        %2839 = vmatpush1.msra.mxu0 0.0
        %2840 = vmatprep.mubr.f32.mxu0 0.0
        %2841 = vmatmul.mubr.f32.gmra.mrb[0].mxu0 %v2771
        %v2842 = vpop.f32.mrb[0].mxu0
        %v2843 = vadd.f32 0.0, %v2842
        %v2844 = vpop.f32.mrb[0].mxu0
        %2845 = vdwg.mxu0
        %vm2846 = vcmask 60416
        %2847 = vst.msk [vmem:[#allocation2] sm:$0xf] %vm2846, %v2843
        %2848 = vrot.lane.b32.xlu0 %v2673, 120
        %v2849 = vpop.permute.xlu0 %2848
        %2850 = vrot.lane.b32.xlu0 %v2673, 88
        %v2851 = vpop.permute.xlu0 %2850
        %v2852 = vsel %vm2679, %v2849, 0
        %v2854 = vsel %vm2679, %v2851, 0
        %2856 = vmatprep.subr.mxu0 0.0
        %2857 = vmatpush1.xpose.msra.mxu0 %v2854
        %2858 = vmatprep.subr.mxu0 0.0
        %2859 = vmatpush1.xpose.msra.mxu0 0.0
        %2860 = vmatprep.subr.mxu0 0.0
        %2861 = vmatpush1.xpose.msra.mxu0 0.0
        %2862 = vmatprep.subr.mxu0 0.0
        %2863 = vmatpush1.xpose.msra.mxu0 0.0
        %2864 = vmatprep.subr.mxu0 0.0
        %2865 = vmatpush1.xpose.msra.mxu0 0.0
        %2866 = vmatprep.subr.mxu0 0.0
        %2867 = vmatpush1.xpose.msra.mxu0 0.0
        %2868 = vmatprep.subr.mxu0 0.0
        %2869 = vmatpush1.xpose.msra.mxu0 0.0
        %2870 = vmatprep.subr.mxu0 0.0
        %2871 = vmatpush1.xpose.msra.mxu0 0.0
        %2872 = vmatprep.subr.mxu0 0.0
        %2873 = vmatpush1.xpose.msra.mxu0 0.0
        %2874 = vmatprep.subr.mxu0 0.0
        %2875 = vmatpush1.xpose.msra.mxu0 0.0
        %2876 = vmatprep.subr.mxu0 0.0
        %2877 = vmatpush1.xpose.msra.mxu0 0.0
        %2878 = vmatprep.subr.mxu0 0.0
        %2879 = vmatpush1.xpose.msra.mxu0 0.0
        %2880 = vmatprep.subr.mxu0 0.0
        %2881 = vmatpush1.xpose.msra.mxu0 0.0
        %2882 = vmatprep.subr.mxu0 0.0
        %2883 = vmatpush1.xpose.msra.mxu0 0.0
        %2884 = vmatprep.subr.mxu0 0.0
        %2885 = vmatpush1.xpose.msra.mxu0 0.0
        %2886 = vmatprep.subr.mxu0 0.0
        %2887 = vmatpush1.xpose.msra.mxu0 0.0
        %2888 = vmatprep.subr.mxu0 0.0
        %2889 = vmatpush1.xpose.msra.mxu0 0.0
        %2890 = vmatprep.subr.mxu0 0.0
        %2891 = vmatpush1.xpose.msra.mxu0 0.0
        %2892 = vmatprep.subr.mxu0 0.0
        %2893 = vmatpush1.xpose.msra.mxu0 0.0
        %2894 = vmatprep.subr.mxu0 0.0
        %2895 = vmatpush1.xpose.msra.mxu0 0.0
        %2896 = vmatprep.subr.mxu0 0.0
        %2897 = vmatpush1.xpose.msra.mxu0 0.0
        %2898 = vmatprep.subr.mxu0 0.0
        %2899 = vmatpush1.xpose.msra.mxu0 0.0
        %2900 = vmatprep.subr.mxu0 0.0
        %2901 = vmatpush1.xpose.msra.mxu0 0.0
        %2902 = vmatprep.subr.mxu0 0.0
        %2903 = vmatpush1.xpose.msra.mxu0 0.0
        %2904 = vmatprep.subr.mxu0 0.0
        %2905 = vmatpush1.xpose.msra.mxu0 0.0
        %2906 = vmatprep.subr.mxu0 0.0
        %2907 = vmatpush1.xpose.msra.mxu0 0.0
        %2908 = vmatprep.subr.mxu0 0.0
        %2909 = vmatpush1.xpose.msra.mxu0 0.0
        %2910 = vmatprep.subr.mxu0 0.0
        %2911 = vmatpush1.xpose.msra.mxu0 0.0
        %2912 = vmatprep.subr.mxu0 0.0
        %2913 = vmatpush1.xpose.msra.mxu0 0.0
        %2914 = vmatprep.subr.mxu0 0.0
        %2915 = vmatpush1.xpose.msra.mxu0 0.0
        %2916 = vmatprep.subr.mxu0 0.0
        %2917 = vmatpush1.xpose.msra.mxu0 0.0
        %2918 = vmatprep.subr.mxu0 0.0
        %2919 = vmatpush1.xpose.msra.mxu0 0.0
        %2920 = vmatprep.mubr.f32.mxu0 0.0
        %2921 = vmatmul.mubr.f32.gmra.mrb[0].mxu0 %v2852
        %v2922 = vpop.f32.mrb[0].mxu0
        %v2923 = vadd.f32 0.0, %v2922
        %v2924 = vpop.f32.mrb[0].mxu0
        %2925 = vdwg.mxu0
        %v2926 = vmul.f32 %v2923, 0.35355338
        %v2927 = vsel %vm2755, %v2926, -inf
        %2928 = vmax.xlane.f32.xlu0 %v2927
        %v2929 = vpop.xlane.xlu0 %2928
        %v2930 = vsub.f32 %v2926, %v2929
        %v2931 = vmul.f32 %v2930, 1.442695
        %v2932 = vpow.pop %v2931
        %v2933 = vsel %vm2755, %v2932, 0.0
        %2934 = vadd.xlane.f32.xlu0 %v2933
        %v2935 = vpop.xlane.xlu0 %2934
        %v2936 = vrcp.pop %v2935
        %v2937 = vmul.f32 %v2932, %v2936
        %2938 = vrot.lane.b32.xlu0 %v2673, 56
        %v2939 = vpop.permute.xlu0 %2938
        %v2941 = vsel %vm2769, %v2937, 0
        %v2943 = vsel %vm2773, %v2939, 0
        %2945 = vmatprep.subr.mxu0 0.0
        %2946 = vmatpush1.msra.mxu0 %v2943
        %2947 = vmatprep.subr.mxu0 0.0
        %2948 = vmatpush1.msra.mxu0 0.0
        %2949 = vmatprep.subr.mxu0 0.0
        %2950 = vmatpush1.msra.mxu0 0.0
        %2951 = vmatprep.subr.mxu0 0.0
        %2952 = vmatpush1.msra.mxu0 0.0
        %2953 = vmatprep.subr.mxu0 0.0
        %2954 = vmatpush1.msra.mxu0 0.0
        %2955 = vmatprep.subr.mxu0 0.0
        %2956 = vmatpush1.msra.mxu0 0.0
        %2957 = vmatprep.subr.mxu0 0.0
        %2958 = vmatpush1.msra.mxu0 0.0
        %2959 = vmatprep.subr.mxu0 0.0
        %2960 = vmatpush1.msra.mxu0 0.0
        %2961 = vmatprep.subr.mxu0 0.0
        %2962 = vmatpush1.msra.mxu0 0.0
        %2963 = vmatprep.subr.mxu0 0.0
        %2964 = vmatpush1.msra.mxu0 0.0
        %2965 = vmatprep.subr.mxu0 0.0
        %2966 = vmatpush1.msra.mxu0 0.0
        %2967 = vmatprep.subr.mxu0 0.0
        %2968 = vmatpush1.msra.mxu0 0.0
        %2969 = vmatprep.subr.mxu0 0.0
        %2970 = vmatpush1.msra.mxu0 0.0
        %2971 = vmatprep.subr.mxu0 0.0
        %2972 = vmatpush1.msra.mxu0 0.0
        %2973 = vmatprep.subr.mxu0 0.0
        %2974 = vmatpush1.msra.mxu0 0.0
        %2975 = vmatprep.subr.mxu0 0.0
        %2976 = vmatpush1.msra.mxu0 0.0
        %2977 = vmatprep.subr.mxu0 0.0
        %2978 = vmatpush1.msra.mxu0 0.0
        %2979 = vmatprep.subr.mxu0 0.0
        %2980 = vmatpush1.msra.mxu0 0.0
        %2981 = vmatprep.subr.mxu0 0.0
        %2982 = vmatpush1.msra.mxu0 0.0
        %2983 = vmatprep.subr.mxu0 0.0
        %2984 = vmatpush1.msra.mxu0 0.0
        %2985 = vmatprep.subr.mxu0 0.0
        %2986 = vmatpush1.msra.mxu0 0.0
        %2987 = vmatprep.subr.mxu0 0.0
        %2988 = vmatpush1.msra.mxu0 0.0
        %2989 = vmatprep.subr.mxu0 0.0
        %2990 = vmatpush1.msra.mxu0 0.0
        %2991 = vmatprep.subr.mxu0 0.0
        %2992 = vmatpush1.msra.mxu0 0.0
        %2993 = vmatprep.subr.mxu0 0.0
        %2994 = vmatpush1.msra.mxu0 0.0
        %2995 = vmatprep.subr.mxu0 0.0
        %2996 = vmatpush1.msra.mxu0 0.0
        %2997 = vmatprep.subr.mxu0 0.0
        %2998 = vmatpush1.msra.mxu0 0.0
        %2999 = vmatprep.subr.mxu0 0.0
        %3000 = vmatpush1.msra.mxu0 0.0
        %3001 = vmatprep.subr.mxu0 0.0
        %3002 = vmatpush1.msra.mxu0 0.0
        %3003 = vmatprep.subr.mxu0 0.0
        %3004 = vmatpush1.msra.mxu0 0.0
        %3005 = vmatprep.subr.mxu0 0.0
        %3006 = vmatpush1.msra.mxu0 0.0
        %3007 = vmatprep.subr.mxu0 0.0
        %3008 = vmatpush1.msra.mxu0 0.0
        %3009 = vmatprep.mubr.f32.mxu0 0.0
        %3010 = vmatmul.mubr.f32.gmra.mrb[0].mxu0 %v2941
        %v3011 = vpop.f32.mrb[0].mxu0
        %v3012 = vadd.f32 0.0, %v3011
        %v3013 = vpop.f32.mrb[0].mxu0
        %3014 = vdwg.mxu0
        %3016 = vrot.lane.b32.xlu0 %v3012, 8
        %v3017 = vpop.permute.xlu0 %3016
        %vm3019 = vcmask 126016
        %3020 = vst.msk [vmem:[#allocation2] sm:$0xf] %vm3019, %v3017
        %3021 = vrot.lane.b32.xlu0 %v2673, 112
        %v3022 = vpop.permute.xlu0 %3021
        %3023 = vrot.lane.b32.xlu0 %v2673, 80
        %v3024 = vpop.permute.xlu0 %3023
        %v3025 = vsel %vm2679, %v3022, 0
        %v3027 = vsel %vm2679, %v3024, 0
        %3029 = vmatprep.subr.mxu0 0.0
        %3030 = vmatpush1.xpose.msra.mxu0 %v3027
        %3031 = vmatprep.subr.mxu0 0.0
        %3032 = vmatpush1.xpose.msra.mxu0 0.0
        %3033 = vmatprep.subr.mxu0 0.0
        %3034 = vmatpush1.xpose.msra.mxu0 0.0
        %3035 = vmatprep.subr.mxu0 0.0
        %3036 = vmatpush1.xpose.msra.mxu0 0.0
        %3037 = vmatprep.subr.mxu0 0.0
        %3038 = vmatpush1.xpose.msra.mxu0 0.0
        %3039 = vmatprep.subr.mxu0 0.0
        %3040 = vmatpush1.xpose.msra.mxu0 0.0
        %3041 = vmatprep.subr.mxu0 0.0
        %3042 = vmatpush1.xpose.msra.mxu0 0.0
        %3043 = vmatprep.subr.mxu0 0.0
        %3044 = vmatpush1.xpose.msra.mxu0 0.0
        %3045 = vmatprep.subr.mxu0 0.0
        %3046 = vmatpush1.xpose.msra.mxu0 0.0
        %3047 = vmatprep.subr.mxu0 0.0
        %3048 = vmatpush1.xpose.msra.mxu0 0.0
        %3049 = vmatprep.subr.mxu0 0.0
        %3050 = vmatpush1.xpose.msra.mxu0 0.0
        %3051 = vmatprep.subr.mxu0 0.0
        %3052 = vmatpush1.xpose.msra.mxu0 0.0
        %3053 = vmatprep.subr.mxu0 0.0
        %3054 = vmatpush1.xpose.msra.mxu0 0.0
        %3055 = vmatprep.subr.mxu0 0.0
        %3056 = vmatpush1.xpose.msra.mxu0 0.0
        %3057 = vmatprep.subr.mxu0 0.0
        %3058 = vmatpush1.xpose.msra.mxu0 0.0
        %3059 = vmatprep.subr.mxu0 0.0
        %3060 = vmatpush1.xpose.msra.mxu0 0.0
        %3061 = vmatprep.subr.mxu0 0.0
        %3062 = vmatpush1.xpose.msra.mxu0 0.0
        %3063 = vmatprep.subr.mxu0 0.0
        %3064 = vmatpush1.xpose.msra.mxu0 0.0
        %3065 = vmatprep.subr.mxu0 0.0
        %3066 = vmatpush1.xpose.msra.mxu0 0.0
        %3067 = vmatprep.subr.mxu0 0.0
        %3068 = vmatpush1.xpose.msra.mxu0 0.0
        %3069 = vmatprep.subr.mxu0 0.0
        %3070 = vmatpush1.xpose.msra.mxu0 0.0
        %3071 = vmatprep.subr.mxu0 0.0
        %3072 = vmatpush1.xpose.msra.mxu0 0.0
        %3073 = vmatprep.subr.mxu0 0.0
        %3074 = vmatpush1.xpose.msra.mxu0 0.0
        %3075 = vmatprep.subr.mxu0 0.0
        %3076 = vmatpush1.xpose.msra.mxu0 0.0
        %3077 = vmatprep.subr.mxu0 0.0
        %3078 = vmatpush1.xpose.msra.mxu0 0.0
        %3079 = vmatprep.subr.mxu0 0.0
        %3080 = vmatpush1.xpose.msra.mxu0 0.0
        %3081 = vmatprep.subr.mxu0 0.0
        %3082 = vmatpush1.xpose.msra.mxu0 0.0
        %3083 = vmatprep.subr.mxu0 0.0
        %3084 = vmatpush1.xpose.msra.mxu0 0.0
        %3085 = vmatprep.subr.mxu0 0.0
        %3086 = vmatpush1.xpose.msra.mxu0 0.0
        %3087 = vmatprep.subr.mxu0 0.0
        %3088 = vmatpush1.xpose.msra.mxu0 0.0
        %3089 = vmatprep.subr.mxu0 0.0
        %3090 = vmatpush1.xpose.msra.mxu0 0.0
        %3091 = vmatprep.subr.mxu0 0.0
        %3092 = vmatpush1.xpose.msra.mxu0 0.0
        %3093 = vmatprep.mubr.f32.mxu0 0.0
        %3094 = vmatmul.mubr.f32.gmra.mrb[0].mxu0 %v3025
        %v3095 = vpop.f32.mrb[0].mxu0
        %v3096 = vadd.f32 0.0, %v3095
        %v3097 = vpop.f32.mrb[0].mxu0
        %3098 = vdwg.mxu0
        %v3099 = vmul.f32 %v3096, 0.35355338
        %v3100 = vsel %vm2755, %v3099, -inf
        %3101 = vmax.xlane.f32.xlu0 %v3100
        %v3102 = vpop.xlane.xlu0 %3101
        %v3103 = vsub.f32 %v3099, %v3102
        %v3104 = vmul.f32 %v3103, 1.442695
        %v3105 = vpow.pop %v3104
        %v3106 = vsel %vm2755, %v3105, 0.0
        %3107 = vadd.xlane.f32.xlu0 %v3106
        %v3108 = vpop.xlane.xlu0 %3107
        %v3109 = vrcp.pop %v3108
        %v3110 = vmul.f32 %v3105, %v3109
        %3111 = vrot.lane.b32.xlu0 %v2673, 48
        %v3112 = vpop.permute.xlu0 %3111
        %v3114 = vsel %vm2769, %v3110, 0
        %v3116 = vsel %vm2773, %v3112, 0
        %3118 = vmatprep.subr.mxu0 0.0
        %3119 = vmatpush1.msra.mxu0 %v3116
        %3120 = vmatprep.subr.mxu0 0.0
        %3121 = vmatpush1.msra.mxu0 0.0
        %3122 = vmatprep.subr.mxu0 0.0
        %3123 = vmatpush1.msra.mxu0 0.0
        %3124 = vmatprep.subr.mxu0 0.0
        %3125 = vmatpush1.msra.mxu0 0.0
        %3126 = vmatprep.subr.mxu0 0.0
        %3127 = vmatpush1.msra.mxu0 0.0
        %3128 = vmatprep.subr.mxu0 0.0
        %3129 = vmatpush1.msra.mxu0 0.0
        %3130 = vmatprep.subr.mxu0 0.0
        %3131 = vmatpush1.msra.mxu0 0.0
        %3132 = vmatprep.subr.mxu0 0.0
        %3133 = vmatpush1.msra.mxu0 0.0
        %3134 = vmatprep.subr.mxu0 0.0
        %3135 = vmatpush1.msra.mxu0 0.0
        %3136 = vmatprep.subr.mxu0 0.0
        %3137 = vmatpush1.msra.mxu0 0.0
        %3138 = vmatprep.subr.mxu0 0.0
        %3139 = vmatpush1.msra.mxu0 0.0
        %3140 = vmatprep.subr.mxu0 0.0
        %3141 = vmatpush1.msra.mxu0 0.0
        %3142 = vmatprep.subr.mxu0 0.0
        %3143 = vmatpush1.msra.mxu0 0.0
        %3144 = vmatprep.subr.mxu0 0.0
        %3145 = vmatpush1.msra.mxu0 0.0
        %3146 = vmatprep.subr.mxu0 0.0
        %3147 = vmatpush1.msra.mxu0 0.0
        %3148 = vmatprep.subr.mxu0 0.0
        %3149 = vmatpush1.msra.mxu0 0.0
        %3150 = vmatprep.subr.mxu0 0.0
        %3151 = vmatpush1.msra.mxu0 0.0
        %3152 = vmatprep.subr.mxu0 0.0
        %3153 = vmatpush1.msra.mxu0 0.0
        %3154 = vmatprep.subr.mxu0 0.0
        %3155 = vmatpush1.msra.mxu0 0.0
        %3156 = vmatprep.subr.mxu0 0.0
        %3157 = vmatpush1.msra.mxu0 0.0
        %3158 = vmatprep.subr.mxu0 0.0
        %3159 = vmatpush1.msra.mxu0 0.0
        %3160 = vmatprep.subr.mxu0 0.0
        %3161 = vmatpush1.msra.mxu0 0.0
        %3162 = vmatprep.subr.mxu0 0.0
        %3163 = vmatpush1.msra.mxu0 0.0
        %3164 = vmatprep.subr.mxu0 0.0
        %3165 = vmatpush1.msra.mxu0 0.0
        %3166 = vmatprep.subr.mxu0 0.0
        %3167 = vmatpush1.msra.mxu0 0.0
        %3168 = vmatprep.subr.mxu0 0.0
        %3169 = vmatpush1.msra.mxu0 0.0
        %3170 = vmatprep.subr.mxu0 0.0
        %3171 = vmatpush1.msra.mxu0 0.0
        %3172 = vmatprep.subr.mxu0 0.0
        %3173 = vmatpush1.msra.mxu0 0.0
        %3174 = vmatprep.subr.mxu0 0.0
        %3175 = vmatpush1.msra.mxu0 0.0
        %3176 = vmatprep.subr.mxu0 0.0
        %3177 = vmatpush1.msra.mxu0 0.0
        %3178 = vmatprep.subr.mxu0 0.0
        %3179 = vmatpush1.msra.mxu0 0.0
        %3180 = vmatprep.subr.mxu0 0.0
        %3181 = vmatpush1.msra.mxu0 0.0
        %3182 = vmatprep.mubr.f32.mxu0 0.0
        %3183 = vmatmul.mubr.f32.gmra.mrb[0].mxu0 %v3114
        %v3184 = vpop.f32.mrb[0].mxu0
        %v3185 = vadd.f32 0.0, %v3184
        %v3186 = vpop.f32.mrb[0].mxu0
        %3187 = vdwg.mxu0
        %3189 = vrot.lane.b32.xlu0 %v3185, 16
        %v3190 = vpop.permute.xlu0 %3189
        %vm3192 = vcmask 191616
        %3193 = vst.msk [vmem:[#allocation2] sm:$0xf] %vm3192, %v3190
        %3194 = vrot.lane.b32.xlu0 %v2673, 104
        %v3195 = vpop.permute.xlu0 %3194
        %3196 = vrot.lane.b32.xlu0 %v2673, 72
        %v3197 = vpop.permute.xlu0 %3196
        %v3198 = vsel %vm2679, %v3195, 0
        %v3200 = vsel %vm2679, %v3197, 0
        %3202 = vmatprep.subr.mxu0 0.0
        %3203 = vmatpush1.xpose.msra.mxu0 %v3200
        %3204 = vmatprep.subr.mxu0 0.0
        %3205 = vmatpush1.xpose.msra.mxu0 0.0
        %3206 = vmatprep.subr.mxu0 0.0
        %3207 = vmatpush1.xpose.msra.mxu0 0.0
        %3208 = vmatprep.subr.mxu0 0.0
        %3209 = vmatpush1.xpose.msra.mxu0 0.0
        %3210 = vmatprep.subr.mxu0 0.0
        %3211 = vmatpush1.xpose.msra.mxu0 0.0
        %3212 = vmatprep.subr.mxu0 0.0
        %3213 = vmatpush1.xpose.msra.mxu0 0.0
        %3214 = vmatprep.subr.mxu0 0.0
        %3215 = vmatpush1.xpose.msra.mxu0 0.0
        %3216 = vmatprep.subr.mxu0 0.0
        %3217 = vmatpush1.xpose.msra.mxu0 0.0
        %3218 = vmatprep.subr.mxu0 0.0
        %3219 = vmatpush1.xpose.msra.mxu0 0.0
        %3220 = vmatprep.subr.mxu0 0.0
        %3221 = vmatpush1.xpose.msra.mxu0 0.0
        %3222 = vmatprep.subr.mxu0 0.0
        %3223 = vmatpush1.xpose.msra.mxu0 0.0
        %3224 = vmatprep.subr.mxu0 0.0
        %3225 = vmatpush1.xpose.msra.mxu0 0.0
        %3226 = vmatprep.subr.mxu0 0.0
        %3227 = vmatpush1.xpose.msra.mxu0 0.0
        %3228 = vmatprep.subr.mxu0 0.0
        %3229 = vmatpush1.xpose.msra.mxu0 0.0
        %3230 = vmatprep.subr.mxu0 0.0
        %3231 = vmatpush1.xpose.msra.mxu0 0.0
        %3232 = vmatprep.subr.mxu0 0.0
        %3233 = vmatpush1.xpose.msra.mxu0 0.0
        %3234 = vmatprep.subr.mxu0 0.0
        %3235 = vmatpush1.xpose.msra.mxu0 0.0
        %3236 = vmatprep.subr.mxu0 0.0
        %3237 = vmatpush1.xpose.msra.mxu0 0.0
        %3238 = vmatprep.subr.mxu0 0.0
        %3239 = vmatpush1.xpose.msra.mxu0 0.0
        %3240 = vmatprep.subr.mxu0 0.0
        %3241 = vmatpush1.xpose.msra.mxu0 0.0
        %3242 = vmatprep.subr.mxu0 0.0
        %3243 = vmatpush1.xpose.msra.mxu0 0.0
        %3244 = vmatprep.subr.mxu0 0.0
        %3245 = vmatpush1.xpose.msra.mxu0 0.0
        %3246 = vmatprep.subr.mxu0 0.0
        %3247 = vmatpush1.xpose.msra.mxu0 0.0
        %3248 = vmatprep.subr.mxu0 0.0
        %3249 = vmatpush1.xpose.msra.mxu0 0.0
        %3250 = vmatprep.subr.mxu0 0.0
        %3251 = vmatpush1.xpose.msra.mxu0 0.0
        %3252 = vmatprep.subr.mxu0 0.0
        %3253 = vmatpush1.xpose.msra.mxu0 0.0
        %3254 = vmatprep.subr.mxu0 0.0
        %3255 = vmatpush1.xpose.msra.mxu0 0.0
        %3256 = vmatprep.subr.mxu0 0.0
        %3257 = vmatpush1.xpose.msra.mxu0 0.0
        %3258 = vmatprep.subr.mxu0 0.0
        %3259 = vmatpush1.xpose.msra.mxu0 0.0
        %3260 = vmatprep.subr.mxu0 0.0
        %3261 = vmatpush1.xpose.msra.mxu0 0.0
        %3262 = vmatprep.subr.mxu0 0.0
        %3263 = vmatpush1.xpose.msra.mxu0 0.0
        %3264 = vmatprep.subr.mxu0 0.0
        %3265 = vmatpush1.xpose.msra.mxu0 0.0
        %3266 = vmatprep.mubr.f32.mxu0 0.0
        %3267 = vmatmul.mubr.f32.gmra.mrb[0].mxu0 %v3198
        %v3268 = vpop.f32.mrb[0].mxu0
        %v3269 = vadd.f32 0.0, %v3268
        %v3270 = vpop.f32.mrb[0].mxu0
        %3271 = vdwg.mxu0
        %v3272 = vmul.f32 %v3269, 0.35355338
        %v3273 = vsel %vm2755, %v3272, -inf
        %3274 = vmax.xlane.f32.xlu0 %v3273
        %v3275 = vpop.xlane.xlu0 %3274
        %v3276 = vsub.f32 %v3272, %v3275
        %v3277 = vmul.f32 %v3276, 1.442695
        %v3278 = vpow.pop %v3277
        %v3279 = vsel %vm2755, %v3278, 0.0
        %3280 = vadd.xlane.f32.xlu0 %v3279
        %v3281 = vpop.xlane.xlu0 %3280
        %v3282 = vrcp.pop %v3281
        %v3283 = vmul.f32 %v3278, %v3282
        %3284 = vrot.lane.b32.xlu0 %v2673, 40
        %v3285 = vpop.permute.xlu0 %3284
        %v3287 = vsel %vm2769, %v3283, 0
        %v3289 = vsel %vm2773, %v3285, 0
        %3291 = vmatprep.subr.mxu0 0.0
        %3292 = vmatpush1.msra.mxu0 %v3289
        %3293 = vmatprep.subr.mxu0 0.0
        %3294 = vmatpush1.msra.mxu0 0.0
        %3295 = vmatprep.subr.mxu0 0.0
        %3296 = vmatpush1.msra.mxu0 0.0
        %3297 = vmatprep.subr.mxu0 0.0
        %3298 = vmatpush1.msra.mxu0 0.0
        %3299 = vmatprep.subr.mxu0 0.0
        %3300 = vmatpush1.msra.mxu0 0.0
        %3301 = vmatprep.subr.mxu0 0.0
        %3302 = vmatpush1.msra.mxu0 0.0
        %3303 = vmatprep.subr.mxu0 0.0
        %3304 = vmatpush1.msra.mxu0 0.0
        %3305 = vmatprep.subr.mxu0 0.0
        %3306 = vmatpush1.msra.mxu0 0.0
        %3307 = vmatprep.subr.mxu0 0.0
        %3308 = vmatpush1.msra.mxu0 0.0
        %3309 = vmatprep.subr.mxu0 0.0
        %3310 = vmatpush1.msra.mxu0 0.0
        %3311 = vmatprep.subr.mxu0 0.0
        %3312 = vmatpush1.msra.mxu0 0.0
        %3313 = vmatprep.subr.mxu0 0.0
        %3314 = vmatpush1.msra.mxu0 0.0
        %3315 = vmatprep.subr.mxu0 0.0
        %3316 = vmatpush1.msra.mxu0 0.0
        %3317 = vmatprep.subr.mxu0 0.0
        %3318 = vmatpush1.msra.mxu0 0.0
        %3319 = vmatprep.subr.mxu0 0.0
        %3320 = vmatpush1.msra.mxu0 0.0
        %3321 = vmatprep.subr.mxu0 0.0
        %3322 = vmatpush1.msra.mxu0 0.0
        %3323 = vmatprep.subr.mxu0 0.0
        %3324 = vmatpush1.msra.mxu0 0.0
        %3325 = vmatprep.subr.mxu0 0.0
        %3326 = vmatpush1.msra.mxu0 0.0
        %3327 = vmatprep.subr.mxu0 0.0
        %3328 = vmatpush1.msra.mxu0 0.0
        %3329 = vmatprep.subr.mxu0 0.0
        %3330 = vmatpush1.msra.mxu0 0.0
        %3331 = vmatprep.subr.mxu0 0.0
        %3332 = vmatpush1.msra.mxu0 0.0
        %3333 = vmatprep.subr.mxu0 0.0
        %3334 = vmatpush1.msra.mxu0 0.0
        %3335 = vmatprep.subr.mxu0 0.0
        %3336 = vmatpush1.msra.mxu0 0.0
        %3337 = vmatprep.subr.mxu0 0.0
        %3338 = vmatpush1.msra.mxu0 0.0
        %3339 = vmatprep.subr.mxu0 0.0
        %3340 = vmatpush1.msra.mxu0 0.0
        %3341 = vmatprep.subr.mxu0 0.0
        %3342 = vmatpush1.msra.mxu0 0.0
        %3343 = vmatprep.subr.mxu0 0.0
        %3344 = vmatpush1.msra.mxu0 0.0
        %3345 = vmatprep.subr.mxu0 0.0
        %3346 = vmatpush1.msra.mxu0 0.0
        %3347 = vmatprep.subr.mxu0 0.0
        %3348 = vmatpush1.msra.mxu0 0.0
        %3349 = vmatprep.subr.mxu0 0.0
        %3350 = vmatpush1.msra.mxu0 0.0
        %3351 = vmatprep.subr.mxu0 0.0
        %3352 = vmatpush1.msra.mxu0 0.0
        %3353 = vmatprep.subr.mxu0 0.0
        %3354 = vmatpush1.msra.mxu0 0.0
        %3355 = vmatprep.mubr.f32.mxu0 0.0
        %3356 = vmatmul.mubr.f32.gmra.mrb[0].mxu0 %v3287
        %v3357 = vpop.f32.mrb[0].mxu0
        %v3358 = vadd.f32 0.0, %v3357
        %v3359 = vpop.f32.mrb[0].mxu0
        %3360 = vdwg.mxu0
        %3362 = vrot.lane.b32.xlu0 %v3358, 24
        %v3363 = vpop.permute.xlu0 %3362
        %vm3365 = vcmask 257216
        %3366 = vst.msk [vmem:[#allocation2] sm:$0xf] %vm3365, %v3363
        %v3367 = vld [vmem:[#allocation2] sm:$0xf]
        %v3368 = vld [vmem:[%s21] sm:$0xff]
        %v3369 = vld [vmem:[%s21 + $0x8] sm:$0xff]
        %v3370 = vld [vmem:[%s21 + $0x10] sm:$0xff]
        %v3371 = vld [vmem:[%s21 + $0x18] sm:$0xff]
        %v3372 = vld [vmem:[%s23] sm:$0x1]
        %v3374 = vlaneseq
        %v3375 = vshrl.u32 %v3374, 7
        %v3376 = vsub.s32 0, %v3375
        %v3377 = vrot.slane %v3372, %v3376
        %v3380 = vsel %vm2602, %v3367, 0
        %3382 = vmatprep.subr.mxu0 0.0
        %3383 = vmatpush1.msra.mxu0 %v3368
        %3384 = vmatprep.subr.mxu0 0.0
        %3385 = vmatpush1.msra.mxu0 %v3369
        %3386 = vmatprep.subr.mxu0 0.0
        %3387 = vmatpush1.msra.mxu0 %v3370
        %3388 = vmatprep.subr.mxu0 0.0
        %3389 = vmatpush1.msra.mxu0 %v3371
        %3390 = vmatprep.subr.mxu0 0.0
        %3391 = vmatpush1.msra.mxu0 0.0
        %3392 = vmatprep.subr.mxu0 0.0
        %3393 = vmatpush1.msra.mxu0 0.0
        %3394 = vmatprep.subr.mxu0 0.0
        %3395 = vmatpush1.msra.mxu0 0.0
        %3396 = vmatprep.subr.mxu0 0.0
        %3397 = vmatpush1.msra.mxu0 0.0
        %3398 = vmatprep.subr.mxu0 0.0
        %3399 = vmatpush1.msra.mxu0 0.0
        %3400 = vmatprep.subr.mxu0 0.0
        %3401 = vmatpush1.msra.mxu0 0.0
        %3402 = vmatprep.subr.mxu0 0.0
        %3403 = vmatpush1.msra.mxu0 0.0
        %3404 = vmatprep.subr.mxu0 0.0
        %3405 = vmatpush1.msra.mxu0 0.0
        %3406 = vmatprep.subr.mxu0 0.0
        %3407 = vmatpush1.msra.mxu0 0.0
        %3408 = vmatprep.subr.mxu0 0.0
        %3409 = vmatpush1.msra.mxu0 0.0
        %3410 = vmatprep.subr.mxu0 0.0
        %3411 = vmatpush1.msra.mxu0 0.0
        %3412 = vmatprep.subr.mxu0 0.0
        %3413 = vmatpush1.msra.mxu0 0.0
        %3414 = vmatprep.subr.mxu0 0.0
        %3415 = vmatpush1.msra.mxu0 0.0
        %3416 = vmatprep.subr.mxu0 0.0
        %3417 = vmatpush1.msra.mxu0 0.0
        %3418 = vmatprep.subr.mxu0 0.0
        %3419 = vmatpush1.msra.mxu0 0.0
        %3420 = vmatprep.subr.mxu0 0.0
        %3421 = vmatpush1.msra.mxu0 0.0
        %3422 = vmatprep.subr.mxu0 0.0
        %3423 = vmatpush1.msra.mxu0 0.0
        %3424 = vmatprep.subr.mxu0 0.0
        %3425 = vmatpush1.msra.mxu0 0.0
        %3426 = vmatprep.subr.mxu0 0.0
        %3427 = vmatpush1.msra.mxu0 0.0
        %3428 = vmatprep.subr.mxu0 0.0
        %3429 = vmatpush1.msra.mxu0 0.0
        %3430 = vmatprep.subr.mxu0 0.0
        %3431 = vmatpush1.msra.mxu0 0.0
        %3432 = vmatprep.subr.mxu0 0.0
        %3433 = vmatpush1.msra.mxu0 0.0
        %3434 = vmatprep.subr.mxu0 0.0
        %3435 = vmatpush1.msra.mxu0 0.0
        %3436 = vmatprep.subr.mxu0 0.0
        %3437 = vmatpush1.msra.mxu0 0.0
        %3438 = vmatprep.subr.mxu0 0.0
        %3439 = vmatpush1.msra.mxu0 0.0
        %3440 = vmatprep.subr.mxu0 0.0
        %3441 = vmatpush1.msra.mxu0 0.0
        %3442 = vmatprep.subr.mxu0 0.0
        %3443 = vmatpush1.msra.mxu0 0.0
        %3444 = vmatprep.subr.mxu0 0.0
        %3445 = vmatpush1.msra.mxu0 0.0
        %3446 = vmatprep.mubr.f32.mxu0 0.0
        %3447 = vmatmul.mubr.f32.gmra.mrb[0].mxu0 %v3380
        %v3448 = vpop.f32.mrb[0].mxu0
        %v3449 = vadd.f32 %v3377, %v3448
        %v3450 = vpop.f32.mrb[0].mxu0
        %3451 = vdwg.mxu0
        %v3452 = vadd.f32 %v2559, %v3449
        %v3453 = vld [vmem:[%s25] sm:$0x1]
        %v3454 = vld [vmem:[%s27] sm:$0x1]
        %v3455 = vsel %vm2562, %v3452, 0.0
        %3456 = vadd.xlane.f32.xlu0 %v3455
        %v3457 = vpop.xlane.xlu0 %3456
        %v3458 = vmul.f32 %v3457, %v2566
        %v3459 = vsub.f32 %v3452, %v3458
        %v3460 = vmul.f32 %v3459, %v3459
        %v3461 = vsel %vm2562, %v3460, 0.0
        %3462 = vadd.xlane.f32.xlu0 %v3461
        %v3463 = vpop.xlane.xlu0 %3462
        %v3464 = vmul.f32 %v3463, %v2566
        %v3465 = vadd.f32 %v3464, 1e-05
        %v3466 = vrsqrt.pop %v3465
        %v3467 = vmul.f32 %v3459, %v3466
        %v3469 = vlaneseq
        %v3470 = vshrl.u32 %v3469, 7
        %v3471 = vsub.s32 0, %v3470
        %v3472 = vrot.slane %v3453, %v3471
        %v3474 = vmul.f32 %v3467, %v3472
        %v3476 = vlaneseq
        %v3477 = vshrl.u32 %v3476, 7
        %v3478 = vsub.s32 0, %v3477
        %v3479 = vrot.slane %v3454, %v3478
        %v3481 = vadd.f32 %v3474, %v3479
        %v3482 = vld [vmem:[%s29] sm:$0xff]
        %v3483 = vld [vmem:[%s29 + $0x8] sm:$0xff]
        %v3484 = vld [vmem:[%s29 + $0x10] sm:$0xff]
        %v3485 = vld [vmem:[%s29 + $0x18] sm:$0xff]
        %v3486 = vld [vmem:[%s31] sm:$0x1]
        %v3488 = vlaneseq
        %v3489 = vshrl.u32 %v3488, 7
        %v3490 = vsub.s32 0, %v3489
        %v3491 = vrot.slane %v3486, %v3490
        %v3494 = vsel %vm2602, %v3481, 0
        %3496 = vmatprep.subr.mxu0 0.0
        %3497 = vmatpush1.msra.mxu0 %v3482
        %3498 = vmatprep.subr.mxu0 0.0
        %3499 = vmatpush1.msra.mxu0 %v3483
        %3500 = vmatprep.subr.mxu0 0.0
        %3501 = vmatpush1.msra.mxu0 %v3484
        %3502 = vmatprep.subr.mxu0 0.0
        %3503 = vmatpush1.msra.mxu0 %v3485
        %3504 = vmatprep.subr.mxu0 0.0
        %3505 = vmatpush1.msra.mxu0 0.0
        %3506 = vmatprep.subr.mxu0 0.0
        %3507 = vmatpush1.msra.mxu0 0.0
        %3508 = vmatprep.subr.mxu0 0.0
        %3509 = vmatpush1.msra.mxu0 0.0
        %3510 = vmatprep.subr.mxu0 0.0
        %3511 = vmatpush1.msra.mxu0 0.0
        %3512 = vmatprep.subr.mxu0 0.0
        %3513 = vmatpush1.msra.mxu0 0.0
        %3514 = vmatprep.subr.mxu0 0.0
        %3515 = vmatpush1.msra.mxu0 0.0
        %3516 = vmatprep.subr.mxu0 0.0
        %3517 = vmatpush1.msra.mxu0 0.0
        %3518 = vmatprep.subr.mxu0 0.0
        %3519 = vmatpush1.msra.mxu0 0.0
        %3520 = vmatprep.subr.mxu0 0.0
        %3521 = vmatpush1.msra.mxu0 0.0
        %3522 = vmatprep.subr.mxu0 0.0
        %3523 = vmatpush1.msra.mxu0 0.0
        %3524 = vmatprep.subr.mxu0 0.0
        %3525 = vmatpush1.msra.mxu0 0.0
        %3526 = vmatprep.subr.mxu0 0.0
        %3527 = vmatpush1.msra.mxu0 0.0
        %3528 = vmatprep.subr.mxu0 0.0
        %3529 = vmatpush1.msra.mxu0 0.0
        %3530 = vmatprep.subr.mxu0 0.0
        %3531 = vmatpush1.msra.mxu0 0.0
        %3532 = vmatprep.subr.mxu0 0.0
        %3533 = vmatpush1.msra.mxu0 0.0
        %3534 = vmatprep.subr.mxu0 0.0
        %3535 = vmatpush1.msra.mxu0 0.0
        %3536 = vmatprep.subr.mxu0 0.0
        %3537 = vmatpush1.msra.mxu0 0.0
        %3538 = vmatprep.subr.mxu0 0.0
        %3539 = vmatpush1.msra.mxu0 0.0
        %3540 = vmatprep.subr.mxu0 0.0
        %3541 = vmatpush1.msra.mxu0 0.0
        %3542 = vmatprep.subr.mxu0 0.0
        %3543 = vmatpush1.msra.mxu0 0.0
        %3544 = vmatprep.subr.mxu0 0.0
        %3545 = vmatpush1.msra.mxu0 0.0
        %3546 = vmatprep.subr.mxu0 0.0
        %3547 = vmatpush1.msra.mxu0 0.0
        %3548 = vmatprep.subr.mxu0 0.0
        %3549 = vmatpush1.msra.mxu0 0.0
        %3550 = vmatprep.subr.mxu0 0.0
        %3551 = vmatpush1.msra.mxu0 0.0
        %3552 = vmatprep.subr.mxu0 0.0
        %3553 = vmatpush1.msra.mxu0 0.0
        %3554 = vmatprep.subr.mxu0 0.0
        %3555 = vmatpush1.msra.mxu0 0.0
        %3556 = vmatprep.subr.mxu0 0.0
        %3557 = vmatpush1.msra.mxu0 0.0
        %3558 = vmatprep.subr.mxu0 0.0
        %3559 = vmatpush1.msra.mxu0 0.0
        %3560 = vmatprep.mubr.f32.mxu0 0.0
        %3561 = vmatmul.mubr.f32.gmra.mrb[0].mxu0 %v3494
        %v3562 = vpop.f32.mrb[0].mxu0
        %v3563 = vadd.f32 %v3491, %v3562
        %v3564 = vpop.f32.mrb[0].mxu0
        %3565 = vdwg.mxu0
        %v3566 = vmul.f32 %v3563, 0.5
        %v3567 = vmul.f32 %v3563, 0.044715
        %v3568 = vmul.f32 %v3567, %v3563
        %v3569 = vmul.f32 %v3568, %v3563
        %v3570 = vadd.f32 %v3563, %v3569
        %v3571 = vmul.f32 %v3570, 0.7978846
        %v3572 = vtanh.pop %v3571
        %v3573 = vadd.f32 %v3572, 1.0
        %v3574 = vmul.f32 %v3566, %v3573
        %v3575 = vld [vmem:[%s33] sm:$0xff]
        %v3576 = vld [vmem:[%s33 + $0x8] sm:$0xff]
        %v3577 = vld [vmem:[%s33 + $0x10] sm:$0xff]
        %v3578 = vld [vmem:[%s33 + $0x18] sm:$0xff]
        %v3579 = vld [vmem:[%s33 + $0x20] sm:$0xff]
        %v3580 = vld [vmem:[%s33 + $0x28] sm:$0xff]
        %v3581 = vld [vmem:[%s33 + $0x30] sm:$0xff]
        %v3582 = vld [vmem:[%s33 + $0x38] sm:$0xff]
        %v3583 = vld [vmem:[%s33 + $0x40] sm:$0xff]
        %v3584 = vld [vmem:[%s33 + $0x48] sm:$0xff]
        %v3585 = vld [vmem:[%s33 + $0x50] sm:$0xff]
        %v3586 = vld [vmem:[%s33 + $0x58] sm:$0xff]
        %v3587 = vld [vmem:[%s33 + $0x60] sm:$0xff]
        %v3588 = vld [vmem:[%s33 + $0x68] sm:$0xff]
        %v3589 = vld [vmem:[%s33 + $0x70] sm:$0xff]
        %v3590 = vld [vmem:[%s33 + $0x78] sm:$0xff]
        %v3591 = vld [vmem:[%s35] sm:$0x1]
        %v3593 = vlaneseq
        %v3594 = vshrl.u32 %v3593, 7
        %v3595 = vsub.s32 0, %v3594
        %v3596 = vrot.slane %v3591, %v3595
        %3598 = vmatprep.subr.mxu0 0.0
        %3599 = vmatpush1.msra.mxu0 %v3575
        %3600 = vmatprep.subr.mxu0 0.0
        %3601 = vmatpush1.msra.mxu0 %v3576
        %3602 = vmatprep.subr.mxu0 0.0
        %3603 = vmatpush1.msra.mxu0 %v3577
        %3604 = vmatprep.subr.mxu0 0.0
        %3605 = vmatpush1.msra.mxu0 %v3578
        %3606 = vmatprep.subr.mxu0 0.0
        %3607 = vmatpush1.msra.mxu0 %v3579
        %3608 = vmatprep.subr.mxu0 0.0
        %3609 = vmatpush1.msra.mxu0 %v3580
        %3610 = vmatprep.subr.mxu0 0.0
        %3611 = vmatpush1.msra.mxu0 %v3581
        %3612 = vmatprep.subr.mxu0 0.0
        %3613 = vmatpush1.msra.mxu0 %v3582
        %3614 = vmatprep.subr.mxu0 0.0
        %3615 = vmatpush1.msra.mxu0 %v3583
        %3616 = vmatprep.subr.mxu0 0.0
        %3617 = vmatpush1.msra.mxu0 %v3584
        %3618 = vmatprep.subr.mxu0 0.0
        %3619 = vmatpush1.msra.mxu0 %v3585
        %3620 = vmatprep.subr.mxu0 0.0
        %3621 = vmatpush1.msra.mxu0 %v3586
        %3622 = vmatprep.subr.mxu0 0.0
        %3623 = vmatpush1.msra.mxu0 %v3587
        %3624 = vmatprep.subr.mxu0 0.0
        %3625 = vmatpush1.msra.mxu0 %v3588
        %3626 = vmatprep.subr.mxu0 0.0
        %3627 = vmatpush1.msra.mxu0 %v3589
        %3628 = vmatprep.subr.mxu0 0.0
        %3629 = vmatpush1.msra.mxu0 %v3590
        %3630 = vmatprep.subr.mxu0 0.0
        %3631 = vmatpush1.msra.mxu0 0.0
        %3632 = vmatprep.subr.mxu0 0.0
        %3633 = vmatpush1.msra.mxu0 0.0
        %3634 = vmatprep.subr.mxu0 0.0
        %3635 = vmatpush1.msra.mxu0 0.0
        %3636 = vmatprep.subr.mxu0 0.0
        %3637 = vmatpush1.msra.mxu0 0.0
        %3638 = vmatprep.subr.mxu0 0.0
        %3639 = vmatpush1.msra.mxu0 0.0
        %3640 = vmatprep.subr.mxu0 0.0
        %3641 = vmatpush1.msra.mxu0 0.0
        %3642 = vmatprep.subr.mxu0 0.0
        %3643 = vmatpush1.msra.mxu0 0.0
        %3644 = vmatprep.subr.mxu0 0.0
        %3645 = vmatpush1.msra.mxu0 0.0
        %3646 = vmatprep.subr.mxu0 0.0
        %3647 = vmatpush1.msra.mxu0 0.0
        %3648 = vmatprep.subr.mxu0 0.0
        %3649 = vmatpush1.msra.mxu0 0.0
        %3650 = vmatprep.subr.mxu0 0.0
        %3651 = vmatpush1.msra.mxu0 0.0
        %3652 = vmatprep.subr.mxu0 0.0
        %3653 = vmatpush1.msra.mxu0 0.0
        %3654 = vmatprep.subr.mxu0 0.0
        %3655 = vmatpush1.msra.mxu0 0.0
        %3656 = vmatprep.subr.mxu0 0.0
        %3657 = vmatpush1.msra.mxu0 0.0
        %3658 = vmatprep.subr.mxu0 0.0
        %3659 = vmatpush1.msra.mxu0 0.0
        %3660 = vmatprep.subr.mxu0 0.0
        %3661 = vmatpush1.msra.mxu0 0.0
        %3662 = vmatprep.mubr.f32.mxu0 0.0
        %3663 = vmatmul.mubr.f32.gmra.mrb[0].mxu0 %v3574
        %v3664 = vpop.f32.mrb[0].mxu0
        %v3665 = vadd.f32 %v3596, %v3664
        %v3666 = vpop.f32.mrb[0].mxu0
        %3667 = vdwg.mxu0
        %v3668 = vadd.f32 %v3452, %v3665
        %v3669 = vld [vmem:[%s37] sm:$0x1]
        %v3670 = vld [vmem:[%s39] sm:$0x1]
        %v3671 = vsel %vm2562, %v3668, 0.0
        %3672 = vadd.xlane.f32.xlu0 %v3671
        %v3673 = vpop.xlane.xlu0 %3672
        %v3674 = vmul.f32 %v3673, %v2566
        %v3675 = vsub.f32 %v3668, %v3674
        %v3676 = vmul.f32 %v3675, %v3675
        %v3677 = vsel %vm2562, %v3676, 0.0
        %3678 = vadd.xlane.f32.xlu0 %v3677
        %v3679 = vpop.xlane.xlu0 %3678
        %v3680 = vmul.f32 %v3679, %v2566
        %v3681 = vadd.f32 %v3680, 1e-05
        %v3682 = vrsqrt.pop %v3681
        %v3683 = vmul.f32 %v3675, %v3682
        %v3685 = vlaneseq
        %v3686 = vshrl.u32 %v3685, 7
        %v3687 = vsub.s32 0, %v3686
        %v3688 = vrot.slane %v3669, %v3687
        %v3690 = vmul.f32 %v3683, %v3688
        %v3692 = vlaneseq
        %v3693 = vshrl.u32 %v3692, 7
        %v3694 = vsub.s32 0, %v3693
        %v3695 = vrot.slane %v3670, %v3694
        %v3697 = vadd.f32 %v3690, %v3695
        %v3698 = vld [vmem:[%s41] sm:$0xff]
        %v3699 = vld [vmem:[%s41 + $0x8] sm:$0xff]
        %v3700 = vld [vmem:[%s41 + $0x10] sm:$0xff]
        %v3701 = vld [vmem:[%s41 + $0x18] sm:$0xff]
        %v3702 = vld [vmem:[%s43] sm:$0x1]
        %v3704 = vlaneseq
        %v3705 = vshrl.u32 %v3704, 7
        %v3706 = vsub.s32 0, %v3705
        %v3707 = vrot.slane %v3702, %v3706
        %v3710 = vsel %vm2602, %v3697, 0
        %3712 = vmatprep.subr.mxu0 0.0
        %3713 = vmatpush1.msra.mxu0 %v3698
        %3714 = vmatprep.subr.mxu0 0.0
        %3715 = vmatpush1.msra.mxu0 %v3699
        %3716 = vmatprep.subr.mxu0 0.0
        %3717 = vmatpush1.msra.mxu0 %v3700
        %3718 = vmatprep.subr.mxu0 0.0
        %3719 = vmatpush1.msra.mxu0 %v3701
        %3720 = vmatprep.subr.mxu0 0.0
        %3721 = vmatpush1.msra.mxu0 0.0
        %3722 = vmatprep.subr.mxu0 0.0
        %3723 = vmatpush1.msra.mxu0 0.0
        %3724 = vmatprep.subr.mxu0 0.0
        %3725 = vmatpush1.msra.mxu0 0.0
        %3726 = vmatprep.subr.mxu0 0.0
        %3727 = vmatpush1.msra.mxu0 0.0
        %3728 = vmatprep.subr.mxu0 0.0
        %3729 = vmatpush1.msra.mxu0 0.0
        %3730 = vmatprep.subr.mxu0 0.0
        %3731 = vmatpush1.msra.mxu0 0.0
        %3732 = vmatprep.subr.mxu0 0.0
        %3733 = vmatpush1.msra.mxu0 0.0
        %3734 = vmatprep.subr.mxu0 0.0
        %3735 = vmatpush1.msra.mxu0 0.0
        %3736 = vmatprep.subr.mxu0 0.0
        %3737 = vmatpush1.msra.mxu0 0.0
        %3738 = vmatprep.subr.mxu0 0.0
        %3739 = vmatpush1.msra.mxu0 0.0
        %3740 = vmatprep.subr.mxu0 0.0
        %3741 = vmatpush1.msra.mxu0 0.0
        %3742 = vmatprep.subr.mxu0 0.0
        %3743 = vmatpush1.msra.mxu0 0.0
        %3744 = vmatprep.subr.mxu0 0.0
        %3745 = vmatpush1.msra.mxu0 0.0
        %3746 = vmatprep.subr.mxu0 0.0
        %3747 = vmatpush1.msra.mxu0 0.0
        %3748 = vmatprep.subr.mxu0 0.0
        %3749 = vmatpush1.msra.mxu0 0.0
        %3750 = vmatprep.subr.mxu0 0.0
        %3751 = vmatpush1.msra.mxu0 0.0
        %3752 = vmatprep.subr.mxu0 0.0
        %3753 = vmatpush1.msra.mxu0 0.0
        %3754 = vmatprep.subr.mxu0 0.0
        %3755 = vmatpush1.msra.mxu0 0.0
        %3756 = vmatprep.subr.mxu0 0.0
        %3757 = vmatpush1.msra.mxu0 0.0
        %3758 = vmatprep.subr.mxu0 0.0
        %3759 = vmatpush1.msra.mxu0 0.0
        %3760 = vmatprep.subr.mxu0 0.0
        %3761 = vmatpush1.msra.mxu0 0.0
        %3762 = vmatprep.subr.mxu0 0.0
        %3763 = vmatpush1.msra.mxu0 0.0
        %3764 = vmatprep.subr.mxu0 0.0
        %3765 = vmatpush1.msra.mxu0 0.0
        %3766 = vmatprep.subr.mxu0 0.0
        %3767 = vmatpush1.msra.mxu0 0.0
        %3768 = vmatprep.subr.mxu0 0.0
        %3769 = vmatpush1.msra.mxu0 0.0
        %3770 = vmatprep.subr.mxu0 0.0
        %3771 = vmatpush1.msra.mxu0 0.0
        %3772 = vmatprep.subr.mxu0 0.0
        %3773 = vmatpush1.msra.mxu0 0.0
        %3774 = vmatprep.subr.mxu0 0.0
        %3775 = vmatpush1.msra.mxu0 0.0
        %3776 = vmatprep.mubr.f32.mxu0 0.0
        %3777 = vmatmul.mubr.f32.gmra.mrb[0].mxu0 %v3710
        %v3778 = vpop.f32.mrb[0].mxu0
        %v3779 = vadd.f32 %v3707, %v3778
        %v3780 = vpop.f32.mrb[0].mxu0
        %3781 = vdwg.mxu0
        %3783 = vrot.lane.b32.xlu0 %v3779, 96
        %v3784 = vpop.permute.xlu0 %3783
        %v3785 = vsel %vm2679, %v3779, 0
        %v3787 = vsel %vm2679, %v3784, 0
        %3789 = vmatprep.subr.mxu0 0.0
        %3790 = vmatpush1.xpose.msra.mxu0 %v3787
        %3791 = vmatprep.subr.mxu0 0.0
        %3792 = vmatpush1.xpose.msra.mxu0 0.0
        %3793 = vmatprep.subr.mxu0 0.0
        %3794 = vmatpush1.xpose.msra.mxu0 0.0
        %3795 = vmatprep.subr.mxu0 0.0
        %3796 = vmatpush1.xpose.msra.mxu0 0.0
        %3797 = vmatprep.subr.mxu0 0.0
        %3798 = vmatpush1.xpose.msra.mxu0 0.0
        %3799 = vmatprep.subr.mxu0 0.0
        %3800 = vmatpush1.xpose.msra.mxu0 0.0
        %3801 = vmatprep.subr.mxu0 0.0
        %3802 = vmatpush1.xpose.msra.mxu0 0.0
        %3803 = vmatprep.subr.mxu0 0.0
        %3804 = vmatpush1.xpose.msra.mxu0 0.0
        %3805 = vmatprep.subr.mxu0 0.0
        %3806 = vmatpush1.xpose.msra.mxu0 0.0
        %3807 = vmatprep.subr.mxu0 0.0
        %3808 = vmatpush1.xpose.msra.mxu0 0.0
        %3809 = vmatprep.subr.mxu0 0.0
        %3810 = vmatpush1.xpose.msra.mxu0 0.0
        %3811 = vmatprep.subr.mxu0 0.0
        %3812 = vmatpush1.xpose.msra.mxu0 0.0
        %3813 = vmatprep.subr.mxu0 0.0
        %3814 = vmatpush1.xpose.msra.mxu0 0.0
        %3815 = vmatprep.subr.mxu0 0.0
        %3816 = vmatpush1.xpose.msra.mxu0 0.0
        %3817 = vmatprep.subr.mxu0 0.0
        %3818 = vmatpush1.xpose.msra.mxu0 0.0
        %3819 = vmatprep.subr.mxu0 0.0
        %3820 = vmatpush1.xpose.msra.mxu0 0.0
        %3821 = vmatprep.subr.mxu0 0.0
        %3822 = vmatpush1.xpose.msra.mxu0 0.0
        %3823 = vmatprep.subr.mxu0 0.0
        %3824 = vmatpush1.xpose.msra.mxu0 0.0
        %3825 = vmatprep.subr.mxu0 0.0
        %3826 = vmatpush1.xpose.msra.mxu0 0.0
        %3827 = vmatprep.subr.mxu0 0.0
        %3828 = vmatpush1.xpose.msra.mxu0 0.0
        %3829 = vmatprep.subr.mxu0 0.0
        %3830 = vmatpush1.xpose.msra.mxu0 0.0
        %3831 = vmatprep.subr.mxu0 0.0
        %3832 = vmatpush1.xpose.msra.mxu0 0.0
        %3833 = vmatprep.subr.mxu0 0.0
        %3834 = vmatpush1.xpose.msra.mxu0 0.0
        %3835 = vmatprep.subr.mxu0 0.0
        %3836 = vmatpush1.xpose.msra.mxu0 0.0
        %3837 = vmatprep.subr.mxu0 0.0
        %3838 = vmatpush1.xpose.msra.mxu0 0.0
        %3839 = vmatprep.subr.mxu0 0.0
        %3840 = vmatpush1.xpose.msra.mxu0 0.0
        %3841 = vmatprep.subr.mxu0 0.0
        %3842 = vmatpush1.xpose.msra.mxu0 0.0
        %3843 = vmatprep.subr.mxu0 0.0
        %3844 = vmatpush1.xpose.msra.mxu0 0.0
        %3845 = vmatprep.subr.mxu0 0.0
        %3846 = vmatpush1.xpose.msra.mxu0 0.0
        %3847 = vmatprep.subr.mxu0 0.0
        %3848 = vmatpush1.xpose.msra.mxu0 0.0
        %3849 = vmatprep.subr.mxu0 0.0
        %3850 = vmatpush1.xpose.msra.mxu0 0.0
        %3851 = vmatprep.subr.mxu0 0.0
        %3852 = vmatpush1.xpose.msra.mxu0 0.0
        %3853 = vmatprep.mubr.f32.mxu0 0.0
        %3854 = vmatmul.mubr.f32.gmra.mrb[0].mxu0 %v3785
        %v3855 = vpop.f32.mrb[0].mxu0
        %v3856 = vadd.f32 0.0, %v3855
        %v3857 = vpop.f32.mrb[0].mxu0
        %3858 = vdwg.mxu0
        %v3859 = vmul.f32 %v3856, 0.35355338
        %v3860 = vsel %vm2755, %v3859, -inf
        %3861 = vmax.xlane.f32.xlu0 %v3860
        %v3862 = vpop.xlane.xlu0 %3861
        %v3863 = vsub.f32 %v3859, %v3862
        %v3864 = vmul.f32 %v3863, 1.442695
        %v3865 = vpow.pop %v3864
        %v3866 = vsel %vm2755, %v3865, 0.0
        %3867 = vadd.xlane.f32.xlu0 %v3866
        %v3868 = vpop.xlane.xlu0 %3867
        %v3869 = vrcp.pop %v3868
        %v3870 = vmul.f32 %v3865, %v3869
        %3871 = vrot.lane.b32.xlu0 %v3779, 64
        %v3872 = vpop.permute.xlu0 %3871
        %v3874 = vsel %vm2769, %v3870, 0
        %v3876 = vsel %vm2773, %v3872, 0
        %3878 = vmatprep.subr.mxu0 0.0
        %3879 = vmatpush1.msra.mxu0 %v3876
        %3880 = vmatprep.subr.mxu0 0.0
        %3881 = vmatpush1.msra.mxu0 0.0
        %3882 = vmatprep.subr.mxu0 0.0
        %3883 = vmatpush1.msra.mxu0 0.0
        %3884 = vmatprep.subr.mxu0 0.0
        %3885 = vmatpush1.msra.mxu0 0.0
        %3886 = vmatprep.subr.mxu0 0.0
        %3887 = vmatpush1.msra.mxu0 0.0
        %3888 = vmatprep.subr.mxu0 0.0
        %3889 = vmatpush1.msra.mxu0 0.0
        %3890 = vmatprep.subr.mxu0 0.0
        %3891 = vmatpush1.msra.mxu0 0.0
        %3892 = vmatprep.subr.mxu0 0.0
        %3893 = vmatpush1.msra.mxu0 0.0
        %3894 = vmatprep.subr.mxu0 0.0
        %3895 = vmatpush1.msra.mxu0 0.0
        %3896 = vmatprep.subr.mxu0 0.0
        %3897 = vmatpush1.msra.mxu0 0.0
        %3898 = vmatprep.subr.mxu0 0.0
        %3899 = vmatpush1.msra.mxu0 0.0
        %3900 = vmatprep.subr.mxu0 0.0
        %3901 = vmatpush1.msra.mxu0 0.0
        %3902 = vmatprep.subr.mxu0 0.0
        %3903 = vmatpush1.msra.mxu0 0.0
        %3904 = vmatprep.subr.mxu0 0.0
        %3905 = vmatpush1.msra.mxu0 0.0
        %3906 = vmatprep.subr.mxu0 0.0
        %3907 = vmatpush1.msra.mxu0 0.0
        %3908 = vmatprep.subr.mxu0 0.0
        %3909 = vmatpush1.msra.mxu0 0.0
        %3910 = vmatprep.subr.mxu0 0.0
        %3911 = vmatpush1.msra.mxu0 0.0
        %3912 = vmatprep.subr.mxu0 0.0
        %3913 = vmatpush1.msra.mxu0 0.0
        %3914 = vmatprep.subr.mxu0 0.0
        %3915 = vmatpush1.msra.mxu0 0.0
        %3916 = vmatprep.subr.mxu0 0.0
        %3917 = vmatpush1.msra.mxu0 0.0
        %3918 = vmatprep.subr.mxu0 0.0
        %3919 = vmatpush1.msra.mxu0 0.0
        %3920 = vmatprep.subr.mxu0 0.0
        %3921 = vmatpush1.msra.mxu0 0.0
        %3922 = vmatprep.subr.mxu0 0.0
        %3923 = vmatpush1.msra.mxu0 0.0
        %3924 = vmatprep.subr.mxu0 0.0
        %3925 = vmatpush1.msra.mxu0 0.0
        %3926 = vmatprep.subr.mxu0 0.0
        %3927 = vmatpush1.msra.mxu0 0.0
        %3928 = vmatprep.subr.mxu0 0.0
        %3929 = vmatpush1.msra.mxu0 0.0
        %3930 = vmatprep.subr.mxu0 0.0
        %3931 = vmatpush1.msra.mxu0 0.0
        %3932 = vmatprep.subr.mxu0 0.0
        %3933 = vmatpush1.msra.mxu0 0.0
        %3934 = vmatprep.subr.mxu0 0.0
        %3935 = vmatpush1.msra.mxu0 0.0
        %3936 = vmatprep.subr.mxu0 0.0
        %3937 = vmatpush1.msra.mxu0 0.0
        %3938 = vmatprep.subr.mxu0 0.0
        %3939 = vmatpush1.msra.mxu0 0.0
        %3940 = vmatprep.subr.mxu0 0.0
        %3941 = vmatpush1.msra.mxu0 0.0
        %3942 = vmatprep.mubr.f32.mxu0 0.0
        %3943 = vmatmul.mubr.f32.gmra.mrb[0].mxu0 %v3874
        %v3944 = vpop.f32.mrb[0].mxu0
        %v3945 = vadd.f32 0.0, %v3944
        %v3946 = vpop.f32.mrb[0].mxu0
        %3947 = vdwg.mxu0
        %3948 = vst.msk [vmem:[#allocation2] sm:$0xf] %vm2846, %v3945
        %3949 = vrot.lane.b32.xlu0 %v3779, 120
        %v3950 = vpop.permute.xlu0 %3949
        %3951 = vrot.lane.b32.xlu0 %v3779, 88
        %v3952 = vpop.permute.xlu0 %3951
        %v3953 = vsel %vm2679, %v3950, 0
        %v3955 = vsel %vm2679, %v3952, 0
        %3957 = vmatprep.subr.mxu0 0.0
        %3958 = vmatpush1.xpose.msra.mxu0 %v3955
        %3959 = vmatprep.subr.mxu0 0.0
        %3960 = vmatpush1.xpose.msra.mxu0 0.0
        %3961 = vmatprep.subr.mxu0 0.0
        %3962 = vmatpush1.xpose.msra.mxu0 0.0
        %3963 = vmatprep.subr.mxu0 0.0
        %3964 = vmatpush1.xpose.msra.mxu0 0.0
        %3965 = vmatprep.subr.mxu0 0.0
        %3966 = vmatpush1.xpose.msra.mxu0 0.0
        %3967 = vmatprep.subr.mxu0 0.0
        %3968 = vmatpush1.xpose.msra.mxu0 0.0
        %3969 = vmatprep.subr.mxu0 0.0
        %3970 = vmatpush1.xpose.msra.mxu0 0.0
        %3971 = vmatprep.subr.mxu0 0.0
        %3972 = vmatpush1.xpose.msra.mxu0 0.0
        %3973 = vmatprep.subr.mxu0 0.0
        %3974 = vmatpush1.xpose.msra.mxu0 0.0
        %3975 = vmatprep.subr.mxu0 0.0
        %3976 = vmatpush1.xpose.msra.mxu0 0.0
        %3977 = vmatprep.subr.mxu0 0.0
        %3978 = vmatpush1.xpose.msra.mxu0 0.0
        %3979 = vmatprep.subr.mxu0 0.0
        %3980 = vmatpush1.xpose.msra.mxu0 0.0
        %3981 = vmatprep.subr.mxu0 0.0
        %3982 = vmatpush1.xpose.msra.mxu0 0.0
        %3983 = vmatprep.subr.mxu0 0.0
        %3984 = vmatpush1.xpose.msra.mxu0 0.0
        %3985 = vmatprep.subr.mxu0 0.0
        %3986 = vmatpush1.xpose.msra.mxu0 0.0
        %3987 = vmatprep.subr.mxu0 0.0
        %3988 = vmatpush1.xpose.msra.mxu0 0.0
        %3989 = vmatprep.subr.mxu0 0.0
        %3990 = vmatpush1.xpose.msra.mxu0 0.0
        %3991 = vmatprep.subr.mxu0 0.0
        %3992 = vmatpush1.xpose.msra.mxu0 0.0
        %3993 = vmatprep.subr.mxu0 0.0
        %3994 = vmatpush1.xpose.msra.mxu0 0.0
        %3995 = vmatprep.subr.mxu0 0.0
        %3996 = vmatpush1.xpose.msra.mxu0 0.0
        %3997 = vmatprep.subr.mxu0 0.0
        %3998 = vmatpush1.xpose.msra.mxu0 0.0
        %3999 = vmatprep.subr.mxu0 0.0
        %4000 = vmatpush1.xpose.msra.mxu0 0.0
        %4001 = vmatprep.subr.mxu0 0.0
        %4002 = vmatpush1.xpose.msra.mxu0 0.0
        %4003 = vmatprep.subr.mxu0 0.0
        %4004 = vmatpush1.xpose.msra.mxu0 0.0
        %4005 = vmatprep.subr.mxu0 0.0
        %4006 = vmatpush1.xpose.msra.mxu0 0.0
        %4007 = vmatprep.subr.mxu0 0.0
        %4008 = vmatpush1.xpose.msra.mxu0 0.0
        %4009 = vmatprep.subr.mxu0 0.0
        %4010 = vmatpush1.xpose.msra.mxu0 0.0
        %4011 = vmatprep.subr.mxu0 0.0
        %4012 = vmatpush1.xpose.msra.mxu0 0.0
        %4013 = vmatprep.subr.mxu0 0.0
        %4014 = vmatpush1.xpose.msra.mxu0 0.0
        %4015 = vmatprep.subr.mxu0 0.0
        %4016 = vmatpush1.xpose.msra.mxu0 0.0
        %4017 = vmatprep.subr.mxu0 0.0
        %4018 = vmatpush1.xpose.msra.mxu0 0.0
        %4019 = vmatprep.subr.mxu0 0.0
        %4020 = vmatpush1.xpose.msra.mxu0 0.0
        %4021 = vmatprep.mubr.f32.mxu0 0.0
        %4022 = vmatmul.mubr.f32.gmra.mrb[0].mxu0 %v3953
        %v4023 = vpop.f32.mrb[0].mxu0
        %v4024 = vadd.f32 0.0, %v4023
        %v4025 = vpop.f32.mrb[0].mxu0
        %4026 = vdwg.mxu0
        %v4027 = vmul.f32 %v4024, 0.35355338
        %v4028 = vsel %vm2755, %v4027, -inf
        %4029 = vmax.xlane.f32.xlu0 %v4028
        %v4030 = vpop.xlane.xlu0 %4029
        %v4031 = vsub.f32 %v4027, %v4030
        %v4032 = vmul.f32 %v4031, 1.442695
        %v4033 = vpow.pop %v4032
        %v4034 = vsel %vm2755, %v4033, 0.0
        %4035 = vadd.xlane.f32.xlu0 %v4034
        %v4036 = vpop.xlane.xlu0 %4035
        %v4037 = vrcp.pop %v4036
        %v4038 = vmul.f32 %v4033, %v4037
        %4039 = vrot.lane.b32.xlu0 %v3779, 56
        %v4040 = vpop.permute.xlu0 %4039
        %v4042 = vsel %vm2769, %v4038, 0
        %v4044 = vsel %vm2773, %v4040, 0
        %4046 = vmatprep.subr.mxu0 0.0
        %4047 = vmatpush1.msra.mxu0 %v4044
        %4048 = vmatprep.subr.mxu0 0.0
        %4049 = vmatpush1.msra.mxu0 0.0
        %4050 = vmatprep.subr.mxu0 0.0
        %4051 = vmatpush1.msra.mxu0 0.0
        %4052 = vmatprep.subr.mxu0 0.0
        %4053 = vmatpush1.msra.mxu0 0.0
        %4054 = vmatprep.subr.mxu0 0.0
        %4055 = vmatpush1.msra.mxu0 0.0
        %4056 = vmatprep.subr.mxu0 0.0
        %4057 = vmatpush1.msra.mxu0 0.0
        %4058 = vmatprep.subr.mxu0 0.0
        %4059 = vmatpush1.msra.mxu0 0.0
        %4060 = vmatprep.subr.mxu0 0.0
        %4061 = vmatpush1.msra.mxu0 0.0
        %4062 = vmatprep.subr.mxu0 0.0
        %4063 = vmatpush1.msra.mxu0 0.0
        %4064 = vmatprep.subr.mxu0 0.0
        %4065 = vmatpush1.msra.mxu0 0.0
        %4066 = vmatprep.subr.mxu0 0.0
        %4067 = vmatpush1.msra.mxu0 0.0
        %4068 = vmatprep.subr.mxu0 0.0
        %4069 = vmatpush1.msra.mxu0 0.0
        %4070 = vmatprep.subr.mxu0 0.0
        %4071 = vmatpush1.msra.mxu0 0.0
        %4072 = vmatprep.subr.mxu0 0.0
        %4073 = vmatpush1.msra.mxu0 0.0
        %4074 = vmatprep.subr.mxu0 0.0
        %4075 = vmatpush1.msra.mxu0 0.0
        %4076 = vmatprep.subr.mxu0 0.0
        %4077 = vmatpush1.msra.mxu0 0.0
        %4078 = vmatprep.subr.mxu0 0.0
        %4079 = vmatpush1.msra.mxu0 0.0
        %4080 = vmatprep.subr.mxu0 0.0
        %4081 = vmatpush1.msra.mxu0 0.0
        %4082 = vmatprep.subr.mxu0 0.0
        %4083 = vmatpush1.msra.mxu0 0.0
        %4084 = vmatprep.subr.mxu0 0.0
        %4085 = vmatpush1.msra.mxu0 0.0
        %4086 = vmatprep.subr.mxu0 0.0
        %4087 = vmatpush1.msra.mxu0 0.0
        %4088 = vmatprep.subr.mxu0 0.0
        %4089 = vmatpush1.msra.mxu0 0.0
        %4090 = vmatprep.subr.mxu0 0.0
        %4091 = vmatpush1.msra.mxu0 0.0
        %4092 = vmatprep.subr.mxu0 0.0
        %4093 = vmatpush1.msra.mxu0 0.0
        %4094 = vmatprep.subr.mxu0 0.0
        %4095 = vmatpush1.msra.mxu0 0.0
        %4096 = vmatprep.subr.mxu0 0.0
        %4097 = vmatpush1.msra.mxu0 0.0
        %4098 = vmatprep.subr.mxu0 0.0
        %4099 = vmatpush1.msra.mxu0 0.0
        %4100 = vmatprep.subr.mxu0 0.0
        %4101 = vmatpush1.msra.mxu0 0.0
        %4102 = vmatprep.subr.mxu0 0.0
        %4103 = vmatpush1.msra.mxu0 0.0
        %4104 = vmatprep.subr.mxu0 0.0
        %4105 = vmatpush1.msra.mxu0 0.0
        %4106 = vmatprep.subr.mxu0 0.0
        %4107 = vmatpush1.msra.mxu0 0.0
        %4108 = vmatprep.subr.mxu0 0.0
        %4109 = vmatpush1.msra.mxu0 0.0
        %4110 = vmatprep.mubr.f32.mxu0 0.0
        %4111 = vmatmul.mubr.f32.gmra.mrb[0].mxu0 %v4042
        %v4112 = vpop.f32.mrb[0].mxu0
        %v4113 = vadd.f32 0.0, %v4112
        %v4114 = vpop.f32.mrb[0].mxu0
        %4115 = vdwg.mxu0
        %4117 = vrot.lane.b32.xlu0 %v4113, 8
        %v4118 = vpop.permute.xlu0 %4117
        %4120 = vst.msk [vmem:[#allocation2] sm:$0xf] %vm3019, %v4118
        %4121 = vrot.lane.b32.xlu0 %v3779, 112
        %v4122 = vpop.permute.xlu0 %4121
        %4123 = vrot.lane.b32.xlu0 %v3779, 80
        %v4124 = vpop.permute.xlu0 %4123
        %v4125 = vsel %vm2679, %v4122, 0
        %v4127 = vsel %vm2679, %v4124, 0
        %4129 = vmatprep.subr.mxu0 0.0
        %4130 = vmatpush1.xpose.msra.mxu0 %v4127
        %4131 = vmatprep.subr.mxu0 0.0
        %4132 = vmatpush1.xpose.msra.mxu0 0.0
        %4133 = vmatprep.subr.mxu0 0.0
        %4134 = vmatpush1.xpose.msra.mxu0 0.0
        %4135 = vmatprep.subr.mxu0 0.0
        %4136 = vmatpush1.xpose.msra.mxu0 0.0
        %4137 = vmatprep.subr.mxu0 0.0
        %4138 = vmatpush1.xpose.msra.mxu0 0.0
        %4139 = vmatprep.subr.mxu0 0.0
        %4140 = vmatpush1.xpose.msra.mxu0 0.0
        %4141 = vmatprep.subr.mxu0 0.0
        %4142 = vmatpush1.xpose.msra.mxu0 0.0
        %4143 = vmatprep.subr.mxu0 0.0
        %4144 = vmatpush1.xpose.msra.mxu0 0.0
        %4145 = vmatprep.subr.mxu0 0.0
        %4146 = vmatpush1.xpose.msra.mxu0 0.0
        %4147 = vmatprep.subr.mxu0 0.0
        %4148 = vmatpush1.xpose.msra.mxu0 0.0
        %4149 = vmatprep.subr.mxu0 0.0
        %4150 = vmatpush1.xpose.msra.mxu0 0.0
        %4151 = vmatprep.subr.mxu0 0.0
        %4152 = vmatpush1.xpose.msra.mxu0 0.0
        %4153 = vmatprep.subr.mxu0 0.0
        %4154 = vmatpush1.xpose.msra.mxu0 0.0
        %4155 = vmatprep.subr.mxu0 0.0
        %4156 = vmatpush1.xpose.msra.mxu0 0.0
        %4157 = vmatprep.subr.mxu0 0.0
        %4158 = vmatpush1.xpose.msra.mxu0 0.0
        %4159 = vmatprep.subr.mxu0 0.0
        %4160 = vmatpush1.xpose.msra.mxu0 0.0
        %4161 = vmatprep.subr.mxu0 0.0
        %4162 = vmatpush1.xpose.msra.mxu0 0.0
        %4163 = vmatprep.subr.mxu0 0.0
        %4164 = vmatpush1.xpose.msra.mxu0 0.0
        %4165 = vmatprep.subr.mxu0 0.0
        %4166 = vmatpush1.xpose.msra.mxu0 0.0
        %4167 = vmatprep.subr.mxu0 0.0
        %4168 = vmatpush1.xpose.msra.mxu0 0.0
        %4169 = vmatprep.subr.mxu0 0.0
        %4170 = vmatpush1.xpose.msra.mxu0 0.0
        %4171 = vmatprep.subr.mxu0 0.0
        %4172 = vmatpush1.xpose.msra.mxu0 0.0
        %4173 = vmatprep.subr.mxu0 0.0
        %4174 = vmatpush1.xpose.msra.mxu0 0.0
        %4175 = vmatprep.subr.mxu0 0.0
        %4176 = vmatpush1.xpose.msra.mxu0 0.0
        %4177 = vmatprep.subr.mxu0 0.0
        %4178 = vmatpush1.xpose.msra.mxu0 0.0
        %4179 = vmatprep.subr.mxu0 0.0
        %4180 = vmatpush1.xpose.msra.mxu0 0.0
        %4181 = vmatprep.subr.mxu0 0.0
        %4182 = vmatpush1.xpose.msra.mxu0 0.0
        %4183 = vmatprep.subr.mxu0 0.0
        %4184 = vmatpush1.xpose.msra.mxu0 0.0
        %4185 = vmatprep.subr.mxu0 0.0
        %4186 = vmatpush1.xpose.msra.mxu0 0.0
        %4187 = vmatprep.subr.mxu0 0.0
        %4188 = vmatpush1.xpose.msra.mxu0 0.0
        %4189 = vmatprep.subr.mxu0 0.0
        %4190 = vmatpush1.xpose.msra.mxu0 0.0
        %4191 = vmatprep.subr.mxu0 0.0
        %4192 = vmatpush1.xpose.msra.mxu0 0.0
        %4193 = vmatprep.mubr.f32.mxu0 0.0
        %4194 = vmatmul.mubr.f32.gmra.mrb[0].mxu0 %v4125
        %v4195 = vpop.f32.mrb[0].mxu0
        %v4196 = vadd.f32 0.0, %v4195
        %v4197 = vpop.f32.mrb[0].mxu0
        %4198 = vdwg.mxu0
        %v4199 = vmul.f32 %v4196, 0.35355338
        %v4200 = vsel %vm2755, %v4199, -inf
        %4201 = vmax.xlane.f32.xlu0 %v4200
        %v4202 = vpop.xlane.xlu0 %4201
        %v4203 = vsub.f32 %v4199, %v4202
        %v4204 = vmul.f32 %v4203, 1.442695
        %v4205 = vpow.pop %v4204
        %v4206 = vsel %vm2755, %v4205, 0.0
        %4207 = vadd.xlane.f32.xlu0 %v4206
        %v4208 = vpop.xlane.xlu0 %4207
        %v4209 = vrcp.pop %v4208
        %v4210 = vmul.f32 %v4205, %v4209
        %4211 = vrot.lane.b32.xlu0 %v3779, 48
        %v4212 = vpop.permute.xlu0 %4211
        %v4214 = vsel %vm2769, %v4210, 0
        %v4216 = vsel %vm2773, %v4212, 0
        %4218 = vmatprep.subr.mxu0 0.0
        %4219 = vmatpush1.msra.mxu0 %v4216
        %4220 = vmatprep.subr.mxu0 0.0
        %4221 = vmatpush1.msra.mxu0 0.0
        %4222 = vmatprep.subr.mxu0 0.0
        %4223 = vmatpush1.msra.mxu0 0.0
        %4224 = vmatprep.subr.mxu0 0.0
        %4225 = vmatpush1.msra.mxu0 0.0
        %4226 = vmatprep.subr.mxu0 0.0
        %4227 = vmatpush1.msra.mxu0 0.0
        %4228 = vmatprep.subr.mxu0 0.0
        %4229 = vmatpush1.msra.mxu0 0.0
        %4230 = vmatprep.subr.mxu0 0.0
        %4231 = vmatpush1.msra.mxu0 0.0
        %4232 = vmatprep.subr.mxu0 0.0
        %4233 = vmatpush1.msra.mxu0 0.0
        %4234 = vmatprep.subr.mxu0 0.0
        %4235 = vmatpush1.msra.mxu0 0.0
        %4236 = vmatprep.subr.mxu0 0.0
        %4237 = vmatpush1.msra.mxu0 0.0
        %4238 = vmatprep.subr.mxu0 0.0
        %4239 = vmatpush1.msra.mxu0 0.0
        %4240 = vmatprep.subr.mxu0 0.0
        %4241 = vmatpush1.msra.mxu0 0.0
        %4242 = vmatprep.subr.mxu0 0.0
        %4243 = vmatpush1.msra.mxu0 0.0
        %4244 = vmatprep.subr.mxu0 0.0
        %4245 = vmatpush1.msra.mxu0 0.0
        %4246 = vmatprep.subr.mxu0 0.0
        %4247 = vmatpush1.msra.mxu0 0.0
        %4248 = vmatprep.subr.mxu0 0.0
        %4249 = vmatpush1.msra.mxu0 0.0
        %4250 = vmatprep.subr.mxu0 0.0
        %4251 = vmatpush1.msra.mxu0 0.0
        %4252 = vmatprep.subr.mxu0 0.0
        %4253 = vmatpush1.msra.mxu0 0.0
        %4254 = vmatprep.subr.mxu0 0.0
        %4255 = vmatpush1.msra.mxu0 0.0
        %4256 = vmatprep.subr.mxu0 0.0
        %4257 = vmatpush1.msra.mxu0 0.0
        %4258 = vmatprep.subr.mxu0 0.0
        %4259 = vmatpush1.msra.mxu0 0.0
        %4260 = vmatprep.subr.mxu0 0.0
        %4261 = vmatpush1.msra.mxu0 0.0
        %4262 = vmatprep.subr.mxu0 0.0
        %4263 = vmatpush1.msra.mxu0 0.0
        %4264 = vmatprep.subr.mxu0 0.0
        %4265 = vmatpush1.msra.mxu0 0.0
        %4266 = vmatprep.subr.mxu0 0.0
        %4267 = vmatpush1.msra.mxu0 0.0
        %4268 = vmatprep.subr.mxu0 0.0
        %4269 = vmatpush1.msra.mxu0 0.0
        %4270 = vmatprep.subr.mxu0 0.0
        %4271 = vmatpush1.msra.mxu0 0.0
        %4272 = vmatprep.subr.mxu0 0.0
        %4273 = vmatpush1.msra.mxu0 0.0
        %4274 = vmatprep.subr.mxu0 0.0
        %4275 = vmatpush1.msra.mxu0 0.0
        %4276 = vmatprep.subr.mxu0 0.0
        %4277 = vmatpush1.msra.mxu0 0.0
        %4278 = vmatprep.subr.mxu0 0.0
        %4279 = vmatpush1.msra.mxu0 0.0
        %4280 = vmatprep.subr.mxu0 0.0
        %4281 = vmatpush1.msra.mxu0 0.0
        %4282 = vmatprep.mubr.f32.mxu0 0.0
        %4283 = vmatmul.mubr.f32.gmra.mrb[0].mxu0 %v4214
        %v4284 = vpop.f32.mrb[0].mxu0
        %v4285 = vadd.f32 0.0, %v4284
        %v4286 = vpop.f32.mrb[0].mxu0
        %4287 = vdwg.mxu0
        %4289 = vrot.lane.b32.xlu0 %v4285, 16
        %v4290 = vpop.permute.xlu0 %4289
        %4292 = vst.msk [vmem:[#allocation2] sm:$0xf] %vm3192, %v4290
        %4293 = vrot.lane.b32.xlu0 %v3779, 104
        %v4294 = vpop.permute.xlu0 %4293
        %4295 = vrot.lane.b32.xlu0 %v3779, 72
        %v4296 = vpop.permute.xlu0 %4295
        %v4297 = vsel %vm2679, %v4294, 0
        %v4299 = vsel %vm2679, %v4296, 0
        %4301 = vmatprep.subr.mxu0 0.0
        %4302 = vmatpush1.xpose.msra.mxu0 %v4299
        %4303 = vmatprep.subr.mxu0 0.0
        %4304 = vmatpush1.xpose.msra.mxu0 0.0
        %4305 = vmatprep.subr.mxu0 0.0
        %4306 = vmatpush1.xpose.msra.mxu0 0.0
        %4307 = vmatprep.subr.mxu0 0.0
        %4308 = vmatpush1.xpose.msra.mxu0 0.0
        %4309 = vmatprep.subr.mxu0 0.0
        %4310 = vmatpush1.xpose.msra.mxu0 0.0
        %4311 = vmatprep.subr.mxu0 0.0
        %4312 = vmatpush1.xpose.msra.mxu0 0.0
        %4313 = vmatprep.subr.mxu0 0.0
        %4314 = vmatpush1.xpose.msra.mxu0 0.0
        %4315 = vmatprep.subr.mxu0 0.0
        %4316 = vmatpush1.xpose.msra.mxu0 0.0
        %4317 = vmatprep.subr.mxu0 0.0
        %4318 = vmatpush1.xpose.msra.mxu0 0.0
        %4319 = vmatprep.subr.mxu0 0.0
        %4320 = vmatpush1.xpose.msra.mxu0 0.0
        %4321 = vmatprep.subr.mxu0 0.0
        %4322 = vmatpush1.xpose.msra.mxu0 0.0
        %4323 = vmatprep.subr.mxu0 0.0
        %4324 = vmatpush1.xpose.msra.mxu0 0.0
        %4325 = vmatprep.subr.mxu0 0.0
        %4326 = vmatpush1.xpose.msra.mxu0 0.0
        %4327 = vmatprep.subr.mxu0 0.0
        %4328 = vmatpush1.xpose.msra.mxu0 0.0
        %4329 = vmatprep.subr.mxu0 0.0
        %4330 = vmatpush1.xpose.msra.mxu0 0.0
        %4331 = vmatprep.subr.mxu0 0.0
        %4332 = vmatpush1.xpose.msra.mxu0 0.0
        %4333 = vmatprep.subr.mxu0 0.0
        %4334 = vmatpush1.xpose.msra.mxu0 0.0
        %4335 = vmatprep.subr.mxu0 0.0
        %4336 = vmatpush1.xpose.msra.mxu0 0.0
        %4337 = vmatprep.subr.mxu0 0.0
        %4338 = vmatpush1.xpose.msra.mxu0 0.0
        %4339 = vmatprep.subr.mxu0 0.0
        %4340 = vmatpush1.xpose.msra.mxu0 0.0
        %4341 = vmatprep.subr.mxu0 0.0
        %4342 = vmatpush1.xpose.msra.mxu0 0.0
        %4343 = vmatprep.subr.mxu0 0.0
        %4344 = vmatpush1.xpose.msra.mxu0 0.0
        %4345 = vmatprep.subr.mxu0 0.0
        %4346 = vmatpush1.xpose.msra.mxu0 0.0
        %4347 = vmatprep.subr.mxu0 0.0
        %4348 = vmatpush1.xpose.msra.mxu0 0.0
        %4349 = vmatprep.subr.mxu0 0.0
        %4350 = vmatpush1.xpose.msra.mxu0 0.0
        %4351 = vmatprep.subr.mxu0 0.0
        %4352 = vmatpush1.xpose.msra.mxu0 0.0
        %4353 = vmatprep.subr.mxu0 0.0
        %4354 = vmatpush1.xpose.msra.mxu0 0.0
        %4355 = vmatprep.subr.mxu0 0.0
        %4356 = vmatpush1.xpose.msra.mxu0 0.0
        %4357 = vmatprep.subr.mxu0 0.0
        %4358 = vmatpush1.xpose.msra.mxu0 0.0
        %4359 = vmatprep.subr.mxu0 0.0
        %4360 = vmatpush1.xpose.msra.mxu0 0.0
        %4361 = vmatprep.subr.mxu0 0.0
        %4362 = vmatpush1.xpose.msra.mxu0 0.0
        %4363 = vmatprep.subr.mxu0 0.0
        %4364 = vmatpush1.xpose.msra.mxu0 0.0
        %4365 = vmatprep.mubr.f32.mxu0 0.0
        %4366 = vmatmul.mubr.f32.gmra.mrb[0].mxu0 %v4297
        %v4367 = vpop.f32.mrb[0].mxu0
        %v4368 = vadd.f32 0.0, %v4367
        %v4369 = vpop.f32.mrb[0].mxu0
        %4370 = vdwg.mxu0
        %v4371 = vmul.f32 %v4368, 0.35355338
        %v4372 = vsel %vm2755, %v4371, -inf
        %4373 = vmax.xlane.f32.xlu0 %v4372
        %v4374 = vpop.xlane.xlu0 %4373
        %v4375 = vsub.f32 %v4371, %v4374
        %v4376 = vmul.f32 %v4375, 1.442695
        %v4377 = vpow.pop %v4376
        %v4378 = vsel %vm2755, %v4377, 0.0
        %4379 = vadd.xlane.f32.xlu0 %v4378
        %v4380 = vpop.xlane.xlu0 %4379
        %v4381 = vrcp.pop %v4380
        %v4382 = vmul.f32 %v4377, %v4381
        %4383 = vrot.lane.b32.xlu0 %v3779, 40
        %v4384 = vpop.permute.xlu0 %4383
        %v4386 = vsel %vm2769, %v4382, 0
        %v4388 = vsel %vm2773, %v4384, 0
        %4390 = vmatprep.subr.mxu0 0.0
        %4391 = vmatpush1.msra.mxu0 %v4388
        %4392 = vmatprep.subr.mxu0 0.0
        %4393 = vmatpush1.msra.mxu0 0.0
        %4394 = vmatprep.subr.mxu0 0.0
        %4395 = vmatpush1.msra.mxu0 0.0
        %4396 = vmatprep.subr.mxu0 0.0
        %4397 = vmatpush1.msra.mxu0 0.0
        %4398 = vmatprep.subr.mxu0 0.0
        %4399 = vmatpush1.msra.mxu0 0.0
        %4400 = vmatprep.subr.mxu0 0.0
        %4401 = vmatpush1.msra.mxu0 0.0
        %4402 = vmatprep.subr.mxu0 0.0
        %4403 = vmatpush1.msra.mxu0 0.0
        %4404 = vmatprep.subr.mxu0 0.0
        %4405 = vmatpush1.msra.mxu0 0.0
        %4406 = vmatprep.subr.mxu0 0.0
        %4407 = vmatpush1.msra.mxu0 0.0
        %4408 = vmatprep.subr.mxu0 0.0
        %4409 = vmatpush1.msra.mxu0 0.0
        %4410 = vmatprep.subr.mxu0 0.0
        %4411 = vmatpush1.msra.mxu0 0.0
        %4412 = vmatprep.subr.mxu0 0.0
        %4413 = vmatpush1.msra.mxu0 0.0
        %4414 = vmatprep.subr.mxu0 0.0
        %4415 = vmatpush1.msra.mxu0 0.0
        %4416 = vmatprep.subr.mxu0 0.0
        %4417 = vmatpush1.msra.mxu0 0.0
        %4418 = vmatprep.subr.mxu0 0.0
        %4419 = vmatpush1.msra.mxu0 0.0
        %4420 = vmatprep.subr.mxu0 0.0
        %4421 = vmatpush1.msra.mxu0 0.0
        %4422 = vmatprep.subr.mxu0 0.0
        %4423 = vmatpush1.msra.mxu0 0.0
        %4424 = vmatprep.subr.mxu0 0.0
        %4425 = vmatpush1.msra.mxu0 0.0
        %4426 = vmatprep.subr.mxu0 0.0
        %4427 = vmatpush1.msra.mxu0 0.0
        %4428 = vmatprep.subr.mxu0 0.0
        %4429 = vmatpush1.msra.mxu0 0.0
        %4430 = vmatprep.subr.mxu0 0.0
        %4431 = vmatpush1.msra.mxu0 0.0
        %4432 = vmatprep.subr.mxu0 0.0
        %4433 = vmatpush1.msra.mxu0 0.0
        %4434 = vmatprep.subr.mxu0 0.0
        %4435 = vmatpush1.msra.mxu0 0.0
        %4436 = vmatprep.subr.mxu0 0.0
        %4437 = vmatpush1.msra.mxu0 0.0
        %4438 = vmatprep.subr.mxu0 0.0
        %4439 = vmatpush1.msra.mxu0 0.0
        %4440 = vmatprep.subr.mxu0 0.0
        %4441 = vmatpush1.msra.mxu0 0.0
        %4442 = vmatprep.subr.mxu0 0.0
        %4443 = vmatpush1.msra.mxu0 0.0
        %4444 = vmatprep.subr.mxu0 0.0
        %4445 = vmatpush1.msra.mxu0 0.0
        %4446 = vmatprep.subr.mxu0 0.0
        %4447 = vmatpush1.msra.mxu0 0.0
        %4448 = vmatprep.subr.mxu0 0.0
        %4449 = vmatpush1.msra.mxu0 0.0
        %4450 = vmatprep.subr.mxu0 0.0
        %4451 = vmatpush1.msra.mxu0 0.0
        %4452 = vmatprep.subr.mxu0 0.0
        %4453 = vmatpush1.msra.mxu0 0.0
        %4454 = vmatprep.mubr.f32.mxu0 0.0
        %4455 = vmatmul.mubr.f32.gmra.mrb[0].mxu0 %v4386
        %v4456 = vpop.f32.mrb[0].mxu0
        %v4457 = vadd.f32 0.0, %v4456
        %v4458 = vpop.f32.mrb[0].mxu0
        %4459 = vdwg.mxu0
        %4461 = vrot.lane.b32.xlu0 %v4457, 24
        %v4462 = vpop.permute.xlu0 %4461
        %4464 = vst.msk [vmem:[#allocation2] sm:$0xf] %vm3365, %v4462
        %v4465 = vld [vmem:[#allocation2] sm:$0xf]
        %v4466 = vld [vmem:[%s45] sm:$0xff]
        %v4467 = vld [vmem:[%s45 + $0x8] sm:$0xff]
        %v4468 = vld [vmem:[%s45 + $0x10] sm:$0xff]
        %v4469 = vld [vmem:[%s45 + $0x18] sm:$0xff]
        %v4470 = vld [vmem:[%s47] sm:$0x1]
        %v4472 = vlaneseq
        %v4473 = vshrl.u32 %v4472, 7
        %v4474 = vsub.s32 0, %v4473
        %v4475 = vrot.slane %v4470, %v4474
        %v4478 = vsel %vm2602, %v4465, 0
        %4480 = vmatprep.subr.mxu0 0.0
        %4481 = vmatpush1.msra.mxu0 %v4466
        %4482 = vmatprep.subr.mxu0 0.0
        %4483 = vmatpush1.msra.mxu0 %v4467
        %4484 = vmatprep.subr.mxu0 0.0
        %4485 = vmatpush1.msra.mxu0 %v4468
        %4486 = vmatprep.subr.mxu0 0.0
        %4487 = vmatpush1.msra.mxu0 %v4469
        %4488 = vmatprep.subr.mxu0 0.0
        %4489 = vmatpush1.msra.mxu0 0.0
        %4490 = vmatprep.subr.mxu0 0.0
        %4491 = vmatpush1.msra.mxu0 0.0
        %4492 = vmatprep.subr.mxu0 0.0
        %4493 = vmatpush1.msra.mxu0 0.0
        %4494 = vmatprep.subr.mxu0 0.0
        %4495 = vmatpush1.msra.mxu0 0.0
        %4496 = vmatprep.subr.mxu0 0.0
        %4497 = vmatpush1.msra.mxu0 0.0
        %4498 = vmatprep.subr.mxu0 0.0
        %4499 = vmatpush1.msra.mxu0 0.0
        %4500 = vmatprep.subr.mxu0 0.0
        %4501 = vmatpush1.msra.mxu0 0.0
        %4502 = vmatprep.subr.mxu0 0.0
        %4503 = vmatpush1.msra.mxu0 0.0
        %4504 = vmatprep.subr.mxu0 0.0
        %4505 = vmatpush1.msra.mxu0 0.0
        %4506 = vmatprep.subr.mxu0 0.0
        %4507 = vmatpush1.msra.mxu0 0.0
        %4508 = vmatprep.subr.mxu0 0.0
        %4509 = vmatpush1.msra.mxu0 0.0
        %4510 = vmatprep.subr.mxu0 0.0
        %4511 = vmatpush1.msra.mxu0 0.0
        %4512 = vmatprep.subr.mxu0 0.0
        %4513 = vmatpush1.msra.mxu0 0.0
        %4514 = vmatprep.subr.mxu0 0.0
        %4515 = vmatpush1.msra.mxu0 0.0
        %4516 = vmatprep.subr.mxu0 0.0
        %4517 = vmatpush1.msra.mxu0 0.0
        %4518 = vmatprep.subr.mxu0 0.0
        %4519 = vmatpush1.msra.mxu0 0.0
        %4520 = vmatprep.subr.mxu0 0.0
        %4521 = vmatpush1.msra.mxu0 0.0
        %4522 = vmatprep.subr.mxu0 0.0
        %4523 = vmatpush1.msra.mxu0 0.0
        %4524 = vmatprep.subr.mxu0 0.0
        %4525 = vmatpush1.msra.mxu0 0.0
        %4526 = vmatprep.subr.mxu0 0.0
        %4527 = vmatpush1.msra.mxu0 0.0
        %4528 = vmatprep.subr.mxu0 0.0
        %4529 = vmatpush1.msra.mxu0 0.0
        %4530 = vmatprep.subr.mxu0 0.0
        %4531 = vmatpush1.msra.mxu0 0.0
        %4532 = vmatprep.subr.mxu0 0.0
        %4533 = vmatpush1.msra.mxu0 0.0
        %4534 = vmatprep.subr.mxu0 0.0
        %4535 = vmatpush1.msra.mxu0 0.0
        %4536 = vmatprep.subr.mxu0 0.0
        %4537 = vmatpush1.msra.mxu0 0.0
        %4538 = vmatprep.subr.mxu0 0.0
        %4539 = vmatpush1.msra.mxu0 0.0
        %4540 = vmatprep.subr.mxu0 0.0
        %4541 = vmatpush1.msra.mxu0 0.0
        %4542 = vmatprep.subr.mxu0 0.0
        %4543 = vmatpush1.msra.mxu0 0.0
        %4544 = vmatprep.mubr.f32.mxu0 0.0
        %4545 = vmatmul.mubr.f32.gmra.mrb[0].mxu0 %v4478
        %v4546 = vpop.f32.mrb[0].mxu0
        %v4547 = vadd.f32 %v4475, %v4546
        %v4548 = vpop.f32.mrb[0].mxu0
        %4549 = vdwg.mxu0
        %v4550 = vadd.f32 %v3668, %v4547
        %v4551 = vld [vmem:[%s49] sm:$0x1]
        %v4552 = vld [vmem:[%s51] sm:$0x1]
        %v4553 = vsel %vm2562, %v4550, 0.0
        %4554 = vadd.xlane.f32.xlu0 %v4553
        %v4555 = vpop.xlane.xlu0 %4554
        %v4556 = vmul.f32 %v4555, %v2566
        %v4557 = vsub.f32 %v4550, %v4556
        %v4558 = vmul.f32 %v4557, %v4557
        %v4559 = vsel %vm2562, %v4558, 0.0
        %4560 = vadd.xlane.f32.xlu0 %v4559
        %v4561 = vpop.xlane.xlu0 %4560
        %v4562 = vmul.f32 %v4561, %v2566
        %v4563 = vadd.f32 %v4562, 1e-05
        %v4564 = vrsqrt.pop %v4563
        %v4565 = vmul.f32 %v4557, %v4564
        %v4567 = vlaneseq
        %v4568 = vshrl.u32 %v4567, 7
        %v4569 = vsub.s32 0, %v4568
        %v4570 = vrot.slane %v4551, %v4569
        %v4572 = vmul.f32 %v4565, %v4570
        %v4574 = vlaneseq
        %v4575 = vshrl.u32 %v4574, 7
        %v4576 = vsub.s32 0, %v4575
        %v4577 = vrot.slane %v4552, %v4576
        %v4579 = vadd.f32 %v4572, %v4577
        %v4580 = vld [vmem:[%s53] sm:$0xff]
        %v4581 = vld [vmem:[%s53 + $0x8] sm:$0xff]
        %v4582 = vld [vmem:[%s53 + $0x10] sm:$0xff]
        %v4583 = vld [vmem:[%s53 + $0x18] sm:$0xff]
        %v4584 = vld [vmem:[%s55] sm:$0x1]
        %v4586 = vlaneseq
        %v4587 = vshrl.u32 %v4586, 7
        %v4588 = vsub.s32 0, %v4587
        %v4589 = vrot.slane %v4584, %v4588
        %v4592 = vsel %vm2602, %v4579, 0
        %4594 = vmatprep.subr.mxu0 0.0
        %4595 = vmatpush1.msra.mxu0 %v4580
        %4596 = vmatprep.subr.mxu0 0.0
        %4597 = vmatpush1.msra.mxu0 %v4581
        %4598 = vmatprep.subr.mxu0 0.0
        %4599 = vmatpush1.msra.mxu0 %v4582
        %4600 = vmatprep.subr.mxu0 0.0
        %4601 = vmatpush1.msra.mxu0 %v4583
        %4602 = vmatprep.subr.mxu0 0.0
        %4603 = vmatpush1.msra.mxu0 0.0
        %4604 = vmatprep.subr.mxu0 0.0
        %4605 = vmatpush1.msra.mxu0 0.0
        %4606 = vmatprep.subr.mxu0 0.0
        %4607 = vmatpush1.msra.mxu0 0.0
        %4608 = vmatprep.subr.mxu0 0.0
        %4609 = vmatpush1.msra.mxu0 0.0
        %4610 = vmatprep.subr.mxu0 0.0
        %4611 = vmatpush1.msra.mxu0 0.0
        %4612 = vmatprep.subr.mxu0 0.0
        %4613 = vmatpush1.msra.mxu0 0.0
        %4614 = vmatprep.subr.mxu0 0.0
        %4615 = vmatpush1.msra.mxu0 0.0
        %4616 = vmatprep.subr.mxu0 0.0
        %4617 = vmatpush1.msra.mxu0 0.0
        %4618 = vmatprep.subr.mxu0 0.0
        %4619 = vmatpush1.msra.mxu0 0.0
        %4620 = vmatprep.subr.mxu0 0.0
        %4621 = vmatpush1.msra.mxu0 0.0
        %4622 = vmatprep.subr.mxu0 0.0
        %4623 = vmatpush1.msra.mxu0 0.0
        %4624 = vmatprep.subr.mxu0 0.0
        %4625 = vmatpush1.msra.mxu0 0.0
        %4626 = vmatprep.subr.mxu0 0.0
        %4627 = vmatpush1.msra.mxu0 0.0
        %4628 = vmatprep.subr.mxu0 0.0
        %4629 = vmatpush1.msra.mxu0 0.0
        %4630 = vmatprep.subr.mxu0 0.0
        %4631 = vmatpush1.msra.mxu0 0.0
        %4632 = vmatprep.subr.mxu0 0.0
        %4633 = vmatpush1.msra.mxu0 0.0
        %4634 = vmatprep.subr.mxu0 0.0
        %4635 = vmatpush1.msra.mxu0 0.0
        %4636 = vmatprep.subr.mxu0 0.0
        %4637 = vmatpush1.msra.mxu0 0.0
        %4638 = vmatprep.subr.mxu0 0.0
        %4639 = vmatpush1.msra.mxu0 0.0
        %4640 = vmatprep.subr.mxu0 0.0
        %4641 = vmatpush1.msra.mxu0 0.0
        %4642 = vmatprep.subr.mxu0 0.0
        %4643 = vmatpush1.msra.mxu0 0.0
        %4644 = vmatprep.subr.mxu0 0.0
        %4645 = vmatpush1.msra.mxu0 0.0
        %4646 = vmatprep.subr.mxu0 0.0
        %4647 = vmatpush1.msra.mxu0 0.0
        %4648 = vmatprep.subr.mxu0 0.0
        %4649 = vmatpush1.msra.mxu0 0.0
        %4650 = vmatprep.subr.mxu0 0.0
        %4651 = vmatpush1.msra.mxu0 0.0
        %4652 = vmatprep.subr.mxu0 0.0
        %4653 = vmatpush1.msra.mxu0 0.0
        %4654 = vmatprep.subr.mxu0 0.0
        %4655 = vmatpush1.msra.mxu0 0.0
        %4656 = vmatprep.subr.mxu0 0.0
        %4657 = vmatpush1.msra.mxu0 0.0
        %4658 = vmatprep.mubr.f32.mxu0 0.0
        %4659 = vmatmul.mubr.f32.gmra.mrb[0].mxu0 %v4592
        %v4660 = vpop.f32.mrb[0].mxu0
        %v4661 = vadd.f32 %v4589, %v4660
        %v4662 = vpop.f32.mrb[0].mxu0
        %4663 = vdwg.mxu0
        %v4664 = vmul.f32 %v4661, 0.5
        %v4665 = vmul.f32 %v4661, 0.044715
        %v4666 = vmul.f32 %v4665, %v4661
        %v4667 = vmul.f32 %v4666, %v4661
        %v4668 = vadd.f32 %v4661, %v4667
        %v4669 = vmul.f32 %v4668, 0.7978846
        %v4670 = vtanh.pop %v4669
        %v4671 = vadd.f32 %v4670, 1.0
        %v4672 = vmul.f32 %v4664, %v4671
        %v4673 = vld [vmem:[%s57] sm:$0xff]
        %v4674 = vld [vmem:[%s57 + $0x8] sm:$0xff]
        %v4675 = vld [vmem:[%s57 + $0x10] sm:$0xff]
        %v4676 = vld [vmem:[%s57 + $0x18] sm:$0xff]
        %v4677 = vld [vmem:[%s57 + $0x20] sm:$0xff]
        %v4678 = vld [vmem:[%s57 + $0x28] sm:$0xff]
        %v4679 = vld [vmem:[%s57 + $0x30] sm:$0xff]
        %v4680 = vld [vmem:[%s57 + $0x38] sm:$0xff]
        %v4681 = vld [vmem:[%s57 + $0x40] sm:$0xff]
        %v4682 = vld [vmem:[%s57 + $0x48] sm:$0xff]
        %v4683 = vld [vmem:[%s57 + $0x50] sm:$0xff]
        %v4684 = vld [vmem:[%s57 + $0x58] sm:$0xff]
        %v4685 = vld [vmem:[%s57 + $0x60] sm:$0xff]
        %v4686 = vld [vmem:[%s57 + $0x68] sm:$0xff]
        %v4687 = vld [vmem:[%s57 + $0x70] sm:$0xff]
        %v4688 = vld [vmem:[%s57 + $0x78] sm:$0xff]
        %v4689 = vld [vmem:[%s59] sm:$0x1]
        %v4691 = vlaneseq
        %v4692 = vshrl.u32 %v4691, 7
        %v4693 = vsub.s32 0, %v4692
        %v4694 = vrot.slane %v4689, %v4693
        %4696 = vmatprep.subr.mxu0 0.0
        %4697 = vmatpush1.msra.mxu0 %v4673
        %4698 = vmatprep.subr.mxu0 0.0
        %4699 = vmatpush1.msra.mxu0 %v4674
        %4700 = vmatprep.subr.mxu0 0.0
        %4701 = vmatpush1.msra.mxu0 %v4675
        %4702 = vmatprep.subr.mxu0 0.0
        %4703 = vmatpush1.msra.mxu0 %v4676
        %4704 = vmatprep.subr.mxu0 0.0
        %4705 = vmatpush1.msra.mxu0 %v4677
        %4706 = vmatprep.subr.mxu0 0.0
        %4707 = vmatpush1.msra.mxu0 %v4678
        %4708 = vmatprep.subr.mxu0 0.0
        %4709 = vmatpush1.msra.mxu0 %v4679
        %4710 = vmatprep.subr.mxu0 0.0
        %4711 = vmatpush1.msra.mxu0 %v4680
        %4712 = vmatprep.subr.mxu0 0.0
        %4713 = vmatpush1.msra.mxu0 %v4681
        %4714 = vmatprep.subr.mxu0 0.0
        %4715 = vmatpush1.msra.mxu0 %v4682
        %4716 = vmatprep.subr.mxu0 0.0
        %4717 = vmatpush1.msra.mxu0 %v4683
        %4718 = vmatprep.subr.mxu0 0.0
        %4719 = vmatpush1.msra.mxu0 %v4684
        %4720 = vmatprep.subr.mxu0 0.0
        %4721 = vmatpush1.msra.mxu0 %v4685
        %4722 = vmatprep.subr.mxu0 0.0
        %4723 = vmatpush1.msra.mxu0 %v4686
        %4724 = vmatprep.subr.mxu0 0.0
        %4725 = vmatpush1.msra.mxu0 %v4687
        %4726 = vmatprep.subr.mxu0 0.0
        %4727 = vmatpush1.msra.mxu0 %v4688
        %4728 = vmatprep.subr.mxu0 0.0
        %4729 = vmatpush1.msra.mxu0 0.0
        %4730 = vmatprep.subr.mxu0 0.0
        %4731 = vmatpush1.msra.mxu0 0.0
        %4732 = vmatprep.subr.mxu0 0.0
        %4733 = vmatpush1.msra.mxu0 0.0
        %4734 = vmatprep.subr.mxu0 0.0
        %4735 = vmatpush1.msra.mxu0 0.0
        %4736 = vmatprep.subr.mxu0 0.0
        %4737 = vmatpush1.msra.mxu0 0.0
        %4738 = vmatprep.subr.mxu0 0.0
        %4739 = vmatpush1.msra.mxu0 0.0
        %4740 = vmatprep.subr.mxu0 0.0
        %4741 = vmatpush1.msra.mxu0 0.0
        %4742 = vmatprep.subr.mxu0 0.0
        %4743 = vmatpush1.msra.mxu0 0.0
        %4744 = vmatprep.subr.mxu0 0.0
        %4745 = vmatpush1.msra.mxu0 0.0
        %4746 = vmatprep.subr.mxu0 0.0
        %4747 = vmatpush1.msra.mxu0 0.0
        %4748 = vmatprep.subr.mxu0 0.0
        %4749 = vmatpush1.msra.mxu0 0.0
        %4750 = vmatprep.subr.mxu0 0.0
        %4751 = vmatpush1.msra.mxu0 0.0
        %4752 = vmatprep.subr.mxu0 0.0
        %4753 = vmatpush1.msra.mxu0 0.0
        %4754 = vmatprep.subr.mxu0 0.0
        %4755 = vmatpush1.msra.mxu0 0.0
        %4756 = vmatprep.subr.mxu0 0.0
        %4757 = vmatpush1.msra.mxu0 0.0
        %4758 = vmatprep.subr.mxu0 0.0
        %4759 = vmatpush1.msra.mxu0 0.0
        %4760 = vmatprep.mubr.f32.mxu0 0.0
        %4761 = vmatmul.mubr.f32.gmra.mrb[0].mxu0 %v4672
        %v4762 = vpop.f32.mrb[0].mxu0
        %v4763 = vadd.f32 %v4694, %v4762
        %v4764 = vpop.f32.mrb[0].mxu0
        %4765 = vdwg.mxu0
        %v4766 = vadd.f32 %v4550, %v4763
        %v4767 = vld [vmem:[#allocation4] sm:$0x1]
        %v4768 = vld [vmem:[#allocation6] sm:$0x1]
        %v4769 = vsel %vm2562, %v4766, 0.0
        %4770 = vadd.xlane.f32.xlu0 %v4769
        %v4771 = vpop.xlane.xlu0 %4770
        %v4772 = vmul.f32 %v4771, %v2566
        %v4773 = vsub.f32 %v4766, %v4772
        %v4774 = vmul.f32 %v4773, %v4773
        %v4775 = vsel %vm2562, %v4774, 0.0
        %4776 = vadd.xlane.f32.xlu0 %v4775
        %v4777 = vpop.xlane.xlu0 %4776
        %v4778 = vmul.f32 %v4777, %v2566
        %v4779 = vadd.f32 %v4778, 1e-05
        %v4780 = vrsqrt.pop %v4779
        %v4781 = vmul.f32 %v4773, %v4780
        %v4783 = vlaneseq
        %v4784 = vshrl.u32 %v4783, 7
        %v4785 = vsub.s32 0, %v4784
        %v4786 = vrot.slane %v4767, %v4785
        %v4788 = vmul.f32 %v4781, %v4786
        %v4790 = vlaneseq
        %v4791 = vshrl.u32 %v4790, 7
        %v4792 = vsub.s32 0, %v4791
        %v4793 = vrot.slane %v4768, %v4792
        %v4795 = vadd.f32 %v4788, %v4793
        %v4796 = vld [vmem:[%s65] sm:$0xff]
        %v4797 = vld [vmem:[%s65 + $0x8] sm:$0xff]
        %v4798 = vld [vmem:[%s65 + $0x10] sm:$0xff]
        %v4799 = vld [vmem:[%s65 + $0x18] sm:$0xff]
        %v4800 = vld [vmem:[#allocation8] sm:$0x1]
        %v4802 = vlaneseq
        %v4803 = vshrl.u32 %v4802, 7
        %v4804 = vsub.s32 0, %v4803
        %v4805 = vrot.slane %v4800, %v4804
        %v4808 = vsel %vm2602, %v4795, 0
        %4810 = vmatprep.subr.mxu0 0.0
        %4811 = vmatpush1.msra.mxu0 %v4796
        %4812 = vmatprep.subr.mxu0 0.0
        %4813 = vmatpush1.msra.mxu0 %v4797
        %4814 = vmatprep.subr.mxu0 0.0
        %4815 = vmatpush1.msra.mxu0 %v4798
        %4816 = vmatprep.subr.mxu0 0.0
        %4817 = vmatpush1.msra.mxu0 %v4799
        %4818 = vmatprep.subr.mxu0 0.0
        %4819 = vmatpush1.msra.mxu0 0.0
        %4820 = vmatprep.subr.mxu0 0.0
        %4821 = vmatpush1.msra.mxu0 0.0
        %4822 = vmatprep.subr.mxu0 0.0
        %4823 = vmatpush1.msra.mxu0 0.0
        %4824 = vmatprep.subr.mxu0 0.0
        %4825 = vmatpush1.msra.mxu0 0.0
        %4826 = vmatprep.subr.mxu0 0.0
        %4827 = vmatpush1.msra.mxu0 0.0
        %4828 = vmatprep.subr.mxu0 0.0
        %4829 = vmatpush1.msra.mxu0 0.0
        %4830 = vmatprep.subr.mxu0 0.0
        %4831 = vmatpush1.msra.mxu0 0.0
        %4832 = vmatprep.subr.mxu0 0.0
        %4833 = vmatpush1.msra.mxu0 0.0
        %4834 = vmatprep.subr.mxu0 0.0
        %4835 = vmatpush1.msra.mxu0 0.0
        %4836 = vmatprep.subr.mxu0 0.0
        %4837 = vmatpush1.msra.mxu0 0.0
        %4838 = vmatprep.subr.mxu0 0.0
        %4839 = vmatpush1.msra.mxu0 0.0
        %4840 = vmatprep.subr.mxu0 0.0
        %4841 = vmatpush1.msra.mxu0 0.0
        %4842 = vmatprep.subr.mxu0 0.0
        %4843 = vmatpush1.msra.mxu0 0.0
        %4844 = vmatprep.subr.mxu0 0.0
        %4845 = vmatpush1.msra.mxu0 0.0
        %4846 = vmatprep.subr.mxu0 0.0
        %4847 = vmatpush1.msra.mxu0 0.0
        %4848 = vmatprep.subr.mxu0 0.0
        %4849 = vmatpush1.msra.mxu0 0.0
        %4850 = vmatprep.subr.mxu0 0.0
        %4851 = vmatpush1.msra.mxu0 0.0
        %4852 = vmatprep.subr.mxu0 0.0
        %4853 = vmatpush1.msra.mxu0 0.0
        %4854 = vmatprep.subr.mxu0 0.0
        %4855 = vmatpush1.msra.mxu0 0.0
        %4856 = vmatprep.subr.mxu0 0.0
        %4857 = vmatpush1.msra.mxu0 0.0
        %4858 = vmatprep.subr.mxu0 0.0
        %4859 = vmatpush1.msra.mxu0 0.0
        %4860 = vmatprep.subr.mxu0 0.0
        %4861 = vmatpush1.msra.mxu0 0.0
        %4862 = vmatprep.subr.mxu0 0.0
        %4863 = vmatpush1.msra.mxu0 0.0
        %4864 = vmatprep.subr.mxu0 0.0
        %4865 = vmatpush1.msra.mxu0 0.0
        %4866 = vmatprep.subr.mxu0 0.0
        %4867 = vmatpush1.msra.mxu0 0.0
        %4868 = vmatprep.subr.mxu0 0.0
        %4869 = vmatpush1.msra.mxu0 0.0
        %4870 = vmatprep.subr.mxu0 0.0
        %4871 = vmatpush1.msra.mxu0 0.0
        %4872 = vmatprep.subr.mxu0 0.0
        %4873 = vmatpush1.msra.mxu0 0.0
        %4874 = vmatprep.mubr.f32.mxu0 0.0
        %4875 = vmatmul.mubr.f32.gmra.mrb[0].mxu0 %v4808
        %v4876 = vpop.f32.mrb[0].mxu0
        %v4877 = vadd.f32 %v4805, %v4876
        %v4878 = vpop.f32.mrb[0].mxu0
        %4879 = vdwg.mxu0
        %v4880 = vld [vmem:[%s2458] sm:$0xff]
        %v4881 = vld [vmem:[%s2458 + $0x8] sm:$0xf]
        %v4882 = vld [vmem:[%s2462] sm:$0xf]
        %v4883 = vld [vmem:[#allocation9] sm:$0x1]
        %v4885 = vlaneseq
        %v4886 = vshrl.u32 %v4885, 7
        %v4887 = vsub.s32 0, %v4886
        %v4888 = vrot.slane %v4883, %v4887
        %v4890 = vadd.f32 %v4888, %v4880
        %v4891 = vadd.f32 %v4888, %v4881
        %v4892 = vadd.f32 %v4877, %v4882
        %v4893 = vld [vmem:[#allocation11] sm:$0x1]
        %v4894 = vld [vmem:[#allocation12] sm:$0x1]
        %v4895 = vsel %vm2602, %v4890, 0.0
        %4896 = vadd.xlane.f32.xlu0 %v4895
        %v4897 = vpop.xlane.xlu0 %4896
        %v4898 = vsel %vm2562, %v4891, 0.0
        %4899 = vadd.xlane.f32.xlu0 %v4898
        %v4900 = vpop.xlane.xlu0 %4899
        %v4901 = vmul.f32 %v4897, %v2566
        %v4902 = vmul.f32 %v4900, %v2566
        %v4903 = vsub.f32 %v4890, %v4901
        %v4904 = vsub.f32 %v4891, %v4902
        %v4905 = vmul.f32 %v4903, %v4903
        %v4906 = vmul.f32 %v4904, %v4904
        %v4907 = vsel %vm2602, %v4905, 0.0
        %4908 = vadd.xlane.f32.xlu0 %v4907
        %v4909 = vpop.xlane.xlu0 %4908
        %v4910 = vsel %vm2562, %v4906, 0.0
        %4911 = vadd.xlane.f32.xlu0 %v4910
        %v4912 = vpop.xlane.xlu0 %4911
        %v4913 = vmul.f32 %v4909, %v2566
        %v4914 = vmul.f32 %v4912, %v2566
        %v4915 = vadd.f32 %v4913, 1e-05
        %v4916 = vadd.f32 %v4914, 1e-05
        %v4917 = vrsqrt.pop %v4915
        %v4918 = vrsqrt.pop %v4916
        %v4919 = vmul.f32 %v4903, %v4917
        %v4920 = vmul.f32 %v4904, %v4918
        %v4922 = vlaneseq
        %v4923 = vshrl.u32 %v4922, 7
        %v4924 = vsub.s32 0, %v4923
        %v4925 = vrot.slane %v4893, %v4924
        %v4927 = vmul.f32 %v4919, %v4925
        %v4928 = vmul.f32 %v4920, %v4925
        %v4930 = vlaneseq
        %v4931 = vshrl.u32 %v4930, 7
        %v4932 = vsub.s32 0, %v4931
        %v4933 = vrot.slane %v4894, %v4932
        %v4935 = vadd.f32 %v4927, %v4933
        %v4936 = vadd.f32 %v4928, %v4933
        %v4937 = vld [vmem:[%s75] sm:$0xff]
        %v4938 = vld [vmem:[%s75 + $0x8] sm:$0xff]
        %v4939 = vld [vmem:[%s75 + $0x10] sm:$0xff]
        %v4940 = vld [vmem:[%s75 + $0x18] sm:$0xff]
        %v4941 = vld [vmem:[#allocation14] sm:$0x1]
        %v4943 = vlaneseq
        %v4944 = vshrl.u32 %v4943, 7
        %v4945 = vsub.s32 0, %v4944
        %v4946 = vrot.slane %v4941, %v4945
        %v4949 = vsel %vm2602, %v4935, 0
        %v4952 = vsel %vm2602, %v4936, 0
        %4954 = vmatprep.subr.mxu0 0.0
        %4955 = vmatpush1.msra.mxu0 %v4937
        %4956 = vmatprep.subr.mxu0 0.0
        %4957 = vmatpush1.msra.mxu0 %v4938
        %4958 = vmatprep.subr.mxu0 0.0
        %4959 = vmatpush1.msra.mxu0 %v4939
        %4960 = vmatprep.subr.mxu0 0.0
        %4961 = vmatpush1.msra.mxu0 %v4940
        %4962 = vmatprep.subr.mxu0 0.0
        %4963 = vmatpush1.msra.mxu0 0.0
        %4964 = vmatprep.subr.mxu0 0.0
        %4965 = vmatpush1.msra.mxu0 0.0
        %4966 = vmatprep.subr.mxu0 0.0
        %4967 = vmatpush1.msra.mxu0 0.0
        %4968 = vmatprep.subr.mxu0 0.0
        %4969 = vmatpush1.msra.mxu0 0.0
        %4970 = vmatprep.subr.mxu0 0.0
        %4971 = vmatpush1.msra.mxu0 0.0
        %4972 = vmatprep.subr.mxu0 0.0
        %4973 = vmatpush1.msra.mxu0 0.0
        %4974 = vmatprep.subr.mxu0 0.0
        %4975 = vmatpush1.msra.mxu0 0.0
        %4976 = vmatprep.subr.mxu0 0.0
        %4977 = vmatpush1.msra.mxu0 0.0
        %4978 = vmatprep.subr.mxu0 0.0
        %4979 = vmatpush1.msra.mxu0 0.0
        %4980 = vmatprep.subr.mxu0 0.0
        %4981 = vmatpush1.msra.mxu0 0.0
        %4982 = vmatprep.subr.mxu0 0.0
        %4983 = vmatpush1.msra.mxu0 0.0
        %4984 = vmatprep.subr.mxu0 0.0
        %4985 = vmatpush1.msra.mxu0 0.0
        %4986 = vmatprep.subr.mxu0 0.0
        %4987 = vmatpush1.msra.mxu0 0.0
        %4988 = vmatprep.subr.mxu0 0.0
        %4989 = vmatpush1.msra.mxu0 0.0
        %4990 = vmatprep.subr.mxu0 0.0
        %4991 = vmatpush1.msra.mxu0 0.0
        %4992 = vmatprep.subr.mxu0 0.0
        %4993 = vmatpush1.msra.mxu0 0.0
        %4994 = vmatprep.subr.mxu0 0.0
        %4995 = vmatpush1.msra.mxu0 0.0
        %4996 = vmatprep.subr.mxu0 0.0
        %4997 = vmatpush1.msra.mxu0 0.0
        %4998 = vmatprep.subr.mxu0 0.0
        %4999 = vmatpush1.msra.mxu0 0.0
        %5000 = vmatprep.subr.mxu0 0.0
        %5001 = vmatpush1.msra.mxu0 0.0
        %5002 = vmatprep.subr.mxu0 0.0
        %5003 = vmatpush1.msra.mxu0 0.0
        %5004 = vmatprep.subr.mxu0 0.0
        %5005 = vmatpush1.msra.mxu0 0.0
        %5006 = vmatprep.subr.mxu0 0.0
        %5007 = vmatpush1.msra.mxu0 0.0
        %5008 = vmatprep.subr.mxu0 0.0
        %5009 = vmatpush1.msra.mxu0 0.0
        %5010 = vmatprep.subr.mxu0 0.0
        %5011 = vmatpush1.msra.mxu0 0.0
        %5012 = vmatprep.subr.mxu0 0.0
        %5013 = vmatpush1.msra.mxu0 0.0
        %5014 = vmatprep.subr.mxu0 0.0
        %5015 = vmatpush1.msra.mxu0 0.0
        %5016 = vmatprep.subr.mxu0 0.0
        %5017 = vmatpush1.msra.mxu0 0.0
        %5018 = vmatprep.mubr.f32.mxu0 0.0
        %5019 = vmatmul.mubr.f32.gmra.mrb[0].mxu0 %v4949
        %v5020 = vpop.f32.mrb[0].mxu0
        %v5021 = vadd.f32 %v4946, %v5020
        %v5022 = vpop.f32.mrb[0].mxu0
        %5023 = vmatprep.mubr.f32.mxu0 0.0
        %5024 = vmatmul.mubr.f32.gmra.mrb[0].mxu0 %v4952
        %v5025 = vpop.f32.mrb[0].mxu0
        %v5026 = vadd.f32 %v4946, %v5025
        %v5027 = vpop.f32.mrb[0].mxu0
        %5028 = vdwg.mxu0
        %v5029 = vld [vmem:[%s79] sm:$0xff]
        %v5030 = vld [vmem:[%s79 + $0x8] sm:$0xff]
        %v5031 = vld [vmem:[%s79 + $0x10] sm:$0xff]
        %v5032 = vld [vmem:[%s79 + $0x18] sm:$0xff]
        %v5033 = vld [vmem:[#allocation15] sm:$0x1]
        %v5035 = vlaneseq
        %v5036 = vshrl.u32 %v5035, 7
        %v5037 = vsub.s32 0, %v5036
        %v5038 = vrot.slane %v5033, %v5037
        %v5041 = vsel %vm2602, %v4892, 0
        %5043 = vmatprep.subr.mxu0 0.0
        %5044 = vmatpush1.msra.mxu0 %v5029
        %5045 = vmatprep.subr.mxu0 0.0
        %5046 = vmatpush1.msra.mxu0 %v5030
        %5047 = vmatprep.subr.mxu0 0.0
        %5048 = vmatpush1.msra.mxu0 %v5031
        %5049 = vmatprep.subr.mxu0 0.0
        %5050 = vmatpush1.msra.mxu0 %v5032
        %5051 = vmatprep.subr.mxu0 0.0
        %5052 = vmatpush1.msra.mxu0 0.0
        %5053 = vmatprep.subr.mxu0 0.0
        %5054 = vmatpush1.msra.mxu0 0.0
        %5055 = vmatprep.subr.mxu0 0.0
        %5056 = vmatpush1.msra.mxu0 0.0
        %5057 = vmatprep.subr.mxu0 0.0
        %5058 = vmatpush1.msra.mxu0 0.0
        %5059 = vmatprep.subr.mxu0 0.0
        %5060 = vmatpush1.msra.mxu0 0.0
        %5061 = vmatprep.subr.mxu0 0.0
        %5062 = vmatpush1.msra.mxu0 0.0
        %5063 = vmatprep.subr.mxu0 0.0
        %5064 = vmatpush1.msra.mxu0 0.0
        %5065 = vmatprep.subr.mxu0 0.0
        %5066 = vmatpush1.msra.mxu0 0.0
        %5067 = vmatprep.subr.mxu0 0.0
        %5068 = vmatpush1.msra.mxu0 0.0
        %5069 = vmatprep.subr.mxu0 0.0
        %5070 = vmatpush1.msra.mxu0 0.0
        %5071 = vmatprep.subr.mxu0 0.0
        %5072 = vmatpush1.msra.mxu0 0.0
        %5073 = vmatprep.subr.mxu0 0.0
        %5074 = vmatpush1.msra.mxu0 0.0
        %5075 = vmatprep.subr.mxu0 0.0
        %5076 = vmatpush1.msra.mxu0 0.0
        %5077 = vmatprep.subr.mxu0 0.0
        %5078 = vmatpush1.msra.mxu0 0.0
        %5079 = vmatprep.subr.mxu0 0.0
        %5080 = vmatpush1.msra.mxu0 0.0
        %5081 = vmatprep.subr.mxu0 0.0
        %5082 = vmatpush1.msra.mxu0 0.0
        %5083 = vmatprep.subr.mxu0 0.0
        %5084 = vmatpush1.msra.mxu0 0.0
        %5085 = vmatprep.subr.mxu0 0.0
        %5086 = vmatpush1.msra.mxu0 0.0
        %5087 = vmatprep.subr.mxu0 0.0
        %5088 = vmatpush1.msra.mxu0 0.0
        %5089 = vmatprep.subr.mxu0 0.0
        %5090 = vmatpush1.msra.mxu0 0.0
        %5091 = vmatprep.subr.mxu0 0.0
        %5092 = vmatpush1.msra.mxu0 0.0
        %5093 = vmatprep.subr.mxu0 0.0
        %5094 = vmatpush1.msra.mxu0 0.0
        %5095 = vmatprep.subr.mxu0 0.0
        %5096 = vmatpush1.msra.mxu0 0.0
        %5097 = vmatprep.subr.mxu0 0.0
        %5098 = vmatpush1.msra.mxu0 0.0
        %5099 = vmatprep.subr.mxu0 0.0
        %5100 = vmatpush1.msra.mxu0 0.0
        %5101 = vmatprep.subr.mxu0 0.0
        %5102 = vmatpush1.msra.mxu0 0.0
        %5103 = vmatprep.subr.mxu0 0.0
        %5104 = vmatpush1.msra.mxu0 0.0
        %5105 = vmatprep.subr.mxu0 0.0
        %5106 = vmatpush1.msra.mxu0 0.0
        %5107 = vmatprep.mubr.f32.mxu0 0.0
        %5108 = vmatmul.mubr.f32.gmra.mrb[0].mxu0 %v5041
        %v5109 = vpop.f32.mrb[0].mxu0
        %v5110 = vadd.f32 %v5038, %v5109
        %v5111 = vpop.f32.mrb[0].mxu0
        %5112 = vdwg.mxu0
        %v5113 = vld [vmem:[%s83] sm:$0xff]
        %v5114 = vld [vmem:[%s83 + $0x8] sm:$0xff]
        %v5115 = vld [vmem:[%s83 + $0x10] sm:$0xff]
        %v5116 = vld [vmem:[%s83 + $0x18] sm:$0xff]
        %v5117 = vld [vmem:[#allocation17] sm:$0x1]
        %v5119 = vlaneseq
        %v5120 = vshrl.u32 %v5119, 7
        %v5121 = vsub.s32 0, %v5120
        %v5122 = vrot.slane %v5117, %v5121
        %5124 = vmatprep.subr.mxu0 0.0
        %5125 = vmatpush1.msra.mxu0 %v5113
        %5126 = vmatprep.subr.mxu0 0.0
        %5127 = vmatpush1.msra.mxu0 %v5114
        %5128 = vmatprep.subr.mxu0 0.0
        %5129 = vmatpush1.msra.mxu0 %v5115
        %5130 = vmatprep.subr.mxu0 0.0
        %5131 = vmatpush1.msra.mxu0 %v5116
        %5132 = vmatprep.subr.mxu0 0.0
        %5133 = vmatpush1.msra.mxu0 0.0
        %5134 = vmatprep.subr.mxu0 0.0
        %5135 = vmatpush1.msra.mxu0 0.0
        %5136 = vmatprep.subr.mxu0 0.0
        %5137 = vmatpush1.msra.mxu0 0.0
        %5138 = vmatprep.subr.mxu0 0.0
        %5139 = vmatpush1.msra.mxu0 0.0
        %5140 = vmatprep.subr.mxu0 0.0
        %5141 = vmatpush1.msra.mxu0 0.0
        %5142 = vmatprep.subr.mxu0 0.0
        %5143 = vmatpush1.msra.mxu0 0.0
        %5144 = vmatprep.subr.mxu0 0.0
        %5145 = vmatpush1.msra.mxu0 0.0
        %5146 = vmatprep.subr.mxu0 0.0
        %5147 = vmatpush1.msra.mxu0 0.0
        %5148 = vmatprep.subr.mxu0 0.0
        %5149 = vmatpush1.msra.mxu0 0.0
        %5150 = vmatprep.subr.mxu0 0.0
        %5151 = vmatpush1.msra.mxu0 0.0
        %5152 = vmatprep.subr.mxu0 0.0
        %5153 = vmatpush1.msra.mxu0 0.0
        %5154 = vmatprep.subr.mxu0 0.0
        %5155 = vmatpush1.msra.mxu0 0.0
        %5156 = vmatprep.subr.mxu0 0.0
        %5157 = vmatpush1.msra.mxu0 0.0
        %5158 = vmatprep.subr.mxu0 0.0
        %5159 = vmatpush1.msra.mxu0 0.0
        %5160 = vmatprep.subr.mxu0 0.0
        %5161 = vmatpush1.msra.mxu0 0.0
        %5162 = vmatprep.subr.mxu0 0.0
        %5163 = vmatpush1.msra.mxu0 0.0
        %5164 = vmatprep.subr.mxu0 0.0
        %5165 = vmatpush1.msra.mxu0 0.0
        %5166 = vmatprep.subr.mxu0 0.0
        %5167 = vmatpush1.msra.mxu0 0.0
        %5168 = vmatprep.subr.mxu0 0.0
        %5169 = vmatpush1.msra.mxu0 0.0
        %5170 = vmatprep.subr.mxu0 0.0
        %5171 = vmatpush1.msra.mxu0 0.0
        %5172 = vmatprep.subr.mxu0 0.0
        %5173 = vmatpush1.msra.mxu0 0.0
        %5174 = vmatprep.subr.mxu0 0.0
        %5175 = vmatpush1.msra.mxu0 0.0
        %5176 = vmatprep.subr.mxu0 0.0
        %5177 = vmatpush1.msra.mxu0 0.0
        %5178 = vmatprep.subr.mxu0 0.0
        %5179 = vmatpush1.msra.mxu0 0.0
        %5180 = vmatprep.subr.mxu0 0.0
        %5181 = vmatpush1.msra.mxu0 0.0
        %5182 = vmatprep.subr.mxu0 0.0
        %5183 = vmatpush1.msra.mxu0 0.0
        %5184 = vmatprep.subr.mxu0 0.0
        %5185 = vmatpush1.msra.mxu0 0.0
        %5186 = vmatprep.subr.mxu0 0.0
        %5187 = vmatpush1.msra.mxu0 0.0
        %5188 = vmatprep.mubr.f32.mxu0 0.0
        %5189 = vmatmul.mubr.f32.gmra.mrb[0].mxu0 %v5041
        %v5190 = vpop.f32.mrb[0].mxu0
        %v5191 = vadd.f32 %v5122, %v5190
        %v5192 = vpop.f32.mrb[0].mxu0
        %5193 = vdwg.mxu0
        %v5195 = vsel %vm2679, %v5021, 0
        %v5198 = vsel %vm2679, %v5026, 0
        %v5201 = vsel %vm2679, %v5110, 0
        %5203 = vmatprep.subr.mxu0 0.0
        %5204 = vmatpush1.xpose.msra.mxu0 %v5201
        %5205 = vmatprep.subr.mxu0 0.0
        %5206 = vmatpush1.xpose.msra.mxu0 0.0
        %5207 = vmatprep.subr.mxu0 0.0
        %5208 = vmatpush1.xpose.msra.mxu0 0.0
        %5209 = vmatprep.subr.mxu0 0.0
        %5210 = vmatpush1.xpose.msra.mxu0 0.0
        %5211 = vmatprep.subr.mxu0 0.0
        %5212 = vmatpush1.xpose.msra.mxu0 0.0
        %5213 = vmatprep.subr.mxu0 0.0
        %5214 = vmatpush1.xpose.msra.mxu0 0.0
        %5215 = vmatprep.subr.mxu0 0.0
        %5216 = vmatpush1.xpose.msra.mxu0 0.0
        %5217 = vmatprep.subr.mxu0 0.0
        %5218 = vmatpush1.xpose.msra.mxu0 0.0
        %5219 = vmatprep.subr.mxu0 0.0
        %5220 = vmatpush1.xpose.msra.mxu0 0.0
        %5221 = vmatprep.subr.mxu0 0.0
        %5222 = vmatpush1.xpose.msra.mxu0 0.0
        %5223 = vmatprep.subr.mxu0 0.0
        %5224 = vmatpush1.xpose.msra.mxu0 0.0
        %5225 = vmatprep.subr.mxu0 0.0
        %5226 = vmatpush1.xpose.msra.mxu0 0.0
        %5227 = vmatprep.subr.mxu0 0.0
        %5228 = vmatpush1.xpose.msra.mxu0 0.0
        %5229 = vmatprep.subr.mxu0 0.0
        %5230 = vmatpush1.xpose.msra.mxu0 0.0
        %5231 = vmatprep.subr.mxu0 0.0
        %5232 = vmatpush1.xpose.msra.mxu0 0.0
        %5233 = vmatprep.subr.mxu0 0.0
        %5234 = vmatpush1.xpose.msra.mxu0 0.0
        %5235 = vmatprep.subr.mxu0 0.0
        %5236 = vmatpush1.xpose.msra.mxu0 0.0
        %5237 = vmatprep.subr.mxu0 0.0
        %5238 = vmatpush1.xpose.msra.mxu0 0.0
        %5239 = vmatprep.subr.mxu0 0.0
        %5240 = vmatpush1.xpose.msra.mxu0 0.0
        %5241 = vmatprep.subr.mxu0 0.0
        %5242 = vmatpush1.xpose.msra.mxu0 0.0
        %5243 = vmatprep.subr.mxu0 0.0
        %5244 = vmatpush1.xpose.msra.mxu0 0.0
        %5245 = vmatprep.subr.mxu0 0.0
        %5246 = vmatpush1.xpose.msra.mxu0 0.0
        %5247 = vmatprep.subr.mxu0 0.0
        %5248 = vmatpush1.xpose.msra.mxu0 0.0
        %5249 = vmatprep.subr.mxu0 0.0
        %5250 = vmatpush1.xpose.msra.mxu0 0.0
        %5251 = vmatprep.subr.mxu0 0.0
        %5252 = vmatpush1.xpose.msra.mxu0 0.0
        %5253 = vmatprep.subr.mxu0 0.0
        %5254 = vmatpush1.xpose.msra.mxu0 0.0
        %5255 = vmatprep.subr.mxu0 0.0
        %5256 = vmatpush1.xpose.msra.mxu0 0.0
        %5257 = vmatprep.subr.mxu0 0.0
        %5258 = vmatpush1.xpose.msra.mxu0 0.0
        %5259 = vmatprep.subr.mxu0 0.0
        %5260 = vmatpush1.xpose.msra.mxu0 0.0
        %5261 = vmatprep.subr.mxu0 0.0
        %5262 = vmatpush1.xpose.msra.mxu0 0.0
        %5263 = vmatprep.subr.mxu0 0.0
        %5264 = vmatpush1.xpose.msra.mxu0 0.0
        %5265 = vmatprep.subr.mxu0 0.0
        %5266 = vmatpush1.xpose.msra.mxu0 0.0
        %5267 = vmatprep.mubr.f32.mxu0 0.0
        %5268 = vmatmul.mubr.f32.gmra.mrb[0].mxu0 %v5195
        %v5269 = vpop.f32.mrb[0].mxu0
        %v5270 = vadd.f32 0.0, %v5269
        %v5271 = vpop.f32.mrb[0].mxu0
        %5272 = vmatprep.mubr.f32.mxu0 0.0
        %5273 = vmatmul.mubr.f32.gmra.mrb[0].mxu0 %v5198
        %v5274 = vpop.f32.mrb[0].mxu0
        %v5275 = vadd.f32 0.0, %v5274
        %v5276 = vpop.f32.mrb[0].mxu0
        %5277 = vdwg.mxu0
        %v5278 = vmul.f32 %v5270, 0.35355338
        %v5279 = vmul.f32 %v5275, 0.35355338
        %v5280 = vsel %vm2769, %v5278, -inf
        %5281 = vmax.xlane.f32.xlu0 %v5280
        %v5282 = vpop.xlane.xlu0 %5281
        %v5283 = vsel %vm2755, %v5279, -inf
        %5284 = vmax.xlane.f32.xlu0 %v5283
        %v5285 = vpop.xlane.xlu0 %5284
        %v5286 = vsub.f32 %v5278, %v5282
        %v5287 = vsub.f32 %v5279, %v5285
        %v5288 = vmul.f32 %v5286, 1.442695
        %v5289 = vpow.pop %v5288
        %v5290 = vmul.f32 %v5287, 1.442695
        %v5291 = vpow.pop %v5290
        %v5292 = vsel %vm2769, %v5289, 0.0
        %5293 = vadd.xlane.f32.xlu0 %v5292
        %v5294 = vpop.xlane.xlu0 %5293
        %v5295 = vsel %vm2755, %v5291, 0.0
        %5296 = vadd.xlane.f32.xlu0 %v5295
        %v5297 = vpop.xlane.xlu0 %5296
        %v5298 = vrcp.pop %v5294
        %v5299 = vrcp.pop %v5297
        %v5300 = vmul.f32 %v5289, %v5298
        %v5301 = vmul.f32 %v5291, %v5299
        %v5303 = vsel %vm2769, %v5300, 0
        %v5306 = vsel %vm2769, %v5301, 0
        %v5309 = vsel %vm2773, %v5191, 0
        %5311 = vmatprep.subr.mxu0 0.0
        %5312 = vmatpush1.msra.mxu0 %v5309
        %5313 = vmatprep.subr.mxu0 0.0
        %5314 = vmatpush1.msra.mxu0 0.0
        %5315 = vmatprep.subr.mxu0 0.0
        %5316 = vmatpush1.msra.mxu0 0.0
        %5317 = vmatprep.subr.mxu0 0.0
        %5318 = vmatpush1.msra.mxu0 0.0
        %5319 = vmatprep.subr.mxu0 0.0
        %5320 = vmatpush1.msra.mxu0 0.0
        %5321 = vmatprep.subr.mxu0 0.0
        %5322 = vmatpush1.msra.mxu0 0.0
        %5323 = vmatprep.subr.mxu0 0.0
        %5324 = vmatpush1.msra.mxu0 0.0
        %5325 = vmatprep.subr.mxu0 0.0
        %5326 = vmatpush1.msra.mxu0 0.0
        %5327 = vmatprep.subr.mxu0 0.0
        %5328 = vmatpush1.msra.mxu0 0.0
        %5329 = vmatprep.subr.mxu0 0.0
        %5330 = vmatpush1.msra.mxu0 0.0
        %5331 = vmatprep.subr.mxu0 0.0
        %5332 = vmatpush1.msra.mxu0 0.0
        %5333 = vmatprep.subr.mxu0 0.0
        %5334 = vmatpush1.msra.mxu0 0.0
        %5335 = vmatprep.subr.mxu0 0.0
        %5336 = vmatpush1.msra.mxu0 0.0
        %5337 = vmatprep.subr.mxu0 0.0
        %5338 = vmatpush1.msra.mxu0 0.0
        %5339 = vmatprep.subr.mxu0 0.0
        %5340 = vmatpush1.msra.mxu0 0.0
        %5341 = vmatprep.subr.mxu0 0.0
        %5342 = vmatpush1.msra.mxu0 0.0
        %5343 = vmatprep.subr.mxu0 0.0
        %5344 = vmatpush1.msra.mxu0 0.0
        %5345 = vmatprep.subr.mxu0 0.0
        %5346 = vmatpush1.msra.mxu0 0.0
        %5347 = vmatprep.subr.mxu0 0.0
        %5348 = vmatpush1.msra.mxu0 0.0
        %5349 = vmatprep.subr.mxu0 0.0
        %5350 = vmatpush1.msra.mxu0 0.0
        %5351 = vmatprep.subr.mxu0 0.0
        %5352 = vmatpush1.msra.mxu0 0.0
        %5353 = vmatprep.subr.mxu0 0.0
        %5354 = vmatpush1.msra.mxu0 0.0
        %5355 = vmatprep.subr.mxu0 0.0
        %5356 = vmatpush1.msra.mxu0 0.0
        %5357 = vmatprep.subr.mxu0 0.0
        %5358 = vmatpush1.msra.mxu0 0.0
        %5359 = vmatprep.subr.mxu0 0.0
        %5360 = vmatpush1.msra.mxu0 0.0
        %5361 = vmatprep.subr.mxu0 0.0
        %5362 = vmatpush1.msra.mxu0 0.0
        %5363 = vmatprep.subr.mxu0 0.0
        %5364 = vmatpush1.msra.mxu0 0.0
        %5365 = vmatprep.subr.mxu0 0.0
        %5366 = vmatpush1.msra.mxu0 0.0
        %5367 = vmatprep.subr.mxu0 0.0
        %5368 = vmatpush1.msra.mxu0 0.0
        %5369 = vmatprep.subr.mxu0 0.0
        %5370 = vmatpush1.msra.mxu0 0.0
        %5371 = vmatprep.subr.mxu0 0.0
        %5372 = vmatpush1.msra.mxu0 0.0
        %5373 = vmatprep.subr.mxu0 0.0
        %5374 = vmatpush1.msra.mxu0 0.0
        %5375 = vmatprep.mubr.f32.mxu0 0.0
        %5376 = vmatmul.mubr.f32.gmra.mrb[0].mxu0 %v5303
        %v5377 = vpop.f32.mrb[0].mxu0
        %v5378 = vadd.f32 0.0, %v5377
        %v5379 = vpop.f32.mrb[0].mxu0
        %5380 = vmatprep.mubr.f32.mxu0 0.0
        %5381 = vmatmul.mubr.f32.gmra.mrb[0].mxu0 %v5306
        %v5382 = vpop.f32.mrb[0].mxu0
        %v5383 = vadd.f32 0.0, %v5382
        %v5384 = vpop.f32.mrb[0].mxu0
        %5385 = vdwg.mxu0
        %5386 = vst.msk [vmem:[#allocation3] sm:$0xff] %vm2679, %v5378
        %5387 = vst.msk [vmem:[#allocation3 + $0x8] sm:$0xf] %vm2846, %v5383
        %5388 = vrot.lane.b32.xlu0 %v5021, 120
        %v5389 = vpop.permute.xlu0 %5388
        %5390 = vrot.lane.b32.xlu0 %v5026, 120
        %v5391 = vpop.permute.xlu0 %5390
        %5392 = vrot.lane.b32.xlu0 %v5110, 120
        %v5393 = vpop.permute.xlu0 %5392
        %v5394 = vsel %vm2679, %v5389, 0
        %v5396 = vsel %vm2679, %v5391, 0
        %v5398 = vsel %vm2679, %v5393, 0
        %5400 = vmatprep.subr.mxu0 0.0
        %5401 = vmatpush1.xpose.msra.mxu0 %v5398
        %5402 = vmatprep.subr.mxu0 0.0
        %5403 = vmatpush1.xpose.msra.mxu0 0.0
        %5404 = vmatprep.subr.mxu0 0.0
        %5405 = vmatpush1.xpose.msra.mxu0 0.0
        %5406 = vmatprep.subr.mxu0 0.0
        %5407 = vmatpush1.xpose.msra.mxu0 0.0
        %5408 = vmatprep.subr.mxu0 0.0
        %5409 = vmatpush1.xpose.msra.mxu0 0.0
        %5410 = vmatprep.subr.mxu0 0.0
        %5411 = vmatpush1.xpose.msra.mxu0 0.0
        %5412 = vmatprep.subr.mxu0 0.0
        %5413 = vmatpush1.xpose.msra.mxu0 0.0
        %5414 = vmatprep.subr.mxu0 0.0
        %5415 = vmatpush1.xpose.msra.mxu0 0.0
        %5416 = vmatprep.subr.mxu0 0.0
        %5417 = vmatpush1.xpose.msra.mxu0 0.0
        %5418 = vmatprep.subr.mxu0 0.0
        %5419 = vmatpush1.xpose.msra.mxu0 0.0
        %5420 = vmatprep.subr.mxu0 0.0
        %5421 = vmatpush1.xpose.msra.mxu0 0.0
        %5422 = vmatprep.subr.mxu0 0.0
        %5423 = vmatpush1.xpose.msra.mxu0 0.0
        %5424 = vmatprep.subr.mxu0 0.0
        %5425 = vmatpush1.xpose.msra.mxu0 0.0
        %5426 = vmatprep.subr.mxu0 0.0
        %5427 = vmatpush1.xpose.msra.mxu0 0.0
        %5428 = vmatprep.subr.mxu0 0.0
        %5429 = vmatpush1.xpose.msra.mxu0 0.0
        %5430 = vmatprep.subr.mxu0 0.0
        %5431 = vmatpush1.xpose.msra.mxu0 0.0
        %5432 = vmatprep.subr.mxu0 0.0
        %5433 = vmatpush1.xpose.msra.mxu0 0.0
        %5434 = vmatprep.subr.mxu0 0.0
        %5435 = vmatpush1.xpose.msra.mxu0 0.0
        %5436 = vmatprep.subr.mxu0 0.0
        %5437 = vmatpush1.xpose.msra.mxu0 0.0
        %5438 = vmatprep.subr.mxu0 0.0
        %5439 = vmatpush1.xpose.msra.mxu0 0.0
        %5440 = vmatprep.subr.mxu0 0.0
        %5441 = vmatpush1.xpose.msra.mxu0 0.0
        %5442 = vmatprep.subr.mxu0 0.0
        %5443 = vmatpush1.xpose.msra.mxu0 0.0
        %5444 = vmatprep.subr.mxu0 0.0
        %5445 = vmatpush1.xpose.msra.mxu0 0.0
        %5446 = vmatprep.subr.mxu0 0.0
        %5447 = vmatpush1.xpose.msra.mxu0 0.0
        %5448 = vmatprep.subr.mxu0 0.0
        %5449 = vmatpush1.xpose.msra.mxu0 0.0
        %5450 = vmatprep.subr.mxu0 0.0
        %5451 = vmatpush1.xpose.msra.mxu0 0.0
        %5452 = vmatprep.subr.mxu0 0.0
        %5453 = vmatpush1.xpose.msra.mxu0 0.0
        %5454 = vmatprep.subr.mxu0 0.0
        %5455 = vmatpush1.xpose.msra.mxu0 0.0
        %5456 = vmatprep.subr.mxu0 0.0
        %5457 = vmatpush1.xpose.msra.mxu0 0.0
        %5458 = vmatprep.subr.mxu0 0.0
        %5459 = vmatpush1.xpose.msra.mxu0 0.0
        %5460 = vmatprep.subr.mxu0 0.0
        %5461 = vmatpush1.xpose.msra.mxu0 0.0
        %5462 = vmatprep.subr.mxu0 0.0
        %5463 = vmatpush1.xpose.msra.mxu0 0.0
        %5464 = vmatprep.mubr.f32.mxu0 0.0
        %5465 = vmatmul.mubr.f32.gmra.mrb[0].mxu0 %v5394
        %v5466 = vpop.f32.mrb[0].mxu0
        %v5467 = vadd.f32 0.0, %v5466
        %v5468 = vpop.f32.mrb[0].mxu0
        %5469 = vmatprep.mubr.f32.mxu0 0.0
        %5470 = vmatmul.mubr.f32.gmra.mrb[0].mxu0 %v5396
        %v5471 = vpop.f32.mrb[0].mxu0
        %v5472 = vadd.f32 0.0, %v5471
        %v5473 = vpop.f32.mrb[0].mxu0
        %5474 = vdwg.mxu0
        %v5475 = vmul.f32 %v5467, 0.35355338
        %v5476 = vmul.f32 %v5472, 0.35355338
        %v5477 = vsel %vm2769, %v5475, -inf
        %5478 = vmax.xlane.f32.xlu0 %v5477
        %v5479 = vpop.xlane.xlu0 %5478
        %v5480 = vsel %vm2755, %v5476, -inf
        %5481 = vmax.xlane.f32.xlu0 %v5480
        %v5482 = vpop.xlane.xlu0 %5481
        %v5483 = vsub.f32 %v5475, %v5479
        %v5484 = vsub.f32 %v5476, %v5482
        %v5485 = vmul.f32 %v5483, 1.442695
        %v5486 = vpow.pop %v5485
        %v5487 = vmul.f32 %v5484, 1.442695
        %v5488 = vpow.pop %v5487
        %v5489 = vsel %vm2769, %v5486, 0.0
        %5490 = vadd.xlane.f32.xlu0 %v5489
        %v5491 = vpop.xlane.xlu0 %5490
        %v5492 = vsel %vm2755, %v5488, 0.0
        %5493 = vadd.xlane.f32.xlu0 %v5492
        %v5494 = vpop.xlane.xlu0 %5493
        %v5495 = vrcp.pop %v5491
        %v5496 = vrcp.pop %v5494
        %v5497 = vmul.f32 %v5486, %v5495
        %v5498 = vmul.f32 %v5488, %v5496
        %5499 = vrot.lane.b32.xlu0 %v5191, 120
        %v5500 = vpop.permute.xlu0 %5499
        %v5502 = vsel %vm2769, %v5497, 0
        %v5505 = vsel %vm2769, %v5498, 0
        %v5507 = vsel %vm2773, %v5500, 0
        %5509 = vmatprep.subr.mxu0 0.0
        %5510 = vmatpush1.msra.mxu0 %v5507
        %5511 = vmatprep.subr.mxu0 0.0
        %5512 = vmatpush1.msra.mxu0 0.0
        %5513 = vmatprep.subr.mxu0 0.0
        %5514 = vmatpush1.msra.mxu0 0.0
        %5515 = vmatprep.subr.mxu0 0.0
        %5516 = vmatpush1.msra.mxu0 0.0
        %5517 = vmatprep.subr.mxu0 0.0
        %5518 = vmatpush1.msra.mxu0 0.0
        %5519 = vmatprep.subr.mxu0 0.0
        %5520 = vmatpush1.msra.mxu0 0.0
        %5521 = vmatprep.subr.mxu0 0.0
        %5522 = vmatpush1.msra.mxu0 0.0
        %5523 = vmatprep.subr.mxu0 0.0
        %5524 = vmatpush1.msra.mxu0 0.0
        %5525 = vmatprep.subr.mxu0 0.0
        %5526 = vmatpush1.msra.mxu0 0.0
        %5527 = vmatprep.subr.mxu0 0.0
        %5528 = vmatpush1.msra.mxu0 0.0
        %5529 = vmatprep.subr.mxu0 0.0
        %5530 = vmatpush1.msra.mxu0 0.0
        %5531 = vmatprep.subr.mxu0 0.0
        %5532 = vmatpush1.msra.mxu0 0.0
        %5533 = vmatprep.subr.mxu0 0.0
        %5534 = vmatpush1.msra.mxu0 0.0
        %5535 = vmatprep.subr.mxu0 0.0
        %5536 = vmatpush1.msra.mxu0 0.0
        %5537 = vmatprep.subr.mxu0 0.0
        %5538 = vmatpush1.msra.mxu0 0.0
        %5539 = vmatprep.subr.mxu0 0.0
        %5540 = vmatpush1.msra.mxu0 0.0
        %5541 = vmatprep.subr.mxu0 0.0
        %5542 = vmatpush1.msra.mxu0 0.0
        %5543 = vmatprep.subr.mxu0 0.0
        %5544 = vmatpush1.msra.mxu0 0.0
        %5545 = vmatprep.subr.mxu0 0.0
        %5546 = vmatpush1.msra.mxu0 0.0
        %5547 = vmatprep.subr.mxu0 0.0
        %5548 = vmatpush1.msra.mxu0 0.0
        %5549 = vmatprep.subr.mxu0 0.0
        %5550 = vmatpush1.msra.mxu0 0.0
        %5551 = vmatprep.subr.mxu0 0.0
        %5552 = vmatpush1.msra.mxu0 0.0
        %5553 = vmatprep.subr.mxu0 0.0
        %5554 = vmatpush1.msra.mxu0 0.0
        %5555 = vmatprep.subr.mxu0 0.0
        %5556 = vmatpush1.msra.mxu0 0.0
        %5557 = vmatprep.subr.mxu0 0.0
        %5558 = vmatpush1.msra.mxu0 0.0
        %5559 = vmatprep.subr.mxu0 0.0
        %5560 = vmatpush1.msra.mxu0 0.0
        %5561 = vmatprep.subr.mxu0 0.0
        %5562 = vmatpush1.msra.mxu0 0.0
        %5563 = vmatprep.subr.mxu0 0.0
        %5564 = vmatpush1.msra.mxu0 0.0
        %5565 = vmatprep.subr.mxu0 0.0
        %5566 = vmatpush1.msra.mxu0 0.0
        %5567 = vmatprep.subr.mxu0 0.0
        %5568 = vmatpush1.msra.mxu0 0.0
        %5569 = vmatprep.subr.mxu0 0.0
        %5570 = vmatpush1.msra.mxu0 0.0
        %5571 = vmatprep.subr.mxu0 0.0
        %5572 = vmatpush1.msra.mxu0 0.0
        %5573 = vmatprep.mubr.f32.mxu0 0.0
        %5574 = vmatmul.mubr.f32.gmra.mrb[0].mxu0 %v5502
        %v5575 = vpop.f32.mrb[0].mxu0
        %v5576 = vadd.f32 0.0, %v5575
        %v5577 = vpop.f32.mrb[0].mxu0
        %5578 = vmatprep.mubr.f32.mxu0 0.0
        %5579 = vmatmul.mubr.f32.gmra.mrb[0].mxu0 %v5505
        %v5580 = vpop.f32.mrb[0].mxu0
        %v5581 = vadd.f32 0.0, %v5580
        %v5582 = vpop.f32.mrb[0].mxu0
        %5583 = vdwg.mxu0
        %5586 = vrot.lane.b32.xlu0 %v5576, 8
        %v5587 = vpop.permute.xlu0 %5586
        %5588 = vrot.lane.b32.xlu0 %v5581, 8
        %v5589 = vpop.permute.xlu0 %5588
        %vm5592 = vcmask 130112
        %5593 = vst.msk [vmem:[#allocation3] sm:$0xff] %vm5592, %v5587
        %5594 = vst.msk [vmem:[#allocation3 + $0x8] sm:$0xf] %vm3019, %v5589
        %5595 = vrot.lane.b32.xlu0 %v5021, 112
        %v5596 = vpop.permute.xlu0 %5595
        %5597 = vrot.lane.b32.xlu0 %v5026, 112
        %v5598 = vpop.permute.xlu0 %5597
        %5599 = vrot.lane.b32.xlu0 %v5110, 112
        %v5600 = vpop.permute.xlu0 %5599
        %v5601 = vsel %vm2679, %v5596, 0
        %v5603 = vsel %vm2679, %v5598, 0
        %v5605 = vsel %vm2679, %v5600, 0
        %5607 = vmatprep.subr.mxu0 0.0
        %5608 = vmatpush1.xpose.msra.mxu0 %v5605
        %5609 = vmatprep.subr.mxu0 0.0
        %5610 = vmatpush1.xpose.msra.mxu0 0.0
        %5611 = vmatprep.subr.mxu0 0.0
        %5612 = vmatpush1.xpose.msra.mxu0 0.0
        %5613 = vmatprep.subr.mxu0 0.0
        %5614 = vmatpush1.xpose.msra.mxu0 0.0
        %5615 = vmatprep.subr.mxu0 0.0
        %5616 = vmatpush1.xpose.msra.mxu0 0.0
        %5617 = vmatprep.subr.mxu0 0.0
        %5618 = vmatpush1.xpose.msra.mxu0 0.0
        %5619 = vmatprep.subr.mxu0 0.0
        %5620 = vmatpush1.xpose.msra.mxu0 0.0
        %5621 = vmatprep.subr.mxu0 0.0
        %5622 = vmatpush1.xpose.msra.mxu0 0.0
        %5623 = vmatprep.subr.mxu0 0.0
        %5624 = vmatpush1.xpose.msra.mxu0 0.0
        %5625 = vmatprep.subr.mxu0 0.0
        %5626 = vmatpush1.xpose.msra.mxu0 0.0
        %5627 = vmatprep.subr.mxu0 0.0
        %5628 = vmatpush1.xpose.msra.mxu0 0.0
        %5629 = vmatprep.subr.mxu0 0.0
        %5630 = vmatpush1.xpose.msra.mxu0 0.0
        %5631 = vmatprep.subr.mxu0 0.0
        %5632 = vmatpush1.xpose.msra.mxu0 0.0
        %5633 = vmatprep.subr.mxu0 0.0
        %5634 = vmatpush1.xpose.msra.mxu0 0.0
        %5635 = vmatprep.subr.mxu0 0.0
        %5636 = vmatpush1.xpose.msra.mxu0 0.0
        %5637 = vmatprep.subr.mxu0 0.0
        %5638 = vmatpush1.xpose.msra.mxu0 0.0
        %5639 = vmatprep.subr.mxu0 0.0
        %5640 = vmatpush1.xpose.msra.mxu0 0.0
        %5641 = vmatprep.subr.mxu0 0.0
        %5642 = vmatpush1.xpose.msra.mxu0 0.0
        %5643 = vmatprep.subr.mxu0 0.0
        %5644 = vmatpush1.xpose.msra.mxu0 0.0
        %5645 = vmatprep.subr.mxu0 0.0
        %5646 = vmatpush1.xpose.msra.mxu0 0.0
        %5647 = vmatprep.subr.mxu0 0.0
        %5648 = vmatpush1.xpose.msra.mxu0 0.0
        %5649 = vmatprep.subr.mxu0 0.0
        %5650 = vmatpush1.xpose.msra.mxu0 0.0
        %5651 = vmatprep.subr.mxu0 0.0
        %5652 = vmatpush1.xpose.msra.mxu0 0.0
        %5653 = vmatprep.subr.mxu0 0.0
        %5654 = vmatpush1.xpose.msra.mxu0 0.0
        %5655 = vmatprep.subr.mxu0 0.0
        %5656 = vmatpush1.xpose.msra.mxu0 0.0
        %5657 = vmatprep.subr.mxu0 0.0
        %5658 = vmatpush1.xpose.msra.mxu0 0.0
        %5659 = vmatprep.subr.mxu0 0.0
        %5660 = vmatpush1.xpose.msra.mxu0 0.0
        %5661 = vmatprep.subr.mxu0 0.0
        %5662 = vmatpush1.xpose.msra.mxu0 0.0
        %5663 = vmatprep.subr.mxu0 0.0
        %5664 = vmatpush1.xpose.msra.mxu0 0.0
        %5665 = vmatprep.subr.mxu0 0.0
        %5666 = vmatpush1.xpose.msra.mxu0 0.0
        %5667 = vmatprep.subr.mxu0 0.0
        %5668 = vmatpush1.xpose.msra.mxu0 0.0
        %5669 = vmatprep.subr.mxu0 0.0
        %5670 = vmatpush1.xpose.msra.mxu0 0.0
        %5671 = vmatprep.mubr.f32.mxu0 0.0
        %5672 = vmatmul.mubr.f32.gmra.mrb[0].mxu0 %v5601
        %v5673 = vpop.f32.mrb[0].mxu0
        %v5674 = vadd.f32 0.0, %v5673
        %v5675 = vpop.f32.mrb[0].mxu0
        %5676 = vmatprep.mubr.f32.mxu0 0.0
        %5677 = vmatmul.mubr.f32.gmra.mrb[0].mxu0 %v5603
        %v5678 = vpop.f32.mrb[0].mxu0
        %v5679 = vadd.f32 0.0, %v5678
        %v5680 = vpop.f32.mrb[0].mxu0
        %5681 = vdwg.mxu0
        %v5682 = vmul.f32 %v5674, 0.35355338
        %v5683 = vmul.f32 %v5679, 0.35355338
        %v5684 = vsel %vm2769, %v5682, -inf
        %5685 = vmax.xlane.f32.xlu0 %v5684
        %v5686 = vpop.xlane.xlu0 %5685
        %v5687 = vsel %vm2755, %v5683, -inf
        %5688 = vmax.xlane.f32.xlu0 %v5687
        %v5689 = vpop.xlane.xlu0 %5688
        %v5690 = vsub.f32 %v5682, %v5686
        %v5691 = vsub.f32 %v5683, %v5689
        %v5692 = vmul.f32 %v5690, 1.442695
        %v5693 = vpow.pop %v5692
        %v5694 = vmul.f32 %v5691, 1.442695
        %v5695 = vpow.pop %v5694
        %v5696 = vsel %vm2769, %v5693, 0.0
        %5697 = vadd.xlane.f32.xlu0 %v5696
        %v5698 = vpop.xlane.xlu0 %5697
        %v5699 = vsel %vm2755, %v5695, 0.0
        %5700 = vadd.xlane.f32.xlu0 %v5699
        %v5701 = vpop.xlane.xlu0 %5700
        %v5702 = vrcp.pop %v5698
        %v5703 = vrcp.pop %v5701
        %v5704 = vmul.f32 %v5693, %v5702
        %v5705 = vmul.f32 %v5695, %v5703
        %5706 = vrot.lane.b32.xlu0 %v5191, 112
        %v5707 = vpop.permute.xlu0 %5706
        %v5709 = vsel %vm2769, %v5704, 0
        %v5712 = vsel %vm2769, %v5705, 0
        %v5714 = vsel %vm2773, %v5707, 0
        %5716 = vmatprep.subr.mxu0 0.0
        %5717 = vmatpush1.msra.mxu0 %v5714
        %5718 = vmatprep.subr.mxu0 0.0
        %5719 = vmatpush1.msra.mxu0 0.0
        %5720 = vmatprep.subr.mxu0 0.0
        %5721 = vmatpush1.msra.mxu0 0.0
        %5722 = vmatprep.subr.mxu0 0.0
        %5723 = vmatpush1.msra.mxu0 0.0
        %5724 = vmatprep.subr.mxu0 0.0
        %5725 = vmatpush1.msra.mxu0 0.0
        %5726 = vmatprep.subr.mxu0 0.0
        %5727 = vmatpush1.msra.mxu0 0.0
        %5728 = vmatprep.subr.mxu0 0.0
        %5729 = vmatpush1.msra.mxu0 0.0
        %5730 = vmatprep.subr.mxu0 0.0
        %5731 = vmatpush1.msra.mxu0 0.0
        %5732 = vmatprep.subr.mxu0 0.0
        %5733 = vmatpush1.msra.mxu0 0.0
        %5734 = vmatprep.subr.mxu0 0.0
        %5735 = vmatpush1.msra.mxu0 0.0
        %5736 = vmatprep.subr.mxu0 0.0
        %5737 = vmatpush1.msra.mxu0 0.0
        %5738 = vmatprep.subr.mxu0 0.0
        %5739 = vmatpush1.msra.mxu0 0.0
        %5740 = vmatprep.subr.mxu0 0.0
        %5741 = vmatpush1.msra.mxu0 0.0
        %5742 = vmatprep.subr.mxu0 0.0
        %5743 = vmatpush1.msra.mxu0 0.0
        %5744 = vmatprep.subr.mxu0 0.0
        %5745 = vmatpush1.msra.mxu0 0.0
        %5746 = vmatprep.subr.mxu0 0.0
        %5747 = vmatpush1.msra.mxu0 0.0
        %5748 = vmatprep.subr.mxu0 0.0
        %5749 = vmatpush1.msra.mxu0 0.0
        %5750 = vmatprep.subr.mxu0 0.0
        %5751 = vmatpush1.msra.mxu0 0.0
        %5752 = vmatprep.subr.mxu0 0.0
        %5753 = vmatpush1.msra.mxu0 0.0
        %5754 = vmatprep.subr.mxu0 0.0
        %5755 = vmatpush1.msra.mxu0 0.0
        %5756 = vmatprep.subr.mxu0 0.0
        %5757 = vmatpush1.msra.mxu0 0.0
        %5758 = vmatprep.subr.mxu0 0.0
        %5759 = vmatpush1.msra.mxu0 0.0
        %5760 = vmatprep.subr.mxu0 0.0
        %5761 = vmatpush1.msra.mxu0 0.0
        %5762 = vmatprep.subr.mxu0 0.0
        %5763 = vmatpush1.msra.mxu0 0.0
        %5764 = vmatprep.subr.mxu0 0.0
        %5765 = vmatpush1.msra.mxu0 0.0
        %5766 = vmatprep.subr.mxu0 0.0
        %5767 = vmatpush1.msra.mxu0 0.0
        %5768 = vmatprep.subr.mxu0 0.0
        %5769 = vmatpush1.msra.mxu0 0.0
        %5770 = vmatprep.subr.mxu0 0.0
        %5771 = vmatpush1.msra.mxu0 0.0
        %5772 = vmatprep.subr.mxu0 0.0
        %5773 = vmatpush1.msra.mxu0 0.0
        %5774 = vmatprep.subr.mxu0 0.0
        %5775 = vmatpush1.msra.mxu0 0.0
        %5776 = vmatprep.subr.mxu0 0.0
        %5777 = vmatpush1.msra.mxu0 0.0
        %5778 = vmatprep.subr.mxu0 0.0
        %5779 = vmatpush1.msra.mxu0 0.0
        %5780 = vmatprep.mubr.f32.mxu0 0.0
        %5781 = vmatmul.mubr.f32.gmra.mrb[0].mxu0 %v5709
        %v5782 = vpop.f32.mrb[0].mxu0
        %v5783 = vadd.f32 0.0, %v5782
        %v5784 = vpop.f32.mrb[0].mxu0
        %5785 = vmatprep.mubr.f32.mxu0 0.0
        %5786 = vmatmul.mubr.f32.gmra.mrb[0].mxu0 %v5712
        %v5787 = vpop.f32.mrb[0].mxu0
        %v5788 = vadd.f32 0.0, %v5787
        %v5789 = vpop.f32.mrb[0].mxu0
        %5790 = vdwg.mxu0
        %5793 = vrot.lane.b32.xlu0 %v5783, 16
        %v5794 = vpop.permute.xlu0 %5793
        %5795 = vrot.lane.b32.xlu0 %v5788, 16
        %v5796 = vpop.permute.xlu0 %5795
        %vm5799 = vcmask 195712
        %5800 = vst.msk [vmem:[#allocation3] sm:$0xff] %vm5799, %v5794
        %5801 = vst.msk [vmem:[#allocation3 + $0x8] sm:$0xf] %vm3192, %v5796
        %5802 = vrot.lane.b32.xlu0 %v5021, 104
        %v5803 = vpop.permute.xlu0 %5802
        %5804 = vrot.lane.b32.xlu0 %v5026, 104
        %v5805 = vpop.permute.xlu0 %5804
        %5806 = vrot.lane.b32.xlu0 %v5110, 104
        %v5807 = vpop.permute.xlu0 %5806
        %v5808 = vsel %vm2679, %v5803, 0
        %v5810 = vsel %vm2679, %v5805, 0
        %v5812 = vsel %vm2679, %v5807, 0
        %5814 = vmatprep.subr.mxu0 0.0
        %5815 = vmatpush1.xpose.msra.mxu0 %v5812
        %5816 = vmatprep.subr.mxu0 0.0
        %5817 = vmatpush1.xpose.msra.mxu0 0.0
        %5818 = vmatprep.subr.mxu0 0.0
        %5819 = vmatpush1.xpose.msra.mxu0 0.0
        %5820 = vmatprep.subr.mxu0 0.0
        %5821 = vmatpush1.xpose.msra.mxu0 0.0
        %5822 = vmatprep.subr.mxu0 0.0
        %5823 = vmatpush1.xpose.msra.mxu0 0.0
        %5824 = vmatprep.subr.mxu0 0.0
        %5825 = vmatpush1.xpose.msra.mxu0 0.0
        %5826 = vmatprep.subr.mxu0 0.0
        %5827 = vmatpush1.xpose.msra.mxu0 0.0
        %5828 = vmatprep.subr.mxu0 0.0
        %5829 = vmatpush1.xpose.msra.mxu0 0.0
        %5830 = vmatprep.subr.mxu0 0.0
        %5831 = vmatpush1.xpose.msra.mxu0 0.0
        %5832 = vmatprep.subr.mxu0 0.0
        %5833 = vmatpush1.xpose.msra.mxu0 0.0
        %5834 = vmatprep.subr.mxu0 0.0
        %5835 = vmatpush1.xpose.msra.mxu0 0.0
        %5836 = vmatprep.subr.mxu0 0.0
        %5837 = vmatpush1.xpose.msra.mxu0 0.0
        %5838 = vmatprep.subr.mxu0 0.0
        %5839 = vmatpush1.xpose.msra.mxu0 0.0
        %5840 = vmatprep.subr.mxu0 0.0
        %5841 = vmatpush1.xpose.msra.mxu0 0.0
        %5842 = vmatprep.subr.mxu0 0.0
        %5843 = vmatpush1.xpose.msra.mxu0 0.0
        %5844 = vmatprep.subr.mxu0 0.0
        %5845 = vmatpush1.xpose.msra.mxu0 0.0
        %5846 = vmatprep.subr.mxu0 0.0
        %5847 = vmatpush1.xpose.msra.mxu0 0.0
        %5848 = vmatprep.subr.mxu0 0.0
        %5849 = vmatpush1.xpose.msra.mxu0 0.0
        %5850 = vmatprep.subr.mxu0 0.0
        %5851 = vmatpush1.xpose.msra.mxu0 0.0
        %5852 = vmatprep.subr.mxu0 0.0
        %5853 = vmatpush1.xpose.msra.mxu0 0.0
        %5854 = vmatprep.subr.mxu0 0.0
        %5855 = vmatpush1.xpose.msra.mxu0 0.0
        %5856 = vmatprep.subr.mxu0 0.0
        %5857 = vmatpush1.xpose.msra.mxu0 0.0
        %5858 = vmatprep.subr.mxu0 0.0
        %5859 = vmatpush1.xpose.msra.mxu0 0.0
        %5860 = vmatprep.subr.mxu0 0.0
        %5861 = vmatpush1.xpose.msra.mxu0 0.0
        %5862 = vmatprep.subr.mxu0 0.0
        %5863 = vmatpush1.xpose.msra.mxu0 0.0
        %5864 = vmatprep.subr.mxu0 0.0
        %5865 = vmatpush1.xpose.msra.mxu0 0.0
        %5866 = vmatprep.subr.mxu0 0.0
        %5867 = vmatpush1.xpose.msra.mxu0 0.0
        %5868 = vmatprep.subr.mxu0 0.0
        %5869 = vmatpush1.xpose.msra.mxu0 0.0
        %5870 = vmatprep.subr.mxu0 0.0
        %5871 = vmatpush1.xpose.msra.mxu0 0.0
        %5872 = vmatprep.subr.mxu0 0.0
        %5873 = vmatpush1.xpose.msra.mxu0 0.0
        %5874 = vmatprep.subr.mxu0 0.0
        %5875 = vmatpush1.xpose.msra.mxu0 0.0
        %5876 = vmatprep.subr.mxu0 0.0
        %5877 = vmatpush1.xpose.msra.mxu0 0.0
        %5878 = vmatprep.mubr.f32.mxu0 0.0
        %5879 = vmatmul.mubr.f32.gmra.mrb[0].mxu0 %v5808
        %v5880 = vpop.f32.mrb[0].mxu0
        %v5881 = vadd.f32 0.0, %v5880
        %v5882 = vpop.f32.mrb[0].mxu0
        %5883 = vmatprep.mubr.f32.mxu0 0.0
        %5884 = vmatmul.mubr.f32.gmra.mrb[0].mxu0 %v5810
        %v5885 = vpop.f32.mrb[0].mxu0
        %v5886 = vadd.f32 0.0, %v5885
        %v5887 = vpop.f32.mrb[0].mxu0
        %5888 = vdwg.mxu0
        %v5889 = vmul.f32 %v5881, 0.35355338
        %v5890 = vmul.f32 %v5886, 0.35355338
        %v5891 = vsel %vm2769, %v5889, -inf
        %5892 = vmax.xlane.f32.xlu0 %v5891
        %v5893 = vpop.xlane.xlu0 %5892
        %v5894 = vsel %vm2755, %v5890, -inf
        %5895 = vmax.xlane.f32.xlu0 %v5894
        %v5896 = vpop.xlane.xlu0 %5895
        %v5897 = vsub.f32 %v5889, %v5893
        %v5898 = vsub.f32 %v5890, %v5896
        %v5899 = vmul.f32 %v5897, 1.442695
        %v5900 = vpow.pop %v5899
        %v5901 = vmul.f32 %v5898, 1.442695
        %v5902 = vpow.pop %v5901
        %v5903 = vsel %vm2769, %v5900, 0.0
        %5904 = vadd.xlane.f32.xlu0 %v5903
        %v5905 = vpop.xlane.xlu0 %5904
        %v5906 = vsel %vm2755, %v5902, 0.0
        %5907 = vadd.xlane.f32.xlu0 %v5906
        %v5908 = vpop.xlane.xlu0 %5907
        %v5909 = vrcp.pop %v5905
        %v5910 = vrcp.pop %v5908
        %v5911 = vmul.f32 %v5900, %v5909
        %v5912 = vmul.f32 %v5902, %v5910
        %5913 = vrot.lane.b32.xlu0 %v5191, 104
        %v5914 = vpop.permute.xlu0 %5913
        %v5916 = vsel %vm2769, %v5911, 0
        %v5919 = vsel %vm2769, %v5912, 0
        %v5921 = vsel %vm2773, %v5914, 0
        %5923 = vmatprep.subr.mxu0 0.0
        %5924 = vmatpush1.msra.mxu0 %v5921
        %5925 = vmatprep.subr.mxu0 0.0
        %5926 = vmatpush1.msra.mxu0 0.0
        %5927 = vmatprep.subr.mxu0 0.0
        %5928 = vmatpush1.msra.mxu0 0.0
        %5929 = vmatprep.subr.mxu0 0.0
        %5930 = vmatpush1.msra.mxu0 0.0
        %5931 = vmatprep.subr.mxu0 0.0
        %5932 = vmatpush1.msra.mxu0 0.0
        %5933 = vmatprep.subr.mxu0 0.0
        %5934 = vmatpush1.msra.mxu0 0.0
        %5935 = vmatprep.subr.mxu0 0.0
        %5936 = vmatpush1.msra.mxu0 0.0
        %5937 = vmatprep.subr.mxu0 0.0
        %5938 = vmatpush1.msra.mxu0 0.0
        %5939 = vmatprep.subr.mxu0 0.0
        %5940 = vmatpush1.msra.mxu0 0.0
        %5941 = vmatprep.subr.mxu0 0.0
        %5942 = vmatpush1.msra.mxu0 0.0
        %5943 = vmatprep.subr.mxu0 0.0
        %5944 = vmatpush1.msra.mxu0 0.0
        %5945 = vmatprep.subr.mxu0 0.0
        %5946 = vmatpush1.msra.mxu0 0.0
        %5947 = vmatprep.subr.mxu0 0.0
        %5948 = vmatpush1.msra.mxu0 0.0
        %5949 = vmatprep.subr.mxu0 0.0
        %5950 = vmatpush1.msra.mxu0 0.0
        %5951 = vmatprep.subr.mxu0 0.0
        %5952 = vmatpush1.msra.mxu0 0.0
        %5953 = vmatprep.subr.mxu0 0.0
        %5954 = vmatpush1.msra.mxu0 0.0
        %5955 = vmatprep.subr.mxu0 0.0
        %5956 = vmatpush1.msra.mxu0 0.0
        %5957 = vmatprep.subr.mxu0 0.0
        %5958 = vmatpush1.msra.mxu0 0.0
        %5959 = vmatprep.subr.mxu0 0.0
        %5960 = vmatpush1.msra.mxu0 0.0
        %5961 = vmatprep.subr.mxu0 0.0
        %5962 = vmatpush1.msra.mxu0 0.0
        %5963 = vmatprep.subr.mxu0 0.0
        %5964 = vmatpush1.msra.mxu0 0.0
        %5965 = vmatprep.subr.mxu0 0.0
        %5966 = vmatpush1.msra.mxu0 0.0
        %5967 = vmatprep.subr.mxu0 0.0
        %5968 = vmatpush1.msra.mxu0 0.0
        %5969 = vmatprep.subr.mxu0 0.0
        %5970 = vmatpush1.msra.mxu0 0.0
        %5971 = vmatprep.subr.mxu0 0.0
        %5972 = vmatpush1.msra.mxu0 0.0
        %5973 = vmatprep.subr.mxu0 0.0
        %5974 = vmatpush1.msra.mxu0 0.0
        %5975 = vmatprep.subr.mxu0 0.0
        %5976 = vmatpush1.msra.mxu0 0.0
        %5977 = vmatprep.subr.mxu0 0.0
        %5978 = vmatpush1.msra.mxu0 0.0
        %5979 = vmatprep.subr.mxu0 0.0
        %5980 = vmatpush1.msra.mxu0 0.0
        %5981 = vmatprep.subr.mxu0 0.0
        %5982 = vmatpush1.msra.mxu0 0.0
        %5983 = vmatprep.subr.mxu0 0.0
        %5984 = vmatpush1.msra.mxu0 0.0
        %5985 = vmatprep.subr.mxu0 0.0
        %5986 = vmatpush1.msra.mxu0 0.0
        %5987 = vmatprep.mubr.f32.mxu0 0.0
        %5988 = vmatmul.mubr.f32.gmra.mrb[0].mxu0 %v5916
        %v5989 = vpop.f32.mrb[0].mxu0
        %v5990 = vadd.f32 0.0, %v5989
        %v5991 = vpop.f32.mrb[0].mxu0
        %5992 = vmatprep.mubr.f32.mxu0 0.0
        %5993 = vmatmul.mubr.f32.gmra.mrb[0].mxu0 %v5919
        %v5994 = vpop.f32.mrb[0].mxu0
        %v5995 = vadd.f32 0.0, %v5994
        %v5996 = vpop.f32.mrb[0].mxu0
        %5997 = vdwg.mxu0
        %6000 = vrot.lane.b32.xlu0 %v5990, 24
        %v6001 = vpop.permute.xlu0 %6000
        %6002 = vrot.lane.b32.xlu0 %v5995, 24
        %v6003 = vpop.permute.xlu0 %6002
        %vm6006 = vcmask 261312
        %6007 = vst.msk [vmem:[#allocation3] sm:$0xff] %vm6006, %v6001
        %6008 = vst.msk [vmem:[#allocation3 + $0x8] sm:$0xf] %vm3365, %v6003
        %v6009 = vld [vmem:[#allocation3] sm:$0xff]
        %v6010 = vld [vmem:[#allocation3 + $0x8] sm:$0xf]
        %v6011 = vld [vmem:[%s87] sm:$0xff]
        %v6012 = vld [vmem:[%s87 + $0x8] sm:$0xff]
        %v6013 = vld [vmem:[%s87 + $0x10] sm:$0xff]
        %v6014 = vld [vmem:[%s87 + $0x18] sm:$0xff]
        %v6015 = vld [vmem:[#allocation18] sm:$0x1]
        %v6017 = vlaneseq
        %v6018 = vshrl.u32 %v6017, 7
        %v6019 = vsub.s32 0, %v6018
        %v6020 = vrot.slane %v6015, %v6019
        %v6023 = vsel %vm2602, %v6009, 0
        %v6026 = vsel %vm2602, %v6010, 0
        %6028 = vmatprep.subr.mxu0 0.0
        %6029 = vmatpush1.msra.mxu0 %v6011
        %6030 = vmatprep.subr.mxu0 0.0
        %6031 = vmatpush1.msra.mxu0 %v6012
        %6032 = vmatprep.subr.mxu0 0.0
        %6033 = vmatpush1.msra.mxu0 %v6013
        %6034 = vmatprep.subr.mxu0 0.0
        %6035 = vmatpush1.msra.mxu0 %v6014
        %6036 = vmatprep.subr.mxu0 0.0
        %6037 = vmatpush1.msra.mxu0 0.0
        %6038 = vmatprep.subr.mxu0 0.0
        %6039 = vmatpush1.msra.mxu0 0.0
        %6040 = vmatprep.subr.mxu0 0.0
        %6041 = vmatpush1.msra.mxu0 0.0
        %6042 = vmatprep.subr.mxu0 0.0
        %6043 = vmatpush1.msra.mxu0 0.0
        %6044 = vmatprep.subr.mxu0 0.0
        %6045 = vmatpush1.msra.mxu0 0.0
        %6046 = vmatprep.subr.mxu0 0.0
        %6047 = vmatpush1.msra.mxu0 0.0
        %6048 = vmatprep.subr.mxu0 0.0
        %6049 = vmatpush1.msra.mxu0 0.0
        %6050 = vmatprep.subr.mxu0 0.0
        %6051 = vmatpush1.msra.mxu0 0.0
        %6052 = vmatprep.subr.mxu0 0.0
        %6053 = vmatpush1.msra.mxu0 0.0
        %6054 = vmatprep.subr.mxu0 0.0
        %6055 = vmatpush1.msra.mxu0 0.0
        %6056 = vmatprep.subr.mxu0 0.0
        %6057 = vmatpush1.msra.mxu0 0.0
        %6058 = vmatprep.subr.mxu0 0.0
        %6059 = vmatpush1.msra.mxu0 0.0
        %6060 = vmatprep.subr.mxu0 0.0
        %6061 = vmatpush1.msra.mxu0 0.0
        %6062 = vmatprep.subr.mxu0 0.0
        %6063 = vmatpush1.msra.mxu0 0.0
        %6064 = vmatprep.subr.mxu0 0.0
        %6065 = vmatpush1.msra.mxu0 0.0
        %6066 = vmatprep.subr.mxu0 0.0
        %6067 = vmatpush1.msra.mxu0 0.0
        %6068 = vmatprep.subr.mxu0 0.0
        %6069 = vmatpush1.msra.mxu0 0.0
        %6070 = vmatprep.subr.mxu0 0.0
        %6071 = vmatpush1.msra.mxu0 0.0
        %6072 = vmatprep.subr.mxu0 0.0
        %6073 = vmatpush1.msra.mxu0 0.0
        %6074 = vmatprep.subr.mxu0 0.0
        %6075 = vmatpush1.msra.mxu0 0.0
        %6076 = vmatprep.subr.mxu0 0.0
        %6077 = vmatpush1.msra.mxu0 0.0
        %6078 = vmatprep.subr.mxu0 0.0
        %6079 = vmatpush1.msra.mxu0 0.0
        %6080 = vmatprep.subr.mxu0 0.0
        %6081 = vmatpush1.msra.mxu0 0.0
        %6082 = vmatprep.subr.mxu0 0.0
        %6083 = vmatpush1.msra.mxu0 0.0
        %6084 = vmatprep.subr.mxu0 0.0
        %6085 = vmatpush1.msra.mxu0 0.0
        %6086 = vmatprep.subr.mxu0 0.0
        %6087 = vmatpush1.msra.mxu0 0.0
        %6088 = vmatprep.subr.mxu0 0.0
        %6089 = vmatpush1.msra.mxu0 0.0
        %6090 = vmatprep.subr.mxu0 0.0
        %6091 = vmatpush1.msra.mxu0 0.0
        %6092 = vmatprep.mubr.f32.mxu0 0.0
        %6093 = vmatmul.mubr.f32.gmra.mrb[0].mxu0 %v6023
        %v6094 = vpop.f32.mrb[0].mxu0
        %v6095 = vadd.f32 %v6020, %v6094
        %v6096 = vpop.f32.mrb[0].mxu0
        %6097 = vmatprep.mubr.f32.mxu0 0.0
        %6098 = vmatmul.mubr.f32.gmra.mrb[0].mxu0 %v6026
        %v6099 = vpop.f32.mrb[0].mxu0
        %v6100 = vadd.f32 %v6020, %v6099
        %v6101 = vpop.f32.mrb[0].mxu0
        %6102 = vdwg.mxu0
        %v6103 = vadd.f32 %v4890, %v6095
        %v6104 = vadd.f32 %v4891, %v6100
        %v6105 = vld [vmem:[#allocation20] sm:$0x1]
        %v6106 = vld [vmem:[#allocation21] sm:$0x1]
        %v6107 = vsel %vm2602, %v6103, 0.0
        %6108 = vadd.xlane.f32.xlu0 %v6107
        %v6109 = vpop.xlane.xlu0 %6108
        %v6110 = vsel %vm2562, %v6104, 0.0
        %6111 = vadd.xlane.f32.xlu0 %v6110
        %v6112 = vpop.xlane.xlu0 %6111
        %v6113 = vmul.f32 %v6109, %v2566
        %v6114 = vmul.f32 %v6112, %v2566
        %v6115 = vsub.f32 %v6103, %v6113
        %v6116 = vsub.f32 %v6104, %v6114
        %v6117 = vmul.f32 %v6115, %v6115
        %v6118 = vmul.f32 %v6116, %v6116
        %v6119 = vsel %vm2602, %v6117, 0.0
        %6120 = vadd.xlane.f32.xlu0 %v6119
        %v6121 = vpop.xlane.xlu0 %6120
        %v6122 = vsel %vm2562, %v6118, 0.0
        %6123 = vadd.xlane.f32.xlu0 %v6122
        %v6124 = vpop.xlane.xlu0 %6123
        %v6125 = vmul.f32 %v6121, %v2566
        %v6126 = vmul.f32 %v6124, %v2566
        %v6127 = vadd.f32 %v6125, 1e-05
        %v6128 = vadd.f32 %v6126, 1e-05
        %v6129 = vrsqrt.pop %v6127
        %v6130 = vrsqrt.pop %v6128
        %v6131 = vmul.f32 %v6115, %v6129
        %v6132 = vmul.f32 %v6116, %v6130
        %v6134 = vlaneseq
        %v6135 = vshrl.u32 %v6134, 7
        %v6136 = vsub.s32 0, %v6135
        %v6137 = vrot.slane %v6105, %v6136
        %v6139 = vmul.f32 %v6131, %v6137
        %v6140 = vmul.f32 %v6132, %v6137
        %v6142 = vlaneseq
        %v6143 = vshrl.u32 %v6142, 7
        %v6144 = vsub.s32 0, %v6143
        %v6145 = vrot.slane %v6106, %v6144
        %v6147 = vadd.f32 %v6139, %v6145
        %v6148 = vadd.f32 %v6140, %v6145
        %v6149 = vld [vmem:[%s95] sm:$0xff]
        %v6150 = vld [vmem:[%s95 + $0x8] sm:$0xff]
        %v6151 = vld [vmem:[%s95 + $0x10] sm:$0xff]
        %v6152 = vld [vmem:[%s95 + $0x18] sm:$0xff]
        %v6153 = vld [vmem:[#allocation23] sm:$0x1]
        %v6155 = vlaneseq
        %v6156 = vshrl.u32 %v6155, 7
        %v6157 = vsub.s32 0, %v6156
        %v6158 = vrot.slane %v6153, %v6157
        %v6161 = vsel %vm2602, %v6147, 0
        %v6164 = vsel %vm2602, %v6148, 0
        %6166 = vmatprep.subr.mxu0 0.0
        %6167 = vmatpush1.msra.mxu0 %v6149
        %6168 = vmatprep.subr.mxu0 0.0
        %6169 = vmatpush1.msra.mxu0 %v6150
        %6170 = vmatprep.subr.mxu0 0.0
        %6171 = vmatpush1.msra.mxu0 %v6151
        %6172 = vmatprep.subr.mxu0 0.0
        %6173 = vmatpush1.msra.mxu0 %v6152
        %6174 = vmatprep.subr.mxu0 0.0
        %6175 = vmatpush1.msra.mxu0 0.0
        %6176 = vmatprep.subr.mxu0 0.0
        %6177 = vmatpush1.msra.mxu0 0.0
        %6178 = vmatprep.subr.mxu0 0.0
        %6179 = vmatpush1.msra.mxu0 0.0
        %6180 = vmatprep.subr.mxu0 0.0
        %6181 = vmatpush1.msra.mxu0 0.0
        %6182 = vmatprep.subr.mxu0 0.0
        %6183 = vmatpush1.msra.mxu0 0.0
        %6184 = vmatprep.subr.mxu0 0.0
        %6185 = vmatpush1.msra.mxu0 0.0
        %6186 = vmatprep.subr.mxu0 0.0
        %6187 = vmatpush1.msra.mxu0 0.0
        %6188 = vmatprep.subr.mxu0 0.0
        %6189 = vmatpush1.msra.mxu0 0.0
        %6190 = vmatprep.subr.mxu0 0.0
        %6191 = vmatpush1.msra.mxu0 0.0
        %6192 = vmatprep.subr.mxu0 0.0
        %6193 = vmatpush1.msra.mxu0 0.0
        %6194 = vmatprep.subr.mxu0 0.0
        %6195 = vmatpush1.msra.mxu0 0.0
        %6196 = vmatprep.subr.mxu0 0.0
        %6197 = vmatpush1.msra.mxu0 0.0
        %6198 = vmatprep.subr.mxu0 0.0
        %6199 = vmatpush1.msra.mxu0 0.0
        %6200 = vmatprep.subr.mxu0 0.0
        %6201 = vmatpush1.msra.mxu0 0.0
        %6202 = vmatprep.subr.mxu0 0.0
        %6203 = vmatpush1.msra.mxu0 0.0
        %6204 = vmatprep.subr.mxu0 0.0
        %6205 = vmatpush1.msra.mxu0 0.0
        %6206 = vmatprep.subr.mxu0 0.0
        %6207 = vmatpush1.msra.mxu0 0.0
        %6208 = vmatprep.subr.mxu0 0.0
        %6209 = vmatpush1.msra.mxu0 0.0
        %6210 = vmatprep.subr.mxu0 0.0
        %6211 = vmatpush1.msra.mxu0 0.0
        %6212 = vmatprep.subr.mxu0 0.0
        %6213 = vmatpush1.msra.mxu0 0.0
        %6214 = vmatprep.subr.mxu0 0.0
        %6215 = vmatpush1.msra.mxu0 0.0
        %6216 = vmatprep.subr.mxu0 0.0
        %6217 = vmatpush1.msra.mxu0 0.0
        %6218 = vmatprep.subr.mxu0 0.0
        %6219 = vmatpush1.msra.mxu0 0.0
        %6220 = vmatprep.subr.mxu0 0.0
        %6221 = vmatpush1.msra.mxu0 0.0
        %6222 = vmatprep.subr.mxu0 0.0
        %6223 = vmatpush1.msra.mxu0 0.0
        %6224 = vmatprep.subr.mxu0 0.0
        %6225 = vmatpush1.msra.mxu0 0.0
        %6226 = vmatprep.subr.mxu0 0.0
        %6227 = vmatpush1.msra.mxu0 0.0
        %6228 = vmatprep.subr.mxu0 0.0
        %6229 = vmatpush1.msra.mxu0 0.0
        %6230 = vmatprep.mubr.f32.mxu0 0.0
        %6231 = vmatmul.mubr.f32.gmra.mrb[0].mxu0 %v6161
        %v6232 = vpop.f32.mrb[0].mxu0
        %v6233 = vadd.f32 %v6158, %v6232
        %v6234 = vpop.f32.mrb[0].mxu0
        %6235 = vmatprep.mubr.f32.mxu0 0.0
        %6236 = vmatmul.mubr.f32.gmra.mrb[0].mxu0 %v6164
        %v6237 = vpop.f32.mrb[0].mxu0
        %v6238 = vadd.f32 %v6158, %v6237
        %v6239 = vpop.f32.mrb[0].mxu0
        %6240 = vdwg.mxu0
        %v6241 = vmul.f32 %v6233, 0.5
        %v6242 = vmul.f32 %v6238, 0.5
        %v6243 = vmul.f32 %v6233, 0.044715
        %v6244 = vmul.f32 %v6238, 0.044715
        %v6245 = vmul.f32 %v6243, %v6233
        %v6246 = vmul.f32 %v6244, %v6238
        %v6247 = vmul.f32 %v6245, %v6233
        %v6248 = vmul.f32 %v6246, %v6238
        %v6249 = vadd.f32 %v6233, %v6247
        %v6250 = vadd.f32 %v6238, %v6248
        %v6251 = vmul.f32 %v6249, 0.7978846
        %v6252 = vmul.f32 %v6250, 0.7978846
        %v6253 = vtanh.pop %v6251
        %v6254 = vtanh.pop %v6252
        %v6255 = vadd.f32 %v6253, 1.0
        %v6256 = vadd.f32 %v6254, 1.0
        %v6257 = vmul.f32 %v6241, %v6255
        %v6258 = vmul.f32 %v6242, %v6256
        %v6259 = vld [vmem:[%s99] sm:$0xff]
        %v6260 = vld [vmem:[%s99 + $0x8] sm:$0xff]
        %v6261 = vld [vmem:[%s99 + $0x10] sm:$0xff]
        %v6262 = vld [vmem:[%s99 + $0x18] sm:$0xff]
        %v6263 = vld [vmem:[%s99 + $0x20] sm:$0xff]
        %v6264 = vld [vmem:[%s99 + $0x28] sm:$0xff]
        %v6265 = vld [vmem:[%s99 + $0x30] sm:$0xff]
        %v6266 = vld [vmem:[%s99 + $0x38] sm:$0xff]
        %v6267 = vld [vmem:[%s99 + $0x40] sm:$0xff]
        %v6268 = vld [vmem:[%s99 + $0x48] sm:$0xff]
        %v6269 = vld [vmem:[%s99 + $0x50] sm:$0xff]
        %v6270 = vld [vmem:[%s99 + $0x58] sm:$0xff]
        %v6271 = vld [vmem:[%s99 + $0x60] sm:$0xff]
        %v6272 = vld [vmem:[%s99 + $0x68] sm:$0xff]
        %v6273 = vld [vmem:[%s99 + $0x70] sm:$0xff]
        %v6274 = vld [vmem:[%s99 + $0x78] sm:$0xff]
        %v6275 = vld [vmem:[#allocation24] sm:$0x1]
        %v6277 = vlaneseq
        %v6278 = vshrl.u32 %v6277, 7
        %v6279 = vsub.s32 0, %v6278
        %v6280 = vrot.slane %v6275, %v6279
        %6282 = vmatprep.subr.mxu0 0.0
        %6283 = vmatpush1.msra.mxu0 %v6259
        %6284 = vmatprep.subr.mxu0 0.0
        %6285 = vmatpush1.msra.mxu0 %v6260
        %6286 = vmatprep.subr.mxu0 0.0
        %6287 = vmatpush1.msra.mxu0 %v6261
        %6288 = vmatprep.subr.mxu0 0.0
        %6289 = vmatpush1.msra.mxu0 %v6262
        %6290 = vmatprep.subr.mxu0 0.0
        %6291 = vmatpush1.msra.mxu0 %v6263
        %6292 = vmatprep.subr.mxu0 0.0
        %6293 = vmatpush1.msra.mxu0 %v6264
        %6294 = vmatprep.subr.mxu0 0.0
        %6295 = vmatpush1.msra.mxu0 %v6265
        %6296 = vmatprep.subr.mxu0 0.0
        %6297 = vmatpush1.msra.mxu0 %v6266
        %6298 = vmatprep.subr.mxu0 0.0
        %6299 = vmatpush1.msra.mxu0 %v6267
        %6300 = vmatprep.subr.mxu0 0.0
        %6301 = vmatpush1.msra.mxu0 %v6268
        %6302 = vmatprep.subr.mxu0 0.0
        %6303 = vmatpush1.msra.mxu0 %v6269
        %6304 = vmatprep.subr.mxu0 0.0
        %6305 = vmatpush1.msra.mxu0 %v6270
        %6306 = vmatprep.subr.mxu0 0.0
        %6307 = vmatpush1.msra.mxu0 %v6271
        %6308 = vmatprep.subr.mxu0 0.0
        %6309 = vmatpush1.msra.mxu0 %v6272
        %6310 = vmatprep.subr.mxu0 0.0
        %6311 = vmatpush1.msra.mxu0 %v6273
        %6312 = vmatprep.subr.mxu0 0.0
        %6313 = vmatpush1.msra.mxu0 %v6274
        %6314 = vmatprep.subr.mxu0 0.0
        %6315 = vmatpush1.msra.mxu0 0.0
        %6316 = vmatprep.subr.mxu0 0.0
        %6317 = vmatpush1.msra.mxu0 0.0
        %6318 = vmatprep.subr.mxu0 0.0
        %6319 = vmatpush1.msra.mxu0 0.0
        %6320 = vmatprep.subr.mxu0 0.0
        %6321 = vmatpush1.msra.mxu0 0.0
        %6322 = vmatprep.subr.mxu0 0.0
        %6323 = vmatpush1.msra.mxu0 0.0
        %6324 = vmatprep.subr.mxu0 0.0
        %6325 = vmatpush1.msra.mxu0 0.0
        %6326 = vmatprep.subr.mxu0 0.0
        %6327 = vmatpush1.msra.mxu0 0.0
        %6328 = vmatprep.subr.mxu0 0.0
        %6329 = vmatpush1.msra.mxu0 0.0
        %6330 = vmatprep.subr.mxu0 0.0
        %6331 = vmatpush1.msra.mxu0 0.0
        %6332 = vmatprep.subr.mxu0 0.0
        %6333 = vmatpush1.msra.mxu0 0.0
        %6334 = vmatprep.subr.mxu0 0.0
        %6335 = vmatpush1.msra.mxu0 0.0
        %6336 = vmatprep.subr.mxu0 0.0
        %6337 = vmatpush1.msra.mxu0 0.0
        %6338 = vmatprep.subr.mxu0 0.0
        %6339 = vmatpush1.msra.mxu0 0.0
        %6340 = vmatprep.subr.mxu0 0.0
        %6341 = vmatpush1.msra.mxu0 0.0
        %6342 = vmatprep.subr.mxu0 0.0
        %6343 = vmatpush1.msra.mxu0 0.0
        %6344 = vmatprep.subr.mxu0 0.0
        %6345 = vmatpush1.msra.mxu0 0.0
        %6346 = vmatprep.mubr.f32.mxu0 0.0
        %6347 = vmatmul.mubr.f32.gmra.mrb[0].mxu0 %v6257
        %v6348 = vpop.f32.mrb[0].mxu0
        %v6349 = vadd.f32 %v6280, %v6348
        %v6350 = vpop.f32.mrb[0].mxu0
        %6351 = vmatprep.mubr.f32.mxu0 0.0
        %6352 = vmatmul.mubr.f32.gmra.mrb[0].mxu0 %v6258
        %v6353 = vpop.f32.mrb[0].mxu0
        %v6354 = vadd.f32 %v6280, %v6353
        %v6355 = vpop.f32.mrb[0].mxu0
        %6356 = vdwg.mxu0
        %v6357 = vadd.f32 %v6103, %v6349
        %v6358 = vadd.f32 %v6104, %v6354
        %v6359 = vadd.f32 %v6357, %v4880
        %v6360 = vadd.f32 %v6358, %v4881
        %v6361 = vadd.f32 %v4892, %v4882
        %v6362 = vld [vmem:[#allocation26] sm:$0x1]
        %v6363 = vld [vmem:[#allocation27] sm:$0x1]
        %v6364 = vsel %vm2602, %v6359, 0.0
        %6365 = vadd.xlane.f32.xlu0 %v6364
        %v6366 = vpop.xlane.xlu0 %6365
        %v6367 = vsel %vm2562, %v6360, 0.0
        %6368 = vadd.xlane.f32.xlu0 %v6367
        %v6369 = vpop.xlane.xlu0 %6368
        %v6370 = vmul.f32 %v6366, %v2566
        %v6371 = vmul.f32 %v6369, %v2566
        %v6372 = vsub.f32 %v6359, %v6370
        %v6373 = vsub.f32 %v6360, %v6371
        %v6374 = vmul.f32 %v6372, %v6372
        %v6375 = vmul.f32 %v6373, %v6373
        %v6376 = vsel %vm2602, %v6374, 0.0
        %6377 = vadd.xlane.f32.xlu0 %v6376
        %v6378 = vpop.xlane.xlu0 %6377
        %v6379 = vsel %vm2562, %v6375, 0.0
        %6380 = vadd.xlane.f32.xlu0 %v6379
        %v6381 = vpop.xlane.xlu0 %6380
        %v6382 = vmul.f32 %v6378, %v2566
        %v6383 = vmul.f32 %v6381, %v2566
        %v6384 = vadd.f32 %v6382, 1e-05
        %v6385 = vadd.f32 %v6383, 1e-05
        %v6386 = vrsqrt.pop %v6384
        %v6387 = vrsqrt.pop %v6385
        %v6388 = vmul.f32 %v6372, %v6386
        %v6389 = vmul.f32 %v6373, %v6387
        %v6391 = vlaneseq
        %v6392 = vshrl.u32 %v6391, 7
        %v6393 = vsub.s32 0, %v6392
        %v6394 = vrot.slane %v6362, %v6393
        %v6396 = vmul.f32 %v6388, %v6394
        %v6397 = vmul.f32 %v6389, %v6394
        %v6399 = vlaneseq
        %v6400 = vshrl.u32 %v6399, 7
        %v6401 = vsub.s32 0, %v6400
        %v6402 = vrot.slane %v6363, %v6401
        %v6404 = vadd.f32 %v6396, %v6402
        %v6405 = vadd.f32 %v6397, %v6402
        %v6406 = vld [vmem:[%s107] sm:$0xff]
        %v6407 = vld [vmem:[%s107 + $0x8] sm:$0xff]
        %v6408 = vld [vmem:[%s107 + $0x10] sm:$0xff]
        %v6409 = vld [vmem:[%s107 + $0x18] sm:$0xff]
        %v6410 = vld [vmem:[#allocation29] sm:$0x1]
        %v6412 = vlaneseq
        %v6413 = vshrl.u32 %v6412, 7
        %v6414 = vsub.s32 0, %v6413
        %v6415 = vrot.slane %v6410, %v6414
        %v6418 = vsel %vm2602, %v6404, 0
        %v6421 = vsel %vm2602, %v6405, 0
        %6423 = vmatprep.subr.mxu0 0.0
        %6424 = vmatpush1.msra.mxu0 %v6406
        %6425 = vmatprep.subr.mxu0 0.0
        %6426 = vmatpush1.msra.mxu0 %v6407
        %6427 = vmatprep.subr.mxu0 0.0
        %6428 = vmatpush1.msra.mxu0 %v6408
        %6429 = vmatprep.subr.mxu0 0.0
        %6430 = vmatpush1.msra.mxu0 %v6409
        %6431 = vmatprep.subr.mxu0 0.0
        %6432 = vmatpush1.msra.mxu0 0.0
        %6433 = vmatprep.subr.mxu0 0.0
        %6434 = vmatpush1.msra.mxu0 0.0
        %6435 = vmatprep.subr.mxu0 0.0
        %6436 = vmatpush1.msra.mxu0 0.0
        %6437 = vmatprep.subr.mxu0 0.0
        %6438 = vmatpush1.msra.mxu0 0.0
        %6439 = vmatprep.subr.mxu0 0.0
        %6440 = vmatpush1.msra.mxu0 0.0
        %6441 = vmatprep.subr.mxu0 0.0
        %6442 = vmatpush1.msra.mxu0 0.0
        %6443 = vmatprep.subr.mxu0 0.0
        %6444 = vmatpush1.msra.mxu0 0.0
        %6445 = vmatprep.subr.mxu0 0.0
        %6446 = vmatpush1.msra.mxu0 0.0
        %6447 = vmatprep.subr.mxu0 0.0
        %6448 = vmatpush1.msra.mxu0 0.0
        %6449 = vmatprep.subr.mxu0 0.0
        %6450 = vmatpush1.msra.mxu0 0.0
        %6451 = vmatprep.subr.mxu0 0.0
        %6452 = vmatpush1.msra.mxu0 0.0
        %6453 = vmatprep.subr.mxu0 0.0
        %6454 = vmatpush1.msra.mxu0 0.0
        %6455 = vmatprep.subr.mxu0 0.0
        %6456 = vmatpush1.msra.mxu0 0.0
        %6457 = vmatprep.subr.mxu0 0.0
        %6458 = vmatpush1.msra.mxu0 0.0
        %6459 = vmatprep.subr.mxu0 0.0
        %6460 = vmatpush1.msra.mxu0 0.0
        %6461 = vmatprep.subr.mxu0 0.0
        %6462 = vmatpush1.msra.mxu0 0.0
        %6463 = vmatprep.subr.mxu0 0.0
        %6464 = vmatpush1.msra.mxu0 0.0
        %6465 = vmatprep.subr.mxu0 0.0
        %6466 = vmatpush1.msra.mxu0 0.0
        %6467 = vmatprep.subr.mxu0 0.0
        %6468 = vmatpush1.msra.mxu0 0.0
        %6469 = vmatprep.subr.mxu0 0.0
        %6470 = vmatpush1.msra.mxu0 0.0
        %6471 = vmatprep.subr.mxu0 0.0
        %6472 = vmatpush1.msra.mxu0 0.0
        %6473 = vmatprep.subr.mxu0 0.0
        %6474 = vmatpush1.msra.mxu0 0.0
        %6475 = vmatprep.subr.mxu0 0.0
        %6476 = vmatpush1.msra.mxu0 0.0
        %6477 = vmatprep.subr.mxu0 0.0
        %6478 = vmatpush1.msra.mxu0 0.0
        %6479 = vmatprep.subr.mxu0 0.0
        %6480 = vmatpush1.msra.mxu0 0.0
        %6481 = vmatprep.subr.mxu0 0.0
        %6482 = vmatpush1.msra.mxu0 0.0
        %6483 = vmatprep.subr.mxu0 0.0
        %6484 = vmatpush1.msra.mxu0 0.0
        %6485 = vmatprep.subr.mxu0 0.0
        %6486 = vmatpush1.msra.mxu0 0.0
        %6487 = vmatprep.mubr.f32.mxu0 0.0
        %6488 = vmatmul.mubr.f32.gmra.mrb[0].mxu0 %v6418
        %v6489 = vpop.f32.mrb[0].mxu0
        %v6490 = vadd.f32 %v6415, %v6489
        %v6491 = vpop.f32.mrb[0].mxu0
        %6492 = vmatprep.mubr.f32.mxu0 0.0
        %6493 = vmatmul.mubr.f32.gmra.mrb[0].mxu0 %v6421
        %v6494 = vpop.f32.mrb[0].mxu0
        %v6495 = vadd.f32 %v6415, %v6494
        %v6496 = vpop.f32.mrb[0].mxu0
        %6497 = vdwg.mxu0
        %v6498 = vld [vmem:[%s111] sm:$0xff]
        %v6499 = vld [vmem:[%s111 + $0x8] sm:$0xff]
        %v6500 = vld [vmem:[%s111 + $0x10] sm:$0xff]
        %v6501 = vld [vmem:[%s111 + $0x18] sm:$0xff]
        %v6502 = vld [vmem:[#allocation30] sm:$0x1]
        %v6504 = vlaneseq
        %v6505 = vshrl.u32 %v6504, 7
        %v6506 = vsub.s32 0, %v6505
        %v6507 = vrot.slane %v6502, %v6506
        %v6510 = vsel %vm2602, %v6361, 0
        %6512 = vmatprep.subr.mxu0 0.0
        %6513 = vmatpush1.msra.mxu0 %v6498
        %6514 = vmatprep.subr.mxu0 0.0
        %6515 = vmatpush1.msra.mxu0 %v6499
        %6516 = vmatprep.subr.mxu0 0.0
        %6517 = vmatpush1.msra.mxu0 %v6500
        %6518 = vmatprep.subr.mxu0 0.0
        %6519 = vmatpush1.msra.mxu0 %v6501
        %6520 = vmatprep.subr.mxu0 0.0
        %6521 = vmatpush1.msra.mxu0 0.0
        %6522 = vmatprep.subr.mxu0 0.0
        %6523 = vmatpush1.msra.mxu0 0.0
        %6524 = vmatprep.subr.mxu0 0.0
        %6525 = vmatpush1.msra.mxu0 0.0
        %6526 = vmatprep.subr.mxu0 0.0
        %6527 = vmatpush1.msra.mxu0 0.0
        %6528 = vmatprep.subr.mxu0 0.0
        %6529 = vmatpush1.msra.mxu0 0.0
        %6530 = vmatprep.subr.mxu0 0.0
        %6531 = vmatpush1.msra.mxu0 0.0
        %6532 = vmatprep.subr.mxu0 0.0
        %6533 = vmatpush1.msra.mxu0 0.0
        %6534 = vmatprep.subr.mxu0 0.0
        %6535 = vmatpush1.msra.mxu0 0.0
        %6536 = vmatprep.subr.mxu0 0.0
        %6537 = vmatpush1.msra.mxu0 0.0
        %6538 = vmatprep.subr.mxu0 0.0
        %6539 = vmatpush1.msra.mxu0 0.0
        %6540 = vmatprep.subr.mxu0 0.0
        %6541 = vmatpush1.msra.mxu0 0.0
        %6542 = vmatprep.subr.mxu0 0.0
        %6543 = vmatpush1.msra.mxu0 0.0
        %6544 = vmatprep.subr.mxu0 0.0
        %6545 = vmatpush1.msra.mxu0 0.0
        %6546 = vmatprep.subr.mxu0 0.0
        %6547 = vmatpush1.msra.mxu0 0.0
        %6548 = vmatprep.subr.mxu0 0.0
        %6549 = vmatpush1.msra.mxu0 0.0
        %6550 = vmatprep.subr.mxu0 0.0
        %6551 = vmatpush1.msra.mxu0 0.0
        %6552 = vmatprep.subr.mxu0 0.0
        %6553 = vmatpush1.msra.mxu0 0.0
        %6554 = vmatprep.subr.mxu0 0.0
        %6555 = vmatpush1.msra.mxu0 0.0
        %6556 = vmatprep.subr.mxu0 0.0
        %6557 = vmatpush1.msra.mxu0 0.0
        %6558 = vmatprep.subr.mxu0 0.0
        %6559 = vmatpush1.msra.mxu0 0.0
        %6560 = vmatprep.subr.mxu0 0.0
        %6561 = vmatpush1.msra.mxu0 0.0
        %6562 = vmatprep.subr.mxu0 0.0
        %6563 = vmatpush1.msra.mxu0 0.0
        %6564 = vmatprep.subr.mxu0 0.0
        %6565 = vmatpush1.msra.mxu0 0.0
        %6566 = vmatprep.subr.mxu0 0.0
        %6567 = vmatpush1.msra.mxu0 0.0
        %6568 = vmatprep.subr.mxu0 0.0
        %6569 = vmatpush1.msra.mxu0 0.0
        %6570 = vmatprep.subr.mxu0 0.0
        %6571 = vmatpush1.msra.mxu0 0.0
        %6572 = vmatprep.subr.mxu0 0.0
        %6573 = vmatpush1.msra.mxu0 0.0
        %6574 = vmatprep.subr.mxu0 0.0
        %6575 = vmatpush1.msra.mxu0 0.0
        %6576 = vmatprep.mubr.f32.mxu0 0.0
        %6577 = vmatmul.mubr.f32.gmra.mrb[0].mxu0 %v6510
        %v6578 = vpop.f32.mrb[0].mxu0
        %v6579 = vadd.f32 %v6507, %v6578
        %v6580 = vpop.f32.mrb[0].mxu0
        %6581 = vdwg.mxu0
        %v6582 = vld [vmem:[%s115] sm:$0xff]
        %v6583 = vld [vmem:[%s115 + $0x8] sm:$0xff]
        %v6584 = vld [vmem:[%s115 + $0x10] sm:$0xff]
        %v6585 = vld [vmem:[%s115 + $0x18] sm:$0xff]
        %v6586 = vld [vmem:[#allocation32] sm:$0x1]
        %v6588 = vlaneseq
        %v6589 = vshrl.u32 %v6588, 7
        %v6590 = vsub.s32 0, %v6589
        %v6591 = vrot.slane %v6586, %v6590
        %6593 = vmatprep.subr.mxu0 0.0
        %6594 = vmatpush1.msra.mxu0 %v6582
        %6595 = vmatprep.subr.mxu0 0.0
        %6596 = vmatpush1.msra.mxu0 %v6583
        %6597 = vmatprep.subr.mxu0 0.0
        %6598 = vmatpush1.msra.mxu0 %v6584
        %6599 = vmatprep.subr.mxu0 0.0
        %6600 = vmatpush1.msra.mxu0 %v6585
        %6601 = vmatprep.subr.mxu0 0.0
        %6602 = vmatpush1.msra.mxu0 0.0
        %6603 = vmatprep.subr.mxu0 0.0
        %6604 = vmatpush1.msra.mxu0 0.0
        %6605 = vmatprep.subr.mxu0 0.0
        %6606 = vmatpush1.msra.mxu0 0.0
        %6607 = vmatprep.subr.mxu0 0.0
        %6608 = vmatpush1.msra.mxu0 0.0
        %6609 = vmatprep.subr.mxu0 0.0
        %6610 = vmatpush1.msra.mxu0 0.0
        %6611 = vmatprep.subr.mxu0 0.0
        %6612 = vmatpush1.msra.mxu0 0.0
        %6613 = vmatprep.subr.mxu0 0.0
        %6614 = vmatpush1.msra.mxu0 0.0
        %6615 = vmatprep.subr.mxu0 0.0
        %6616 = vmatpush1.msra.mxu0 0.0
        %6617 = vmatprep.subr.mxu0 0.0
        %6618 = vmatpush1.msra.mxu0 0.0
        %6619 = vmatprep.subr.mxu0 0.0
        %6620 = vmatpush1.msra.mxu0 0.0
        %6621 = vmatprep.subr.mxu0 0.0
        %6622 = vmatpush1.msra.mxu0 0.0
        %6623 = vmatprep.subr.mxu0 0.0
        %6624 = vmatpush1.msra.mxu0 0.0
        %6625 = vmatprep.subr.mxu0 0.0
        %6626 = vmatpush1.msra.mxu0 0.0
        %6627 = vmatprep.subr.mxu0 0.0
        %6628 = vmatpush1.msra.mxu0 0.0
        %6629 = vmatprep.subr.mxu0 0.0
        %6630 = vmatpush1.msra.mxu0 0.0
        %6631 = vmatprep.subr.mxu0 0.0
        %6632 = vmatpush1.msra.mxu0 0.0
        %6633 = vmatprep.subr.mxu0 0.0
        %6634 = vmatpush1.msra.mxu0 0.0
        %6635 = vmatprep.subr.mxu0 0.0
        %6636 = vmatpush1.msra.mxu0 0.0
        %6637 = vmatprep.subr.mxu0 0.0
        %6638 = vmatpush1.msra.mxu0 0.0
        %6639 = vmatprep.subr.mxu0 0.0
        %6640 = vmatpush1.msra.mxu0 0.0
        %6641 = vmatprep.subr.mxu0 0.0
        %6642 = vmatpush1.msra.mxu0 0.0
        %6643 = vmatprep.subr.mxu0 0.0
        %6644 = vmatpush1.msra.mxu0 0.0
        %6645 = vmatprep.subr.mxu0 0.0
        %6646 = vmatpush1.msra.mxu0 0.0
        %6647 = vmatprep.subr.mxu0 0.0
        %6648 = vmatpush1.msra.mxu0 0.0
        %6649 = vmatprep.subr.mxu0 0.0
        %6650 = vmatpush1.msra.mxu0 0.0
        %6651 = vmatprep.subr.mxu0 0.0
        %6652 = vmatpush1.msra.mxu0 0.0
        %6653 = vmatprep.subr.mxu0 0.0
        %6654 = vmatpush1.msra.mxu0 0.0
        %6655 = vmatprep.subr.mxu0 0.0
        %6656 = vmatpush1.msra.mxu0 0.0
        %6657 = vmatprep.mubr.f32.mxu0 0.0
        %6658 = vmatmul.mubr.f32.gmra.mrb[0].mxu0 %v6510
        %v6659 = vpop.f32.mrb[0].mxu0
        %v6660 = vadd.f32 %v6591, %v6659
        %v6661 = vpop.f32.mrb[0].mxu0
        %6662 = vdwg.mxu0
        %v6664 = vsel %vm2679, %v6490, 0
        %v6667 = vsel %vm2679, %v6495, 0
        %v6670 = vsel %vm2679, %v6579, 0
        %6672 = vmatprep.subr.mxu0 0.0
        %6673 = vmatpush1.xpose.msra.mxu0 %v6670
        %6674 = vmatprep.subr.mxu0 0.0
        %6675 = vmatpush1.xpose.msra.mxu0 0.0
        %6676 = vmatprep.subr.mxu0 0.0
        %6677 = vmatpush1.xpose.msra.mxu0 0.0
        %6678 = vmatprep.subr.mxu0 0.0
        %6679 = vmatpush1.xpose.msra.mxu0 0.0
        %6680 = vmatprep.subr.mxu0 0.0
        %6681 = vmatpush1.xpose.msra.mxu0 0.0
        %6682 = vmatprep.subr.mxu0 0.0
        %6683 = vmatpush1.xpose.msra.mxu0 0.0
        %6684 = vmatprep.subr.mxu0 0.0
        %6685 = vmatpush1.xpose.msra.mxu0 0.0
        %6686 = vmatprep.subr.mxu0 0.0
        %6687 = vmatpush1.xpose.msra.mxu0 0.0
        %6688 = vmatprep.subr.mxu0 0.0
        %6689 = vmatpush1.xpose.msra.mxu0 0.0
        %6690 = vmatprep.subr.mxu0 0.0
        %6691 = vmatpush1.xpose.msra.mxu0 0.0
        %6692 = vmatprep.subr.mxu0 0.0
        %6693 = vmatpush1.xpose.msra.mxu0 0.0
        %6694 = vmatprep.subr.mxu0 0.0
        %6695 = vmatpush1.xpose.msra.mxu0 0.0
        %6696 = vmatprep.subr.mxu0 0.0
        %6697 = vmatpush1.xpose.msra.mxu0 0.0
        %6698 = vmatprep.subr.mxu0 0.0
        %6699 = vmatpush1.xpose.msra.mxu0 0.0
        %6700 = vmatprep.subr.mxu0 0.0
        %6701 = vmatpush1.xpose.msra.mxu0 0.0
        %6702 = vmatprep.subr.mxu0 0.0
        %6703 = vmatpush1.xpose.msra.mxu0 0.0
        %6704 = vmatprep.subr.mxu0 0.0
        %6705 = vmatpush1.xpose.msra.mxu0 0.0
        %6706 = vmatprep.subr.mxu0 0.0
        %6707 = vmatpush1.xpose.msra.mxu0 0.0
        %6708 = vmatprep.subr.mxu0 0.0
        %6709 = vmatpush1.xpose.msra.mxu0 0.0
        %6710 = vmatprep.subr.mxu0 0.0
        %6711 = vmatpush1.xpose.msra.mxu0 0.0
        %6712 = vmatprep.subr.mxu0 0.0
        %6713 = vmatpush1.xpose.msra.mxu0 0.0
        %6714 = vmatprep.subr.mxu0 0.0
        %6715 = vmatpush1.xpose.msra.mxu0 0.0
        %6716 = vmatprep.subr.mxu0 0.0
        %6717 = vmatpush1.xpose.msra.mxu0 0.0
        %6718 = vmatprep.subr.mxu0 0.0
        %6719 = vmatpush1.xpose.msra.mxu0 0.0
        %6720 = vmatprep.subr.mxu0 0.0
        %6721 = vmatpush1.xpose.msra.mxu0 0.0
        %6722 = vmatprep.subr.mxu0 0.0
        %6723 = vmatpush1.xpose.msra.mxu0 0.0
        %6724 = vmatprep.subr.mxu0 0.0
        %6725 = vmatpush1.xpose.msra.mxu0 0.0
        %6726 = vmatprep.subr.mxu0 0.0
        %6727 = vmatpush1.xpose.msra.mxu0 0.0
        %6728 = vmatprep.subr.mxu0 0.0
        %6729 = vmatpush1.xpose.msra.mxu0 0.0
        %6730 = vmatprep.subr.mxu0 0.0
        %6731 = vmatpush1.xpose.msra.mxu0 0.0
        %6732 = vmatprep.subr.mxu0 0.0
        %6733 = vmatpush1.xpose.msra.mxu0 0.0
        %6734 = vmatprep.subr.mxu0 0.0
        %6735 = vmatpush1.xpose.msra.mxu0 0.0
        %6736 = vmatprep.mubr.f32.mxu0 0.0
        %6737 = vmatmul.mubr.f32.gmra.mrb[0].mxu0 %v6664
        %v6738 = vpop.f32.mrb[0].mxu0
        %v6739 = vadd.f32 0.0, %v6738
        %v6740 = vpop.f32.mrb[0].mxu0
        %6741 = vmatprep.mubr.f32.mxu0 0.0
        %6742 = vmatmul.mubr.f32.gmra.mrb[0].mxu0 %v6667
        %v6743 = vpop.f32.mrb[0].mxu0
        %v6744 = vadd.f32 0.0, %v6743
        %v6745 = vpop.f32.mrb[0].mxu0
        %6746 = vdwg.mxu0
        %v6747 = vmul.f32 %v6739, 0.35355338
        %v6748 = vmul.f32 %v6744, 0.35355338
        %v6749 = vsel %vm2769, %v6747, -inf
        %6750 = vmax.xlane.f32.xlu0 %v6749
        %v6751 = vpop.xlane.xlu0 %6750
        %v6752 = vsel %vm2755, %v6748, -inf
        %6753 = vmax.xlane.f32.xlu0 %v6752
        %v6754 = vpop.xlane.xlu0 %6753
        %v6755 = vsub.f32 %v6747, %v6751
        %v6756 = vsub.f32 %v6748, %v6754
        %v6757 = vmul.f32 %v6755, 1.442695
        %v6758 = vpow.pop %v6757
        %v6759 = vmul.f32 %v6756, 1.442695
        %v6760 = vpow.pop %v6759
        %v6761 = vsel %vm2769, %v6758, 0.0
        %6762 = vadd.xlane.f32.xlu0 %v6761
        %v6763 = vpop.xlane.xlu0 %6762
        %v6764 = vsel %vm2755, %v6760, 0.0
        %6765 = vadd.xlane.f32.xlu0 %v6764
        %v6766 = vpop.xlane.xlu0 %6765
        %v6767 = vrcp.pop %v6763
        %v6768 = vrcp.pop %v6766
        %v6769 = vmul.f32 %v6758, %v6767
        %v6770 = vmul.f32 %v6760, %v6768
        %v6772 = vsel %vm2769, %v6769, 0
        %v6775 = vsel %vm2769, %v6770, 0
        %v6778 = vsel %vm2773, %v6660, 0
        %6780 = vmatprep.subr.mxu0 0.0
        %6781 = vmatpush1.msra.mxu0 %v6778
        %6782 = vmatprep.subr.mxu0 0.0
        %6783 = vmatpush1.msra.mxu0 0.0
        %6784 = vmatprep.subr.mxu0 0.0
        %6785 = vmatpush1.msra.mxu0 0.0
        %6786 = vmatprep.subr.mxu0 0.0
        %6787 = vmatpush1.msra.mxu0 0.0
        %6788 = vmatprep.subr.mxu0 0.0
        %6789 = vmatpush1.msra.mxu0 0.0
        %6790 = vmatprep.subr.mxu0 0.0
        %6791 = vmatpush1.msra.mxu0 0.0
        %6792 = vmatprep.subr.mxu0 0.0
        %6793 = vmatpush1.msra.mxu0 0.0
        %6794 = vmatprep.subr.mxu0 0.0
        %6795 = vmatpush1.msra.mxu0 0.0
        %6796 = vmatprep.subr.mxu0 0.0
        %6797 = vmatpush1.msra.mxu0 0.0
        %6798 = vmatprep.subr.mxu0 0.0
        %6799 = vmatpush1.msra.mxu0 0.0
        %6800 = vmatprep.subr.mxu0 0.0
        %6801 = vmatpush1.msra.mxu0 0.0
        %6802 = vmatprep.subr.mxu0 0.0
        %6803 = vmatpush1.msra.mxu0 0.0
        %6804 = vmatprep.subr.mxu0 0.0
        %6805 = vmatpush1.msra.mxu0 0.0
        %6806 = vmatprep.subr.mxu0 0.0
        %6807 = vmatpush1.msra.mxu0 0.0
        %6808 = vmatprep.subr.mxu0 0.0
        %6809 = vmatpush1.msra.mxu0 0.0
        %6810 = vmatprep.subr.mxu0 0.0
        %6811 = vmatpush1.msra.mxu0 0.0
        %6812 = vmatprep.subr.mxu0 0.0
        %6813 = vmatpush1.msra.mxu0 0.0
        %6814 = vmatprep.subr.mxu0 0.0
        %6815 = vmatpush1.msra.mxu0 0.0
        %6816 = vmatprep.subr.mxu0 0.0
        %6817 = vmatpush1.msra.mxu0 0.0
        %6818 = vmatprep.subr.mxu0 0.0
        %6819 = vmatpush1.msra.mxu0 0.0
        %6820 = vmatprep.subr.mxu0 0.0
        %6821 = vmatpush1.msra.mxu0 0.0
        %6822 = vmatprep.subr.mxu0 0.0
        %6823 = vmatpush1.msra.mxu0 0.0
        %6824 = vmatprep.subr.mxu0 0.0
        %6825 = vmatpush1.msra.mxu0 0.0
        %6826 = vmatprep.subr.mxu0 0.0
        %6827 = vmatpush1.msra.mxu0 0.0
        %6828 = vmatprep.subr.mxu0 0.0
        %6829 = vmatpush1.msra.mxu0 0.0
        %6830 = vmatprep.subr.mxu0 0.0
        %6831 = vmatpush1.msra.mxu0 0.0
        %6832 = vmatprep.subr.mxu0 0.0
        %6833 = vmatpush1.msra.mxu0 0.0
        %6834 = vmatprep.subr.mxu0 0.0
        %6835 = vmatpush1.msra.mxu0 0.0
        %6836 = vmatprep.subr.mxu0 0.0
        %6837 = vmatpush1.msra.mxu0 0.0
        %6838 = vmatprep.subr.mxu0 0.0
        %6839 = vmatpush1.msra.mxu0 0.0
        %6840 = vmatprep.subr.mxu0 0.0
        %6841 = vmatpush1.msra.mxu0 0.0
        %6842 = vmatprep.subr.mxu0 0.0
        %6843 = vmatpush1.msra.mxu0 0.0
        %6844 = vmatprep.mubr.f32.mxu0 0.0
        %6845 = vmatmul.mubr.f32.gmra.mrb[0].mxu0 %v6772
        %v6846 = vpop.f32.mrb[0].mxu0
        %v6847 = vadd.f32 0.0, %v6846
        %v6848 = vpop.f32.mrb[0].mxu0
        %6849 = vmatprep.mubr.f32.mxu0 0.0
        %6850 = vmatmul.mubr.f32.gmra.mrb[0].mxu0 %v6775
        %v6851 = vpop.f32.mrb[0].mxu0
        %v6852 = vadd.f32 0.0, %v6851
        %v6853 = vpop.f32.mrb[0].mxu0
        %6854 = vdwg.mxu0
        %6855 = vst.msk [vmem:[#allocation3] sm:$0xff] %vm2679, %v6847
        %6856 = vst.msk [vmem:[#allocation3 + $0x8] sm:$0xf] %vm2846, %v6852
        %6857 = vrot.lane.b32.xlu0 %v6490, 120
        %v6858 = vpop.permute.xlu0 %6857
        %6859 = vrot.lane.b32.xlu0 %v6495, 120
        %v6860 = vpop.permute.xlu0 %6859
        %6861 = vrot.lane.b32.xlu0 %v6579, 120
        %v6862 = vpop.permute.xlu0 %6861
        %v6863 = vsel %vm2679, %v6858, 0
        %v6865 = vsel %vm2679, %v6860, 0
        %v6867 = vsel %vm2679, %v6862, 0
        %6869 = vmatprep.subr.mxu0 0.0
        %6870 = vmatpush1.xpose.msra.mxu0 %v6867
        %6871 = vmatprep.subr.mxu0 0.0
        %6872 = vmatpush1.xpose.msra.mxu0 0.0
        %6873 = vmatprep.subr.mxu0 0.0
        %6874 = vmatpush1.xpose.msra.mxu0 0.0
        %6875 = vmatprep.subr.mxu0 0.0
        %6876 = vmatpush1.xpose.msra.mxu0 0.0
        %6877 = vmatprep.subr.mxu0 0.0
        %6878 = vmatpush1.xpose.msra.mxu0 0.0
        %6879 = vmatprep.subr.mxu0 0.0
        %6880 = vmatpush1.xpose.msra.mxu0 0.0
        %6881 = vmatprep.subr.mxu0 0.0
        %6882 = vmatpush1.xpose.msra.mxu0 0.0
        %6883 = vmatprep.subr.mxu0 0.0
        %6884 = vmatpush1.xpose.msra.mxu0 0.0
        %6885 = vmatprep.subr.mxu0 0.0
        %6886 = vmatpush1.xpose.msra.mxu0 0.0
        %6887 = vmatprep.subr.mxu0 0.0
        %6888 = vmatpush1.xpose.msra.mxu0 0.0
        %6889 = vmatprep.subr.mxu0 0.0
        %6890 = vmatpush1.xpose.msra.mxu0 0.0
        %6891 = vmatprep.subr.mxu0 0.0
        %6892 = vmatpush1.xpose.msra.mxu0 0.0
        %6893 = vmatprep.subr.mxu0 0.0
        %6894 = vmatpush1.xpose.msra.mxu0 0.0
        %6895 = vmatprep.subr.mxu0 0.0
        %6896 = vmatpush1.xpose.msra.mxu0 0.0
        %6897 = vmatprep.subr.mxu0 0.0
        %6898 = vmatpush1.xpose.msra.mxu0 0.0
        %6899 = vmatprep.subr.mxu0 0.0
        %6900 = vmatpush1.xpose.msra.mxu0 0.0
        %6901 = vmatprep.subr.mxu0 0.0
        %6902 = vmatpush1.xpose.msra.mxu0 0.0
        %6903 = vmatprep.subr.mxu0 0.0
        %6904 = vmatpush1.xpose.msra.mxu0 0.0
        %6905 = vmatprep.subr.mxu0 0.0
        %6906 = vmatpush1.xpose.msra.mxu0 0.0
        %6907 = vmatprep.subr.mxu0 0.0
        %6908 = vmatpush1.xpose.msra.mxu0 0.0
        %6909 = vmatprep.subr.mxu0 0.0
        %6910 = vmatpush1.xpose.msra.mxu0 0.0
        %6911 = vmatprep.subr.mxu0 0.0
        %6912 = vmatpush1.xpose.msra.mxu0 0.0
        %6913 = vmatprep.subr.mxu0 0.0
        %6914 = vmatpush1.xpose.msra.mxu0 0.0
        %6915 = vmatprep.subr.mxu0 0.0
        %6916 = vmatpush1.xpose.msra.mxu0 0.0
        %6917 = vmatprep.subr.mxu0 0.0
        %6918 = vmatpush1.xpose.msra.mxu0 0.0
        %6919 = vmatprep.subr.mxu0 0.0
        %6920 = vmatpush1.xpose.msra.mxu0 0.0
        %6921 = vmatprep.subr.mxu0 0.0
        %6922 = vmatpush1.xpose.msra.mxu0 0.0
        %6923 = vmatprep.subr.mxu0 0.0
        %6924 = vmatpush1.xpose.msra.mxu0 0.0
        %6925 = vmatprep.subr.mxu0 0.0
        %6926 = vmatpush1.xpose.msra.mxu0 0.0
        %6927 = vmatprep.subr.mxu0 0.0
        %6928 = vmatpush1.xpose.msra.mxu0 0.0
        %6929 = vmatprep.subr.mxu0 0.0
        %6930 = vmatpush1.xpose.msra.mxu0 0.0
        %6931 = vmatprep.subr.mxu0 0.0
        %6932 = vmatpush1.xpose.msra.mxu0 0.0
        %6933 = vmatprep.mubr.f32.mxu0 0.0
        %6934 = vmatmul.mubr.f32.gmra.mrb[0].mxu0 %v6863
        %v6935 = vpop.f32.mrb[0].mxu0
        %v6936 = vadd.f32 0.0, %v6935
        %v6937 = vpop.f32.mrb[0].mxu0
        %6938 = vmatprep.mubr.f32.mxu0 0.0
        %6939 = vmatmul.mubr.f32.gmra.mrb[0].mxu0 %v6865
        %v6940 = vpop.f32.mrb[0].mxu0
        %v6941 = vadd.f32 0.0, %v6940
        %v6942 = vpop.f32.mrb[0].mxu0
        %6943 = vdwg.mxu0
        %v6944 = vmul.f32 %v6936, 0.35355338
        %v6945 = vmul.f32 %v6941, 0.35355338
        %v6946 = vsel %vm2769, %v6944, -inf
        %6947 = vmax.xlane.f32.xlu0 %v6946
        %v6948 = vpop.xlane.xlu0 %6947
        %v6949 = vsel %vm2755, %v6945, -inf
        %6950 = vmax.xlane.f32.xlu0 %v6949
        %v6951 = vpop.xlane.xlu0 %6950
        %v6952 = vsub.f32 %v6944, %v6948
        %v6953 = vsub.f32 %v6945, %v6951
        %v6954 = vmul.f32 %v6952, 1.442695
        %v6955 = vpow.pop %v6954
        %v6956 = vmul.f32 %v6953, 1.442695
        %v6957 = vpow.pop %v6956
        %v6958 = vsel %vm2769, %v6955, 0.0
        %6959 = vadd.xlane.f32.xlu0 %v6958
        %v6960 = vpop.xlane.xlu0 %6959
        %v6961 = vsel %vm2755, %v6957, 0.0
        %6962 = vadd.xlane.f32.xlu0 %v6961
        %v6963 = vpop.xlane.xlu0 %6962
        %v6964 = vrcp.pop %v6960
        %v6965 = vrcp.pop %v6963
        %v6966 = vmul.f32 %v6955, %v6964
        %v6967 = vmul.f32 %v6957, %v6965
        %6968 = vrot.lane.b32.xlu0 %v6660, 120
        %v6969 = vpop.permute.xlu0 %6968
        %v6971 = vsel %vm2769, %v6966, 0
        %v6974 = vsel %vm2769, %v6967, 0
        %v6976 = vsel %vm2773, %v6969, 0
        %6978 = vmatprep.subr.mxu0 0.0
        %6979 = vmatpush1.msra.mxu0 %v6976
        %6980 = vmatprep.subr.mxu0 0.0
        %6981 = vmatpush1.msra.mxu0 0.0
        %6982 = vmatprep.subr.mxu0 0.0
        %6983 = vmatpush1.msra.mxu0 0.0
        %6984 = vmatprep.subr.mxu0 0.0
        %6985 = vmatpush1.msra.mxu0 0.0
        %6986 = vmatprep.subr.mxu0 0.0
        %6987 = vmatpush1.msra.mxu0 0.0
        %6988 = vmatprep.subr.mxu0 0.0
        %6989 = vmatpush1.msra.mxu0 0.0
        %6990 = vmatprep.subr.mxu0 0.0
        %6991 = vmatpush1.msra.mxu0 0.0
        %6992 = vmatprep.subr.mxu0 0.0
        %6993 = vmatpush1.msra.mxu0 0.0
        %6994 = vmatprep.subr.mxu0 0.0
        %6995 = vmatpush1.msra.mxu0 0.0
        %6996 = vmatprep.subr.mxu0 0.0
        %6997 = vmatpush1.msra.mxu0 0.0
        %6998 = vmatprep.subr.mxu0 0.0
        %6999 = vmatpush1.msra.mxu0 0.0
        %7000 = vmatprep.subr.mxu0 0.0
        %7001 = vmatpush1.msra.mxu0 0.0
        %7002 = vmatprep.subr.mxu0 0.0
        %7003 = vmatpush1.msra.mxu0 0.0
        %7004 = vmatprep.subr.mxu0 0.0
        %7005 = vmatpush1.msra.mxu0 0.0
        %7006 = vmatprep.subr.mxu0 0.0
        %7007 = vmatpush1.msra.mxu0 0.0
        %7008 = vmatprep.subr.mxu0 0.0
        %7009 = vmatpush1.msra.mxu0 0.0
        %7010 = vmatprep.subr.mxu0 0.0
        %7011 = vmatpush1.msra.mxu0 0.0
        %7012 = vmatprep.subr.mxu0 0.0
        %7013 = vmatpush1.msra.mxu0 0.0
        %7014 = vmatprep.subr.mxu0 0.0
        %7015 = vmatpush1.msra.mxu0 0.0
        %7016 = vmatprep.subr.mxu0 0.0
        %7017 = vmatpush1.msra.mxu0 0.0
        %7018 = vmatprep.subr.mxu0 0.0
        %7019 = vmatpush1.msra.mxu0 0.0
        %7020 = vmatprep.subr.mxu0 0.0
        %7021 = vmatpush1.msra.mxu0 0.0
        %7022 = vmatprep.subr.mxu0 0.0
        %7023 = vmatpush1.msra.mxu0 0.0
        %7024 = vmatprep.subr.mxu0 0.0
        %7025 = vmatpush1.msra.mxu0 0.0
        %7026 = vmatprep.subr.mxu0 0.0
        %7027 = vmatpush1.msra.mxu0 0.0
        %7028 = vmatprep.subr.mxu0 0.0
        %7029 = vmatpush1.msra.mxu0 0.0
        %7030 = vmatprep.subr.mxu0 0.0
        %7031 = vmatpush1.msra.mxu0 0.0
        %7032 = vmatprep.subr.mxu0 0.0
        %7033 = vmatpush1.msra.mxu0 0.0
        %7034 = vmatprep.subr.mxu0 0.0
        %7035 = vmatpush1.msra.mxu0 0.0
        %7036 = vmatprep.subr.mxu0 0.0
        %7037 = vmatpush1.msra.mxu0 0.0
        %7038 = vmatprep.subr.mxu0 0.0
        %7039 = vmatpush1.msra.mxu0 0.0
        %7040 = vmatprep.subr.mxu0 0.0
        %7041 = vmatpush1.msra.mxu0 0.0
        %7042 = vmatprep.mubr.f32.mxu0 0.0
        %7043 = vmatmul.mubr.f32.gmra.mrb[0].mxu0 %v6971
        %v7044 = vpop.f32.mrb[0].mxu0
        %v7045 = vadd.f32 0.0, %v7044
        %v7046 = vpop.f32.mrb[0].mxu0
        %7047 = vmatprep.mubr.f32.mxu0 0.0
        %7048 = vmatmul.mubr.f32.gmra.mrb[0].mxu0 %v6974
        %v7049 = vpop.f32.mrb[0].mxu0
        %v7050 = vadd.f32 0.0, %v7049
        %v7051 = vpop.f32.mrb[0].mxu0
        %7052 = vdwg.mxu0
        %7055 = vrot.lane.b32.xlu0 %v7045, 8
        %v7056 = vpop.permute.xlu0 %7055
        %7057 = vrot.lane.b32.xlu0 %v7050, 8
        %v7058 = vpop.permute.xlu0 %7057
        %7061 = vst.msk [vmem:[#allocation3] sm:$0xff] %vm5592, %v7056
        %7062 = vst.msk [vmem:[#allocation3 + $0x8] sm:$0xf] %vm3019, %v7058
        %7063 = vrot.lane.b32.xlu0 %v6490, 112
        %v7064 = vpop.permute.xlu0 %7063
        %7065 = vrot.lane.b32.xlu0 %v6495, 112
        %v7066 = vpop.permute.xlu0 %7065
        %7067 = vrot.lane.b32.xlu0 %v6579, 112
        %v7068 = vpop.permute.xlu0 %7067
        %v7069 = vsel %vm2679, %v7064, 0
        %v7071 = vsel %vm2679, %v7066, 0
        %v7073 = vsel %vm2679, %v7068, 0
        %7075 = vmatprep.subr.mxu0 0.0
        %7076 = vmatpush1.xpose.msra.mxu0 %v7073
        %7077 = vmatprep.subr.mxu0 0.0
        %7078 = vmatpush1.xpose.msra.mxu0 0.0
        %7079 = vmatprep.subr.mxu0 0.0
        %7080 = vmatpush1.xpose.msra.mxu0 0.0
        %7081 = vmatprep.subr.mxu0 0.0
        %7082 = vmatpush1.xpose.msra.mxu0 0.0
        %7083 = vmatprep.subr.mxu0 0.0
        %7084 = vmatpush1.xpose.msra.mxu0 0.0
        %7085 = vmatprep.subr.mxu0 0.0
        %7086 = vmatpush1.xpose.msra.mxu0 0.0
        %7087 = vmatprep.subr.mxu0 0.0
        %7088 = vmatpush1.xpose.msra.mxu0 0.0
        %7089 = vmatprep.subr.mxu0 0.0
        %7090 = vmatpush1.xpose.msra.mxu0 0.0
        %7091 = vmatprep.subr.mxu0 0.0
        %7092 = vmatpush1.xpose.msra.mxu0 0.0
        %7093 = vmatprep.subr.mxu0 0.0
        %7094 = vmatpush1.xpose.msra.mxu0 0.0
        %7095 = vmatprep.subr.mxu0 0.0
        %7096 = vmatpush1.xpose.msra.mxu0 0.0
        %7097 = vmatprep.subr.mxu0 0.0
        %7098 = vmatpush1.xpose.msra.mxu0 0.0
        %7099 = vmatprep.subr.mxu0 0.0
        %7100 = vmatpush1.xpose.msra.mxu0 0.0
        %7101 = vmatprep.subr.mxu0 0.0
        %7102 = vmatpush1.xpose.msra.mxu0 0.0
        %7103 = vmatprep.subr.mxu0 0.0
        %7104 = vmatpush1.xpose.msra.mxu0 0.0
        %7105 = vmatprep.subr.mxu0 0.0
        %7106 = vmatpush1.xpose.msra.mxu0 0.0
        %7107 = vmatprep.subr.mxu0 0.0
        %7108 = vmatpush1.xpose.msra.mxu0 0.0
        %7109 = vmatprep.subr.mxu0 0.0
        %7110 = vmatpush1.xpose.msra.mxu0 0.0
        %7111 = vmatprep.subr.mxu0 0.0
        %7112 = vmatpush1.xpose.msra.mxu0 0.0
        %7113 = vmatprep.subr.mxu0 0.0
        %7114 = vmatpush1.xpose.msra.mxu0 0.0
        %7115 = vmatprep.subr.mxu0 0.0
        %7116 = vmatpush1.xpose.msra.mxu0 0.0
        %7117 = vmatprep.subr.mxu0 0.0
        %7118 = vmatpush1.xpose.msra.mxu0 0.0
        %7119 = vmatprep.subr.mxu0 0.0
        %7120 = vmatpush1.xpose.msra.mxu0 0.0
        %7121 = vmatprep.subr.mxu0 0.0
        %7122 = vmatpush1.xpose.msra.mxu0 0.0
        %7123 = vmatprep.subr.mxu0 0.0
        %7124 = vmatpush1.xpose.msra.mxu0 0.0
        %7125 = vmatprep.subr.mxu0 0.0
        %7126 = vmatpush1.xpose.msra.mxu0 0.0
        %7127 = vmatprep.subr.mxu0 0.0
        %7128 = vmatpush1.xpose.msra.mxu0 0.0
        %7129 = vmatprep.subr.mxu0 0.0
        %7130 = vmatpush1.xpose.msra.mxu0 0.0
        %7131 = vmatprep.subr.mxu0 0.0
        %7132 = vmatpush1.xpose.msra.mxu0 0.0
        %7133 = vmatprep.subr.mxu0 0.0
        %7134 = vmatpush1.xpose.msra.mxu0 0.0
        %7135 = vmatprep.subr.mxu0 0.0
        %7136 = vmatpush1.xpose.msra.mxu0 0.0
        %7137 = vmatprep.subr.mxu0 0.0
        %7138 = vmatpush1.xpose.msra.mxu0 0.0
        %7139 = vmatprep.mubr.f32.mxu0 0.0
        %7140 = vmatmul.mubr.f32.gmra.mrb[0].mxu0 %v7069
        %v7141 = vpop.f32.mrb[0].mxu0
        %v7142 = vadd.f32 0.0, %v7141
        %v7143 = vpop.f32.mrb[0].mxu0
        %7144 = vmatprep.mubr.f32.mxu0 0.0
        %7145 = vmatmul.mubr.f32.gmra.mrb[0].mxu0 %v7071
        %v7146 = vpop.f32.mrb[0].mxu0
        %v7147 = vadd.f32 0.0, %v7146
        %v7148 = vpop.f32.mrb[0].mxu0
        %7149 = vdwg.mxu0
        %v7150 = vmul.f32 %v7142, 0.35355338
        %v7151 = vmul.f32 %v7147, 0.35355338
        %v7152 = vsel %vm2769, %v7150, -inf
        %7153 = vmax.xlane.f32.xlu0 %v7152
        %v7154 = vpop.xlane.xlu0 %7153
        %v7155 = vsel %vm2755, %v7151, -inf
        %7156 = vmax.xlane.f32.xlu0 %v7155
        %v7157 = vpop.xlane.xlu0 %7156
        %v7158 = vsub.f32 %v7150, %v7154
        %v7159 = vsub.f32 %v7151, %v7157
        %v7160 = vmul.f32 %v7158, 1.442695
        %v7161 = vpow.pop %v7160
        %v7162 = vmul.f32 %v7159, 1.442695
        %v7163 = vpow.pop %v7162
        %v7164 = vsel %vm2769, %v7161, 0.0
        %7165 = vadd.xlane.f32.xlu0 %v7164
        %v7166 = vpop.xlane.xlu0 %7165
        %v7167 = vsel %vm2755, %v7163, 0.0
        %7168 = vadd.xlane.f32.xlu0 %v7167
        %v7169 = vpop.xlane.xlu0 %7168
        %v7170 = vrcp.pop %v7166
        %v7171 = vrcp.pop %v7169
        %v7172 = vmul.f32 %v7161, %v7170
        %v7173 = vmul.f32 %v7163, %v7171
        %7174 = vrot.lane.b32.xlu0 %v6660, 112
        %v7175 = vpop.permute.xlu0 %7174
        %v7177 = vsel %vm2769, %v7172, 0
        %v7180 = vsel %vm2769, %v7173, 0
        %v7182 = vsel %vm2773, %v7175, 0
        %7184 = vmatprep.subr.mxu0 0.0
        %7185 = vmatpush1.msra.mxu0 %v7182
        %7186 = vmatprep.subr.mxu0 0.0
        %7187 = vmatpush1.msra.mxu0 0.0
        %7188 = vmatprep.subr.mxu0 0.0
        %7189 = vmatpush1.msra.mxu0 0.0
        %7190 = vmatprep.subr.mxu0 0.0
        %7191 = vmatpush1.msra.mxu0 0.0
        %7192 = vmatprep.subr.mxu0 0.0
        %7193 = vmatpush1.msra.mxu0 0.0
        %7194 = vmatprep.subr.mxu0 0.0
        %7195 = vmatpush1.msra.mxu0 0.0
        %7196 = vmatprep.subr.mxu0 0.0
        %7197 = vmatpush1.msra.mxu0 0.0
        %7198 = vmatprep.subr.mxu0 0.0
        %7199 = vmatpush1.msra.mxu0 0.0
        %7200 = vmatprep.subr.mxu0 0.0
        %7201 = vmatpush1.msra.mxu0 0.0
        %7202 = vmatprep.subr.mxu0 0.0
        %7203 = vmatpush1.msra.mxu0 0.0
        %7204 = vmatprep.subr.mxu0 0.0
        %7205 = vmatpush1.msra.mxu0 0.0
        %7206 = vmatprep.subr.mxu0 0.0
        %7207 = vmatpush1.msra.mxu0 0.0
        %7208 = vmatprep.subr.mxu0 0.0
        %7209 = vmatpush1.msra.mxu0 0.0
        %7210 = vmatprep.subr.mxu0 0.0
        %7211 = vmatpush1.msra.mxu0 0.0
        %7212 = vmatprep.subr.mxu0 0.0
        %7213 = vmatpush1.msra.mxu0 0.0
        %7214 = vmatprep.subr.mxu0 0.0
        %7215 = vmatpush1.msra.mxu0 0.0
        %7216 = vmatprep.subr.mxu0 0.0
        %7217 = vmatpush1.msra.mxu0 0.0
        %7218 = vmatprep.subr.mxu0 0.0
        %7219 = vmatpush1.msra.mxu0 0.0
        %7220 = vmatprep.subr.mxu0 0.0
        %7221 = vmatpush1.msra.mxu0 0.0
        %7222 = vmatprep.subr.mxu0 0.0
        %7223 = vmatpush1.msra.mxu0 0.0
        %7224 = vmatprep.subr.mxu0 0.0
        %7225 = vmatpush1.msra.mxu0 0.0
        %7226 = vmatprep.subr.mxu0 0.0
        %7227 = vmatpush1.msra.mxu0 0.0
        %7228 = vmatprep.subr.mxu0 0.0
        %7229 = vmatpush1.msra.mxu0 0.0
        %7230 = vmatprep.subr.mxu0 0.0
        %7231 = vmatpush1.msra.mxu0 0.0
        %7232 = vmatprep.subr.mxu0 0.0
        %7233 = vmatpush1.msra.mxu0 0.0
        %7234 = vmatprep.subr.mxu0 0.0
        %7235 = vmatpush1.msra.mxu0 0.0
        %7236 = vmatprep.subr.mxu0 0.0
        %7237 = vmatpush1.msra.mxu0 0.0
        %7238 = vmatprep.subr.mxu0 0.0
        %7239 = vmatpush1.msra.mxu0 0.0
        %7240 = vmatprep.subr.mxu0 0.0
        %7241 = vmatpush1.msra.mxu0 0.0
        %7242 = vmatprep.subr.mxu0 0.0
        %7243 = vmatpush1.msra.mxu0 0.0
        %7244 = vmatprep.subr.mxu0 0.0
        %7245 = vmatpush1.msra.mxu0 0.0
        %7246 = vmatprep.subr.mxu0 0.0
        %7247 = vmatpush1.msra.mxu0 0.0
        %7248 = vmatprep.mubr.f32.mxu0 0.0
        %7249 = vmatmul.mubr.f32.gmra.mrb[0].mxu0 %v7177
        %v7250 = vpop.f32.mrb[0].mxu0
        %v7251 = vadd.f32 0.0, %v7250
        %v7252 = vpop.f32.mrb[0].mxu0
        %7253 = vmatprep.mubr.f32.mxu0 0.0
        %7254 = vmatmul.mubr.f32.gmra.mrb[0].mxu0 %v7180
        %v7255 = vpop.f32.mrb[0].mxu0
        %v7256 = vadd.f32 0.0, %v7255
        %v7257 = vpop.f32.mrb[0].mxu0
        %7258 = vdwg.mxu0
        %7261 = vrot.lane.b32.xlu0 %v7251, 16
        %v7262 = vpop.permute.xlu0 %7261
        %7263 = vrot.lane.b32.xlu0 %v7256, 16
        %v7264 = vpop.permute.xlu0 %7263
        %7267 = vst.msk [vmem:[#allocation3] sm:$0xff] %vm5799, %v7262
        %7268 = vst.msk [vmem:[#allocation3 + $0x8] sm:$0xf] %vm3192, %v7264
        %7269 = vrot.lane.b32.xlu0 %v6490, 104
        %v7270 = vpop.permute.xlu0 %7269
        %7271 = vrot.lane.b32.xlu0 %v6495, 104
        %v7272 = vpop.permute.xlu0 %7271
        %7273 = vrot.lane.b32.xlu0 %v6579, 104
        %v7274 = vpop.permute.xlu0 %7273
        %v7275 = vsel %vm2679, %v7270, 0
        %v7277 = vsel %vm2679, %v7272, 0
        %v7279 = vsel %vm2679, %v7274, 0
        %7281 = vmatprep.subr.mxu0 0.0
        %7282 = vmatpush1.xpose.msra.mxu0 %v7279
        %7283 = vmatprep.subr.mxu0 0.0
        %7284 = vmatpush1.xpose.msra.mxu0 0.0
        %7285 = vmatprep.subr.mxu0 0.0
        %7286 = vmatpush1.xpose.msra.mxu0 0.0
        %7287 = vmatprep.subr.mxu0 0.0
        %7288 = vmatpush1.xpose.msra.mxu0 0.0
        %7289 = vmatprep.subr.mxu0 0.0
        %7290 = vmatpush1.xpose.msra.mxu0 0.0
        %7291 = vmatprep.subr.mxu0 0.0
        %7292 = vmatpush1.xpose.msra.mxu0 0.0
        %7293 = vmatprep.subr.mxu0 0.0
        %7294 = vmatpush1.xpose.msra.mxu0 0.0
        %7295 = vmatprep.subr.mxu0 0.0
        %7296 = vmatpush1.xpose.msra.mxu0 0.0
        %7297 = vmatprep.subr.mxu0 0.0
        %7298 = vmatpush1.xpose.msra.mxu0 0.0
        %7299 = vmatprep.subr.mxu0 0.0
        %7300 = vmatpush1.xpose.msra.mxu0 0.0
        %7301 = vmatprep.subr.mxu0 0.0
        %7302 = vmatpush1.xpose.msra.mxu0 0.0
        %7303 = vmatprep.subr.mxu0 0.0
        %7304 = vmatpush1.xpose.msra.mxu0 0.0
        %7305 = vmatprep.subr.mxu0 0.0
        %7306 = vmatpush1.xpose.msra.mxu0 0.0
        %7307 = vmatprep.subr.mxu0 0.0
        %7308 = vmatpush1.xpose.msra.mxu0 0.0
        %7309 = vmatprep.subr.mxu0 0.0
        %7310 = vmatpush1.xpose.msra.mxu0 0.0
        %7311 = vmatprep.subr.mxu0 0.0
        %7312 = vmatpush1.xpose.msra.mxu0 0.0
        %7313 = vmatprep.subr.mxu0 0.0
        %7314 = vmatpush1.xpose.msra.mxu0 0.0
        %7315 = vmatprep.subr.mxu0 0.0
        %7316 = vmatpush1.xpose.msra.mxu0 0.0
        %7317 = vmatprep.subr.mxu0 0.0
        %7318 = vmatpush1.xpose.msra.mxu0 0.0
        %7319 = vmatprep.subr.mxu0 0.0
        %7320 = vmatpush1.xpose.msra.mxu0 0.0
        %7321 = vmatprep.subr.mxu0 0.0
        %7322 = vmatpush1.xpose.msra.mxu0 0.0
        %7323 = vmatprep.subr.mxu0 0.0
        %7324 = vmatpush1.xpose.msra.mxu0 0.0
        %7325 = vmatprep.subr.mxu0 0.0
        %7326 = vmatpush1.xpose.msra.mxu0 0.0
        %7327 = vmatprep.subr.mxu0 0.0
        %7328 = vmatpush1.xpose.msra.mxu0 0.0
        %7329 = vmatprep.subr.mxu0 0.0
        %7330 = vmatpush1.xpose.msra.mxu0 0.0
        %7331 = vmatprep.subr.mxu0 0.0
        %7332 = vmatpush1.xpose.msra.mxu0 0.0
        %7333 = vmatprep.subr.mxu0 0.0
        %7334 = vmatpush1.xpose.msra.mxu0 0.0
        %7335 = vmatprep.subr.mxu0 0.0
        %7336 = vmatpush1.xpose.msra.mxu0 0.0
        %7337 = vmatprep.subr.mxu0 0.0
        %7338 = vmatpush1.xpose.msra.mxu0 0.0
        %7339 = vmatprep.subr.mxu0 0.0
        %7340 = vmatpush1.xpose.msra.mxu0 0.0
        %7341 = vmatprep.subr.mxu0 0.0
        %7342 = vmatpush1.xpose.msra.mxu0 0.0
        %7343 = vmatprep.subr.mxu0 0.0
        %7344 = vmatpush1.xpose.msra.mxu0 0.0
        %7345 = vmatprep.mubr.f32.mxu0 0.0
        %7346 = vmatmul.mubr.f32.gmra.mrb[0].mxu0 %v7275
        %v7347 = vpop.f32.mrb[0].mxu0
        %v7348 = vadd.f32 0.0, %v7347
        %v7349 = vpop.f32.mrb[0].mxu0
        %7350 = vmatprep.mubr.f32.mxu0 0.0
        %7351 = vmatmul.mubr.f32.gmra.mrb[0].mxu0 %v7277
        %v7352 = vpop.f32.mrb[0].mxu0
        %v7353 = vadd.f32 0.0, %v7352
        %v7354 = vpop.f32.mrb[0].mxu0
        %7355 = vdwg.mxu0
        %v7356 = vmul.f32 %v7348, 0.35355338
        %v7357 = vmul.f32 %v7353, 0.35355338
        %v7358 = vsel %vm2769, %v7356, -inf
        %7359 = vmax.xlane.f32.xlu0 %v7358
        %v7360 = vpop.xlane.xlu0 %7359
        %v7361 = vsel %vm2755, %v7357, -inf
        %7362 = vmax.xlane.f32.xlu0 %v7361
        %v7363 = vpop.xlane.xlu0 %7362
        %v7364 = vsub.f32 %v7356, %v7360
        %v7365 = vsub.f32 %v7357, %v7363
        %v7366 = vmul.f32 %v7364, 1.442695
        %v7367 = vpow.pop %v7366
        %v7368 = vmul.f32 %v7365, 1.442695
        %v7369 = vpow.pop %v7368
        %v7370 = vsel %vm2769, %v7367, 0.0
        %7371 = vadd.xlane.f32.xlu0 %v7370
        %v7372 = vpop.xlane.xlu0 %7371
        %v7373 = vsel %vm2755, %v7369, 0.0
        %7374 = vadd.xlane.f32.xlu0 %v7373
        %v7375 = vpop.xlane.xlu0 %7374
        %v7376 = vrcp.pop %v7372
        %v7377 = vrcp.pop %v7375
        %v7378 = vmul.f32 %v7367, %v7376
        %v7379 = vmul.f32 %v7369, %v7377
        %7380 = vrot.lane.b32.xlu0 %v6660, 104
        %v7381 = vpop.permute.xlu0 %7380
        %v7383 = vsel %vm2769, %v7378, 0
        %v7386 = vsel %vm2769, %v7379, 0
        %v7388 = vsel %vm2773, %v7381, 0
        %7390 = vmatprep.subr.mxu0 0.0
        %7391 = vmatpush1.msra.mxu0 %v7388
        %7392 = vmatprep.subr.mxu0 0.0
        %7393 = vmatpush1.msra.mxu0 0.0
        %7394 = vmatprep.subr.mxu0 0.0
        %7395 = vmatpush1.msra.mxu0 0.0
        %7396 = vmatprep.subr.mxu0 0.0
        %7397 = vmatpush1.msra.mxu0 0.0
        %7398 = vmatprep.subr.mxu0 0.0
        %7399 = vmatpush1.msra.mxu0 0.0
        %7400 = vmatprep.subr.mxu0 0.0
        %7401 = vmatpush1.msra.mxu0 0.0
        %7402 = vmatprep.subr.mxu0 0.0
        %7403 = vmatpush1.msra.mxu0 0.0
        %7404 = vmatprep.subr.mxu0 0.0
        %7405 = vmatpush1.msra.mxu0 0.0
        %7406 = vmatprep.subr.mxu0 0.0
        %7407 = vmatpush1.msra.mxu0 0.0
        %7408 = vmatprep.subr.mxu0 0.0
        %7409 = vmatpush1.msra.mxu0 0.0
        %7410 = vmatprep.subr.mxu0 0.0
        %7411 = vmatpush1.msra.mxu0 0.0
        %7412 = vmatprep.subr.mxu0 0.0
        %7413 = vmatpush1.msra.mxu0 0.0
        %7414 = vmatprep.subr.mxu0 0.0
        %7415 = vmatpush1.msra.mxu0 0.0
        %7416 = vmatprep.subr.mxu0 0.0
        %7417 = vmatpush1.msra.mxu0 0.0
        %7418 = vmatprep.subr.mxu0 0.0
        %7419 = vmatpush1.msra.mxu0 0.0
        %7420 = vmatprep.subr.mxu0 0.0
        %7421 = vmatpush1.msra.mxu0 0.0
        %7422 = vmatprep.subr.mxu0 0.0
        %7423 = vmatpush1.msra.mxu0 0.0
        %7424 = vmatprep.subr.mxu0 0.0
        %7425 = vmatpush1.msra.mxu0 0.0
        %7426 = vmatprep.subr.mxu0 0.0
        %7427 = vmatpush1.msra.mxu0 0.0
        %7428 = vmatprep.subr.mxu0 0.0
        %7429 = vmatpush1.msra.mxu0 0.0
        %7430 = vmatprep.subr.mxu0 0.0
        %7431 = vmatpush1.msra.mxu0 0.0
        %7432 = vmatprep.subr.mxu0 0.0
        %7433 = vmatpush1.msra.mxu0 0.0
        %7434 = vmatprep.subr.mxu0 0.0
        %7435 = vmatpush1.msra.mxu0 0.0
        %7436 = vmatprep.subr.mxu0 0.0
        %7437 = vmatpush1.msra.mxu0 0.0
        %7438 = vmatprep.subr.mxu0 0.0
        %7439 = vmatpush1.msra.mxu0 0.0
        %7440 = vmatprep.subr.mxu0 0.0
        %7441 = vmatpush1.msra.mxu0 0.0
        %7442 = vmatprep.subr.mxu0 0.0
        %7443 = vmatpush1.msra.mxu0 0.0
        %7444 = vmatprep.subr.mxu0 0.0
        %7445 = vmatpush1.msra.mxu0 0.0
        %7446 = vmatprep.subr.mxu0 0.0
        %7447 = vmatpush1.msra.mxu0 0.0
        %7448 = vmatprep.subr.mxu0 0.0
        %7449 = vmatpush1.msra.mxu0 0.0
        %7450 = vmatprep.subr.mxu0 0.0
        %7451 = vmatpush1.msra.mxu0 0.0
        %7452 = vmatprep.subr.mxu0 0.0
        %7453 = vmatpush1.msra.mxu0 0.0
        %7454 = vmatprep.mubr.f32.mxu0 0.0
        %7455 = vmatmul.mubr.f32.gmra.mrb[0].mxu0 %v7383
        %v7456 = vpop.f32.mrb[0].mxu0
        %v7457 = vadd.f32 0.0, %v7456
        %v7458 = vpop.f32.mrb[0].mxu0
        %7459 = vmatprep.mubr.f32.mxu0 0.0
        %7460 = vmatmul.mubr.f32.gmra.mrb[0].mxu0 %v7386
        %v7461 = vpop.f32.mrb[0].mxu0
        %v7462 = vadd.f32 0.0, %v7461
        %v7463 = vpop.f32.mrb[0].mxu0
        %7464 = vdwg.mxu0
        %7467 = vrot.lane.b32.xlu0 %v7457, 24
        %v7468 = vpop.permute.xlu0 %7467
        %7469 = vrot.lane.b32.xlu0 %v7462, 24
        %v7470 = vpop.permute.xlu0 %7469
        %7473 = vst.msk [vmem:[#allocation3] sm:$0xff] %vm6006, %v7468
        %7474 = vst.msk [vmem:[#allocation3 + $0x8] sm:$0xf] %vm3365, %v7470
        %v7475 = vld [vmem:[#allocation3] sm:$0xff]
        %v7476 = vld [vmem:[#allocation3 + $0x8] sm:$0xf]
        %v7477 = vld [vmem:[%s119] sm:$0xff]
        %v7478 = vld [vmem:[%s119 + $0x8] sm:$0xff]
        %v7479 = vld [vmem:[%s119 + $0x10] sm:$0xff]
        %v7480 = vld [vmem:[%s119 + $0x18] sm:$0xff]
        %v7481 = vld [vmem:[#allocation33] sm:$0x1]
        %v7483 = vlaneseq
        %v7484 = vshrl.u32 %v7483, 7
        %v7485 = vsub.s32 0, %v7484
        %v7486 = vrot.slane %v7481, %v7485
        %v7489 = vsel %vm2602, %v7475, 0
        %v7492 = vsel %vm2602, %v7476, 0
        %7494 = vmatprep.subr.mxu0 0.0
        %7495 = vmatpush1.msra.mxu0 %v7477
        %7496 = vmatprep.subr.mxu0 0.0
        %7497 = vmatpush1.msra.mxu0 %v7478
        %7498 = vmatprep.subr.mxu0 0.0
        %7499 = vmatpush1.msra.mxu0 %v7479
        %7500 = vmatprep.subr.mxu0 0.0
        %7501 = vmatpush1.msra.mxu0 %v7480
        %7502 = vmatprep.subr.mxu0 0.0
        %7503 = vmatpush1.msra.mxu0 0.0
        %7504 = vmatprep.subr.mxu0 0.0
        %7505 = vmatpush1.msra.mxu0 0.0
        %7506 = vmatprep.subr.mxu0 0.0
        %7507 = vmatpush1.msra.mxu0 0.0
        %7508 = vmatprep.subr.mxu0 0.0
        %7509 = vmatpush1.msra.mxu0 0.0
        %7510 = vmatprep.subr.mxu0 0.0
        %7511 = vmatpush1.msra.mxu0 0.0
        %7512 = vmatprep.subr.mxu0 0.0
        %7513 = vmatpush1.msra.mxu0 0.0
        %7514 = vmatprep.subr.mxu0 0.0
        %7515 = vmatpush1.msra.mxu0 0.0
        %7516 = vmatprep.subr.mxu0 0.0
        %7517 = vmatpush1.msra.mxu0 0.0
        %7518 = vmatprep.subr.mxu0 0.0
        %7519 = vmatpush1.msra.mxu0 0.0
        %7520 = vmatprep.subr.mxu0 0.0
        %7521 = vmatpush1.msra.mxu0 0.0
        %7522 = vmatprep.subr.mxu0 0.0
        %7523 = vmatpush1.msra.mxu0 0.0
        %7524 = vmatprep.subr.mxu0 0.0
        %7525 = vmatpush1.msra.mxu0 0.0
        %7526 = vmatprep.subr.mxu0 0.0
        %7527 = vmatpush1.msra.mxu0 0.0
        %7528 = vmatprep.subr.mxu0 0.0
        %7529 = vmatpush1.msra.mxu0 0.0
        %7530 = vmatprep.subr.mxu0 0.0
        %7531 = vmatpush1.msra.mxu0 0.0
        %7532 = vmatprep.subr.mxu0 0.0
        %7533 = vmatpush1.msra.mxu0 0.0
        %7534 = vmatprep.subr.mxu0 0.0
        %7535 = vmatpush1.msra.mxu0 0.0
        %7536 = vmatprep.subr.mxu0 0.0
        %7537 = vmatpush1.msra.mxu0 0.0
        %7538 = vmatprep.subr.mxu0 0.0
        %7539 = vmatpush1.msra.mxu0 0.0
        %7540 = vmatprep.subr.mxu0 0.0
        %7541 = vmatpush1.msra.mxu0 0.0
        %7542 = vmatprep.subr.mxu0 0.0
        %7543 = vmatpush1.msra.mxu0 0.0
        %7544 = vmatprep.subr.mxu0 0.0
        %7545 = vmatpush1.msra.mxu0 0.0
        %7546 = vmatprep.subr.mxu0 0.0
        %7547 = vmatpush1.msra.mxu0 0.0
        %7548 = vmatprep.subr.mxu0 0.0
        %7549 = vmatpush1.msra.mxu0 0.0
        %7550 = vmatprep.subr.mxu0 0.0
        %7551 = vmatpush1.msra.mxu0 0.0
        %7552 = vmatprep.subr.mxu0 0.0
        %7553 = vmatpush1.msra.mxu0 0.0
        %7554 = vmatprep.subr.mxu0 0.0
        %7555 = vmatpush1.msra.mxu0 0.0
        %7556 = vmatprep.subr.mxu0 0.0
        %7557 = vmatpush1.msra.mxu0 0.0
        %7558 = vmatprep.mubr.f32.mxu0 0.0
        %7559 = vmatmul.mubr.f32.gmra.mrb[0].mxu0 %v7489
        %v7560 = vpop.f32.mrb[0].mxu0
        %v7561 = vadd.f32 %v7486, %v7560
        %v7562 = vpop.f32.mrb[0].mxu0
        %7563 = vmatprep.mubr.f32.mxu0 0.0
        %7564 = vmatmul.mubr.f32.gmra.mrb[0].mxu0 %v7492
        %v7565 = vpop.f32.mrb[0].mxu0
        %v7566 = vadd.f32 %v7486, %v7565
        %v7567 = vpop.f32.mrb[0].mxu0
        %7568 = vdwg.mxu0
        %v7569 = vadd.f32 %v6359, %v7561
        %v7570 = vadd.f32 %v6360, %v7566
        %v7571 = vld [vmem:[#allocation35] sm:$0x1]
        %v7572 = vld [vmem:[#allocation36] sm:$0x1]
        %v7573 = vsel %vm2602, %v7569, 0.0
        %7574 = vadd.xlane.f32.xlu0 %v7573
        %v7575 = vpop.xlane.xlu0 %7574
        %v7576 = vsel %vm2562, %v7570, 0.0
        %7577 = vadd.xlane.f32.xlu0 %v7576
        %v7578 = vpop.xlane.xlu0 %7577
        %v7579 = vmul.f32 %v7575, %v2566
        %v7580 = vmul.f32 %v7578, %v2566
        %v7581 = vsub.f32 %v7569, %v7579
        %v7582 = vsub.f32 %v7570, %v7580
        %v7583 = vmul.f32 %v7581, %v7581
        %v7584 = vmul.f32 %v7582, %v7582
        %v7585 = vsel %vm2602, %v7583, 0.0
        %7586 = vadd.xlane.f32.xlu0 %v7585
        %v7587 = vpop.xlane.xlu0 %7586
        %v7588 = vsel %vm2562, %v7584, 0.0
        %7589 = vadd.xlane.f32.xlu0 %v7588
        %v7590 = vpop.xlane.xlu0 %7589
        %v7591 = vmul.f32 %v7587, %v2566
        %v7592 = vmul.f32 %v7590, %v2566
        %v7593 = vadd.f32 %v7591, 1e-05
        %v7594 = vadd.f32 %v7592, 1e-05
        %v7595 = vrsqrt.pop %v7593
        %v7596 = vrsqrt.pop %v7594
        %v7597 = vmul.f32 %v7581, %v7595
        %v7598 = vmul.f32 %v7582, %v7596
        %v7600 = vlaneseq
        %v7601 = vshrl.u32 %v7600, 7
        %v7602 = vsub.s32 0, %v7601
        %v7603 = vrot.slane %v7571, %v7602
        %v7605 = vmul.f32 %v7597, %v7603
        %v7606 = vmul.f32 %v7598, %v7603
        %v7608 = vlaneseq
        %v7609 = vshrl.u32 %v7608, 7
        %v7610 = vsub.s32 0, %v7609
        %v7611 = vrot.slane %v7572, %v7610
        %v7613 = vadd.f32 %v7605, %v7611
        %v7614 = vadd.f32 %v7606, %v7611
        %v7615 = vld [vmem:[%s127] sm:$0xff]
        %v7616 = vld [vmem:[%s127 + $0x8] sm:$0xff]
        %v7617 = vld [vmem:[%s127 + $0x10] sm:$0xff]
        %v7618 = vld [vmem:[%s127 + $0x18] sm:$0xff]
        %v7619 = vld [vmem:[#allocation38] sm:$0x1]
        %v7621 = vlaneseq
        %v7622 = vshrl.u32 %v7621, 7
        %v7623 = vsub.s32 0, %v7622
        %v7624 = vrot.slane %v7619, %v7623
        %v7627 = vsel %vm2602, %v7613, 0
        %v7630 = vsel %vm2602, %v7614, 0
        %7632 = vmatprep.subr.mxu0 0.0
        %7633 = vmatpush1.msra.mxu0 %v7615
        %7634 = vmatprep.subr.mxu0 0.0
        %7635 = vmatpush1.msra.mxu0 %v7616
        %7636 = vmatprep.subr.mxu0 0.0
        %7637 = vmatpush1.msra.mxu0 %v7617
        %7638 = vmatprep.subr.mxu0 0.0
        %7639 = vmatpush1.msra.mxu0 %v7618
        %7640 = vmatprep.subr.mxu0 0.0
        %7641 = vmatpush1.msra.mxu0 0.0
        %7642 = vmatprep.subr.mxu0 0.0
        %7643 = vmatpush1.msra.mxu0 0.0
        %7644 = vmatprep.subr.mxu0 0.0
        %7645 = vmatpush1.msra.mxu0 0.0
        %7646 = vmatprep.subr.mxu0 0.0
        %7647 = vmatpush1.msra.mxu0 0.0
        %7648 = vmatprep.subr.mxu0 0.0
        %7649 = vmatpush1.msra.mxu0 0.0
        %7650 = vmatprep.subr.mxu0 0.0
        %7651 = vmatpush1.msra.mxu0 0.0
        %7652 = vmatprep.subr.mxu0 0.0
        %7653 = vmatpush1.msra.mxu0 0.0
        %7654 = vmatprep.subr.mxu0 0.0
        %7655 = vmatpush1.msra.mxu0 0.0
        %7656 = vmatprep.subr.mxu0 0.0
        %7657 = vmatpush1.msra.mxu0 0.0
        %7658 = vmatprep.subr.mxu0 0.0
        %7659 = vmatpush1.msra.mxu0 0.0
        %7660 = vmatprep.subr.mxu0 0.0
        %7661 = vmatpush1.msra.mxu0 0.0
        %7662 = vmatprep.subr.mxu0 0.0
        %7663 = vmatpush1.msra.mxu0 0.0
        %7664 = vmatprep.subr.mxu0 0.0
        %7665 = vmatpush1.msra.mxu0 0.0
        %7666 = vmatprep.subr.mxu0 0.0
        %7667 = vmatpush1.msra.mxu0 0.0
        %7668 = vmatprep.subr.mxu0 0.0
        %7669 = vmatpush1.msra.mxu0 0.0
        %7670 = vmatprep.subr.mxu0 0.0
        %7671 = vmatpush1.msra.mxu0 0.0
        %7672 = vmatprep.subr.mxu0 0.0
        %7673 = vmatpush1.msra.mxu0 0.0
        %7674 = vmatprep.subr.mxu0 0.0
        %7675 = vmatpush1.msra.mxu0 0.0
        %7676 = vmatprep.subr.mxu0 0.0
        %7677 = vmatpush1.msra.mxu0 0.0
        %7678 = vmatprep.subr.mxu0 0.0
        %7679 = vmatpush1.msra.mxu0 0.0
        %7680 = vmatprep.subr.mxu0 0.0
        %7681 = vmatpush1.msra.mxu0 0.0
        %7682 = vmatprep.subr.mxu0 0.0
        %7683 = vmatpush1.msra.mxu0 0.0
        %7684 = vmatprep.subr.mxu0 0.0
        %7685 = vmatpush1.msra.mxu0 0.0
        %7686 = vmatprep.subr.mxu0 0.0
        %7687 = vmatpush1.msra.mxu0 0.0
        %7688 = vmatprep.subr.mxu0 0.0
        %7689 = vmatpush1.msra.mxu0 0.0
        %7690 = vmatprep.subr.mxu0 0.0
        %7691 = vmatpush1.msra.mxu0 0.0
        %7692 = vmatprep.subr.mxu0 0.0
        %7693 = vmatpush1.msra.mxu0 0.0
        %7694 = vmatprep.subr.mxu0 0.0
        %7695 = vmatpush1.msra.mxu0 0.0
        %7696 = vmatprep.mubr.f32.mxu0 0.0
        %7697 = vmatmul.mubr.f32.gmra.mrb[0].mxu0 %v7627
        %v7698 = vpop.f32.mrb[0].mxu0
        %v7699 = vadd.f32 %v7624, %v7698
        %v7700 = vpop.f32.mrb[0].mxu0
        %7701 = vmatprep.mubr.f32.mxu0 0.0
        %7702 = vmatmul.mubr.f32.gmra.mrb[0].mxu0 %v7630
        %v7703 = vpop.f32.mrb[0].mxu0
        %v7704 = vadd.f32 %v7624, %v7703
        %v7705 = vpop.f32.mrb[0].mxu0
        %7706 = vdwg.mxu0
        %v7707 = vmul.f32 %v7699, 0.5
        %v7708 = vmul.f32 %v7704, 0.5
        %v7709 = vmul.f32 %v7699, 0.044715
        %v7710 = vmul.f32 %v7704, 0.044715
        %v7711 = vmul.f32 %v7709, %v7699
        %v7712 = vmul.f32 %v7710, %v7704
        %v7713 = vmul.f32 %v7711, %v7699
        %v7714 = vmul.f32 %v7712, %v7704
        %v7715 = vadd.f32 %v7699, %v7713
        %v7716 = vadd.f32 %v7704, %v7714
        %v7717 = vmul.f32 %v7715, 0.7978846
        %v7718 = vmul.f32 %v7716, 0.7978846
        %v7719 = vtanh.pop %v7717
        %v7720 = vtanh.pop %v7718
        %v7721 = vadd.f32 %v7719, 1.0
        %v7722 = vadd.f32 %v7720, 1.0
        %v7723 = vmul.f32 %v7707, %v7721
        %v7724 = vmul.f32 %v7708, %v7722
        %v7725 = vld [vmem:[%s131] sm:$0xff]
        %v7726 = vld [vmem:[%s131 + $0x8] sm:$0xff]
        %v7727 = vld [vmem:[%s131 + $0x10] sm:$0xff]
        %v7728 = vld [vmem:[%s131 + $0x18] sm:$0xff]
        %v7729 = vld [vmem:[%s131 + $0x20] sm:$0xff]
        %v7730 = vld [vmem:[%s131 + $0x28] sm:$0xff]
        %v7731 = vld [vmem:[%s131 + $0x30] sm:$0xff]
        %v7732 = vld [vmem:[%s131 + $0x38] sm:$0xff]
        %v7733 = vld [vmem:[%s131 + $0x40] sm:$0xff]
        %v7734 = vld [vmem:[%s131 + $0x48] sm:$0xff]
        %v7735 = vld [vmem:[%s131 + $0x50] sm:$0xff]
        %v7736 = vld [vmem:[%s131 + $0x58] sm:$0xff]
        %v7737 = vld [vmem:[%s131 + $0x60] sm:$0xff]
        %v7738 = vld [vmem:[%s131 + $0x68] sm:$0xff]
        %v7739 = vld [vmem:[%s131 + $0x70] sm:$0xff]
        %v7740 = vld [vmem:[%s131 + $0x78] sm:$0xff]
        %v7741 = vld [vmem:[#allocation39] sm:$0x1]
        %v7743 = vlaneseq
        %v7744 = vshrl.u32 %v7743, 7
        %v7745 = vsub.s32 0, %v7744
        %v7746 = vrot.slane %v7741, %v7745
        %7748 = vmatprep.subr.mxu0 0.0
        %7749 = vmatpush1.msra.mxu0 %v7725
        %7750 = vmatprep.subr.mxu0 0.0
        %7751 = vmatpush1.msra.mxu0 %v7726
        %7752 = vmatprep.subr.mxu0 0.0
        %7753 = vmatpush1.msra.mxu0 %v7727
        %7754 = vmatprep.subr.mxu0 0.0
        %7755 = vmatpush1.msra.mxu0 %v7728
        %7756 = vmatprep.subr.mxu0 0.0
        %7757 = vmatpush1.msra.mxu0 %v7729
        %7758 = vmatprep.subr.mxu0 0.0
        %7759 = vmatpush1.msra.mxu0 %v7730
        %7760 = vmatprep.subr.mxu0 0.0
        %7761 = vmatpush1.msra.mxu0 %v7731
        %7762 = vmatprep.subr.mxu0 0.0
        %7763 = vmatpush1.msra.mxu0 %v7732
        %7764 = vmatprep.subr.mxu0 0.0
        %7765 = vmatpush1.msra.mxu0 %v7733
        %7766 = vmatprep.subr.mxu0 0.0
        %7767 = vmatpush1.msra.mxu0 %v7734
        %7768 = vmatprep.subr.mxu0 0.0
        %7769 = vmatpush1.msra.mxu0 %v7735
        %7770 = vmatprep.subr.mxu0 0.0
        %7771 = vmatpush1.msra.mxu0 %v7736
        %7772 = vmatprep.subr.mxu0 0.0
        %7773 = vmatpush1.msra.mxu0 %v7737
        %7774 = vmatprep.subr.mxu0 0.0
        %7775 = vmatpush1.msra.mxu0 %v7738
        %7776 = vmatprep.subr.mxu0 0.0
        %7777 = vmatpush1.msra.mxu0 %v7739
        %7778 = vmatprep.subr.mxu0 0.0
        %7779 = vmatpush1.msra.mxu0 %v7740
        %7780 = vmatprep.subr.mxu0 0.0
        %7781 = vmatpush1.msra.mxu0 0.0
        %7782 = vmatprep.subr.mxu0 0.0
        %7783 = vmatpush1.msra.mxu0 0.0
        %7784 = vmatprep.subr.mxu0 0.0
        %7785 = vmatpush1.msra.mxu0 0.0
        %7786 = vmatprep.subr.mxu0 0.0
        %7787 = vmatpush1.msra.mxu0 0.0
        %7788 = vmatprep.subr.mxu0 0.0
        %7789 = vmatpush1.msra.mxu0 0.0
        %7790 = vmatprep.subr.mxu0 0.0
        %7791 = vmatpush1.msra.mxu0 0.0
        %7792 = vmatprep.subr.mxu0 0.0
        %7793 = vmatpush1.msra.mxu0 0.0
        %7794 = vmatprep.subr.mxu0 0.0
        %7795 = vmatpush1.msra.mxu0 0.0
        %7796 = vmatprep.subr.mxu0 0.0
        %7797 = vmatpush1.msra.mxu0 0.0
        %7798 = vmatprep.subr.mxu0 0.0
        %7799 = vmatpush1.msra.mxu0 0.0
        %7800 = vmatprep.subr.mxu0 0.0
        %7801 = vmatpush1.msra.mxu0 0.0
        %7802 = vmatprep.subr.mxu0 0.0
        %7803 = vmatpush1.msra.mxu0 0.0
        %7804 = vmatprep.subr.mxu0 0.0
        %7805 = vmatpush1.msra.mxu0 0.0
        %7806 = vmatprep.subr.mxu0 0.0
        %7807 = vmatpush1.msra.mxu0 0.0
        %7808 = vmatprep.subr.mxu0 0.0
        %7809 = vmatpush1.msra.mxu0 0.0
        %7810 = vmatprep.subr.mxu0 0.0
        %7811 = vmatpush1.msra.mxu0 0.0
        %7812 = vmatprep.mubr.f32.mxu0 0.0
        %7813 = vmatmul.mubr.f32.gmra.mrb[0].mxu0 %v7723
        %v7814 = vpop.f32.mrb[0].mxu0
        %v7815 = vadd.f32 %v7746, %v7814
        %v7816 = vpop.f32.mrb[0].mxu0
        %7817 = vmatprep.mubr.f32.mxu0 0.0
        %7818 = vmatmul.mubr.f32.gmra.mrb[0].mxu0 %v7724
        %v7819 = vpop.f32.mrb[0].mxu0
        %v7820 = vadd.f32 %v7746, %v7819
        %v7821 = vpop.f32.mrb[0].mxu0
        %7822 = vdwg.mxu0
        %v7823 = vadd.f32 %v7569, %v7815
        %v7824 = vadd.f32 %v7570, %v7820
        %v7825 = vld [vmem:[#allocation41] sm:$0x1]
        %v7826 = vld [vmem:[#allocation42] sm:$0x1]
        %v7827 = vsel %vm2602, %v7823, 0.0
        %7828 = vadd.xlane.f32.xlu0 %v7827
        %v7829 = vpop.xlane.xlu0 %7828
        %v7830 = vsel %vm2562, %v7824, 0.0
        %7831 = vadd.xlane.f32.xlu0 %v7830
        %v7832 = vpop.xlane.xlu0 %7831
        %v7833 = vmul.f32 %v7829, %v2566
        %v7834 = vmul.f32 %v7832, %v2566
        %v7835 = vsub.f32 %v7823, %v7833
        %v7836 = vsub.f32 %v7824, %v7834
        %v7837 = vmul.f32 %v7835, %v7835
        %v7838 = vmul.f32 %v7836, %v7836
        %v7839 = vsel %vm2602, %v7837, 0.0
        %7840 = vadd.xlane.f32.xlu0 %v7839
        %v7841 = vpop.xlane.xlu0 %7840
        %v7842 = vsel %vm2562, %v7838, 0.0
        %7843 = vadd.xlane.f32.xlu0 %v7842
        %v7844 = vpop.xlane.xlu0 %7843
        %v7845 = vmul.f32 %v7841, %v2566
        %v7846 = vmul.f32 %v7844, %v2566
        %v7847 = vadd.f32 %v7845, 1e-05
        %v7848 = vadd.f32 %v7846, 1e-05
        %v7849 = vrsqrt.pop %v7847
        %v7850 = vrsqrt.pop %v7848
        %v7851 = vmul.f32 %v7835, %v7849
        %v7852 = vmul.f32 %v7836, %v7850
        %v7854 = vlaneseq
        %v7855 = vshrl.u32 %v7854, 7
        %v7856 = vsub.s32 0, %v7855
        %v7857 = vrot.slane %v7825, %v7856
        %v7859 = vmul.f32 %v7851, %v7857
        %v7860 = vmul.f32 %v7852, %v7857
        %v7862 = vlaneseq
        %v7863 = vshrl.u32 %v7862, 7
        %v7864 = vsub.s32 0, %v7863
        %v7865 = vrot.slane %v7826, %v7864
        %v7867 = vadd.f32 %v7859, %v7865
        %v7868 = vadd.f32 %v7860, %v7865
        %v7871 = vrot.slane %v7867, 4
        %v7872 = vrot.slane %v7868, 4
        %v7873 = vsel %vm2773, %v7871, %v7872
        %v7875 = vsel %vm2773, %v6361, %v7871
        %v7876 = vld [vmem:[%s139] sm:$0xff]
        %v7877 = vld [vmem:[%s139 + $0x8] sm:$0xff]
        %v7878 = vld [vmem:[%s139 + $0x10] sm:$0xff]
        %v7879 = vld [vmem:[%s139 + $0x18] sm:$0xff]
        %v7880 = vld [vmem:[#allocation44] sm:$0x1]
        %v7882 = vlaneseq
        %v7883 = vshrl.u32 %v7882, 7
        %v7884 = vsub.s32 0, %v7883
        %v7885 = vrot.slane %v7880, %v7884
        %v7888 = vsel %vm2602, %v7875, 0
        %v7890 = vsel %vm2602, %v7873, 0
        %7892 = vmatprep.subr.mxu0 0.0
        %7893 = vmatpush1.msra.mxu0 %v7876
        %7894 = vmatprep.subr.mxu0 0.0
        %7895 = vmatpush1.msra.mxu0 %v7877
        %7896 = vmatprep.subr.mxu0 0.0
        %7897 = vmatpush1.msra.mxu0 %v7878
        %7898 = vmatprep.subr.mxu0 0.0
        %7899 = vmatpush1.msra.mxu0 %v7879
        %7900 = vmatprep.subr.mxu0 0.0
        %7901 = vmatpush1.msra.mxu0 0.0
        %7902 = vmatprep.subr.mxu0 0.0
        %7903 = vmatpush1.msra.mxu0 0.0
        %7904 = vmatprep.subr.mxu0 0.0
        %7905 = vmatpush1.msra.mxu0 0.0
        %7906 = vmatprep.subr.mxu0 0.0
        %7907 = vmatpush1.msra.mxu0 0.0
        %7908 = vmatprep.subr.mxu0 0.0
        %7909 = vmatpush1.msra.mxu0 0.0
        %7910 = vmatprep.subr.mxu0 0.0
        %7911 = vmatpush1.msra.mxu0 0.0
        %7912 = vmatprep.subr.mxu0 0.0
        %7913 = vmatpush1.msra.mxu0 0.0
        %7914 = vmatprep.subr.mxu0 0.0
        %7915 = vmatpush1.msra.mxu0 0.0
        %7916 = vmatprep.subr.mxu0 0.0
        %7917 = vmatpush1.msra.mxu0 0.0
        %7918 = vmatprep.subr.mxu0 0.0
        %7919 = vmatpush1.msra.mxu0 0.0
        %7920 = vmatprep.subr.mxu0 0.0
        %7921 = vmatpush1.msra.mxu0 0.0
        %7922 = vmatprep.subr.mxu0 0.0
        %7923 = vmatpush1.msra.mxu0 0.0
        %7924 = vmatprep.subr.mxu0 0.0
        %7925 = vmatpush1.msra.mxu0 0.0
        %7926 = vmatprep.subr.mxu0 0.0
        %7927 = vmatpush1.msra.mxu0 0.0
        %7928 = vmatprep.subr.mxu0 0.0
        %7929 = vmatpush1.msra.mxu0 0.0
        %7930 = vmatprep.subr.mxu0 0.0
        %7931 = vmatpush1.msra.mxu0 0.0
        %7932 = vmatprep.subr.mxu0 0.0
        %7933 = vmatpush1.msra.mxu0 0.0
        %7934 = vmatprep.subr.mxu0 0.0
        %7935 = vmatpush1.msra.mxu0 0.0
        %7936 = vmatprep.subr.mxu0 0.0
        %7937 = vmatpush1.msra.mxu0 0.0
        %7938 = vmatprep.subr.mxu0 0.0
        %7939 = vmatpush1.msra.mxu0 0.0
        %7940 = vmatprep.subr.mxu0 0.0
        %7941 = vmatpush1.msra.mxu0 0.0
        %7942 = vmatprep.subr.mxu0 0.0
        %7943 = vmatpush1.msra.mxu0 0.0
        %7944 = vmatprep.subr.mxu0 0.0
        %7945 = vmatpush1.msra.mxu0 0.0
        %7946 = vmatprep.subr.mxu0 0.0
        %7947 = vmatpush1.msra.mxu0 0.0
        %7948 = vmatprep.subr.mxu0 0.0
        %7949 = vmatpush1.msra.mxu0 0.0
        %7950 = vmatprep.subr.mxu0 0.0
        %7951 = vmatpush1.msra.mxu0 0.0
        %7952 = vmatprep.subr.mxu0 0.0
        %7953 = vmatpush1.msra.mxu0 0.0
        %7954 = vmatprep.subr.mxu0 0.0
        %7955 = vmatpush1.msra.mxu0 0.0
        %7956 = vmatprep.mubr.f32.mxu0 0.0
        %7957 = vmatmul.mubr.f32.gmra.mrb[0].mxu0 %v7888
        %v7958 = vpop.f32.mrb[0].mxu0
        %v7959 = vadd.f32 %v7885, %v7958
        %v7960 = vpop.f32.mrb[0].mxu0
        %7961 = vmatprep.mubr.f32.mxu0 0.0
        %7962 = vmatmul.mubr.f32.gmra.mrb[0].mxu0 %v7890
        %v7963 = vpop.f32.mrb[0].mxu0
        %v7964 = vadd.f32 %v7885, %v7963
        %v7965 = vpop.f32.mrb[0].mxu0
        %7966 = vdwg.mxu0
        %7967 = vst.msk [vmem:[%s2467] sm:$0xff] %vm2484, %v7959
        %7968 = vst.msk [vmem:[%s2467 + $0x8] sm:$0xff] %vm2484, %v7964
        %p7969 = scmp.lt.s32.totalorder %s168, 1
        %s7970 = scalar_select %p7969, %s168, 1
        %s7971 = smul.addr %s7970, 2
        %s7972 = smul.addr %s7971, 8
        %s7973 = scalar_lea.vmem %s143, %s7972
        // Predicated region
        $region413: #{mae_forward.1} parent=303 // pred_check
          %p7974 = pneg %p1697
        $region414: #{mae_forward.1} parent=303 // pred_check_branch
          %7976 = sbr.rel (%p7974) target = $region416
        $region415: #{mae_forward.1} parent=303 // pred_region
          _
        $region416: #{mae_forward.1} parent=303 // pred_fallthru
          _
      $region304: #{mae_forward.1} parent=5 // pred_fallthru
        _
      %p7977 = scmp.le.s32.totalorder 2, %s163
      // Predicated region
      $region417: #{mae_forward.1} parent=5 // pred_check
        %p7978 = pneg %p7977
      $region418: #{mae_forward.1} parent=5 // pred_check_branch
        %7980 = sbr.rel (%p7978) target = $region420
      $region419: #{mae_forward.1} parent=5 // pred_region
        %s7981 = ssub.s32 %s163, 2
        // Predicated region
        $region421: #{mae_forward.1} parent=419 // pred_check
          %p7982 = pneg %p1703
        $region422: #{mae_forward.1} parent=419 // pred_check_branch
          %7984 = sbr.rel (%p7982) target = $region424
        $region423: #{mae_forward.1} parent=419 // pred_region
          %p7985 = scmp.lt.s32.totalorder %s169, 1
          %s7986 = scalar_select %p7985, %s169, 1
          %s7987 = smul.addr %s7986, 2
          %s7988 = smul.addr %s7987, 8
          %s7989 = scalar_lea.vmem %s143, %s7988
        $region424: #{mae_forward.1} parent=419 // pred_fallthru
          _
      $region420: #{mae_forward.1} parent=5 // pred_fallthru
        _
    $region6: #{mae_forward.1} parent=1 // loop_footer
      %s167 = sadd.s32 1, %s163
    $region7: #{mae_forward.1} parent=1 // loop_footer_branch
      %162 = sbr.rel target = $region3
    $region8: #{mae_forward.1} parent=1 // loop_exit
      _
    %7990 = vsyncpa [#allocation5], 1
    %s7991 = scalar_lea.sflag [#allocation5], 1
    %7992 = vsyncpa %s7991, 1
    %7993 = vsyncpa [#allocation7], 1
    %7994 = vsyncpa [#allocation10], 1
    %7995 = vsyncpa [#allocation13], 1
    %7996 = vsyncpa [#allocation16], 1
    %7997 = vsyncpa [#allocation19], 1
    %7998 = vsyncpa [#allocation22], 1
    %7999 = vsyncpa [#allocation25], 1
    %8000 = vsyncpa [#allocation28], 1
    %8001 = vsyncpa [#allocation31], 1
    %8002 = vsyncpa [#allocation34], 1
    %8003 = vsyncpa [#allocation37], 1
    %8004 = vsyncpa [#allocation40], 1
    %8005 = vsyncpa [#allocation43], 1

</llo_original>
